<compile_context>
chip_gen: v7x
topology: tpu7x:2x2x1
jax: 0.10.0
libtpu: 0.0.40
codegen_flags: <defaults>
</compile_context>

<pallas_src>
import functools

import jax
import jax.numpy as jnp
from jax.experimental import pallas as pl
from jax.experimental.pallas import tpu as pltpu


# ---------------------------------------------------------------------------
# Front-end weight-slab layout (shared by the packer and the kernel).
# All segments are stored with `channels` columns (narrow weights zero-padded),
# so the whole front end is a single (rows, C) array = a single DMA.
# ---------------------------------------------------------------------------
def _front_layout(n_enc, channels):
    C = channels
    segs = {}
    off = 0

    def add(name, rows):
        nonlocal off
        segs[name] = (off, rows)
        off += rows

    add("in_proj", n_enc)   # input_projection.weight^T                  (E, C)
    add("pa_x", n_enc)      # output_projection_a.weight^T[:E]           (E, C)
    add("pa_a", C)          # output_projection_a.weight^T[E:]  (pad ->  (C, C))
    add("pb_x", n_enc)      # output_projection_b.weight^T[:E]           (E, C)
    add("pb_a", C)          # output_projection_b tgt_a rows    (pad ->  (C, C))
    add("pb_b", C)          # output_projection_b tgt_b rows    (pad ->  (C, C))
    add("fc1", C)           # fc1.weight^T                      (C, 64 -> C)
    add("fc2", 64)          # fc2.weight^T                      (64, n_out -> C)
    add("fc3", 64)          # fc3.weight^T                      (64, 1 -> C)
    total = ((off + 7) // 8) * 8
    return segs, total


# ------------------------------ fused kernel --------------------------------
def _spec2hrd_kernel(x_ref, fw_ref, fb_ref, sel_ref, ew1_ref, ew2_ref, eb_ref,
                     o_ref, *, n_enc, channels, n_heads, n_layers):
    C, H = channels, n_heads
    dh = C // H
    f32 = jnp.float32
    segs, _ = _front_layout(n_enc, C)

    def seg(name, cols=None):
        start, rows = segs[name]
        w = fw_ref[start:start + rows, :]
        return w if cols is None else w[:, :cols]

    def mm(a, w):
        # weights may be bf16: cast the activation, accumulate in f32.
        return jnp.dot(a.astype(w.dtype), w, preferred_element_type=f32)

    def layernorm(x, g, b, eps=1e-5):
        # one-pass LN: two independent reductions, var = E[x^2] - mu^2.
        mu = jnp.mean(x, axis=-1, keepdims=True)
        m2 = jnp.mean(x * x, axis=-1, keepdims=True)
        return (x - mu) * jax.lax.rsqrt(m2 - mu * mu + eps) * g + b

    fbv = fb_ref[...]                                   # (8, C) f32
    pos0, b_in, b_pa, b_pb = fbv[0:1], fbv[1:2], fbv[2:3], fbv[3:4]
    b_fc1 = fbv[4:5, 0:64]
    b_fc2, b_fc3 = fbv[5:6], fbv[6:7]

    x2d = x_ref[0].astype(f32)                          # (S, n_enc)

    def attention(h, wqkv, bqkv, wo, bo):
        # Single fused QKV matmul (1/sqrt(dh) folded into the q columns).
        qkv = mm(h, wqkv) + bqkv                        # (S, 3C) f32
        q = jnp.stack([qkv[:, i * dh:(i + 1) * dh] for i in range(H)])
        k = jnp.stack([qkv[:, C + i * dh:C + (i + 1) * dh] for i in range(H)])
        v = jnp.stack([qkv[:, 2 * C + i * dh:2 * C + (i + 1) * dh]
                       for i in range(H)])              # each (H, S, dh)
        s = jnp.einsum('hsd,htd->hst', q, k, preferred_element_type=f32)
        s = s - jnp.max(s, axis=-1, keepdims=True)
        p = jnp.exp(s)
        p = p / jnp.sum(p, axis=-1, keepdims=True)      # exact softmax
        ctx = jnp.einsum('hst,htd->hsd', p, v, preferred_element_type=f32)
        # Concatenate heads along lanes -> ONE K=C output-projection matmul.
        ctx2d = jnp.concatenate([ctx[i] for i in range(H)], axis=-1)  # (S, C)
        return mm(ctx2d, wo) + bo

    def encoder_layer(h, layer):
        wrow = ew1_ref[layer]                           # (C, 8C) [Wqkv|Wo|W1]
        w2 = ew2_ref[layer]                             # (4C, C)
        brow = eb_ref[layer]                            # (8, 4C) f32
        wqkv, wo, w1 = wrow[:, :3 * C], wrow[:, 3 * C:4 * C], wrow[:, 4 * C:]
        bqkv, bo = brow[0:1, :3 * C], brow[0:1, 3 * C:]
        b1 = brow[1:2, :]
        b2, g1 = brow[2:3, 0:C], brow[2:3, C:2 * C]
        be1, g2 = brow[2:3, 2 * C:3 * C], brow[2:3, 3 * C:]
        be2 = brow[3:4, 0:C]
        # Post-norm nn.TransformerEncoderLayer (relu FFN, eps=1e-5, no dropout).
        h = layernorm(h + attention(h, wqkv, bqkv, wo, bo), g1, be1)
        ff = jnp.maximum(mm(h, w1) + b1, 0.0)
        ff = mm(ff, w2) + b2
        return layernorm(h + ff, g2, be2)

    def encode(src_start):
        # encode_src / decode_src: + pos-emb(0), shared encoder stack, residual.
        h = src_start + pos0
        for layer in range(n_layers):
            h = encoder_layer(h, layer)
        return h + src_start

    def fc1(h):
        return mm(h, seg("fc1", 64)) + b_fc1            # (S, 64)

    # --- encode_src(x);  tgt_a = fc2(relu(fc1(.))) ---
    src = encode(mm(x2d, seg("in_proj")) + b_in)
    r = jnp.maximum(fc1(src), 0.0)
    tgt_a = mm(r, seg("fc2")) + b_fc2                   # (S, C); cols >= 2 are 0

    # --- decode_src([x | tgt_a]): concat realised as column-split matmuls ---
    out_a = encode(mm(x2d, seg("pa_x")) + mm(tgt_a, seg("pa_a")) + b_pa)
    r = jnp.maximum(fc1(out_a), 0.0)
    tgt_b = mm(r, seg("fc2")) + b_fc2

    # --- decode_src([x | tgt_a | tgt_b]) ---
    out_b = encode(mm(x2d, seg("pb_x")) + mm(tgt_a, seg("pb_a"))
                   + mm(tgt_b, seg("pb_b")) + b_pb)
    r = jnp.maximum(fc1(out_b), 0.0)
    tgt_c = mm(r, seg("fc3")) + b_fc3                   # (S, C); only col 0 live

    # --- [tgt_a | tgt_b | tgt_c] via exact 0/1 selector matmuls, one store ---
    sel = sel_ref[...]                                  # (3C, 5) f32
    out5 = (jnp.dot(tgt_a, sel[0:C], preferred_element_type=f32)
            + jnp.dot(tgt_b, sel[C:2 * C], preferred_element_type=f32)
            + jnp.dot(tgt_c, sel[2 * C:3 * C], preferred_element_type=f32))
    o_ref[0] = out5


# ------------------------------- glue / model --------------------------------
def _forward_grouped(x3, params, n_heads):
    """x3: (G, S, n_enc) — G independent forward passes, one pallas_call."""
    G, S, E = x3.shape
    fw, fb, sel, ew1, ew2, eb = (params[k] for k in
                                 ("fw", "fb", "sel", "ew1", "ew2", "eb"))
    C = fb.shape[1]
    L = ew1.shape[0]
    kernel = functools.partial(_spec2hrd_kernel, n_enc=E, channels=C,
                               n_heads=n_heads, n_layers=L)

    def whole(arr):
        nd = arr.ndim

        def imap(g):
            return (0,) * nd
        return pl.BlockSpec(arr.shape, imap)            # constant block -> one DMA

    return pl.pallas_call(
        kernel,
        grid=(G,),
        out_shape=jax.ShapeDtypeStruct((G, S, 5), jnp.float32),
        in_specs=[pl.BlockSpec((1, S, E), lambda g: (g, 0, 0)),
                  whole(fw), whole(fb), whole(sel),
                  whole(ew1), whole(ew2), whole(eb)],
        out_specs=pl.BlockSpec((1, S, 5), lambda g: (g, 0, 0)),
        compiler_params=pltpu.CompilerParams(
            dimension_semantics=("parallel",)),          # split groups across TCs (v7x)
    )(x3, fw, fb, sel, ew1, ew2, eb)


def spec2hrd_forward(x, params, *, n_heads):
    """x: (B, 1, n_encoder_inputs) — same layout/semantics as the torch module."""
    B, E = x.shape[0], x.shape[-1]
    out = _forward_grouped(x.reshape(1, B, E), params, n_heads)
    return out.reshape(-1, 5)                            # == torch .view(-1, 5)


def spec2hrd_forward_batched(xs, params, *, n_heads):
    """xs: (G, B, 1, n_enc) — G independent forward passes fused in one launch."""
    G, B, E = xs.shape[0], xs.shape[1], xs.shape[-1]
    return _forward_grouped(xs.reshape(G, B, E), params, n_heads)    # (G, B, 5)


def init_params(key, n_enc, n_dec, n_out, channels, n_heads, n_layers,
                weight_dtype=jnp.bfloat16):
    # forward() requires n_decoder_inputs == n_encoder_inputs + n_outputs and
    # 2 * n_outputs + 1 == 5  =>  n_outputs == 2.
    assert n_dec == n_enc + n_out and n_out == 2
    C = channels
    assert C % n_heads == 0 and C >= 64
    dh = C // n_heads
    qk_scale = 1.0 / (dh ** 0.5)

    keys = iter(jax.random.split(key, 1024))

    def w(shape, scale=0.05):
        return scale * jax.random.normal(next(keys), shape, jnp.float32)

    # --- front weight slab: one (rows, C) array, narrow weights zero-padded ---
    segs, total_rows = _front_layout(n_enc, C)
    fw = jnp.zeros((total_rows, C), jnp.float32)

    def put(name, mat):
        nonlocal fw
        start, _ = segs[name]
        r, c = mat.shape
        fw = fw.at[start:start + r, 0:c].set(mat)

    proj_a_w_t = w((n_dec, C))                 # rows: [x | tgt_a]
    proj_b_w_t = w((n_dec + 2, C))             # rows: [x | tgt_a | tgt_b]
    put("in_proj", w((n_enc, C)))
    put("pa_x", proj_a_w_t[:n_enc]); put("pa_a", proj_a_w_t[n_enc:])
    put("pb_x", proj_b_w_t[:n_enc])
    put("pb_a", proj_b_w_t[n_enc:n_enc + n_out])
    put("pb_b", proj_b_w_t[n_enc + n_out:])
    put("fc1", w((C, 64)))
    put("fc2", w((64, n_out)))
    put("fc3", w((64, 1)))

    # --- front bias slab (f32): pos-emb row 0 + all front-end biases ---
    fb = jnp.zeros((8, C), jnp.float32)
    pos_table = w((1024, C))                   # input_pos_embedding; only row 0 used
    fb = fb.at[0, :].set(pos_table[0])
    fb = fb.at[1, :].set(w((C,)))              # input_projection bias
    fb = fb.at[2, :].set(w((C,)))              # output_projection_a bias
    fb = fb.at[3, :].set(w((C,)))              # output_projection_b bias
    fb = fb.at[4, 0:64].set(w((64,)))          # fc1 bias
    fb = fb.at[5, 0:n_out].set(w((n_out,)))    # fc2 bias
    fb = fb.at[6, 0:1].set(w((1,)))            # fc3 bias

    # --- exact 0/1 selector slab placing tgt_a / tgt_b / tgt_c in 5 columns ---
    sel = jnp.zeros((3 * C, 5), jnp.float32)
    sel = sel.at[0:n_out, 0:n_out].set(jnp.eye(n_out))
    sel = sel.at[C:C + n_out, n_out:2 * n_out].set(jnp.eye(n_out))
    sel = sel.at[2 * C, 2 * n_out].set(1.0)

    # --- shared TransformerEncoder stack packed per layer ---
    ew1_list, ew2_list, eb_list = [], [], []
    for _ in range(n_layers):
        wqkv_t = w((C, 3 * C))                 # in_proj^T, cols [q | k | v], head-major
        wqkv_t = wqkv_t.at[:, 0:C].multiply(qk_scale)     # fold 1/sqrt(dh) into q
        wo_t = w((C, C))                       # out_proj^T (concat-head rows)
        w1_t = w((C, 4 * C))
        w2_t = w((4 * C, C))
        bqkv = w((3 * C,))
        bqkv = bqkv.at[0:C].multiply(qk_scale)
        bo, b1, b2 = w((C,)), w((4 * C,)), w((C,))
        g1 = jnp.ones((C,), jnp.float32); be1 = jnp.zeros((C,), jnp.float32)
        g2 = jnp.ones((C,), jnp.float32); be2 = jnp.zeros((C,), jnp.float32)

        ew1_list.append(jnp.concatenate([wqkv_t, wo_t, w1_t], axis=1))  # (C, 8C)
        ew2_list.append(w2_t)                                           # (4C, C)
        eb = jnp.zeros((8, 4 * C), jnp.float32)
        eb = eb.at[0, 0:3 * C].set(bqkv)
        eb = eb.at[0, 3 * C:4 * C].set(bo)
        eb = eb.at[1, :].set(b1)
        eb = eb.at[2, 0:C].set(b2)
        eb = eb.at[2, C:2 * C].set(g1)
        eb = eb.at[2, 2 * C:3 * C].set(be1)
        eb = eb.at[2, 3 * C:4 * C].set(g2)
        eb = eb.at[3, 0:C].set(be2)
        eb_list.append(eb)

    return {
        "fw": fw.astype(weight_dtype),                   # bf16 matmul weights
        "fb": fb,                                        # f32 biases / pos-emb
        "sel": sel,                                      # f32 exact selectors
        "ew1": jnp.stack(ew1_list).astype(weight_dtype),
        "ew2": jnp.stack(ew2_list).astype(weight_dtype),
        "eb": jnp.stack(eb_list),                        # f32 biases / LN params
    }


if __name__ == "__main__":
    # Small, consistent shapes:
    #   forward requires n_decoder_inputs == n_encoder_inputs + n_outputs
    #   and 2 * n_outputs + 1 == 5  =>  n_outputs == 2.
    B = 8
    n_enc, n_out = 16, 2
    n_dec = n_enc + n_out
    channels, n_heads, n_layers = 64, 4, 2

    key = jax.random.PRNGKey(0)
    kx, kb, kp = jax.random.split(key, 3)
    x = jax.random.normal(kx, (B, 1, n_enc), jnp.float32)
    params = init_params(kp, n_enc, n_dec, n_out, channels, n_heads, n_layers)

    fwd = jax.jit(functools.partial(spec2hrd_forward, n_heads=n_heads))
    out = fwd(x, params)
    jax.block_until_ready(out)
    assert out.shape == (B, 5), out.shape
    assert out.dtype == jnp.float32

    # Many independent samples amortised into ONE pallas_call: grid over groups,
    # weights DMA'd once, groups split across the two TCs on v7x.
    G = 4
    xs = jax.random.normal(kb, (G, B, 1, n_enc), jnp.float32)
    fwd_b = jax.jit(functools.partial(spec2hrd_forward_batched, n_heads=n_heads))
    outs = fwd_b(xs, params)
    jax.block_until_ready(outs)
    assert outs.shape == (G, B, 5), outs.shape

    # Batched path must agree with the per-call path.
    ref0 = fwd(xs[0], params)
    assert jnp.allclose(outs[0], ref0, atol=1e-3, rtol=1e-3), "group-0 mismatch"

    print("KERNEL_OK")
</pallas_src>

<mosaic_0001>
module attributes {stable_mosaic.version = 11 : i64} {
  func.func @_spec2hrd_kernel(%arg0: i32, %arg1: memref<1x8x16xf32, #tpu.memory_space<vmem>>, %arg2: memref<432x64xbf16, #tpu.memory_space<vmem>>, %arg3: memref<8x64xf32, #tpu.memory_space<vmem>>, %arg4: memref<192x5xf32, #tpu.memory_space<vmem>>, %arg5: memref<2x64x512xbf16, #tpu.memory_space<vmem>>, %arg6: memref<2x256x64xbf16, #tpu.memory_space<vmem>>, %arg7: memref<2x8x256xf32, #tpu.memory_space<vmem>>, %arg8: memref<1x8x5xf32, #tpu.memory_space<vmem>>) attributes {dimension_semantics = [#tpu.dimension_semantics<parallel>], iteration_bounds = array<i64: 1>, scalar_prefetch = 0 : i64, scratch_operands = 0 : i64, tpu.core_type = #tpu.core_type<tc>, window_params = [{transform_indices = @transform_0, window_bounds = array<i64: 1, 8, 16>}, {pipeline_mode = #tpu.pipeline_mode<synchronous>, transform_indices = @transform_1, window_bounds = array<i64: 432, 64>}, {pipeline_mode = #tpu.pipeline_mode<synchronous>, transform_indices = @transform_2, window_bounds = array<i64: 8, 64>}, {pipeline_mode = #tpu.pipeline_mode<synchronous>, transform_indices = @transform_3, window_bounds = array<i64: 192, 5>}, {pipeline_mode = #tpu.pipeline_mode<synchronous>, transform_indices = @transform_4, window_bounds = array<i64: 2, 64, 512>}, {pipeline_mode = #tpu.pipeline_mode<synchronous>, transform_indices = @transform_5, window_bounds = array<i64: 2, 256, 64>}, {pipeline_mode = #tpu.pipeline_mode<synchronous>, transform_indices = @transform_6, window_bounds = array<i64: 2, 8, 256>}, {transform_indices = @transform_7, window_bounds = array<i64: 1, 8, 5>}]} {
    %c0 = arith.constant 0 : index
    %c0_0 = arith.constant 0 : index
    %0 = vector.load %arg3[%c0, %c0_0] : memref<8x64xf32, #tpu.memory_space<vmem>>, vector<8x64xf32>
    %1 = vector.extract_strided_slice %0 {offsets = [0, 0], sizes = [1, 64], strides = [1, 1]} : vector<8x64xf32> to vector<1x64xf32>
    %2 = vector.extract_strided_slice %0 {offsets = [1, 0], sizes = [1, 64], strides = [1, 1]} : vector<8x64xf32> to vector<1x64xf32>
    %3 = vector.extract_strided_slice %0 {offsets = [2, 0], sizes = [1, 64], strides = [1, 1]} : vector<8x64xf32> to vector<1x64xf32>
    %4 = vector.extract_strided_slice %0 {offsets = [3, 0], sizes = [1, 64], strides = [1, 1]} : vector<8x64xf32> to vector<1x64xf32>
    %5 = vector.extract_strided_slice %0 {offsets = [4, 0], sizes = [1, 64], strides = [1, 1]} : vector<8x64xf32> to vector<1x64xf32>
    %6 = vector.extract_strided_slice %0 {offsets = [5, 0], sizes = [1, 64], strides = [1, 1]} : vector<8x64xf32> to vector<1x64xf32>
    %7 = vector.extract_strided_slice %0 {offsets = [6, 0], sizes = [1, 64], strides = [1, 1]} : vector<8x64xf32> to vector<1x64xf32>
    %c0_1 = arith.constant 0 : index
    %c0_2 = arith.constant 0 : index
    %c0_3 = arith.constant 0 : index
    %8 = vector.load %arg1[%c0_1, %c0_2, %c0_3] : memref<1x8x16xf32, #tpu.memory_space<vmem>>, vector<1x8x16xf32>
    %9 = vector.shape_cast %8 : vector<1x8x16xf32> to vector<8x16xf32>
    %c0_4 = arith.constant 0 : index
    %c0_5 = arith.constant 0 : index
    %10 = vector.load %arg2[%c0_4, %c0_5] : memref<432x64xbf16, #tpu.memory_space<vmem>>, vector<16x64xbf16>
    %11 = arith.truncf %9 : vector<8x16xf32> to vector<8x16xbf16>
    %cst = arith.constant dense<0.000000e+00> : vector<8x64xf32>
    %12 = tpu.matmul %11, %10, %cst {dimension_numbers = #tpu.dot_dimension_numbers<[1], [0], [0], [1], [0, 0, 1, 1], [], []>} : vector<8x16xbf16>, vector<16x64xbf16>, vector<8x64xf32> -> vector<8x64xf32>
    %13 = vector.broadcast %2 : vector<1x64xf32> to vector<8x64xf32>
    %14 = arith.addf %12, %13 : vector<8x64xf32>
    %15 = vector.broadcast %1 : vector<1x64xf32> to vector<8x64xf32>
    %16 = arith.addf %14, %15 : vector<8x64xf32>
    %c0_6 = arith.constant 0 : index
    %c0_7 = arith.constant 0 : index
    %c0_8 = arith.constant 0 : index
    %17 = vector.load %arg5[%c0_6, %c0_7, %c0_8] : memref<2x64x512xbf16, #tpu.memory_space<vmem>>, vector<1x64x512xbf16>
    %18 = vector.shape_cast %17 : vector<1x64x512xbf16> to vector<64x512xbf16>
    %c0_9 = arith.constant 0 : index
    %c0_10 = arith.constant 0 : index
    %c0_11 = arith.constant 0 : index
    %19 = vector.load %arg6[%c0_9, %c0_10, %c0_11] : memref<2x256x64xbf16, #tpu.memory_space<vmem>>, vector<1x256x64xbf16>
    %20 = vector.shape_cast %19 : vector<1x256x64xbf16> to vector<256x64xbf16>
    %c0_12 = arith.constant 0 : index
    %c0_13 = arith.constant 0 : index
    %c0_14 = arith.constant 0 : index
    %21 = vector.load %arg7[%c0_12, %c0_13, %c0_14] : memref<2x8x256xf32, #tpu.memory_space<vmem>>, vector<1x8x256xf32>
    %22 = vector.shape_cast %21 : vector<1x8x256xf32> to vector<8x256xf32>
    %23 = vector.extract_strided_slice %18 {offsets = [0, 0], sizes = [64, 192], strides = [1, 1]} : vector<64x512xbf16> to vector<64x192xbf16>
    %24 = vector.extract_strided_slice %18 {offsets = [0, 192], sizes = [64, 64], strides = [1, 1]} : vector<64x512xbf16> to vector<64x64xbf16>
    %25 = vector.extract_strided_slice %18 {offsets = [0, 256], sizes = [64, 256], strides = [1, 1]} : vector<64x512xbf16> to vector<64x256xbf16>
    %26 = vector.extract_strided_slice %22 {offsets = [0, 0], sizes = [1, 192], strides = [1, 1]} : vector<8x256xf32> to vector<1x192xf32>
    %27 = vector.extract_strided_slice %22 {offsets = [0, 192], sizes = [1, 64], strides = [1, 1]} : vector<8x256xf32> to vector<1x64xf32>
    %28 = vector.extract_strided_slice %22 {offsets = [1, 0], sizes = [1, 256], strides = [1, 1]} : vector<8x256xf32> to vector<1x256xf32>
    %29 = vector.extract_strided_slice %22 {offsets = [2, 0], sizes = [1, 64], strides = [1, 1]} : vector<8x256xf32> to vector<1x64xf32>
    %30 = vector.extract_strided_slice %22 {offsets = [2, 64], sizes = [1, 64], strides = [1, 1]} : vector<8x256xf32> to vector<1x64xf32>
    %31 = vector.extract_strided_slice %22 {offsets = [2, 128], sizes = [1, 64], strides = [1, 1]} : vector<8x256xf32> to vector<1x64xf32>
    %32 = vector.extract_strided_slice %22 {offsets = [2, 192], sizes = [1, 64], strides = [1, 1]} : vector<8x256xf32> to vector<1x64xf32>
    %33 = vector.extract_strided_slice %22 {offsets = [3, 0], sizes = [1, 64], strides = [1, 1]} : vector<8x256xf32> to vector<1x64xf32>
    %34 = arith.truncf %16 : vector<8x64xf32> to vector<8x64xbf16>
    %cst_15 = arith.constant dense<0.000000e+00> : vector<8x192xf32>
    %35 = tpu.matmul %34, %23, %cst_15 {dimension_numbers = #tpu.dot_dimension_numbers<[1], [0], [0], [1], [0, 0, 1, 1], [], []>} : vector<8x64xbf16>, vector<64x192xbf16>, vector<8x192xf32> -> vector<8x192xf32>
    %36 = vector.broadcast %26 : vector<1x192xf32> to vector<8x192xf32>
    %37 = arith.addf %35, %36 : vector<8x192xf32>
    %38 = vector.extract_strided_slice %37 {offsets = [0, 0], sizes = [8, 16], strides = [1, 1]} : vector<8x192xf32> to vector<8x16xf32>
    %39 = vector.extract_strided_slice %37 {offsets = [0, 16], sizes = [8, 16], strides = [1, 1]} : vector<8x192xf32> to vector<8x16xf32>
    %40 = vector.extract_strided_slice %37 {offsets = [0, 32], sizes = [8, 16], strides = [1, 1]} : vector<8x192xf32> to vector<8x16xf32>
    %41 = vector.extract_strided_slice %37 {offsets = [0, 48], sizes = [8, 16], strides = [1, 1]} : vector<8x192xf32> to vector<8x16xf32>
    %42 = vector.shape_cast %38 : vector<8x16xf32> to vector<1x8x16xf32>
    %43 = vector.shape_cast %39 : vector<8x16xf32> to vector<1x8x16xf32>
    %44 = vector.shape_cast %40 : vector<8x16xf32> to vector<1x8x16xf32>
    %45 = vector.shape_cast %41 : vector<8x16xf32> to vector<1x8x16xf32>
    %46 = tpu.concatenate %42, %43, %44, %45 in 0 : vector<1x8x16xf32>, vector<1x8x16xf32>, vector<1x8x16xf32>, vector<1x8x16xf32> -> vector<4x8x16xf32>
    %47 = vector.extract_strided_slice %37 {offsets = [0, 64], sizes = [8, 16], strides = [1, 1]} : vector<8x192xf32> to vector<8x16xf32>
    %48 = vector.extract_strided_slice %37 {offsets = [0, 80], sizes = [8, 16], strides = [1, 1]} : vector<8x192xf32> to vector<8x16xf32>
    %49 = vector.extract_strided_slice %37 {offsets = [0, 96], sizes = [8, 16], strides = [1, 1]} : vector<8x192xf32> to vector<8x16xf32>
    %50 = vector.extract_strided_slice %37 {offsets = [0, 112], sizes = [8, 16], strides = [1, 1]} : vector<8x192xf32> to vector<8x16xf32>
    %51 = vector.shape_cast %47 : vector<8x16xf32> to vector<1x8x16xf32>
    %52 = vector.shape_cast %48 : vector<8x16xf32> to vector<1x8x16xf32>
    %53 = vector.shape_cast %49 : vector<8x16xf32> to vector<1x8x16xf32>
    %54 = vector.shape_cast %50 : vector<8x16xf32> to vector<1x8x16xf32>
    %55 = tpu.concatenate %51, %52, %53, %54 in 0 : vector<1x8x16xf32>, vector<1x8x16xf32>, vector<1x8x16xf32>, vector<1x8x16xf32> -> vector<4x8x16xf32>
    %56 = vector.extract_strided_slice %37 {offsets = [0, 128], sizes = [8, 16], strides = [1, 1]} : vector<8x192xf32> to vector<8x16xf32>
    %57 = vector.extract_strided_slice %37 {offsets = [0, 144], sizes = [8, 16], strides = [1, 1]} : vector<8x192xf32> to vector<8x16xf32>
    %58 = vector.extract_strided_slice %37 {offsets = [0, 160], sizes = [8, 16], strides = [1, 1]} : vector<8x192xf32> to vector<8x16xf32>
    %59 = vector.extract_strided_slice %37 {offsets = [0, 176], sizes = [8, 16], strides = [1, 1]} : vector<8x192xf32> to vector<8x16xf32>
    %60 = vector.shape_cast %56 : vector<8x16xf32> to vector<1x8x16xf32>
    %61 = vector.shape_cast %57 : vector<8x16xf32> to vector<1x8x16xf32>
    %62 = vector.shape_cast %58 : vector<8x16xf32> to vector<1x8x16xf32>
    %63 = vector.shape_cast %59 : vector<8x16xf32> to vector<1x8x16xf32>
    %64 = tpu.concatenate %60, %61, %62, %63 in 0 : vector<1x8x16xf32>, vector<1x8x16xf32>, vector<1x8x16xf32>, vector<1x8x16xf32> -> vector<4x8x16xf32>
    "tpu.trace_start"() <{level = 10 : i32, message = "hsd,htd->hst"}> : () -> ()
    %cst_16 = arith.constant dense<0.000000e+00> : vector<4x8x8xf32>
    %65 = tpu.matmul %46, %55, %cst_16 {dimension_numbers = #tpu.dot_dimension_numbers<[2], [2], [1], [1], [0, 0, 0, 1, 1, 1], [0], [0]>} : vector<4x8x16xf32>, vector<4x8x16xf32>, vector<4x8x8xf32> -> vector<4x8x8xf32>
    "tpu.trace_stop"() : () -> ()
    %cst_17 = arith.constant dense<0xFF800000> : vector<4x8xf32>
    %66 = vector.multi_reduction <maximumf>, %65, %cst_17 [2] : vector<4x8x8xf32> to vector<4x8xf32>
    %67 = vector.shape_cast %66 : vector<4x8xf32> to vector<4x8x1xf32>
    %68 = vector.broadcast %67 : vector<4x8x1xf32> to vector<4x8x8xf32>
    %69 = arith.subf %65, %68 : vector<4x8x8xf32>
    %70 = math.exp %69 : vector<4x8x8xf32>
    %cst_18 = arith.constant dense<0.000000e+00> : vector<4x8xf32>
    %71 = vector.multi_reduction <add>, %70, %cst_18 [2] : vector<4x8x8xf32> to vector<4x8xf32>
    %72 = vector.shape_cast %71 : vector<4x8xf32> to vector<4x8x1xf32>
    %73 = vector.broadcast %72 : vector<4x8x1xf32> to vector<4x8x8xf32>
    %74 = arith.divf %70, %73 : vector<4x8x8xf32>
    "tpu.trace_start"() <{level = 10 : i32, message = "hst,htd->hsd"}> : () -> ()
    %cst_19 = arith.constant dense<0.000000e+00> : vector<4x8x16xf32>
    %75 = tpu.matmul %74, %64, %cst_19 {dimension_numbers = #tpu.dot_dimension_numbers<[2], [1], [1], [2], [0, 0, 0, 1, 1, 2], [0], [0]>} : vector<4x8x8xf32>, vector<4x8x16xf32>, vector<4x8x16xf32> -> vector<4x8x16xf32>
    "tpu.trace_stop"() : () -> ()
    %76 = vector.extract_strided_slice %75 {offsets = [0, 0, 0], sizes = [1, 8, 16], strides = [1, 1, 1]} : vector<4x8x16xf32> to vector<1x8x16xf32>
    %77 = vector.shape_cast %76 : vector<1x8x16xf32> to vector<8x16xf32>
    %78 = vector.extract_strided_slice %75 {offsets = [1, 0, 0], sizes = [1, 8, 16], strides = [1, 1, 1]} : vector<4x8x16xf32> to vector<1x8x16xf32>
    %79 = vector.shape_cast %78 : vector<1x8x16xf32> to vector<8x16xf32>
    %80 = vector.extract_strided_slice %75 {offsets = [2, 0, 0], sizes = [1, 8, 16], strides = [1, 1, 1]} : vector<4x8x16xf32> to vector<1x8x16xf32>
    %81 = vector.shape_cast %80 : vector<1x8x16xf32> to vector<8x16xf32>
    %82 = vector.extract_strided_slice %75 {offsets = [3, 0, 0], sizes = [1, 8, 16], strides = [1, 1, 1]} : vector<4x8x16xf32> to vector<1x8x16xf32>
    %83 = vector.shape_cast %82 : vector<1x8x16xf32> to vector<8x16xf32>
    %84 = tpu.concatenate %77, %79, %81, %83 in 1 : vector<8x16xf32>, vector<8x16xf32>, vector<8x16xf32>, vector<8x16xf32> -> vector<8x64xf32>
    %85 = arith.truncf %84 : vector<8x64xf32> to vector<8x64xbf16>
    %cst_20 = arith.constant dense<0.000000e+00> : vector<8x64xf32>
    %86 = tpu.matmul %85, %24, %cst_20 {dimension_numbers = #tpu.dot_dimension_numbers<[1], [0], [0], [1], [0, 0, 1, 1], [], []>} : vector<8x64xbf16>, vector<64x64xbf16>, vector<8x64xf32> -> vector<8x64xf32>
    %87 = vector.broadcast %27 : vector<1x64xf32> to vector<8x64xf32>
    %88 = arith.addf %86, %87 : vector<8x64xf32>
    %89 = arith.addf %16, %88 : vector<8x64xf32>
    %cst_21 = arith.constant dense<0.000000e+00> : vector<8xf32>
    %90 = vector.multi_reduction <add>, %89, %cst_21 [1] : vector<8x64xf32> to vector<8xf32>
    %91 = vector.shape_cast %90 : vector<8xf32> to vector<8x1xf32>
    %cst_22 = arith.constant 6.400000e+01 : f32
    %92 = vector.broadcast %cst_22 : f32 to vector<8x1xf32>
    %93 = arith.divf %91, %92 : vector<8x1xf32>
    %94 = arith.mulf %89, %89 : vector<8x64xf32>
    %cst_23 = arith.constant dense<0.000000e+00> : vector<8xf32>
    %95 = vector.multi_reduction <add>, %94, %cst_23 [1] : vector<8x64xf32> to vector<8xf32>
    %96 = vector.shape_cast %95 : vector<8xf32> to vector<8x1xf32>
    %cst_24 = arith.constant 6.400000e+01 : f32
    %97 = vector.broadcast %cst_24 : f32 to vector<8x1xf32>
    %98 = arith.divf %96, %97 : vector<8x1xf32>
    %99 = vector.broadcast %93 : vector<8x1xf32> to vector<8x64xf32>
    %100 = arith.subf %89, %99 : vector<8x64xf32>
    %101 = arith.mulf %93, %93 : vector<8x1xf32>
    %102 = arith.subf %98, %101 : vector<8x1xf32>
    %cst_25 = arith.constant 9.99999974E-6 : f32
    %103 = vector.broadcast %cst_25 : f32 to vector<8x1xf32>
    %104 = arith.addf %102, %103 : vector<8x1xf32>
    %105 = math.rsqrt %104 : vector<8x1xf32>
    %106 = vector.broadcast %105 : vector<8x1xf32> to vector<8x64xf32>
    %107 = arith.mulf %100, %106 : vector<8x64xf32>
    %108 = vector.broadcast %30 : vector<1x64xf32> to vector<8x64xf32>
    %109 = arith.mulf %107, %108 : vector<8x64xf32>
    %110 = vector.broadcast %31 : vector<1x64xf32> to vector<8x64xf32>
    %111 = arith.addf %109, %110 : vector<8x64xf32>
    %112 = arith.truncf %111 : vector<8x64xf32> to vector<8x64xbf16>
    %cst_26 = arith.constant dense<0.000000e+00> : vector<8x256xf32>
    %113 = tpu.matmul %112, %25, %cst_26 {dimension_numbers = #tpu.dot_dimension_numbers<[1], [0], [0], [1], [0, 0, 1, 1], [], []>} : vector<8x64xbf16>, vector<64x256xbf16>, vector<8x256xf32> -> vector<8x256xf32>
    %114 = vector.broadcast %28 : vector<1x256xf32> to vector<8x256xf32>
    %115 = arith.addf %113, %114 : vector<8x256xf32>
    %cst_27 = arith.constant 0.000000e+00 : f32
    %116 = vector.broadcast %cst_27 : f32 to vector<8x256xf32>
    %117 = arith.maximumf %115, %116 : vector<8x256xf32>
    %118 = arith.truncf %117 : vector<8x256xf32> to vector<8x256xbf16>
    %cst_28 = arith.constant dense<0.000000e+00> : vector<8x64xf32>
    %119 = tpu.matmul %118, %20, %cst_28 {dimension_numbers = #tpu.dot_dimension_numbers<[1], [0], [0], [1], [0, 0, 1, 1], [], []>} : vector<8x256xbf16>, vector<256x64xbf16>, vector<8x64xf32> -> vector<8x64xf32>
    %120 = vector.broadcast %29 : vector<1x64xf32> to vector<8x64xf32>
    %121 = arith.addf %119, %120 : vector<8x64xf32>
    %122 = arith.addf %111, %121 : vector<8x64xf32>
    %cst_29 = arith.constant dense<0.000000e+00> : vector<8xf32>
    %123 = vector.multi_reduction <add>, %122, %cst_29 [1] : vector<8x64xf32> to vector<8xf32>
    %124 = vector.shape_cast %123 : vector<8xf32> to vector<8x1xf32>
    %cst_30 = arith.constant 6.400000e+01 : f32
    %125 = vector.broadcast %cst_30 : f32 to vector<8x1xf32>
    %126 = arith.divf %124, %125 : vector<8x1xf32>
    %127 = arith.mulf %122, %122 : vector<8x64xf32>
    %cst_31 = arith.constant dense<0.000000e+00> : vector<8xf32>
    %128 = vector.multi_reduction <add>, %127, %cst_31 [1] : vector<8x64xf32> to vector<8xf32>
    %129 = vector.shape_cast %128 : vector<8xf32> to vector<8x1xf32>
    %cst_32 = arith.constant 6.400000e+01 : f32
    %130 = vector.broadcast %cst_32 : f32 to vector<8x1xf32>
    %131 = arith.divf %129, %130 : vector<8x1xf32>
    %132 = vector.broadcast %126 : vector<8x1xf32> to vector<8x64xf32>
    %133 = arith.subf %122, %132 : vector<8x64xf32>
    %134 = arith.mulf %126, %126 : vector<8x1xf32>
    %135 = arith.subf %131, %134 : vector<8x1xf32>
    %cst_33 = arith.constant 9.99999974E-6 : f32
    %136 = vector.broadcast %cst_33 : f32 to vector<8x1xf32>
    %137 = arith.addf %135, %136 : vector<8x1xf32>
    %138 = math.rsqrt %137 : vector<8x1xf32>
    %139 = vector.broadcast %138 : vector<8x1xf32> to vector<8x64xf32>
    %140 = arith.mulf %133, %139 : vector<8x64xf32>
    %141 = vector.broadcast %32 : vector<1x64xf32> to vector<8x64xf32>
    %142 = arith.mulf %140, %141 : vector<8x64xf32>
    %143 = vector.broadcast %33 : vector<1x64xf32> to vector<8x64xf32>
    %144 = arith.addf %142, %143 : vector<8x64xf32>
    %c1 = arith.constant 1 : index
    %c0_34 = arith.constant 0 : index
    %c0_35 = arith.constant 0 : index
    %145 = vector.load %arg5[%c1, %c0_34, %c0_35] : memref<2x64x512xbf16, #tpu.memory_space<vmem>>, vector<1x64x512xbf16>
    %146 = vector.shape_cast %145 : vector<1x64x512xbf16> to vector<64x512xbf16>
    %c1_36 = arith.constant 1 : index
    %c0_37 = arith.constant 0 : index
    %c0_38 = arith.constant 0 : index
    %147 = vector.load %arg6[%c1_36, %c0_37, %c0_38] : memref<2x256x64xbf16, #tpu.memory_space<vmem>>, vector<1x256x64xbf16>
    %148 = vector.shape_cast %147 : vector<1x256x64xbf16> to vector<256x64xbf16>
    %c1_39 = arith.constant 1 : index
    %c0_40 = arith.constant 0 : index
    %c0_41 = arith.constant 0 : index
    %149 = vector.load %arg7[%c1_39, %c0_40, %c0_41] : memref<2x8x256xf32, #tpu.memory_space<vmem>>, vector<1x8x256xf32>
    %150 = vector.shape_cast %149 : vector<1x8x256xf32> to vector<8x256xf32>
    %151 = vector.extract_strided_slice %146 {offsets = [0, 0], sizes = [64, 192], strides = [1, 1]} : vector<64x512xbf16> to vector<64x192xbf16>
    %152 = vector.extract_strided_slice %146 {offsets = [0, 192], sizes = [64, 64], strides = [1, 1]} : vector<64x512xbf16> to vector<64x64xbf16>
    %153 = vector.extract_strided_slice %146 {offsets = [0, 256], sizes = [64, 256], strides = [1, 1]} : vector<64x512xbf16> to vector<64x256xbf16>
    %154 = vector.extract_strided_slice %150 {offsets = [0, 0], sizes = [1, 192], strides = [1, 1]} : vector<8x256xf32> to vector<1x192xf32>
    %155 = vector.extract_strided_slice %150 {offsets = [0, 192], sizes = [1, 64], strides = [1, 1]} : vector<8x256xf32> to vector<1x64xf32>
    %156 = vector.extract_strided_slice %150 {offsets = [1, 0], sizes = [1, 256], strides = [1, 1]} : vector<8x256xf32> to vector<1x256xf32>
    %157 = vector.extract_strided_slice %150 {offsets = [2, 0], sizes = [1, 64], strides = [1, 1]} : vector<8x256xf32> to vector<1x64xf32>
    %158 = vector.extract_strided_slice %150 {offsets = [2, 64], sizes = [1, 64], strides = [1, 1]} : vector<8x256xf32> to vector<1x64xf32>
    %159 = vector.extract_strided_slice %150 {offsets = [2, 128], sizes = [1, 64], strides = [1, 1]} : vector<8x256xf32> to vector<1x64xf32>
    %160 = vector.extract_strided_slice %150 {offsets = [2, 192], sizes = [1, 64], strides = [1, 1]} : vector<8x256xf32> to vector<1x64xf32>
    %161 = vector.extract_strided_slice %150 {offsets = [3, 0], sizes = [1, 64], strides = [1, 1]} : vector<8x256xf32> to vector<1x64xf32>
    %162 = arith.truncf %144 : vector<8x64xf32> to vector<8x64xbf16>
    %cst_42 = arith.constant dense<0.000000e+00> : vector<8x192xf32>
    %163 = tpu.matmul %162, %151, %cst_42 {dimension_numbers = #tpu.dot_dimension_numbers<[1], [0], [0], [1], [0, 0, 1, 1], [], []>} : vector<8x64xbf16>, vector<64x192xbf16>, vector<8x192xf32> -> vector<8x192xf32>
    %164 = vector.broadcast %154 : vector<1x192xf32> to vector<8x192xf32>
    %165 = arith.addf %163, %164 : vector<8x192xf32>
    %166 = vector.extract_strided_slice %165 {offsets = [0, 0], sizes = [8, 16], strides = [1, 1]} : vector<8x192xf32> to vector<8x16xf32>
    %167 = vector.extract_strided_slice %165 {offsets = [0, 16], sizes = [8, 16], strides = [1, 1]} : vector<8x192xf32> to vector<8x16xf32>
    %168 = vector.extract_strided_slice %165 {offsets = [0, 32], sizes = [8, 16], strides = [1, 1]} : vector<8x192xf32> to vector<8x16xf32>
    %169 = vector.extract_strided_slice %165 {offsets = [0, 48], sizes = [8, 16], strides = [1, 1]} : vector<8x192xf32> to vector<8x16xf32>
    %170 = vector.shape_cast %166 : vector<8x16xf32> to vector<1x8x16xf32>
    %171 = vector.shape_cast %167 : vector<8x16xf32> to vector<1x8x16xf32>
    %172 = vector.shape_cast %168 : vector<8x16xf32> to vector<1x8x16xf32>
    %173 = vector.shape_cast %169 : vector<8x16xf32> to vector<1x8x16xf32>
    %174 = tpu.concatenate %170, %171, %172, %173 in 0 : vector<1x8x16xf32>, vector<1x8x16xf32>, vector<1x8x16xf32>, vector<1x8x16xf32> -> vector<4x8x16xf32>
    %175 = vector.extract_strided_slice %165 {offsets = [0, 64], sizes = [8, 16], strides = [1, 1]} : vector<8x192xf32> to vector<8x16xf32>
    %176 = vector.extract_strided_slice %165 {offsets = [0, 80], sizes = [8, 16], strides = [1, 1]} : vector<8x192xf32> to vector<8x16xf32>
    %177 = vector.extract_strided_slice %165 {offsets = [0, 96], sizes = [8, 16], strides = [1, 1]} : vector<8x192xf32> to vector<8x16xf32>
    %178 = vector.extract_strided_slice %165 {offsets = [0, 112], sizes = [8, 16], strides = [1, 1]} : vector<8x192xf32> to vector<8x16xf32>
    %179 = vector.shape_cast %175 : vector<8x16xf32> to vector<1x8x16xf32>
    %180 = vector.shape_cast %176 : vector<8x16xf32> to vector<1x8x16xf32>
    %181 = vector.shape_cast %177 : vector<8x16xf32> to vector<1x8x16xf32>
    %182 = vector.shape_cast %178 : vector<8x16xf32> to vector<1x8x16xf32>
    %183 = tpu.concatenate %179, %180, %181, %182 in 0 : vector<1x8x16xf32>, vector<1x8x16xf32>, vector<1x8x16xf32>, vector<1x8x16xf32> -> vector<4x8x16xf32>
    %184 = vector.extract_strided_slice %165 {offsets = [0, 128], sizes = [8, 16], strides = [1, 1]} : vector<8x192xf32> to vector<8x16xf32>
    %185 = vector.extract_strided_slice %165 {offsets = [0, 144], sizes = [8, 16], strides = [1, 1]} : vector<8x192xf32> to vector<8x16xf32>
    %186 = vector.extract_strided_slice %165 {offsets = [0, 160], sizes = [8, 16], strides = [1, 1]} : vector<8x192xf32> to vector<8x16xf32>
    %187 = vector.extract_strided_slice %165 {offsets = [0, 176], sizes = [8, 16], strides = [1, 1]} : vector<8x192xf32> to vector<8x16xf32>
    %188 = vector.shape_cast %184 : vector<8x16xf32> to vector<1x8x16xf32>
    %189 = vector.shape_cast %185 : vector<8x16xf32> to vector<1x8x16xf32>
    %190 = vector.shape_cast %186 : vector<8x16xf32> to vector<1x8x16xf32>
    %191 = vector.shape_cast %187 : vector<8x16xf32> to vector<1x8x16xf32>
    %192 = tpu.concatenate %188, %189, %190, %191 in 0 : vector<1x8x16xf32>, vector<1x8x16xf32>, vector<1x8x16xf32>, vector<1x8x16xf32> -> vector<4x8x16xf32>
    "tpu.trace_start"() <{level = 10 : i32, message = "hsd,htd->hst"}> : () -> ()
    %cst_43 = arith.constant dense<0.000000e+00> : vector<4x8x8xf32>
    %193 = tpu.matmul %174, %183, %cst_43 {dimension_numbers = #tpu.dot_dimension_numbers<[2], [2], [1], [1], [0, 0, 0, 1, 1, 1], [0], [0]>} : vector<4x8x16xf32>, vector<4x8x16xf32>, vector<4x8x8xf32> -> vector<4x8x8xf32>
    "tpu.trace_stop"() : () -> ()
    %cst_44 = arith.constant dense<0xFF800000> : vector<4x8xf32>
    %194 = vector.multi_reduction <maximumf>, %193, %cst_44 [2] : vector<4x8x8xf32> to vector<4x8xf32>
    %195 = vector.shape_cast %194 : vector<4x8xf32> to vector<4x8x1xf32>
    %196 = vector.broadcast %195 : vector<4x8x1xf32> to vector<4x8x8xf32>
    %197 = arith.subf %193, %196 : vector<4x8x8xf32>
    %198 = math.exp %197 : vector<4x8x8xf32>
    %cst_45 = arith.constant dense<0.000000e+00> : vector<4x8xf32>
    %199 = vector.multi_reduction <add>, %198, %cst_45 [2] : vector<4x8x8xf32> to vector<4x8xf32>
    %200 = vector.shape_cast %199 : vector<4x8xf32> to vector<4x8x1xf32>
    %201 = vector.broadcast %200 : vector<4x8x1xf32> to vector<4x8x8xf32>
    %202 = arith.divf %198, %201 : vector<4x8x8xf32>
    "tpu.trace_start"() <{level = 10 : i32, message = "hst,htd->hsd"}> : () -> ()
    %cst_46 = arith.constant dense<0.000000e+00> : vector<4x8x16xf32>
    %203 = tpu.matmul %202, %192, %cst_46 {dimension_numbers = #tpu.dot_dimension_numbers<[2], [1], [1], [2], [0, 0, 0, 1, 1, 2], [0], [0]>} : vector<4x8x8xf32>, vector<4x8x16xf32>, vector<4x8x16xf32> -> vector<4x8x16xf32>
    "tpu.trace_stop"() : () -> ()
    %204 = vector.extract_strided_slice %203 {offsets = [0, 0, 0], sizes = [1, 8, 16], strides = [1, 1, 1]} : vector<4x8x16xf32> to vector<1x8x16xf32>
    %205 = vector.shape_cast %204 : vector<1x8x16xf32> to vector<8x16xf32>
    %206 = vector.extract_strided_slice %203 {offsets = [1, 0, 0], sizes = [1, 8, 16], strides = [1, 1, 1]} : vector<4x8x16xf32> to vector<1x8x16xf32>
    %207 = vector.shape_cast %206 : vector<1x8x16xf32> to vector<8x16xf32>
    %208 = vector.extract_strided_slice %203 {offsets = [2, 0, 0], sizes = [1, 8, 16], strides = [1, 1, 1]} : vector<4x8x16xf32> to vector<1x8x16xf32>
    %209 = vector.shape_cast %208 : vector<1x8x16xf32> to vector<8x16xf32>
    %210 = vector.extract_strided_slice %203 {offsets = [3, 0, 0], sizes = [1, 8, 16], strides = [1, 1, 1]} : vector<4x8x16xf32> to vector<1x8x16xf32>
    %211 = vector.shape_cast %210 : vector<1x8x16xf32> to vector<8x16xf32>
    %212 = tpu.concatenate %205, %207, %209, %211 in 1 : vector<8x16xf32>, vector<8x16xf32>, vector<8x16xf32>, vector<8x16xf32> -> vector<8x64xf32>
    %213 = arith.truncf %212 : vector<8x64xf32> to vector<8x64xbf16>
    %cst_47 = arith.constant dense<0.000000e+00> : vector<8x64xf32>
    %214 = tpu.matmul %213, %152, %cst_47 {dimension_numbers = #tpu.dot_dimension_numbers<[1], [0], [0], [1], [0, 0, 1, 1], [], []>} : vector<8x64xbf16>, vector<64x64xbf16>, vector<8x64xf32> -> vector<8x64xf32>
    %215 = vector.broadcast %155 : vector<1x64xf32> to vector<8x64xf32>
    %216 = arith.addf %214, %215 : vector<8x64xf32>
    %217 = arith.addf %144, %216 : vector<8x64xf32>
    %cst_48 = arith.constant dense<0.000000e+00> : vector<8xf32>
    %218 = vector.multi_reduction <add>, %217, %cst_48 [1] : vector<8x64xf32> to vector<8xf32>
    %219 = vector.shape_cast %218 : vector<8xf32> to vector<8x1xf32>
    %cst_49 = arith.constant 6.400000e+01 : f32
    %220 = vector.broadcast %cst_49 : f32 to vector<8x1xf32>
    %221 = arith.divf %219, %220 : vector<8x1xf32>
    %222 = arith.mulf %217, %217 : vector<8x64xf32>
    %cst_50 = arith.constant dense<0.000000e+00> : vector<8xf32>
    %223 = vector.multi_reduction <add>, %222, %cst_50 [1] : vector<8x64xf32> to vector<8xf32>
    %224 = vector.shape_cast %223 : vector<8xf32> to vector<8x1xf32>
    %cst_51 = arith.constant 6.400000e+01 : f32
    %225 = vector.broadcast %cst_51 : f32 to vector<8x1xf32>
    %226 = arith.divf %224, %225 : vector<8x1xf32>
    %227 = vector.broadcast %221 : vector<8x1xf32> to vector<8x64xf32>
    %228 = arith.subf %217, %227 : vector<8x64xf32>
    %229 = arith.mulf %221, %221 : vector<8x1xf32>
    %230 = arith.subf %226, %229 : vector<8x1xf32>
    %cst_52 = arith.constant 9.99999974E-6 : f32
    %231 = vector.broadcast %cst_52 : f32 to vector<8x1xf32>
    %232 = arith.addf %230, %231 : vector<8x1xf32>
    %233 = math.rsqrt %232 : vector<8x1xf32>
    %234 = vector.broadcast %233 : vector<8x1xf32> to vector<8x64xf32>
    %235 = arith.mulf %228, %234 : vector<8x64xf32>
    %236 = vector.broadcast %158 : vector<1x64xf32> to vector<8x64xf32>
    %237 = arith.mulf %235, %236 : vector<8x64xf32>
    %238 = vector.broadcast %159 : vector<1x64xf32> to vector<8x64xf32>
    %239 = arith.addf %237, %238 : vector<8x64xf32>
    %240 = arith.truncf %239 : vector<8x64xf32> to vector<8x64xbf16>
    %cst_53 = arith.constant dense<0.000000e+00> : vector<8x256xf32>
    %241 = tpu.matmul %240, %153, %cst_53 {dimension_numbers = #tpu.dot_dimension_numbers<[1], [0], [0], [1], [0, 0, 1, 1], [], []>} : vector<8x64xbf16>, vector<64x256xbf16>, vector<8x256xf32> -> vector<8x256xf32>
    %242 = vector.broadcast %156 : vector<1x256xf32> to vector<8x256xf32>
    %243 = arith.addf %241, %242 : vector<8x256xf32>
    %cst_54 = arith.constant 0.000000e+00 : f32
    %244 = vector.broadcast %cst_54 : f32 to vector<8x256xf32>
    %245 = arith.maximumf %243, %244 : vector<8x256xf32>
    %246 = arith.truncf %245 : vector<8x256xf32> to vector<8x256xbf16>
    %cst_55 = arith.constant dense<0.000000e+00> : vector<8x64xf32>
    %247 = tpu.matmul %246, %148, %cst_55 {dimension_numbers = #tpu.dot_dimension_numbers<[1], [0], [0], [1], [0, 0, 1, 1], [], []>} : vector<8x256xbf16>, vector<256x64xbf16>, vector<8x64xf32> -> vector<8x64xf32>
    %248 = vector.broadcast %157 : vector<1x64xf32> to vector<8x64xf32>
    %249 = arith.addf %247, %248 : vector<8x64xf32>
    %250 = arith.addf %239, %249 : vector<8x64xf32>
    %cst_56 = arith.constant dense<0.000000e+00> : vector<8xf32>
    %251 = vector.multi_reduction <add>, %250, %cst_56 [1] : vector<8x64xf32> to vector<8xf32>
    %252 = vector.shape_cast %251 : vector<8xf32> to vector<8x1xf32>
    %cst_57 = arith.constant 6.400000e+01 : f32
    %253 = vector.broadcast %cst_57 : f32 to vector<8x1xf32>
    %254 = arith.divf %252, %253 : vector<8x1xf32>
    %255 = arith.mulf %250, %250 : vector<8x64xf32>
    %cst_58 = arith.constant dense<0.000000e+00> : vector<8xf32>
    %256 = vector.multi_reduction <add>, %255, %cst_58 [1] : vector<8x64xf32> to vector<8xf32>
    %257 = vector.shape_cast %256 : vector<8xf32> to vector<8x1xf32>
    %cst_59 = arith.constant 6.400000e+01 : f32
    %258 = vector.broadcast %cst_59 : f32 to vector<8x1xf32>
    %259 = arith.divf %257, %258 : vector<8x1xf32>
    %260 = vector.broadcast %254 : vector<8x1xf32> to vector<8x64xf32>
    %261 = arith.subf %250, %260 : vector<8x64xf32>
    %262 = arith.mulf %254, %254 : vector<8x1xf32>
    %263 = arith.subf %259, %262 : vector<8x1xf32>
    %cst_60 = arith.constant 9.99999974E-6 : f32
    %264 = vector.broadcast %cst_60 : f32 to vector<8x1xf32>
    %265 = arith.addf %263, %264 : vector<8x1xf32>
    %266 = math.rsqrt %265 : vector<8x1xf32>
    %267 = vector.broadcast %266 : vector<8x1xf32> to vector<8x64xf32>
    %268 = arith.mulf %261, %267 : vector<8x64xf32>
    %269 = vector.broadcast %160 : vector<1x64xf32> to vector<8x64xf32>
    %270 = arith.mulf %268, %269 : vector<8x64xf32>
    %271 = vector.broadcast %161 : vector<1x64xf32> to vector<8x64xf32>
    %272 = arith.addf %270, %271 : vector<8x64xf32>
    %273 = arith.addf %272, %14 : vector<8x64xf32>
    %c240 = arith.constant 240 : index
    %c0_61 = arith.constant 0 : index
    %274 = vector.load %arg2[%c240, %c0_61] : memref<432x64xbf16, #tpu.memory_space<vmem>>, vector<64x64xbf16>
    %275 = arith.truncf %273 : vector<8x64xf32> to vector<8x64xbf16>
    %cst_62 = arith.constant dense<0.000000e+00> : vector<8x64xf32>
    %276 = tpu.matmul %275, %274, %cst_62 {dimension_numbers = #tpu.dot_dimension_numbers<[1], [0], [0], [1], [0, 0, 1, 1], [], []>} : vector<8x64xbf16>, vector<64x64xbf16>, vector<8x64xf32> -> vector<8x64xf32>
    %277 = vector.broadcast %5 : vector<1x64xf32> to vector<8x64xf32>
    %278 = arith.addf %276, %277 : vector<8x64xf32>
    %cst_63 = arith.constant 0.000000e+00 : f32
    %279 = vector.broadcast %cst_63 : f32 to vector<8x64xf32>
    %280 = arith.maximumf %278, %279 : vector<8x64xf32>
    %c304 = arith.constant 304 : index
    %c0_64 = arith.constant 0 : index
    %281 = vector.load %arg2[%c304, %c0_64] : memref<432x64xbf16, #tpu.memory_space<vmem>>, vector<64x64xbf16>
    %282 = arith.truncf %280 : vector<8x64xf32> to vector<8x64xbf16>
    %cst_65 = arith.constant dense<0.000000e+00> : vector<8x64xf32>
    %283 = tpu.matmul %282, %281, %cst_65 {dimension_numbers = #tpu.dot_dimension_numbers<[1], [0], [0], [1], [0, 0, 1, 1], [], []>} : vector<8x64xbf16>, vector<64x64xbf16>, vector<8x64xf32> -> vector<8x64xf32>
    %284 = vector.broadcast %6 : vector<1x64xf32> to vector<8x64xf32>
    %285 = arith.addf %283, %284 : vector<8x64xf32>
    %c16 = arith.constant 16 : index
    %c0_66 = arith.constant 0 : index
    %286 = vector.load %arg2[%c16, %c0_66] : memref<432x64xbf16, #tpu.memory_space<vmem>>, vector<16x64xbf16>
    %287 = arith.truncf %9 : vector<8x16xf32> to vector<8x16xbf16>
    %cst_67 = arith.constant dense<0.000000e+00> : vector<8x64xf32>
    %288 = tpu.matmul %287, %286, %cst_67 {dimension_numbers = #tpu.dot_dimension_numbers<[1], [0], [0], [1], [0, 0, 1, 1], [], []>} : vector<8x16xbf16>, vector<16x64xbf16>, vector<8x64xf32> -> vector<8x64xf32>
    %c32 = arith.constant 32 : index
    %c0_68 = arith.constant 0 : index
    %289 = vector.load %arg2[%c32, %c0_68] : memref<432x64xbf16, #tpu.memory_space<vmem>>, vector<64x64xbf16>
    %290 = arith.truncf %285 : vector<8x64xf32> to vector<8x64xbf16>
    %cst_69 = arith.constant dense<0.000000e+00> : vector<8x64xf32>
    %291 = tpu.matmul %290, %289, %cst_69 {dimension_numbers = #tpu.dot_dimension_numbers<[1], [0], [0], [1], [0, 0, 1, 1], [], []>} : vector<8x64xbf16>, vector<64x64xbf16>, vector<8x64xf32> -> vector<8x64xf32>
    %292 = arith.addf %288, %291 : vector<8x64xf32>
    %293 = vector.broadcast %3 : vector<1x64xf32> to vector<8x64xf32>
    %294 = arith.addf %292, %293 : vector<8x64xf32>
    %295 = vector.broadcast %1 : vector<1x64xf32> to vector<8x64xf32>
    %296 = arith.addf %294, %295 : vector<8x64xf32>
    %c0_70 = arith.constant 0 : index
    %c0_71 = arith.constant 0 : index
    %c0_72 = arith.constant 0 : index
    %297 = vector.load %arg5[%c0_70, %c0_71, %c0_72] : memref<2x64x512xbf16, #tpu.memory_space<vmem>>, vector<1x64x512xbf16>
    %298 = vector.shape_cast %297 : vector<1x64x512xbf16> to vector<64x512xbf16>
    %c0_73 = arith.constant 0 : index
    %c0_74 = arith.constant 0 : index
    %c0_75 = arith.constant 0 : index
    %299 = vector.load %arg6[%c0_73, %c0_74, %c0_75] : memref<2x256x64xbf16, #tpu.memory_space<vmem>>, vector<1x256x64xbf16>
    %300 = vector.shape_cast %299 : vector<1x256x64xbf16> to vector<256x64xbf16>
    %c0_76 = arith.constant 0 : index
    %c0_77 = arith.constant 0 : index
    %c0_78 = arith.constant 0 : index
    %301 = vector.load %arg7[%c0_76, %c0_77, %c0_78] : memref<2x8x256xf32, #tpu.memory_space<vmem>>, vector<1x8x256xf32>
    %302 = vector.shape_cast %301 : vector<1x8x256xf32> to vector<8x256xf32>
    %303 = vector.extract_strided_slice %298 {offsets = [0, 0], sizes = [64, 192], strides = [1, 1]} : vector<64x512xbf16> to vector<64x192xbf16>
    %304 = vector.extract_strided_slice %298 {offsets = [0, 192], sizes = [64, 64], strides = [1, 1]} : vector<64x512xbf16> to vector<64x64xbf16>
    %305 = vector.extract_strided_slice %298 {offsets = [0, 256], sizes = [64, 256], strides = [1, 1]} : vector<64x512xbf16> to vector<64x256xbf16>
    %306 = vector.extract_strided_slice %302 {offsets = [0, 0], sizes = [1, 192], strides = [1, 1]} : vector<8x256xf32> to vector<1x192xf32>
    %307 = vector.extract_strided_slice %302 {offsets = [0, 192], sizes = [1, 64], strides = [1, 1]} : vector<8x256xf32> to vector<1x64xf32>
    %308 = vector.extract_strided_slice %302 {offsets = [1, 0], sizes = [1, 256], strides = [1, 1]} : vector<8x256xf32> to vector<1x256xf32>
    %309 = vector.extract_strided_slice %302 {offsets = [2, 0], sizes = [1, 64], strides = [1, 1]} : vector<8x256xf32> to vector<1x64xf32>
    %310 = vector.extract_strided_slice %302 {offsets = [2, 64], sizes = [1, 64], strides = [1, 1]} : vector<8x256xf32> to vector<1x64xf32>
    %311 = vector.extract_strided_slice %302 {offsets = [2, 128], sizes = [1, 64], strides = [1, 1]} : vector<8x256xf32> to vector<1x64xf32>
    %312 = vector.extract_strided_slice %302 {offsets = [2, 192], sizes = [1, 64], strides = [1, 1]} : vector<8x256xf32> to vector<1x64xf32>
    %313 = vector.extract_strided_slice %302 {offsets = [3, 0], sizes = [1, 64], strides = [1, 1]} : vector<8x256xf32> to vector<1x64xf32>
    %314 = arith.truncf %296 : vector<8x64xf32> to vector<8x64xbf16>
    %cst_79 = arith.constant dense<0.000000e+00> : vector<8x192xf32>
    %315 = tpu.matmul %314, %303, %cst_79 {dimension_numbers = #tpu.dot_dimension_numbers<[1], [0], [0], [1], [0, 0, 1, 1], [], []>} : vector<8x64xbf16>, vector<64x192xbf16>, vector<8x192xf32> -> vector<8x192xf32>
    %316 = vector.broadcast %306 : vector<1x192xf32> to vector<8x192xf32>
    %317 = arith.addf %315, %316 : vector<8x192xf32>
    %318 = vector.extract_strided_slice %317 {offsets = [0, 0], sizes = [8, 16], strides = [1, 1]} : vector<8x192xf32> to vector<8x16xf32>
    %319 = vector.extract_strided_slice %317 {offsets = [0, 16], sizes = [8, 16], strides = [1, 1]} : vector<8x192xf32> to vector<8x16xf32>
    %320 = vector.extract_strided_slice %317 {offsets = [0, 32], sizes = [8, 16], strides = [1, 1]} : vector<8x192xf32> to vector<8x16xf32>
    %321 = vector.extract_strided_slice %317 {offsets = [0, 48], sizes = [8, 16], strides = [1, 1]} : vector<8x192xf32> to vector<8x16xf32>
    %322 = vector.shape_cast %318 : vector<8x16xf32> to vector<1x8x16xf32>
    %323 = vector.shape_cast %319 : vector<8x16xf32> to vector<1x8x16xf32>
    %324 = vector.shape_cast %320 : vector<8x16xf32> to vector<1x8x16xf32>
    %325 = vector.shape_cast %321 : vector<8x16xf32> to vector<1x8x16xf32>
    %326 = tpu.concatenate %322, %323, %324, %325 in 0 : vector<1x8x16xf32>, vector<1x8x16xf32>, vector<1x8x16xf32>, vector<1x8x16xf32> -> vector<4x8x16xf32>
    %327 = vector.extract_strided_slice %317 {offsets = [0, 64], sizes = [8, 16], strides = [1, 1]} : vector<8x192xf32> to vector<8x16xf32>
    %328 = vector.extract_strided_slice %317 {offsets = [0, 80], sizes = [8, 16], strides = [1, 1]} : vector<8x192xf32> to vector<8x16xf32>
    %329 = vector.extract_strided_slice %317 {offsets = [0, 96], sizes = [8, 16], strides = [1, 1]} : vector<8x192xf32> to vector<8x16xf32>
    %330 = vector.extract_strided_slice %317 {offsets = [0, 112], sizes = [8, 16], strides = [1, 1]} : vector<8x192xf32> to vector<8x16xf32>
    %331 = vector.shape_cast %327 : vector<8x16xf32> to vector<1x8x16xf32>
    %332 = vector.shape_cast %328 : vector<8x16xf32> to vector<1x8x16xf32>
    %333 = vector.shape_cast %329 : vector<8x16xf32> to vector<1x8x16xf32>
    %334 = vector.shape_cast %330 : vector<8x16xf32> to vector<1x8x16xf32>
    %335 = tpu.concatenate %331, %332, %333, %334 in 0 : vector<1x8x16xf32>, vector<1x8x16xf32>, vector<1x8x16xf32>, vector<1x8x16xf32> -> vector<4x8x16xf32>
    %336 = vector.extract_strided_slice %317 {offsets = [0, 128], sizes = [8, 16], strides = [1, 1]} : vector<8x192xf32> to vector<8x16xf32>
    %337 = vector.extract_strided_slice %317 {offsets = [0, 144], sizes = [8, 16], strides = [1, 1]} : vector<8x192xf32> to vector<8x16xf32>
    %338 = vector.extract_strided_slice %317 {offsets = [0, 160], sizes = [8, 16], strides = [1, 1]} : vector<8x192xf32> to vector<8x16xf32>
    %339 = vector.extract_strided_slice %317 {offsets = [0, 176], sizes = [8, 16], strides = [1, 1]} : vector<8x192xf32> to vector<8x16xf32>
    %340 = vector.shape_cast %336 : vector<8x16xf32> to vector<1x8x16xf32>
    %341 = vector.shape_cast %337 : vector<8x16xf32> to vector<1x8x16xf32>
    %342 = vector.shape_cast %338 : vector<8x16xf32> to vector<1x8x16xf32>
    %343 = vector.shape_cast %339 : vector<8x16xf32> to vector<1x8x16xf32>
    %344 = tpu.concatenate %340, %341, %342, %343 in 0 : vector<1x8x16xf32>, vector<1x8x16xf32>, vector<1x8x16xf32>, vector<1x8x16xf32> -> vector<4x8x16xf32>
    "tpu.trace_start"() <{level = 10 : i32, message = "hsd,htd->hst"}> : () -> ()
    %cst_80 = arith.constant dense<0.000000e+00> : vector<4x8x8xf32>
    %345 = tpu.matmul %326, %335, %cst_80 {dimension_numbers = #tpu.dot_dimension_numbers<[2], [2], [1], [1], [0, 0, 0, 1, 1, 1], [0], [0]>} : vector<4x8x16xf32>, vector<4x8x16xf32>, vector<4x8x8xf32> -> vector<4x8x8xf32>
    "tpu.trace_stop"() : () -> ()
    %cst_81 = arith.constant dense<0xFF800000> : vector<4x8xf32>
    %346 = vector.multi_reduction <maximumf>, %345, %cst_81 [2] : vector<4x8x8xf32> to vector<4x8xf32>
    %347 = vector.shape_cast %346 : vector<4x8xf32> to vector<4x8x1xf32>
    %348 = vector.broadcast %347 : vector<4x8x1xf32> to vector<4x8x8xf32>
    %349 = arith.subf %345, %348 : vector<4x8x8xf32>
    %350 = math.exp %349 : vector<4x8x8xf32>
    %cst_82 = arith.constant dense<0.000000e+00> : vector<4x8xf32>
    %351 = vector.multi_reduction <add>, %350, %cst_82 [2] : vector<4x8x8xf32> to vector<4x8xf32>
    %352 = vector.shape_cast %351 : vector<4x8xf32> to vector<4x8x1xf32>
    %353 = vector.broadcast %352 : vector<4x8x1xf32> to vector<4x8x8xf32>
    %354 = arith.divf %350, %353 : vector<4x8x8xf32>
    "tpu.trace_start"() <{level = 10 : i32, message = "hst,htd->hsd"}> : () -> ()
    %cst_83 = arith.constant dense<0.000000e+00> : vector<4x8x16xf32>
    %355 = tpu.matmul %354, %344, %cst_83 {dimension_numbers = #tpu.dot_dimension_numbers<[2], [1], [1], [2], [0, 0, 0, 1, 1, 2], [0], [0]>} : vector<4x8x8xf32>, vector<4x8x16xf32>, vector<4x8x16xf32> -> vector<4x8x16xf32>
    "tpu.trace_stop"() : () -> ()
    %356 = vector.extract_strided_slice %355 {offsets = [0, 0, 0], sizes = [1, 8, 16], strides = [1, 1, 1]} : vector<4x8x16xf32> to vector<1x8x16xf32>
    %357 = vector.shape_cast %356 : vector<1x8x16xf32> to vector<8x16xf32>
    %358 = vector.extract_strided_slice %355 {offsets = [1, 0, 0], sizes = [1, 8, 16], strides = [1, 1, 1]} : vector<4x8x16xf32> to vector<1x8x16xf32>
    %359 = vector.shape_cast %358 : vector<1x8x16xf32> to vector<8x16xf32>
    %360 = vector.extract_strided_slice %355 {offsets = [2, 0, 0], sizes = [1, 8, 16], strides = [1, 1, 1]} : vector<4x8x16xf32> to vector<1x8x16xf32>
    %361 = vector.shape_cast %360 : vector<1x8x16xf32> to vector<8x16xf32>
    %362 = vector.extract_strided_slice %355 {offsets = [3, 0, 0], sizes = [1, 8, 16], strides = [1, 1, 1]} : vector<4x8x16xf32> to vector<1x8x16xf32>
    %363 = vector.shape_cast %362 : vector<1x8x16xf32> to vector<8x16xf32>
    %364 = tpu.concatenate %357, %359, %361, %363 in 1 : vector<8x16xf32>, vector<8x16xf32>, vector<8x16xf32>, vector<8x16xf32> -> vector<8x64xf32>
    %365 = arith.truncf %364 : vector<8x64xf32> to vector<8x64xbf16>
    %cst_84 = arith.constant dense<0.000000e+00> : vector<8x64xf32>
    %366 = tpu.matmul %365, %304, %cst_84 {dimension_numbers = #tpu.dot_dimension_numbers<[1], [0], [0], [1], [0, 0, 1, 1], [], []>} : vector<8x64xbf16>, vector<64x64xbf16>, vector<8x64xf32> -> vector<8x64xf32>
    %367 = vector.broadcast %307 : vector<1x64xf32> to vector<8x64xf32>
    %368 = arith.addf %366, %367 : vector<8x64xf32>
    %369 = arith.addf %296, %368 : vector<8x64xf32>
    %cst_85 = arith.constant dense<0.000000e+00> : vector<8xf32>
    %370 = vector.multi_reduction <add>, %369, %cst_85 [1] : vector<8x64xf32> to vector<8xf32>
    %371 = vector.shape_cast %370 : vector<8xf32> to vector<8x1xf32>
    %cst_86 = arith.constant 6.400000e+01 : f32
    %372 = vector.broadcast %cst_86 : f32 to vector<8x1xf32>
    %373 = arith.divf %371, %372 : vector<8x1xf32>
    %374 = arith.mulf %369, %369 : vector<8x64xf32>
    %cst_87 = arith.constant dense<0.000000e+00> : vector<8xf32>
    %375 = vector.multi_reduction <add>, %374, %cst_87 [1] : vector<8x64xf32> to vector<8xf32>
    %376 = vector.shape_cast %375 : vector<8xf32> to vector<8x1xf32>
    %cst_88 = arith.constant 6.400000e+01 : f32
    %377 = vector.broadcast %cst_88 : f32 to vector<8x1xf32>
    %378 = arith.divf %376, %377 : vector<8x1xf32>
    %379 = vector.broadcast %373 : vector<8x1xf32> to vector<8x64xf32>
    %380 = arith.subf %369, %379 : vector<8x64xf32>
    %381 = arith.mulf %373, %373 : vector<8x1xf32>
    %382 = arith.subf %378, %381 : vector<8x1xf32>
    %cst_89 = arith.constant 9.99999974E-6 : f32
    %383 = vector.broadcast %cst_89 : f32 to vector<8x1xf32>
    %384 = arith.addf %382, %383 : vector<8x1xf32>
    %385 = math.rsqrt %384 : vector<8x1xf32>
    %386 = vector.broadcast %385 : vector<8x1xf32> to vector<8x64xf32>
    %387 = arith.mulf %380, %386 : vector<8x64xf32>
    %388 = vector.broadcast %310 : vector<1x64xf32> to vector<8x64xf32>
    %389 = arith.mulf %387, %388 : vector<8x64xf32>
    %390 = vector.broadcast %311 : vector<1x64xf32> to vector<8x64xf32>
    %391 = arith.addf %389, %390 : vector<8x64xf32>
    %392 = arith.truncf %391 : vector<8x64xf32> to vector<8x64xbf16>
    %cst_90 = arith.constant dense<0.000000e+00> : vector<8x256xf32>
    %393 = tpu.matmul %392, %305, %cst_90 {dimension_numbers = #tpu.dot_dimension_numbers<[1], [0], [0], [1], [0, 0, 1, 1], [], []>} : vector<8x64xbf16>, vector<64x256xbf16>, vector<8x256xf32> -> vector<8x256xf32>
    %394 = vector.broadcast %308 : vector<1x256xf32> to vector<8x256xf32>
    %395 = arith.addf %393, %394 : vector<8x256xf32>
    %cst_91 = arith.constant 0.000000e+00 : f32
    %396 = vector.broadcast %cst_91 : f32 to vector<8x256xf32>
    %397 = arith.maximumf %395, %396 : vector<8x256xf32>
    %398 = arith.truncf %397 : vector<8x256xf32> to vector<8x256xbf16>
    %cst_92 = arith.constant dense<0.000000e+00> : vector<8x64xf32>
    %399 = tpu.matmul %398, %300, %cst_92 {dimension_numbers = #tpu.dot_dimension_numbers<[1], [0], [0], [1], [0, 0, 1, 1], [], []>} : vector<8x256xbf16>, vector<256x64xbf16>, vector<8x64xf32> -> vector<8x64xf32>
    %400 = vector.broadcast %309 : vector<1x64xf32> to vector<8x64xf32>
    %401 = arith.addf %399, %400 : vector<8x64xf32>
    %402 = arith.addf %391, %401 : vector<8x64xf32>
    %cst_93 = arith.constant dense<0.000000e+00> : vector<8xf32>
    %403 = vector.multi_reduction <add>, %402, %cst_93 [1] : vector<8x64xf32> to vector<8xf32>
    %404 = vector.shape_cast %403 : vector<8xf32> to vector<8x1xf32>
    %cst_94 = arith.constant 6.400000e+01 : f32
    %405 = vector.broadcast %cst_94 : f32 to vector<8x1xf32>
    %406 = arith.divf %404, %405 : vector<8x1xf32>
    %407 = arith.mulf %402, %402 : vector<8x64xf32>
    %cst_95 = arith.constant dense<0.000000e+00> : vector<8xf32>
    %408 = vector.multi_reduction <add>, %407, %cst_95 [1] : vector<8x64xf32> to vector<8xf32>
    %409 = vector.shape_cast %408 : vector<8xf32> to vector<8x1xf32>
    %cst_96 = arith.constant 6.400000e+01 : f32
    %410 = vector.broadcast %cst_96 : f32 to vector<8x1xf32>
    %411 = arith.divf %409, %410 : vector<8x1xf32>
    %412 = vector.broadcast %406 : vector<8x1xf32> to vector<8x64xf32>
    %413 = arith.subf %402, %412 : vector<8x64xf32>
    %414 = arith.mulf %406, %406 : vector<8x1xf32>
    %415 = arith.subf %411, %414 : vector<8x1xf32>
    %cst_97 = arith.constant 9.99999974E-6 : f32
    %416 = vector.broadcast %cst_97 : f32 to vector<8x1xf32>
    %417 = arith.addf %415, %416 : vector<8x1xf32>
    %418 = math.rsqrt %417 : vector<8x1xf32>
    %419 = vector.broadcast %418 : vector<8x1xf32> to vector<8x64xf32>
    %420 = arith.mulf %413, %419 : vector<8x64xf32>
    %421 = vector.broadcast %312 : vector<1x64xf32> to vector<8x64xf32>
    %422 = arith.mulf %420, %421 : vector<8x64xf32>
    %423 = vector.broadcast %313 : vector<1x64xf32> to vector<8x64xf32>
    %424 = arith.addf %422, %423 : vector<8x64xf32>
    %c1_98 = arith.constant 1 : index
    %c0_99 = arith.constant 0 : index
    %c0_100 = arith.constant 0 : index
    %425 = vector.load %arg5[%c1_98, %c0_99, %c0_100] : memref<2x64x512xbf16, #tpu.memory_space<vmem>>, vector<1x64x512xbf16>
    %426 = vector.shape_cast %425 : vector<1x64x512xbf16> to vector<64x512xbf16>
    %c1_101 = arith.constant 1 : index
    %c0_102 = arith.constant 0 : index
    %c0_103 = arith.constant 0 : index
    %427 = vector.load %arg6[%c1_101, %c0_102, %c0_103] : memref<2x256x64xbf16, #tpu.memory_space<vmem>>, vector<1x256x64xbf16>
    %428 = vector.shape_cast %427 : vector<1x256x64xbf16> to vector<256x64xbf16>
    %c1_104 = arith.constant 1 : index
    %c0_105 = arith.constant 0 : index
    %c0_106 = arith.constant 0 : index
    %429 = vector.load %arg7[%c1_104, %c0_105, %c0_106] : memref<2x8x256xf32, #tpu.memory_space<vmem>>, vector<1x8x256xf32>
    %430 = vector.shape_cast %429 : vector<1x8x256xf32> to vector<8x256xf32>
    %431 = vector.extract_strided_slice %426 {offsets = [0, 0], sizes = [64, 192], strides = [1, 1]} : vector<64x512xbf16> to vector<64x192xbf16>
    %432 = vector.extract_strided_slice %426 {offsets = [0, 192], sizes = [64, 64], strides = [1, 1]} : vector<64x512xbf16> to vector<64x64xbf16>
    %433 = vector.extract_strided_slice %426 {offsets = [0, 256], sizes = [64, 256], strides = [1, 1]} : vector<64x512xbf16> to vector<64x256xbf16>
    %434 = vector.extract_strided_slice %430 {offsets = [0, 0], sizes = [1, 192], strides = [1, 1]} : vector<8x256xf32> to vector<1x192xf32>
    %435 = vector.extract_strided_slice %430 {offsets = [0, 192], sizes = [1, 64], strides = [1, 1]} : vector<8x256xf32> to vector<1x64xf32>
    %436 = vector.extract_strided_slice %430 {offsets = [1, 0], sizes = [1, 256], strides = [1, 1]} : vector<8x256xf32> to vector<1x256xf32>
    %437 = vector.extract_strided_slice %430 {offsets = [2, 0], sizes = [1, 64], strides = [1, 1]} : vector<8x256xf32> to vector<1x64xf32>
    %438 = vector.extract_strided_slice %430 {offsets = [2, 64], sizes = [1, 64], strides = [1, 1]} : vector<8x256xf32> to vector<1x64xf32>
    %439 = vector.extract_strided_slice %430 {offsets = [2, 128], sizes = [1, 64], strides = [1, 1]} : vector<8x256xf32> to vector<1x64xf32>
    %440 = vector.extract_strided_slice %430 {offsets = [2, 192], sizes = [1, 64], strides = [1, 1]} : vector<8x256xf32> to vector<1x64xf32>
    %441 = vector.extract_strided_slice %430 {offsets = [3, 0], sizes = [1, 64], strides = [1, 1]} : vector<8x256xf32> to vector<1x64xf32>
    %442 = arith.truncf %424 : vector<8x64xf32> to vector<8x64xbf16>
    %cst_107 = arith.constant dense<0.000000e+00> : vector<8x192xf32>
    %443 = tpu.matmul %442, %431, %cst_107 {dimension_numbers = #tpu.dot_dimension_numbers<[1], [0], [0], [1], [0, 0, 1, 1], [], []>} : vector<8x64xbf16>, vector<64x192xbf16>, vector<8x192xf32> -> vector<8x192xf32>
    %444 = vector.broadcast %434 : vector<1x192xf32> to vector<8x192xf32>
    %445 = arith.addf %443, %444 : vector<8x192xf32>
    %446 = vector.extract_strided_slice %445 {offsets = [0, 0], sizes = [8, 16], strides = [1, 1]} : vector<8x192xf32> to vector<8x16xf32>
    %447 = vector.extract_strided_slice %445 {offsets = [0, 16], sizes = [8, 16], strides = [1, 1]} : vector<8x192xf32> to vector<8x16xf32>
    %448 = vector.extract_strided_slice %445 {offsets = [0, 32], sizes = [8, 16], strides = [1, 1]} : vector<8x192xf32> to vector<8x16xf32>
    %449 = vector.extract_strided_slice %445 {offsets = [0, 48], sizes = [8, 16], strides = [1, 1]} : vector<8x192xf32> to vector<8x16xf32>
    %450 = vector.shape_cast %446 : vector<8x16xf32> to vector<1x8x16xf32>
    %451 = vector.shape_cast %447 : vector<8x16xf32> to vector<1x8x16xf32>
    %452 = vector.shape_cast %448 : vector<8x16xf32> to vector<1x8x16xf32>
    %453 = vector.shape_cast %449 : vector<8x16xf32> to vector<1x8x16xf32>
    %454 = tpu.concatenate %450, %451, %452, %453 in 0 : vector<1x8x16xf32>, vector<1x8x16xf32>, vector<1x8x16xf32>, vector<1x8x16xf32> -> vector<4x8x16xf32>
    %455 = vector.extract_strided_slice %445 {offsets = [0, 64], sizes = [8, 16], strides = [1, 1]} : vector<8x192xf32> to vector<8x16xf32>
    %456 = vector.extract_strided_slice %445 {offsets = [0, 80], sizes = [8, 16], strides = [1, 1]} : vector<8x192xf32> to vector<8x16xf32>
    %457 = vector.extract_strided_slice %445 {offsets = [0, 96], sizes = [8, 16], strides = [1, 1]} : vector<8x192xf32> to vector<8x16xf32>
    %458 = vector.extract_strided_slice %445 {offsets = [0, 112], sizes = [8, 16], strides = [1, 1]} : vector<8x192xf32> to vector<8x16xf32>
    %459 = vector.shape_cast %455 : vector<8x16xf32> to vector<1x8x16xf32>
    %460 = vector.shape_cast %456 : vector<8x16xf32> to vector<1x8x16xf32>
    %461 = vector.shape_cast %457 : vector<8x16xf32> to vector<1x8x16xf32>
    %462 = vector.shape_cast %458 : vector<8x16xf32> to vector<1x8x16xf32>
    %463 = tpu.concatenate %459, %460, %461, %462 in 0 : vector<1x8x16xf32>, vector<1x8x16xf32>, vector<1x8x16xf32>, vector<1x8x16xf32> -> vector<4x8x16xf32>
    %464 = vector.extract_strided_slice %445 {offsets = [0, 128], sizes = [8, 16], strides = [1, 1]} : vector<8x192xf32> to vector<8x16xf32>
    %465 = vector.extract_strided_slice %445 {offsets = [0, 144], sizes = [8, 16], strides = [1, 1]} : vector<8x192xf32> to vector<8x16xf32>
    %466 = vector.extract_strided_slice %445 {offsets = [0, 160], sizes = [8, 16], strides = [1, 1]} : vector<8x192xf32> to vector<8x16xf32>
    %467 = vector.extract_strided_slice %445 {offsets = [0, 176], sizes = [8, 16], strides = [1, 1]} : vector<8x192xf32> to vector<8x16xf32>
    %468 = vector.shape_cast %464 : vector<8x16xf32> to vector<1x8x16xf32>
    %469 = vector.shape_cast %465 : vector<8x16xf32> to vector<1x8x16xf32>
    %470 = vector.shape_cast %466 : vector<8x16xf32> to vector<1x8x16xf32>
    %471 = vector.shape_cast %467 : vector<8x16xf32> to vector<1x8x16xf32>
    %472 = tpu.concatenate %468, %469, %470, %471 in 0 : vector<1x8x16xf32>, vector<1x8x16xf32>, vector<1x8x16xf32>, vector<1x8x16xf32> -> vector<4x8x16xf32>
    "tpu.trace_start"() <{level = 10 : i32, message = "hsd,htd->hst"}> : () -> ()
    %cst_108 = arith.constant dense<0.000000e+00> : vector<4x8x8xf32>
    %473 = tpu.matmul %454, %463, %cst_108 {dimension_numbers = #tpu.dot_dimension_numbers<[2], [2], [1], [1], [0, 0, 0, 1, 1, 1], [0], [0]>} : vector<4x8x16xf32>, vector<4x8x16xf32>, vector<4x8x8xf32> -> vector<4x8x8xf32>
    "tpu.trace_stop"() : () -> ()
    %cst_109 = arith.constant dense<0xFF800000> : vector<4x8xf32>
    %474 = vector.multi_reduction <maximumf>, %473, %cst_109 [2] : vector<4x8x8xf32> to vector<4x8xf32>
    %475 = vector.shape_cast %474 : vector<4x8xf32> to vector<4x8x1xf32>
    %476 = vector.broadcast %475 : vector<4x8x1xf32> to vector<4x8x8xf32>
    %477 = arith.subf %473, %476 : vector<4x8x8xf32>
    %478 = math.exp %477 : vector<4x8x8xf32>
    %cst_110 = arith.constant dense<0.000000e+00> : vector<4x8xf32>
    %479 = vector.multi_reduction <add>, %478, %cst_110 [2] : vector<4x8x8xf32> to vector<4x8xf32>
    %480 = vector.shape_cast %479 : vector<4x8xf32> to vector<4x8x1xf32>
    %481 = vector.broadcast %480 : vector<4x8x1xf32> to vector<4x8x8xf32>
    %482 = arith.divf %478, %481 : vector<4x8x8xf32>
    "tpu.trace_start"() <{level = 10 : i32, message = "hst,htd->hsd"}> : () -> ()
    %cst_111 = arith.constant dense<0.000000e+00> : vector<4x8x16xf32>
    %483 = tpu.matmul %482, %472, %cst_111 {dimension_numbers = #tpu.dot_dimension_numbers<[2], [1], [1], [2], [0, 0, 0, 1, 1, 2], [0], [0]>} : vector<4x8x8xf32>, vector<4x8x16xf32>, vector<4x8x16xf32> -> vector<4x8x16xf32>
    "tpu.trace_stop"() : () -> ()
    %484 = vector.extract_strided_slice %483 {offsets = [0, 0, 0], sizes = [1, 8, 16], strides = [1, 1, 1]} : vector<4x8x16xf32> to vector<1x8x16xf32>
    %485 = vector.shape_cast %484 : vector<1x8x16xf32> to vector<8x16xf32>
    %486 = vector.extract_strided_slice %483 {offsets = [1, 0, 0], sizes = [1, 8, 16], strides = [1, 1, 1]} : vector<4x8x16xf32> to vector<1x8x16xf32>
    %487 = vector.shape_cast %486 : vector<1x8x16xf32> to vector<8x16xf32>
    %488 = vector.extract_strided_slice %483 {offsets = [2, 0, 0], sizes = [1, 8, 16], strides = [1, 1, 1]} : vector<4x8x16xf32> to vector<1x8x16xf32>
    %489 = vector.shape_cast %488 : vector<1x8x16xf32> to vector<8x16xf32>
    %490 = vector.extract_strided_slice %483 {offsets = [3, 0, 0], sizes = [1, 8, 16], strides = [1, 1, 1]} : vector<4x8x16xf32> to vector<1x8x16xf32>
    %491 = vector.shape_cast %490 : vector<1x8x16xf32> to vector<8x16xf32>
    %492 = tpu.concatenate %485, %487, %489, %491 in 1 : vector<8x16xf32>, vector<8x16xf32>, vector<8x16xf32>, vector<8x16xf32> -> vector<8x64xf32>
    %493 = arith.truncf %492 : vector<8x64xf32> to vector<8x64xbf16>
    %cst_112 = arith.constant dense<0.000000e+00> : vector<8x64xf32>
    %494 = tpu.matmul %493, %432, %cst_112 {dimension_numbers = #tpu.dot_dimension_numbers<[1], [0], [0], [1], [0, 0, 1, 1], [], []>} : vector<8x64xbf16>, vector<64x64xbf16>, vector<8x64xf32> -> vector<8x64xf32>
    %495 = vector.broadcast %435 : vector<1x64xf32> to vector<8x64xf32>
    %496 = arith.addf %494, %495 : vector<8x64xf32>
    %497 = arith.addf %424, %496 : vector<8x64xf32>
    %cst_113 = arith.constant dense<0.000000e+00> : vector<8xf32>
    %498 = vector.multi_reduction <add>, %497, %cst_113 [1] : vector<8x64xf32> to vector<8xf32>
    %499 = vector.shape_cast %498 : vector<8xf32> to vector<8x1xf32>
    %cst_114 = arith.constant 6.400000e+01 : f32
    %500 = vector.broadcast %cst_114 : f32 to vector<8x1xf32>
    %501 = arith.divf %499, %500 : vector<8x1xf32>
    %502 = arith.mulf %497, %497 : vector<8x64xf32>
    %cst_115 = arith.constant dense<0.000000e+00> : vector<8xf32>
    %503 = vector.multi_reduction <add>, %502, %cst_115 [1] : vector<8x64xf32> to vector<8xf32>
    %504 = vector.shape_cast %503 : vector<8xf32> to vector<8x1xf32>
    %cst_116 = arith.constant 6.400000e+01 : f32
    %505 = vector.broadcast %cst_116 : f32 to vector<8x1xf32>
    %506 = arith.divf %504, %505 : vector<8x1xf32>
    %507 = vector.broadcast %501 : vector<8x1xf32> to vector<8x64xf32>
    %508 = arith.subf %497, %507 : vector<8x64xf32>
    %509 = arith.mulf %501, %501 : vector<8x1xf32>
    %510 = arith.subf %506, %509 : vector<8x1xf32>
    %cst_117 = arith.constant 9.99999974E-6 : f32
    %511 = vector.broadcast %cst_117 : f32 to vector<8x1xf32>
    %512 = arith.addf %510, %511 : vector<8x1xf32>
    %513 = math.rsqrt %512 : vector<8x1xf32>
    %514 = vector.broadcast %513 : vector<8x1xf32> to vector<8x64xf32>
    %515 = arith.mulf %508, %514 : vector<8x64xf32>
    %516 = vector.broadcast %438 : vector<1x64xf32> to vector<8x64xf32>
    %517 = arith.mulf %515, %516 : vector<8x64xf32>
    %518 = vector.broadcast %439 : vector<1x64xf32> to vector<8x64xf32>
    %519 = arith.addf %517, %518 : vector<8x64xf32>
    %520 = arith.truncf %519 : vector<8x64xf32> to vector<8x64xbf16>
    %cst_118 = arith.constant dense<0.000000e+00> : vector<8x256xf32>
    %521 = tpu.matmul %520, %433, %cst_118 {dimension_numbers = #tpu.dot_dimension_numbers<[1], [0], [0], [1], [0, 0, 1, 1], [], []>} : vector<8x64xbf16>, vector<64x256xbf16>, vector<8x256xf32> -> vector<8x256xf32>
    %522 = vector.broadcast %436 : vector<1x256xf32> to vector<8x256xf32>
    %523 = arith.addf %521, %522 : vector<8x256xf32>
    %cst_119 = arith.constant 0.000000e+00 : f32
    %524 = vector.broadcast %cst_119 : f32 to vector<8x256xf32>
    %525 = arith.maximumf %523, %524 : vector<8x256xf32>
    %526 = arith.truncf %525 : vector<8x256xf32> to vector<8x256xbf16>
    %cst_120 = arith.constant dense<0.000000e+00> : vector<8x64xf32>
    %527 = tpu.matmul %526, %428, %cst_120 {dimension_numbers = #tpu.dot_dimension_numbers<[1], [0], [0], [1], [0, 0, 1, 1], [], []>} : vector<8x256xbf16>, vector<256x64xbf16>, vector<8x64xf32> -> vector<8x64xf32>
    %528 = vector.broadcast %437 : vector<1x64xf32> to vector<8x64xf32>
    %529 = arith.addf %527, %528 : vector<8x64xf32>
    %530 = arith.addf %519, %529 : vector<8x64xf32>
    %cst_121 = arith.constant dense<0.000000e+00> : vector<8xf32>
    %531 = vector.multi_reduction <add>, %530, %cst_121 [1] : vector<8x64xf32> to vector<8xf32>
    %532 = vector.shape_cast %531 : vector<8xf32> to vector<8x1xf32>
    %cst_122 = arith.constant 6.400000e+01 : f32
    %533 = vector.broadcast %cst_122 : f32 to vector<8x1xf32>
    %534 = arith.divf %532, %533 : vector<8x1xf32>
    %535 = arith.mulf %530, %530 : vector<8x64xf32>
    %cst_123 = arith.constant dense<0.000000e+00> : vector<8xf32>
    %536 = vector.multi_reduction <add>, %535, %cst_123 [1] : vector<8x64xf32> to vector<8xf32>
    %537 = vector.shape_cast %536 : vector<8xf32> to vector<8x1xf32>
    %cst_124 = arith.constant 6.400000e+01 : f32
    %538 = vector.broadcast %cst_124 : f32 to vector<8x1xf32>
    %539 = arith.divf %537, %538 : vector<8x1xf32>
    %540 = vector.broadcast %534 : vector<8x1xf32> to vector<8x64xf32>
    %541 = arith.subf %530, %540 : vector<8x64xf32>
    %542 = arith.mulf %534, %534 : vector<8x1xf32>
    %543 = arith.subf %539, %542 : vector<8x1xf32>
    %cst_125 = arith.constant 9.99999974E-6 : f32
    %544 = vector.broadcast %cst_125 : f32 to vector<8x1xf32>
    %545 = arith.addf %543, %544 : vector<8x1xf32>
    %546 = math.rsqrt %545 : vector<8x1xf32>
    %547 = vector.broadcast %546 : vector<8x1xf32> to vector<8x64xf32>
    %548 = arith.mulf %541, %547 : vector<8x64xf32>
    %549 = vector.broadcast %440 : vector<1x64xf32> to vector<8x64xf32>
    %550 = arith.mulf %548, %549 : vector<8x64xf32>
    %551 = vector.broadcast %441 : vector<1x64xf32> to vector<8x64xf32>
    %552 = arith.addf %550, %551 : vector<8x64xf32>
    %553 = arith.addf %552, %294 : vector<8x64xf32>
    %c240_126 = arith.constant 240 : index
    %c0_127 = arith.constant 0 : index
    %554 = vector.load %arg2[%c240_126, %c0_127] : memref<432x64xbf16, #tpu.memory_space<vmem>>, vector<64x64xbf16>
    %555 = arith.truncf %553 : vector<8x64xf32> to vector<8x64xbf16>
    %cst_128 = arith.constant dense<0.000000e+00> : vector<8x64xf32>
    %556 = tpu.matmul %555, %554, %cst_128 {dimension_numbers = #tpu.dot_dimension_numbers<[1], [0], [0], [1], [0, 0, 1, 1], [], []>} : vector<8x64xbf16>, vector<64x64xbf16>, vector<8x64xf32> -> vector<8x64xf32>
    %557 = vector.broadcast %5 : vector<1x64xf32> to vector<8x64xf32>
    %558 = arith.addf %556, %557 : vector<8x64xf32>
    %cst_129 = arith.constant 0.000000e+00 : f32
    %559 = vector.broadcast %cst_129 : f32 to vector<8x64xf32>
    %560 = arith.maximumf %558, %559 : vector<8x64xf32>
    %c304_130 = arith.constant 304 : index
    %c0_131 = arith.constant 0 : index
    %561 = vector.load %arg2[%c304_130, %c0_131] : memref<432x64xbf16, #tpu.memory_space<vmem>>, vector<64x64xbf16>
    %562 = arith.truncf %560 : vector<8x64xf32> to vector<8x64xbf16>
    %cst_132 = arith.constant dense<0.000000e+00> : vector<8x64xf32>
    %563 = tpu.matmul %562, %561, %cst_132 {dimension_numbers = #tpu.dot_dimension_numbers<[1], [0], [0], [1], [0, 0, 1, 1], [], []>} : vector<8x64xbf16>, vector<64x64xbf16>, vector<8x64xf32> -> vector<8x64xf32>
    %564 = vector.broadcast %6 : vector<1x64xf32> to vector<8x64xf32>
    %565 = arith.addf %563, %564 : vector<8x64xf32>
    %c96 = arith.constant 96 : index
    %c0_133 = arith.constant 0 : index
    %566 = vector.load %arg2[%c96, %c0_133] : memref<432x64xbf16, #tpu.memory_space<vmem>>, vector<16x64xbf16>
    %567 = arith.truncf %9 : vector<8x16xf32> to vector<8x16xbf16>
    %cst_134 = arith.constant dense<0.000000e+00> : vector<8x64xf32>
    %568 = tpu.matmul %567, %566, %cst_134 {dimension_numbers = #tpu.dot_dimension_numbers<[1], [0], [0], [1], [0, 0, 1, 1], [], []>} : vector<8x16xbf16>, vector<16x64xbf16>, vector<8x64xf32> -> vector<8x64xf32>
    %c112 = arith.constant 112 : index
    %c0_135 = arith.constant 0 : index
    %569 = vector.load %arg2[%c112, %c0_135] : memref<432x64xbf16, #tpu.memory_space<vmem>>, vector<64x64xbf16>
    %570 = arith.truncf %285 : vector<8x64xf32> to vector<8x64xbf16>
    %cst_136 = arith.constant dense<0.000000e+00> : vector<8x64xf32>
    %571 = tpu.matmul %570, %569, %cst_136 {dimension_numbers = #tpu.dot_dimension_numbers<[1], [0], [0], [1], [0, 0, 1, 1], [], []>} : vector<8x64xbf16>, vector<64x64xbf16>, vector<8x64xf32> -> vector<8x64xf32>
    %572 = arith.addf %568, %571 : vector<8x64xf32>
    %c176 = arith.constant 176 : index
    %c0_137 = arith.constant 0 : index
    %573 = vector.load %arg2[%c176, %c0_137] : memref<432x64xbf16, #tpu.memory_space<vmem>>, vector<64x64xbf16>
    %574 = arith.truncf %565 : vector<8x64xf32> to vector<8x64xbf16>
    %cst_138 = arith.constant dense<0.000000e+00> : vector<8x64xf32>
    %575 = tpu.matmul %574, %573, %cst_138 {dimension_numbers = #tpu.dot_dimension_numbers<[1], [0], [0], [1], [0, 0, 1, 1], [], []>} : vector<8x64xbf16>, vector<64x64xbf16>, vector<8x64xf32> -> vector<8x64xf32>
    %576 = arith.addf %572, %575 : vector<8x64xf32>
    %577 = vector.broadcast %4 : vector<1x64xf32> to vector<8x64xf32>
    %578 = arith.addf %576, %577 : vector<8x64xf32>
    %579 = vector.broadcast %1 : vector<1x64xf32> to vector<8x64xf32>
    %580 = arith.addf %578, %579 : vector<8x64xf32>
    %c0_139 = arith.constant 0 : index
    %c0_140 = arith.constant 0 : index
    %c0_141 = arith.constant 0 : index
    %581 = vector.load %arg5[%c0_139, %c0_140, %c0_141] : memref<2x64x512xbf16, #tpu.memory_space<vmem>>, vector<1x64x512xbf16>
    %582 = vector.shape_cast %581 : vector<1x64x512xbf16> to vector<64x512xbf16>
    %c0_142 = arith.constant 0 : index
    %c0_143 = arith.constant 0 : index
    %c0_144 = arith.constant 0 : index
    %583 = vector.load %arg6[%c0_142, %c0_143, %c0_144] : memref<2x256x64xbf16, #tpu.memory_space<vmem>>, vector<1x256x64xbf16>
    %584 = vector.shape_cast %583 : vector<1x256x64xbf16> to vector<256x64xbf16>
    %c0_145 = arith.constant 0 : index
    %c0_146 = arith.constant 0 : index
    %c0_147 = arith.constant 0 : index
    %585 = vector.load %arg7[%c0_145, %c0_146, %c0_147] : memref<2x8x256xf32, #tpu.memory_space<vmem>>, vector<1x8x256xf32>
    %586 = vector.shape_cast %585 : vector<1x8x256xf32> to vector<8x256xf32>
    %587 = vector.extract_strided_slice %582 {offsets = [0, 0], sizes = [64, 192], strides = [1, 1]} : vector<64x512xbf16> to vector<64x192xbf16>
    %588 = vector.extract_strided_slice %582 {offsets = [0, 192], sizes = [64, 64], strides = [1, 1]} : vector<64x512xbf16> to vector<64x64xbf16>
    %589 = vector.extract_strided_slice %582 {offsets = [0, 256], sizes = [64, 256], strides = [1, 1]} : vector<64x512xbf16> to vector<64x256xbf16>
    %590 = vector.extract_strided_slice %586 {offsets = [0, 0], sizes = [1, 192], strides = [1, 1]} : vector<8x256xf32> to vector<1x192xf32>
    %591 = vector.extract_strided_slice %586 {offsets = [0, 192], sizes = [1, 64], strides = [1, 1]} : vector<8x256xf32> to vector<1x64xf32>
    %592 = vector.extract_strided_slice %586 {offsets = [1, 0], sizes = [1, 256], strides = [1, 1]} : vector<8x256xf32> to vector<1x256xf32>
    %593 = vector.extract_strided_slice %586 {offsets = [2, 0], sizes = [1, 64], strides = [1, 1]} : vector<8x256xf32> to vector<1x64xf32>
    %594 = vector.extract_strided_slice %586 {offsets = [2, 64], sizes = [1, 64], strides = [1, 1]} : vector<8x256xf32> to vector<1x64xf32>
    %595 = vector.extract_strided_slice %586 {offsets = [2, 128], sizes = [1, 64], strides = [1, 1]} : vector<8x256xf32> to vector<1x64xf32>
    %596 = vector.extract_strided_slice %586 {offsets = [2, 192], sizes = [1, 64], strides = [1, 1]} : vector<8x256xf32> to vector<1x64xf32>
    %597 = vector.extract_strided_slice %586 {offsets = [3, 0], sizes = [1, 64], strides = [1, 1]} : vector<8x256xf32> to vector<1x64xf32>
    %598 = arith.truncf %580 : vector<8x64xf32> to vector<8x64xbf16>
    %cst_148 = arith.constant dense<0.000000e+00> : vector<8x192xf32>
    %599 = tpu.matmul %598, %587, %cst_148 {dimension_numbers = #tpu.dot_dimension_numbers<[1], [0], [0], [1], [0, 0, 1, 1], [], []>} : vector<8x64xbf16>, vector<64x192xbf16>, vector<8x192xf32> -> vector<8x192xf32>
    %600 = vector.broadcast %590 : vector<1x192xf32> to vector<8x192xf32>
    %601 = arith.addf %599, %600 : vector<8x192xf32>
    %602 = vector.extract_strided_slice %601 {offsets = [0, 0], sizes = [8, 16], strides = [1, 1]} : vector<8x192xf32> to vector<8x16xf32>
    %603 = vector.extract_strided_slice %601 {offsets = [0, 16], sizes = [8, 16], strides = [1, 1]} : vector<8x192xf32> to vector<8x16xf32>
    %604 = vector.extract_strided_slice %601 {offsets = [0, 32], sizes = [8, 16], strides = [1, 1]} : vector<8x192xf32> to vector<8x16xf32>
    %605 = vector.extract_strided_slice %601 {offsets = [0, 48], sizes = [8, 16], strides = [1, 1]} : vector<8x192xf32> to vector<8x16xf32>
    %606 = vector.shape_cast %602 : vector<8x16xf32> to vector<1x8x16xf32>
    %607 = vector.shape_cast %603 : vector<8x16xf32> to vector<1x8x16xf32>
    %608 = vector.shape_cast %604 : vector<8x16xf32> to vector<1x8x16xf32>
    %609 = vector.shape_cast %605 : vector<8x16xf32> to vector<1x8x16xf32>
    %610 = tpu.concatenate %606, %607, %608, %609 in 0 : vector<1x8x16xf32>, vector<1x8x16xf32>, vector<1x8x16xf32>, vector<1x8x16xf32> -> vector<4x8x16xf32>
    %611 = vector.extract_strided_slice %601 {offsets = [0, 64], sizes = [8, 16], strides = [1, 1]} : vector<8x192xf32> to vector<8x16xf32>
    %612 = vector.extract_strided_slice %601 {offsets = [0, 80], sizes = [8, 16], strides = [1, 1]} : vector<8x192xf32> to vector<8x16xf32>
    %613 = vector.extract_strided_slice %601 {offsets = [0, 96], sizes = [8, 16], strides = [1, 1]} : vector<8x192xf32> to vector<8x16xf32>
    %614 = vector.extract_strided_slice %601 {offsets = [0, 112], sizes = [8, 16], strides = [1, 1]} : vector<8x192xf32> to vector<8x16xf32>
    %615 = vector.shape_cast %611 : vector<8x16xf32> to vector<1x8x16xf32>
    %616 = vector.shape_cast %612 : vector<8x16xf32> to vector<1x8x16xf32>
    %617 = vector.shape_cast %613 : vector<8x16xf32> to vector<1x8x16xf32>
    %618 = vector.shape_cast %614 : vector<8x16xf32> to vector<1x8x16xf32>
    %619 = tpu.concatenate %615, %616, %617, %618 in 0 : vector<1x8x16xf32>, vector<1x8x16xf32>, vector<1x8x16xf32>, vector<1x8x16xf32> -> vector<4x8x16xf32>
    %620 = vector.extract_strided_slice %601 {offsets = [0, 128], sizes = [8, 16], strides = [1, 1]} : vector<8x192xf32> to vector<8x16xf32>
    %621 = vector.extract_strided_slice %601 {offsets = [0, 144], sizes = [8, 16], strides = [1, 1]} : vector<8x192xf32> to vector<8x16xf32>
    %622 = vector.extract_strided_slice %601 {offsets = [0, 160], sizes = [8, 16], strides = [1, 1]} : vector<8x192xf32> to vector<8x16xf32>
    %623 = vector.extract_strided_slice %601 {offsets = [0, 176], sizes = [8, 16], strides = [1, 1]} : vector<8x192xf32> to vector<8x16xf32>
    %624 = vector.shape_cast %620 : vector<8x16xf32> to vector<1x8x16xf32>
    %625 = vector.shape_cast %621 : vector<8x16xf32> to vector<1x8x16xf32>
    %626 = vector.shape_cast %622 : vector<8x16xf32> to vector<1x8x16xf32>
    %627 = vector.shape_cast %623 : vector<8x16xf32> to vector<1x8x16xf32>
    %628 = tpu.concatenate %624, %625, %626, %627 in 0 : vector<1x8x16xf32>, vector<1x8x16xf32>, vector<1x8x16xf32>, vector<1x8x16xf32> -> vector<4x8x16xf32>
    "tpu.trace_start"() <{level = 10 : i32, message = "hsd,htd->hst"}> : () -> ()
    %cst_149 = arith.constant dense<0.000000e+00> : vector<4x8x8xf32>
    %629 = tpu.matmul %610, %619, %cst_149 {dimension_numbers = #tpu.dot_dimension_numbers<[2], [2], [1], [1], [0, 0, 0, 1, 1, 1], [0], [0]>} : vector<4x8x16xf32>, vector<4x8x16xf32>, vector<4x8x8xf32> -> vector<4x8x8xf32>
    "tpu.trace_stop"() : () -> ()
    %cst_150 = arith.constant dense<0xFF800000> : vector<4x8xf32>
    %630 = vector.multi_reduction <maximumf>, %629, %cst_150 [2] : vector<4x8x8xf32> to vector<4x8xf32>
    %631 = vector.shape_cast %630 : vector<4x8xf32> to vector<4x8x1xf32>
    %632 = vector.broadcast %631 : vector<4x8x1xf32> to vector<4x8x8xf32>
    %633 = arith.subf %629, %632 : vector<4x8x8xf32>
    %634 = math.exp %633 : vector<4x8x8xf32>
    %cst_151 = arith.constant dense<0.000000e+00> : vector<4x8xf32>
    %635 = vector.multi_reduction <add>, %634, %cst_151 [2] : vector<4x8x8xf32> to vector<4x8xf32>
    %636 = vector.shape_cast %635 : vector<4x8xf32> to vector<4x8x1xf32>
    %637 = vector.broadcast %636 : vector<4x8x1xf32> to vector<4x8x8xf32>
    %638 = arith.divf %634, %637 : vector<4x8x8xf32>
    "tpu.trace_start"() <{level = 10 : i32, message = "hst,htd->hsd"}> : () -> ()
    %cst_152 = arith.constant dense<0.000000e+00> : vector<4x8x16xf32>
    %639 = tpu.matmul %638, %628, %cst_152 {dimension_numbers = #tpu.dot_dimension_numbers<[2], [1], [1], [2], [0, 0, 0, 1, 1, 2], [0], [0]>} : vector<4x8x8xf32>, vector<4x8x16xf32>, vector<4x8x16xf32> -> vector<4x8x16xf32>
    "tpu.trace_stop"() : () -> ()
    %640 = vector.extract_strided_slice %639 {offsets = [0, 0, 0], sizes = [1, 8, 16], strides = [1, 1, 1]} : vector<4x8x16xf32> to vector<1x8x16xf32>
    %641 = vector.shape_cast %640 : vector<1x8x16xf32> to vector<8x16xf32>
    %642 = vector.extract_strided_slice %639 {offsets = [1, 0, 0], sizes = [1, 8, 16], strides = [1, 1, 1]} : vector<4x8x16xf32> to vector<1x8x16xf32>
    %643 = vector.shape_cast %642 : vector<1x8x16xf32> to vector<8x16xf32>
    %644 = vector.extract_strided_slice %639 {offsets = [2, 0, 0], sizes = [1, 8, 16], strides = [1, 1, 1]} : vector<4x8x16xf32> to vector<1x8x16xf32>
    %645 = vector.shape_cast %644 : vector<1x8x16xf32> to vector<8x16xf32>
    %646 = vector.extract_strided_slice %639 {offsets = [3, 0, 0], sizes = [1, 8, 16], strides = [1, 1, 1]} : vector<4x8x16xf32> to vector<1x8x16xf32>
    %647 = vector.shape_cast %646 : vector<1x8x16xf32> to vector<8x16xf32>
    %648 = tpu.concatenate %641, %643, %645, %647 in 1 : vector<8x16xf32>, vector<8x16xf32>, vector<8x16xf32>, vector<8x16xf32> -> vector<8x64xf32>
    %649 = arith.truncf %648 : vector<8x64xf32> to vector<8x64xbf16>
    %cst_153 = arith.constant dense<0.000000e+00> : vector<8x64xf32>
    %650 = tpu.matmul %649, %588, %cst_153 {dimension_numbers = #tpu.dot_dimension_numbers<[1], [0], [0], [1], [0, 0, 1, 1], [], []>} : vector<8x64xbf16>, vector<64x64xbf16>, vector<8x64xf32> -> vector<8x64xf32>
    %651 = vector.broadcast %591 : vector<1x64xf32> to vector<8x64xf32>
    %652 = arith.addf %650, %651 : vector<8x64xf32>
    %653 = arith.addf %580, %652 : vector<8x64xf32>
    %cst_154 = arith.constant dense<0.000000e+00> : vector<8xf32>
    %654 = vector.multi_reduction <add>, %653, %cst_154 [1] : vector<8x64xf32> to vector<8xf32>
    %655 = vector.shape_cast %654 : vector<8xf32> to vector<8x1xf32>
    %cst_155 = arith.constant 6.400000e+01 : f32
    %656 = vector.broadcast %cst_155 : f32 to vector<8x1xf32>
    %657 = arith.divf %655, %656 : vector<8x1xf32>
    %658 = arith.mulf %653, %653 : vector<8x64xf32>
    %cst_156 = arith.constant dense<0.000000e+00> : vector<8xf32>
    %659 = vector.multi_reduction <add>, %658, %cst_156 [1] : vector<8x64xf32> to vector<8xf32>
    %660 = vector.shape_cast %659 : vector<8xf32> to vector<8x1xf32>
    %cst_157 = arith.constant 6.400000e+01 : f32
    %661 = vector.broadcast %cst_157 : f32 to vector<8x1xf32>
    %662 = arith.divf %660, %661 : vector<8x1xf32>
    %663 = vector.broadcast %657 : vector<8x1xf32> to vector<8x64xf32>
    %664 = arith.subf %653, %663 : vector<8x64xf32>
    %665 = arith.mulf %657, %657 : vector<8x1xf32>
    %666 = arith.subf %662, %665 : vector<8x1xf32>
    %cst_158 = arith.constant 9.99999974E-6 : f32
    %667 = vector.broadcast %cst_158 : f32 to vector<8x1xf32>
    %668 = arith.addf %666, %667 : vector<8x1xf32>
    %669 = math.rsqrt %668 : vector<8x1xf32>
    %670 = vector.broadcast %669 : vector<8x1xf32> to vector<8x64xf32>
    %671 = arith.mulf %664, %670 : vector<8x64xf32>
    %672 = vector.broadcast %594 : vector<1x64xf32> to vector<8x64xf32>
    %673 = arith.mulf %671, %672 : vector<8x64xf32>
    %674 = vector.broadcast %595 : vector<1x64xf32> to vector<8x64xf32>
    %675 = arith.addf %673, %674 : vector<8x64xf32>
    %676 = arith.truncf %675 : vector<8x64xf32> to vector<8x64xbf16>
    %cst_159 = arith.constant dense<0.000000e+00> : vector<8x256xf32>
    %677 = tpu.matmul %676, %589, %cst_159 {dimension_numbers = #tpu.dot_dimension_numbers<[1], [0], [0], [1], [0, 0, 1, 1], [], []>} : vector<8x64xbf16>, vector<64x256xbf16>, vector<8x256xf32> -> vector<8x256xf32>
    %678 = vector.broadcast %592 : vector<1x256xf32> to vector<8x256xf32>
    %679 = arith.addf %677, %678 : vector<8x256xf32>
    %cst_160 = arith.constant 0.000000e+00 : f32
    %680 = vector.broadcast %cst_160 : f32 to vector<8x256xf32>
    %681 = arith.maximumf %679, %680 : vector<8x256xf32>
    %682 = arith.truncf %681 : vector<8x256xf32> to vector<8x256xbf16>
    %cst_161 = arith.constant dense<0.000000e+00> : vector<8x64xf32>
    %683 = tpu.matmul %682, %584, %cst_161 {dimension_numbers = #tpu.dot_dimension_numbers<[1], [0], [0], [1], [0, 0, 1, 1], [], []>} : vector<8x256xbf16>, vector<256x64xbf16>, vector<8x64xf32> -> vector<8x64xf32>
    %684 = vector.broadcast %593 : vector<1x64xf32> to vector<8x64xf32>
    %685 = arith.addf %683, %684 : vector<8x64xf32>
    %686 = arith.addf %675, %685 : vector<8x64xf32>
    %cst_162 = arith.constant dense<0.000000e+00> : vector<8xf32>
    %687 = vector.multi_reduction <add>, %686, %cst_162 [1] : vector<8x64xf32> to vector<8xf32>
    %688 = vector.shape_cast %687 : vector<8xf32> to vector<8x1xf32>
    %cst_163 = arith.constant 6.400000e+01 : f32
    %689 = vector.broadcast %cst_163 : f32 to vector<8x1xf32>
    %690 = arith.divf %688, %689 : vector<8x1xf32>
    %691 = arith.mulf %686, %686 : vector<8x64xf32>
    %cst_164 = arith.constant dense<0.000000e+00> : vector<8xf32>
    %692 = vector.multi_reduction <add>, %691, %cst_164 [1] : vector<8x64xf32> to vector<8xf32>
    %693 = vector.shape_cast %692 : vector<8xf32> to vector<8x1xf32>
    %cst_165 = arith.constant 6.400000e+01 : f32
    %694 = vector.broadcast %cst_165 : f32 to vector<8x1xf32>
    %695 = arith.divf %693, %694 : vector<8x1xf32>
    %696 = vector.broadcast %690 : vector<8x1xf32> to vector<8x64xf32>
    %697 = arith.subf %686, %696 : vector<8x64xf32>
    %698 = arith.mulf %690, %690 : vector<8x1xf32>
    %699 = arith.subf %695, %698 : vector<8x1xf32>
    %cst_166 = arith.constant 9.99999974E-6 : f32
    %700 = vector.broadcast %cst_166 : f32 to vector<8x1xf32>
    %701 = arith.addf %699, %700 : vector<8x1xf32>
    %702 = math.rsqrt %701 : vector<8x1xf32>
    %703 = vector.broadcast %702 : vector<8x1xf32> to vector<8x64xf32>
    %704 = arith.mulf %697, %703 : vector<8x64xf32>
    %705 = vector.broadcast %596 : vector<1x64xf32> to vector<8x64xf32>
    %706 = arith.mulf %704, %705 : vector<8x64xf32>
    %707 = vector.broadcast %597 : vector<1x64xf32> to vector<8x64xf32>
    %708 = arith.addf %706, %707 : vector<8x64xf32>
    %c1_167 = arith.constant 1 : index
    %c0_168 = arith.constant 0 : index
    %c0_169 = arith.constant 0 : index
    %709 = vector.load %arg5[%c1_167, %c0_168, %c0_169] : memref<2x64x512xbf16, #tpu.memory_space<vmem>>, vector<1x64x512xbf16>
    %710 = vector.shape_cast %709 : vector<1x64x512xbf16> to vector<64x512xbf16>
    %c1_170 = arith.constant 1 : index
    %c0_171 = arith.constant 0 : index
    %c0_172 = arith.constant 0 : index
    %711 = vector.load %arg6[%c1_170, %c0_171, %c0_172] : memref<2x256x64xbf16, #tpu.memory_space<vmem>>, vector<1x256x64xbf16>
    %712 = vector.shape_cast %711 : vector<1x256x64xbf16> to vector<256x64xbf16>
    %c1_173 = arith.constant 1 : index
    %c0_174 = arith.constant 0 : index
    %c0_175 = arith.constant 0 : index
    %713 = vector.load %arg7[%c1_173, %c0_174, %c0_175] : memref<2x8x256xf32, #tpu.memory_space<vmem>>, vector<1x8x256xf32>
    %714 = vector.shape_cast %713 : vector<1x8x256xf32> to vector<8x256xf32>
    %715 = vector.extract_strided_slice %710 {offsets = [0, 0], sizes = [64, 192], strides = [1, 1]} : vector<64x512xbf16> to vector<64x192xbf16>
    %716 = vector.extract_strided_slice %710 {offsets = [0, 192], sizes = [64, 64], strides = [1, 1]} : vector<64x512xbf16> to vector<64x64xbf16>
    %717 = vector.extract_strided_slice %710 {offsets = [0, 256], sizes = [64, 256], strides = [1, 1]} : vector<64x512xbf16> to vector<64x256xbf16>
    %718 = vector.extract_strided_slice %714 {offsets = [0, 0], sizes = [1, 192], strides = [1, 1]} : vector<8x256xf32> to vector<1x192xf32>
    %719 = vector.extract_strided_slice %714 {offsets = [0, 192], sizes = [1, 64], strides = [1, 1]} : vector<8x256xf32> to vector<1x64xf32>
    %720 = vector.extract_strided_slice %714 {offsets = [1, 0], sizes = [1, 256], strides = [1, 1]} : vector<8x256xf32> to vector<1x256xf32>
    %721 = vector.extract_strided_slice %714 {offsets = [2, 0], sizes = [1, 64], strides = [1, 1]} : vector<8x256xf32> to vector<1x64xf32>
    %722 = vector.extract_strided_slice %714 {offsets = [2, 64], sizes = [1, 64], strides = [1, 1]} : vector<8x256xf32> to vector<1x64xf32>
    %723 = vector.extract_strided_slice %714 {offsets = [2, 128], sizes = [1, 64], strides = [1, 1]} : vector<8x256xf32> to vector<1x64xf32>
    %724 = vector.extract_strided_slice %714 {offsets = [2, 192], sizes = [1, 64], strides = [1, 1]} : vector<8x256xf32> to vector<1x64xf32>
    %725 = vector.extract_strided_slice %714 {offsets = [3, 0], sizes = [1, 64], strides = [1, 1]} : vector<8x256xf32> to vector<1x64xf32>
    %726 = arith.truncf %708 : vector<8x64xf32> to vector<8x64xbf16>
    %cst_176 = arith.constant dense<0.000000e+00> : vector<8x192xf32>
    %727 = tpu.matmul %726, %715, %cst_176 {dimension_numbers = #tpu.dot_dimension_numbers<[1], [0], [0], [1], [0, 0, 1, 1], [], []>} : vector<8x64xbf16>, vector<64x192xbf16>, vector<8x192xf32> -> vector<8x192xf32>
    %728 = vector.broadcast %718 : vector<1x192xf32> to vector<8x192xf32>
    %729 = arith.addf %727, %728 : vector<8x192xf32>
    %730 = vector.extract_strided_slice %729 {offsets = [0, 0], sizes = [8, 16], strides = [1, 1]} : vector<8x192xf32> to vector<8x16xf32>
    %731 = vector.extract_strided_slice %729 {offsets = [0, 16], sizes = [8, 16], strides = [1, 1]} : vector<8x192xf32> to vector<8x16xf32>
    %732 = vector.extract_strided_slice %729 {offsets = [0, 32], sizes = [8, 16], strides = [1, 1]} : vector<8x192xf32> to vector<8x16xf32>
    %733 = vector.extract_strided_slice %729 {offsets = [0, 48], sizes = [8, 16], strides = [1, 1]} : vector<8x192xf32> to vector<8x16xf32>
    %734 = vector.shape_cast %730 : vector<8x16xf32> to vector<1x8x16xf32>
    %735 = vector.shape_cast %731 : vector<8x16xf32> to vector<1x8x16xf32>
    %736 = vector.shape_cast %732 : vector<8x16xf32> to vector<1x8x16xf32>
    %737 = vector.shape_cast %733 : vector<8x16xf32> to vector<1x8x16xf32>
    %738 = tpu.concatenate %734, %735, %736, %737 in 0 : vector<1x8x16xf32>, vector<1x8x16xf32>, vector<1x8x16xf32>, vector<1x8x16xf32> -> vector<4x8x16xf32>
    %739 = vector.extract_strided_slice %729 {offsets = [0, 64], sizes = [8, 16], strides = [1, 1]} : vector<8x192xf32> to vector<8x16xf32>
    %740 = vector.extract_strided_slice %729 {offsets = [0, 80], sizes = [8, 16], strides = [1, 1]} : vector<8x192xf32> to vector<8x16xf32>
    %741 = vector.extract_strided_slice %729 {offsets = [0, 96], sizes = [8, 16], strides = [1, 1]} : vector<8x192xf32> to vector<8x16xf32>
    %742 = vector.extract_strided_slice %729 {offsets = [0, 112], sizes = [8, 16], strides = [1, 1]} : vector<8x192xf32> to vector<8x16xf32>
    %743 = vector.shape_cast %739 : vector<8x16xf32> to vector<1x8x16xf32>
    %744 = vector.shape_cast %740 : vector<8x16xf32> to vector<1x8x16xf32>
    %745 = vector.shape_cast %741 : vector<8x16xf32> to vector<1x8x16xf32>
    %746 = vector.shape_cast %742 : vector<8x16xf32> to vector<1x8x16xf32>
    %747 = tpu.concatenate %743, %744, %745, %746 in 0 : vector<1x8x16xf32>, vector<1x8x16xf32>, vector<1x8x16xf32>, vector<1x8x16xf32> -> vector<4x8x16xf32>
    %748 = vector.extract_strided_slice %729 {offsets = [0, 128], sizes = [8, 16], strides = [1, 1]} : vector<8x192xf32> to vector<8x16xf32>
    %749 = vector.extract_strided_slice %729 {offsets = [0, 144], sizes = [8, 16], strides = [1, 1]} : vector<8x192xf32> to vector<8x16xf32>
    %750 = vector.extract_strided_slice %729 {offsets = [0, 160], sizes = [8, 16], strides = [1, 1]} : vector<8x192xf32> to vector<8x16xf32>
    %751 = vector.extract_strided_slice %729 {offsets = [0, 176], sizes = [8, 16], strides = [1, 1]} : vector<8x192xf32> to vector<8x16xf32>
    %752 = vector.shape_cast %748 : vector<8x16xf32> to vector<1x8x16xf32>
    %753 = vector.shape_cast %749 : vector<8x16xf32> to vector<1x8x16xf32>
    %754 = vector.shape_cast %750 : vector<8x16xf32> to vector<1x8x16xf32>
    %755 = vector.shape_cast %751 : vector<8x16xf32> to vector<1x8x16xf32>
    %756 = tpu.concatenate %752, %753, %754, %755 in 0 : vector<1x8x16xf32>, vector<1x8x16xf32>, vector<1x8x16xf32>, vector<1x8x16xf32> -> vector<4x8x16xf32>
    "tpu.trace_start"() <{level = 10 : i32, message = "hsd,htd->hst"}> : () -> ()
    %cst_177 = arith.constant dense<0.000000e+00> : vector<4x8x8xf32>
    %757 = tpu.matmul %738, %747, %cst_177 {dimension_numbers = #tpu.dot_dimension_numbers<[2], [2], [1], [1], [0, 0, 0, 1, 1, 1], [0], [0]>} : vector<4x8x16xf32>, vector<4x8x16xf32>, vector<4x8x8xf32> -> vector<4x8x8xf32>
    "tpu.trace_stop"() : () -> ()
    %cst_178 = arith.constant dense<0xFF800000> : vector<4x8xf32>
    %758 = vector.multi_reduction <maximumf>, %757, %cst_178 [2] : vector<4x8x8xf32> to vector<4x8xf32>
    %759 = vector.shape_cast %758 : vector<4x8xf32> to vector<4x8x1xf32>
    %760 = vector.broadcast %759 : vector<4x8x1xf32> to vector<4x8x8xf32>
    %761 = arith.subf %757, %760 : vector<4x8x8xf32>
    %762 = math.exp %761 : vector<4x8x8xf32>
    %cst_179 = arith.constant dense<0.000000e+00> : vector<4x8xf32>
    %763 = vector.multi_reduction <add>, %762, %cst_179 [2] : vector<4x8x8xf32> to vector<4x8xf32>
    %764 = vector.shape_cast %763 : vector<4x8xf32> to vector<4x8x1xf32>
    %765 = vector.broadcast %764 : vector<4x8x1xf32> to vector<4x8x8xf32>
    %766 = arith.divf %762, %765 : vector<4x8x8xf32>
    "tpu.trace_start"() <{level = 10 : i32, message = "hst,htd->hsd"}> : () -> ()
    %cst_180 = arith.constant dense<0.000000e+00> : vector<4x8x16xf32>
    %767 = tpu.matmul %766, %756, %cst_180 {dimension_numbers = #tpu.dot_dimension_numbers<[2], [1], [1], [2], [0, 0, 0, 1, 1, 2], [0], [0]>} : vector<4x8x8xf32>, vector<4x8x16xf32>, vector<4x8x16xf32> -> vector<4x8x16xf32>
    "tpu.trace_stop"() : () -> ()
    %768 = vector.extract_strided_slice %767 {offsets = [0, 0, 0], sizes = [1, 8, 16], strides = [1, 1, 1]} : vector<4x8x16xf32> to vector<1x8x16xf32>
    %769 = vector.shape_cast %768 : vector<1x8x16xf32> to vector<8x16xf32>
    %770 = vector.extract_strided_slice %767 {offsets = [1, 0, 0], sizes = [1, 8, 16], strides = [1, 1, 1]} : vector<4x8x16xf32> to vector<1x8x16xf32>
    %771 = vector.shape_cast %770 : vector<1x8x16xf32> to vector<8x16xf32>
    %772 = vector.extract_strided_slice %767 {offsets = [2, 0, 0], sizes = [1, 8, 16], strides = [1, 1, 1]} : vector<4x8x16xf32> to vector<1x8x16xf32>
    %773 = vector.shape_cast %772 : vector<1x8x16xf32> to vector<8x16xf32>
    %774 = vector.extract_strided_slice %767 {offsets = [3, 0, 0], sizes = [1, 8, 16], strides = [1, 1, 1]} : vector<4x8x16xf32> to vector<1x8x16xf32>
    %775 = vector.shape_cast %774 : vector<1x8x16xf32> to vector<8x16xf32>
    %776 = tpu.concatenate %769, %771, %773, %775 in 1 : vector<8x16xf32>, vector<8x16xf32>, vector<8x16xf32>, vector<8x16xf32> -> vector<8x64xf32>
    %777 = arith.truncf %776 : vector<8x64xf32> to vector<8x64xbf16>
    %cst_181 = arith.constant dense<0.000000e+00> : vector<8x64xf32>
    %778 = tpu.matmul %777, %716, %cst_181 {dimension_numbers = #tpu.dot_dimension_numbers<[1], [0], [0], [1], [0, 0, 1, 1], [], []>} : vector<8x64xbf16>, vector<64x64xbf16>, vector<8x64xf32> -> vector<8x64xf32>
    %779 = vector.broadcast %719 : vector<1x64xf32> to vector<8x64xf32>
    %780 = arith.addf %778, %779 : vector<8x64xf32>
    %781 = arith.addf %708, %780 : vector<8x64xf32>
    %cst_182 = arith.constant dense<0.000000e+00> : vector<8xf32>
    %782 = vector.multi_reduction <add>, %781, %cst_182 [1] : vector<8x64xf32> to vector<8xf32>
    %783 = vector.shape_cast %782 : vector<8xf32> to vector<8x1xf32>
    %cst_183 = arith.constant 6.400000e+01 : f32
    %784 = vector.broadcast %cst_183 : f32 to vector<8x1xf32>
    %785 = arith.divf %783, %784 : vector<8x1xf32>
    %786 = arith.mulf %781, %781 : vector<8x64xf32>
    %cst_184 = arith.constant dense<0.000000e+00> : vector<8xf32>
    %787 = vector.multi_reduction <add>, %786, %cst_184 [1] : vector<8x64xf32> to vector<8xf32>
    %788 = vector.shape_cast %787 : vector<8xf32> to vector<8x1xf32>
    %cst_185 = arith.constant 6.400000e+01 : f32
    %789 = vector.broadcast %cst_185 : f32 to vector<8x1xf32>
    %790 = arith.divf %788, %789 : vector<8x1xf32>
    %791 = vector.broadcast %785 : vector<8x1xf32> to vector<8x64xf32>
    %792 = arith.subf %781, %791 : vector<8x64xf32>
    %793 = arith.mulf %785, %785 : vector<8x1xf32>
    %794 = arith.subf %790, %793 : vector<8x1xf32>
    %cst_186 = arith.constant 9.99999974E-6 : f32
    %795 = vector.broadcast %cst_186 : f32 to vector<8x1xf32>
    %796 = arith.addf %794, %795 : vector<8x1xf32>
    %797 = math.rsqrt %796 : vector<8x1xf32>
    %798 = vector.broadcast %797 : vector<8x1xf32> to vector<8x64xf32>
    %799 = arith.mulf %792, %798 : vector<8x64xf32>
    %800 = vector.broadcast %722 : vector<1x64xf32> to vector<8x64xf32>
    %801 = arith.mulf %799, %800 : vector<8x64xf32>
    %802 = vector.broadcast %723 : vector<1x64xf32> to vector<8x64xf32>
    %803 = arith.addf %801, %802 : vector<8x64xf32>
    %804 = arith.truncf %803 : vector<8x64xf32> to vector<8x64xbf16>
    %cst_187 = arith.constant dense<0.000000e+00> : vector<8x256xf32>
    %805 = tpu.matmul %804, %717, %cst_187 {dimension_numbers = #tpu.dot_dimension_numbers<[1], [0], [0], [1], [0, 0, 1, 1], [], []>} : vector<8x64xbf16>, vector<64x256xbf16>, vector<8x256xf32> -> vector<8x256xf32>
    %806 = vector.broadcast %720 : vector<1x256xf32> to vector<8x256xf32>
    %807 = arith.addf %805, %806 : vector<8x256xf32>
    %cst_188 = arith.constant 0.000000e+00 : f32
    %808 = vector.broadcast %cst_188 : f32 to vector<8x256xf32>
    %809 = arith.maximumf %807, %808 : vector<8x256xf32>
    %810 = arith.truncf %809 : vector<8x256xf32> to vector<8x256xbf16>
    %cst_189 = arith.constant dense<0.000000e+00> : vector<8x64xf32>
    %811 = tpu.matmul %810, %712, %cst_189 {dimension_numbers = #tpu.dot_dimension_numbers<[1], [0], [0], [1], [0, 0, 1, 1], [], []>} : vector<8x256xbf16>, vector<256x64xbf16>, vector<8x64xf32> -> vector<8x64xf32>
    %812 = vector.broadcast %721 : vector<1x64xf32> to vector<8x64xf32>
    %813 = arith.addf %811, %812 : vector<8x64xf32>
    %814 = arith.addf %803, %813 : vector<8x64xf32>
    %cst_190 = arith.constant dense<0.000000e+00> : vector<8xf32>
    %815 = vector.multi_reduction <add>, %814, %cst_190 [1] : vector<8x64xf32> to vector<8xf32>
    %816 = vector.shape_cast %815 : vector<8xf32> to vector<8x1xf32>
    %cst_191 = arith.constant 6.400000e+01 : f32
    %817 = vector.broadcast %cst_191 : f32 to vector<8x1xf32>
    %818 = arith.divf %816, %817 : vector<8x1xf32>
    %819 = arith.mulf %814, %814 : vector<8x64xf32>
    %cst_192 = arith.constant dense<0.000000e+00> : vector<8xf32>
    %820 = vector.multi_reduction <add>, %819, %cst_192 [1] : vector<8x64xf32> to vector<8xf32>
    %821 = vector.shape_cast %820 : vector<8xf32> to vector<8x1xf32>
    %cst_193 = arith.constant 6.400000e+01 : f32
    %822 = vector.broadcast %cst_193 : f32 to vector<8x1xf32>
    %823 = arith.divf %821, %822 : vector<8x1xf32>
    %824 = vector.broadcast %818 : vector<8x1xf32> to vector<8x64xf32>
    %825 = arith.subf %814, %824 : vector<8x64xf32>
    %826 = arith.mulf %818, %818 : vector<8x1xf32>
    %827 = arith.subf %823, %826 : vector<8x1xf32>
    %cst_194 = arith.constant 9.99999974E-6 : f32
    %828 = vector.broadcast %cst_194 : f32 to vector<8x1xf32>
    %829 = arith.addf %827, %828 : vector<8x1xf32>
    %830 = math.rsqrt %829 : vector<8x1xf32>
    %831 = vector.broadcast %830 : vector<8x1xf32> to vector<8x64xf32>
    %832 = arith.mulf %825, %831 : vector<8x64xf32>
    %833 = vector.broadcast %724 : vector<1x64xf32> to vector<8x64xf32>
    %834 = arith.mulf %832, %833 : vector<8x64xf32>
    %835 = vector.broadcast %725 : vector<1x64xf32> to vector<8x64xf32>
    %836 = arith.addf %834, %835 : vector<8x64xf32>
    %837 = arith.addf %836, %578 : vector<8x64xf32>
    %c240_195 = arith.constant 240 : index
    %c0_196 = arith.constant 0 : index
    %838 = vector.load %arg2[%c240_195, %c0_196] : memref<432x64xbf16, #tpu.memory_space<vmem>>, vector<64x64xbf16>
    %839 = arith.truncf %837 : vector<8x64xf32> to vector<8x64xbf16>
    %cst_197 = arith.constant dense<0.000000e+00> : vector<8x64xf32>
    %840 = tpu.matmul %839, %838, %cst_197 {dimension_numbers = #tpu.dot_dimension_numbers<[1], [0], [0], [1], [0, 0, 1, 1], [], []>} : vector<8x64xbf16>, vector<64x64xbf16>, vector<8x64xf32> -> vector<8x64xf32>
    %841 = vector.broadcast %5 : vector<1x64xf32> to vector<8x64xf32>
    %842 = arith.addf %840, %841 : vector<8x64xf32>
    %cst_198 = arith.constant 0.000000e+00 : f32
    %843 = vector.broadcast %cst_198 : f32 to vector<8x64xf32>
    %844 = arith.maximumf %842, %843 : vector<8x64xf32>
    %c368 = arith.constant 368 : index
    %c0_199 = arith.constant 0 : index
    %845 = vector.load %arg2[%c368, %c0_199] : memref<432x64xbf16, #tpu.memory_space<vmem>>, vector<64x64xbf16>
    %846 = arith.truncf %844 : vector<8x64xf32> to vector<8x64xbf16>
    %cst_200 = arith.constant dense<0.000000e+00> : vector<8x64xf32>
    %847 = tpu.matmul %846, %845, %cst_200 {dimension_numbers = #tpu.dot_dimension_numbers<[1], [0], [0], [1], [0, 0, 1, 1], [], []>} : vector<8x64xbf16>, vector<64x64xbf16>, vector<8x64xf32> -> vector<8x64xf32>
    %848 = vector.broadcast %7 : vector<1x64xf32> to vector<8x64xf32>
    %849 = arith.addf %847, %848 : vector<8x64xf32>
    %c0_201 = arith.constant 0 : index
    %c0_202 = arith.constant 0 : index
    %850 = vector.load %arg4[%c0_201, %c0_202] : memref<192x5xf32, #tpu.memory_space<vmem>>, vector<192x5xf32>
    %851 = vector.extract_strided_slice %850 {offsets = [0, 0], sizes = [64, 5], strides = [1, 1]} : vector<192x5xf32> to vector<64x5xf32>
    %cst_203 = arith.constant dense<0.000000e+00> : vector<8x5xf32>
    %852 = tpu.matmul %285, %851, %cst_203 {dimension_numbers = #tpu.dot_dimension_numbers<[1], [0], [0], [1], [0, 0, 1, 1], [], []>} : vector<8x64xf32>, vector<64x5xf32>, vector<8x5xf32> -> vector<8x5xf32>
    %853 = vector.extract_strided_slice %850 {offsets = [64, 0], sizes = [64, 5], strides = [1, 1]} : vector<192x5xf32> to vector<64x5xf32>
    %cst_204 = arith.constant dense<0.000000e+00> : vector<8x5xf32>
    %854 = tpu.matmul %565, %853, %cst_204 {dimension_numbers = #tpu.dot_dimension_numbers<[1], [0], [0], [1], [0, 0, 1, 1], [], []>} : vector<8x64xf32>, vector<64x5xf32>, vector<8x5xf32> -> vector<8x5xf32>
    %855 = arith.addf %852, %854 : vector<8x5xf32>
    %856 = vector.extract_strided_slice %850 {offsets = [128, 0], sizes = [64, 5], strides = [1, 1]} : vector<192x5xf32> to vector<64x5xf32>
    %cst_205 = arith.constant dense<0.000000e+00> : vector<8x5xf32>
    %857 = tpu.matmul %849, %856, %cst_205 {dimension_numbers = #tpu.dot_dimension_numbers<[1], [0], [0], [1], [0, 0, 1, 1], [], []>} : vector<8x64xf32>, vector<64x5xf32>, vector<8x5xf32> -> vector<8x5xf32>
    %858 = arith.addf %855, %857 : vector<8x5xf32>
    %c0_206 = arith.constant 0 : index
    %c0_207 = arith.constant 0 : index
    %c0_208 = arith.constant 0 : index
    %859 = vector.load %arg8[%c0_206, %c0_207, %c0_208] : memref<1x8x5xf32, #tpu.memory_space<vmem>>, vector<1x8x5xf32>
    %860 = vector.shape_cast %859 : vector<1x8x5xf32> to vector<8x5xf32>
    %861 = vector.shape_cast %858 : vector<8x5xf32> to vector<1x8x5xf32>
    tpu.vector_store %arg8[%c0_206, %c0_207, %c0_208], %861 {strides = array<i32>} : memref<1x8x5xf32, #tpu.memory_space<vmem>>, vector<1x8x5xf32>,
    return
  }
  func.func @transform_0(%arg0: i32) -> (i32, i32, i32) {
    %c0_i32 = arith.constant 0 : i32
    %c0_i32_0 = arith.constant 0 : i32
    %c0_i32_1 = arith.constant 0 : i32
    return %arg0, %c0_i32, %c0_i32_0 : i32, i32, i32
  }
  func.func @transform_1(%arg0: i32) -> (i32, i32) {
    %c0_i32 = arith.constant 0 : i32
    %c0_i32_0 = arith.constant 0 : i32
    %c0_i32_1 = arith.constant 0 : i32
    return %c0_i32, %c0_i32_0 : i32, i32
  }
  func.func @transform_2(%arg0: i32) -> (i32, i32) {
    %c0_i32 = arith.constant 0 : i32
    %c0_i32_0 = arith.constant 0 : i32
    %c0_i32_1 = arith.constant 0 : i32
    return %c0_i32, %c0_i32_0 : i32, i32
  }
  func.func @transform_3(%arg0: i32) -> (i32, i32) {
    %c0_i32 = arith.constant 0 : i32
    %c0_i32_0 = arith.constant 0 : i32
    %c0_i32_1 = arith.constant 0 : i32
    return %c0_i32, %c0_i32_0 : i32, i32
  }
  func.func @transform_4(%arg0: i32) -> (i32, i32, i32) {
    %c0_i32 = arith.constant 0 : i32
    %c0_i32_0 = arith.constant 0 : i32
    %c0_i32_1 = arith.constant 0 : i32
    %c0_i32_2 = arith.constant 0 : i32
    return %c0_i32, %c0_i32_0, %c0_i32_1 : i32, i32, i32
  }
  func.func @transform_5(%arg0: i32) -> (i32, i32, i32) {
    %c0_i32 = arith.constant 0 : i32
    %c0_i32_0 = arith.constant 0 : i32
    %c0_i32_1 = arith.constant 0 : i32
    %c0_i32_2 = arith.constant 0 : i32
    return %c0_i32, %c0_i32_0, %c0_i32_1 : i32, i32, i32
  }
  func.func @transform_6(%arg0: i32) -> (i32, i32, i32) {
    %c0_i32 = arith.constant 0 : i32
    %c0_i32_0 = arith.constant 0 : i32
    %c0_i32_1 = arith.constant 0 : i32
    %c0_i32_2 = arith.constant 0 : i32
    return %c0_i32, %c0_i32_0, %c0_i32_1 : i32, i32, i32
  }
  func.func @transform_7(%arg0: i32) -> (i32, i32, i32) {
    %c0_i32 = arith.constant 0 : i32
    %c0_i32_0 = arith.constant 0 : i32
    %c0_i32_1 = arith.constant 0 : i32
    return %arg0, %c0_i32, %c0_i32_0 : i32, i32, i32
  }
}

</mosaic_0001>

<llo_original>
// kernel: spec2hrd_forward.1
$region0: #{spec2hrd_forward.1}
  #allocation0 [shape = 'u32[]', space=smem, size = 0x4, offset = 0x4, fixed_abs, tag = 'smem constant byte address 0x4 - core index']
  #allocation1 [shape = 'u32[144,128]{1,0:T(1,128)}', space=vmem, size = 0x12000, scoped, tag = 'internal scratch']
  %s0 = inlined_call_operand.vmem [shape: f32[1,8,16], index: 0, kind: input, shape index: {}]
  %s1 = inlined_call_operand.vmem [shape: bf16[432,64], index: 1, kind: input, shape index: {}]
  %s2 = inlined_call_operand.vmem [shape: f32[8,64], index: 2, kind: input, shape index: {}]
  %s3 = inlined_call_operand.vmem [shape: f32[192,5], index: 3, kind: input, shape index: {}]
  %s4 = inlined_call_operand.vmem [shape: bf16[2,64,512], index: 4, kind: input, shape index: {}]
  %s5 = inlined_call_operand.vmem [shape: bf16[2,256,64], index: 5, kind: input, shape index: {}]
  %s6 = inlined_call_operand.vmem [shape: f32[2,8,256], index: 6, kind: input, shape index: {}]
  %s7 = inlined_call_operand.hbm [shape: f32[1,8,5], index: 7, kind: output, shape index: {}]
  %s8 = sld [smem:[#allocation0]]
  $region38: #{spec2hrd_forward.1} parent=0
    _
  %s10 = ssub.s32 1, %s8
  %s11 = scalar_select 0, %s10, %s8
  $region1: #{spec2hrd_forward.1} parent=0
    #allocation2 [shape = 'u8[4096]{0}', space=vmem, size = 0x1000, scoped, tag = 'output window, operand 0, single buffered']
    #allocation3 [shape = 's32[1]{0}', space=sflag, size = 0x4, scoped, tag = 'scoped memory for spec2hrd_forward.1']
    %12 = vsyncpa [#allocation3], 0
    // Predicated region
    $region2: #{spec2hrd_forward.1} parent=1 // pred_check
      _
    $region3: #{spec2hrd_forward.1} parent=1 // pred_check_branch
      %14 = sbr.rel (0) target = $region5
    $region4: #{spec2hrd_forward.1} parent=1 // pred_region
      _
    $region5: #{spec2hrd_forward.1} parent=1 // pred_fallthru
      _
    // Predicated region
    $region6: #{spec2hrd_forward.1} parent=1 // pred_check
      _
    $region7: #{spec2hrd_forward.1} parent=1 // pred_check_branch
      %16 = sbr.rel (0) target = $region9
    $region8: #{spec2hrd_forward.1} parent=1 // pred_region
      _
    $region9: #{spec2hrd_forward.1} parent=1 // pred_fallthru
      _
    // Predicated region
    $region10: #{spec2hrd_forward.1} parent=1 // pred_check
      _
    $region11: #{spec2hrd_forward.1} parent=1 // pred_check_branch
      %18 = sbr.rel (0) target = $region13
    $region12: #{spec2hrd_forward.1} parent=1 // pred_region
      _
    $region13: #{spec2hrd_forward.1} parent=1 // pred_fallthru
      _
    // Predicated region
    $region14: #{spec2hrd_forward.1} parent=1 // pred_check
      _
    $region15: #{spec2hrd_forward.1} parent=1 // pred_check_branch
      %20 = sbr.rel (0) target = $region17
    $region16: #{spec2hrd_forward.1} parent=1 // pred_region
      _
    $region17: #{spec2hrd_forward.1} parent=1 // pred_fallthru
      _
    // Predicated region
    $region18: #{spec2hrd_forward.1} parent=1 // pred_check
      _
    $region19: #{spec2hrd_forward.1} parent=1 // pred_check_branch
      %22 = sbr.rel (0) target = $region21
    $region20: #{spec2hrd_forward.1} parent=1 // pred_region
      _
    $region21: #{spec2hrd_forward.1} parent=1 // pred_fallthru
      _
    // Predicated region
    $region22: #{spec2hrd_forward.1} parent=1 // pred_check
      _
    $region23: #{spec2hrd_forward.1} parent=1 // pred_check_branch
      %24 = sbr.rel (0) target = $region25
    $region24: #{spec2hrd_forward.1} parent=1 // pred_region
      _
    $region25: #{spec2hrd_forward.1} parent=1 // pred_fallthru
      _
    // Predicated region
    $region26: #{spec2hrd_forward.1} parent=1 // pred_check
      _
    $region27: #{spec2hrd_forward.1} parent=1 // pred_check_branch
      %26 = sbr.rel (0) target = $region29
    $region28: #{spec2hrd_forward.1} parent=1 // pred_region
      _
    $region29: #{spec2hrd_forward.1} parent=1 // pred_fallthru
      _
    %v28 = vld [vmem:[%s2] sm:$0xff]
    %v29 = vld [vmem:[%s0] sm:$0xff]
    %v30 = vld [vmem:[%s1] sm:$0xf]
    %v31 = vld [vmem:[%s1 + $0x4] sm:$0xf]
    %v32 = vpack.c.bf16 %v29, %v29
    %v33 = vlaneseq
    %v34 = vshrl.u32 %v33, 7
    %v35 = vsub.s32 1, %v34
    %v36 = vrot.slane %v28, %v35
    %v39 = vunpack.c.l.b16 %v30
    %v40 = vunpack.c.l.b16 %v31
    %v41 = vpack.c.b16 %v40, %v39
    %vm43 = vcmask 130048
    %v45 = vsel %vm43, %v32, 0
    %47 = vmatprep.subr.bf16.mxu0 0
    %48 = vmatpush1.bf16.msra.mxu0 %v41
    %49 = vmatprep.subr.bf16.mxu0 0
    %50 = vmatpush1.bf16.msra.mxu0 0
    %51 = vmatprep.subr.bf16.mxu0 0
    %52 = vmatpush1.bf16.msra.mxu0 0
    %53 = vmatprep.subr.bf16.mxu0 0
    %54 = vmatpush1.bf16.msra.mxu0 0
    %55 = vmatprep.subr.bf16.mxu0 0
    %56 = vmatpush1.bf16.msra.mxu0 0
    %57 = vmatprep.subr.bf16.mxu0 0
    %58 = vmatpush1.bf16.msra.mxu0 0
    %59 = vmatprep.subr.bf16.mxu0 0
    %60 = vmatpush1.bf16.msra.mxu0 0
    %61 = vmatprep.subr.bf16.mxu0 0
    %62 = vmatpush1.bf16.msra.mxu0 0
    %63 = vmatprep.subr.bf16.mxu0 0
    %64 = vmatpush1.bf16.msra.mxu0 0
    %65 = vmatprep.subr.bf16.mxu0 0
    %66 = vmatpush1.bf16.msra.mxu0 0
    %67 = vmatprep.subr.bf16.mxu0 0
    %68 = vmatpush1.bf16.msra.mxu0 0
    %69 = vmatprep.subr.bf16.mxu0 0
    %70 = vmatpush1.bf16.msra.mxu0 0
    %71 = vmatprep.subr.bf16.mxu0 0
    %72 = vmatpush1.bf16.msra.mxu0 0
    %73 = vmatprep.subr.bf16.mxu0 0
    %74 = vmatpush1.bf16.msra.mxu0 0
    %75 = vmatprep.subr.bf16.mxu0 0
    %76 = vmatpush1.bf16.msra.mxu0 0
    %77 = vmatprep.subr.bf16.mxu0 0
    %78 = vmatpush1.bf16.msra.mxu0 0
    %79 = vmatprep.mubr.bf16.mxu0 0
    %80 = vmatmul.mubr.bf16.gmra.mrb[0].mxu0 %v45
    %v81 = vpop.f32.mrb[0].mxu0
    %v82 = vadd.f32 %v36, %v81
    %v83 = vpop.f32.mrb[0].mxu0
    %v84 = vpop.f32.mrb[0].mxu0
    %v85 = vpop.f32.mrb[0].mxu0
    %86 = vdwg.mxu0
    %v87 = vlaneseq
    %v88 = vshrl.u32 %v87, 7
    %v89 = vsub.s32 0, %v88
    %v90 = vrot.slane %v28, %v89
    %v91 = vadd.f32 %v82, %v90
    %v92 = vld [vmem:[%s4] sm:$0xff]
    %v93 = vld [vmem:[%s4 + $0x8] sm:$0xff]
    %v94 = vld [vmem:[%s4 + $0x10] sm:$0xff]
    %v95 = vld [vmem:[%s4 + $0x18] sm:$0xff]
    %v96 = vld [vmem:[%s4 + $0x20] sm:$0xff]
    %v97 = vld [vmem:[%s4 + $0x28] sm:$0xff]
    %v98 = vld [vmem:[%s4 + $0x30] sm:$0xff]
    %v99 = vld [vmem:[%s4 + $0x38] sm:$0xff]
    %v100 = vld [vmem:[%s4 + $0x40] sm:$0xff]
    %v101 = vld [vmem:[%s4 + $0x48] sm:$0xff]
    %v102 = vld [vmem:[%s4 + $0x50] sm:$0xff]
    %v103 = vld [vmem:[%s4 + $0x58] sm:$0xff]
    %v104 = vld [vmem:[%s4 + $0x60] sm:$0xff]
    %v105 = vld [vmem:[%s4 + $0x68] sm:$0xff]
    %v106 = vld [vmem:[%s4 + $0x70] sm:$0xff]
    %v107 = vld [vmem:[%s4 + $0x78] sm:$0xff]
    %v108 = vld [vmem:[%s5] sm:$0xf]
    %v109 = vld [vmem:[%s5 + $0x4] sm:$0xf]
    %v110 = vld [vmem:[%s5 + $0x8] sm:$0xf]
    %v111 = vld [vmem:[%s5 + $0xc] sm:$0xf]
    %v112 = vld [vmem:[%s5 + $0x10] sm:$0xf]
    %v113 = vld [vmem:[%s5 + $0x14] sm:$0xf]
    %v114 = vld [vmem:[%s5 + $0x18] sm:$0xf]
    %v115 = vld [vmem:[%s5 + $0x1c] sm:$0xf]
    %v116 = vld [vmem:[%s5 + $0x20] sm:$0xf]
    %v117 = vld [vmem:[%s5 + $0x24] sm:$0xf]
    %v118 = vld [vmem:[%s5 + $0x28] sm:$0xf]
    %v119 = vld [vmem:[%s5 + $0x2c] sm:$0xf]
    %v120 = vld [vmem:[%s5 + $0x30] sm:$0xf]
    %v121 = vld [vmem:[%s5 + $0x34] sm:$0xf]
    %v122 = vld [vmem:[%s5 + $0x38] sm:$0xf]
    %v123 = vld [vmem:[%s5 + $0x3c] sm:$0xf]
    %v124 = vld [vmem:[%s5 + $0x40] sm:$0xf]
    %v125 = vld [vmem:[%s5 + $0x44] sm:$0xf]
    %v126 = vld [vmem:[%s5 + $0x48] sm:$0xf]
    %v127 = vld [vmem:[%s5 + $0x4c] sm:$0xf]
    %v128 = vld [vmem:[%s5 + $0x50] sm:$0xf]
    %v129 = vld [vmem:[%s5 + $0x54] sm:$0xf]
    %v130 = vld [vmem:[%s5 + $0x58] sm:$0xf]
    %v131 = vld [vmem:[%s5 + $0x5c] sm:$0xf]
    %v132 = vld [vmem:[%s5 + $0x60] sm:$0xf]
    %v133 = vld [vmem:[%s5 + $0x64] sm:$0xf]
    %v134 = vld [vmem:[%s5 + $0x68] sm:$0xf]
    %v135 = vld [vmem:[%s5 + $0x6c] sm:$0xf]
    %v136 = vld [vmem:[%s5 + $0x70] sm:$0xf]
    %v137 = vld [vmem:[%s5 + $0x74] sm:$0xf]
    %v138 = vld [vmem:[%s5 + $0x78] sm:$0xf]
    %v139 = vld [vmem:[%s5 + $0x7c] sm:$0xf]
    %v140 = vld [vmem:[%s6] sm:$0xff]
    %v141 = vld [vmem:[%s6 + $0x8] sm:$0xff]
    %v142 = vpack.c.bf16 %v91, %v91
    %v143 = vlaneseq
    %v144 = vshrl.u32 %v143, 7
    %v145 = vsub.s32 0, %v144
    %v146 = vrot.slane %v140, %v145
    %v147 = vlaneseq
    %v148 = vshrl.u32 %v147, 7
    %v149 = vsub.s32 0, %v148
    %v150 = vrot.slane %v141, %v149
    %v159 = vunpack.c.l.b16 %v92
    %v160 = vunpack.c.h.b16 %v92
    %v161 = vunpack.c.l.b16 %v94
    %v162 = vunpack.c.h.b16 %v94
    %v163 = vunpack.c.l.b16 %v96
    %v164 = vunpack.c.h.b16 %v96
    %v165 = vunpack.c.l.b16 %v98
    %v166 = vunpack.c.h.b16 %v98
    %v167 = vunpack.c.l.b16 %v100
    %v168 = vunpack.c.h.b16 %v100
    %v169 = vunpack.c.l.b16 %v102
    %v170 = vunpack.c.h.b16 %v102
    %v171 = vunpack.c.l.b16 %v104
    %v172 = vunpack.c.h.b16 %v104
    %v173 = vunpack.c.l.b16 %v106
    %v174 = vunpack.c.h.b16 %v106
    %v175 = vpack.c.b16 %v161, %v159
    %v176 = vpack.c.b16 %v162, %v160
    %v177 = vpack.c.b16 %v165, %v163
    %v178 = vpack.c.b16 %v166, %v164
    %v179 = vpack.c.b16 %v169, %v167
    %v180 = vpack.c.b16 %v170, %v168
    %v181 = vpack.c.b16 %v173, %v171
    %v182 = vpack.c.b16 %v174, %v172
    %vm191 = vcmask 523264
    %v193 = vsel %vm191, %v142, 0
    %195 = vmatprep.subr.bf16.mxu0 %v176
    %196 = vmatpush1.bf16.msra.mxu0 %v175
    %197 = vmatprep.subr.bf16.mxu0 %v178
    %198 = vmatpush1.bf16.msra.mxu0 %v177
    %199 = vmatprep.subr.bf16.mxu0 %v180
    %200 = vmatpush1.bf16.msra.mxu0 %v179
    %201 = vmatprep.subr.bf16.mxu0 %v182
    %202 = vmatpush1.bf16.msra.mxu0 %v181
    %203 = vmatprep.subr.bf16.mxu0 0
    %204 = vmatpush1.bf16.msra.mxu0 0
    %205 = vmatprep.subr.bf16.mxu0 0
    %206 = vmatpush1.bf16.msra.mxu0 0
    %207 = vmatprep.subr.bf16.mxu0 0
    %208 = vmatpush1.bf16.msra.mxu0 0
    %209 = vmatprep.subr.bf16.mxu0 0
    %210 = vmatpush1.bf16.msra.mxu0 0
    %211 = vmatprep.subr.bf16.mxu0 0
    %212 = vmatpush1.bf16.msra.mxu0 0
    %213 = vmatprep.subr.bf16.mxu0 0
    %214 = vmatpush1.bf16.msra.mxu0 0
    %215 = vmatprep.subr.bf16.mxu0 0
    %216 = vmatpush1.bf16.msra.mxu0 0
    %217 = vmatprep.subr.bf16.mxu0 0
    %218 = vmatpush1.bf16.msra.mxu0 0
    %219 = vmatprep.subr.bf16.mxu0 0
    %220 = vmatpush1.bf16.msra.mxu0 0
    %221 = vmatprep.subr.bf16.mxu0 0
    %222 = vmatpush1.bf16.msra.mxu0 0
    %223 = vmatprep.subr.bf16.mxu0 0
    %224 = vmatpush1.bf16.msra.mxu0 0
    %225 = vmatprep.subr.bf16.mxu0 0
    %226 = vmatpush1.bf16.msra.mxu0 0
    %227 = vmatprep.mubr.bf16.mxu0 0
    %228 = vmatmul.mubr.bf16.gmra.mrb[0].mxu0 %v193
    %v229 = vpop.f32.mrb[0].mxu0
    %v230 = vadd.f32 %v146, %v229
    %v231 = vpop.f32.mrb[0].mxu0
    %v232 = vadd.f32 %v150, %v231
    %v233 = vpop.f32.mrb[0].mxu0
    %v234 = vpop.f32.mrb[0].mxu0
    %235 = vdwg.mxu0
    %237 = vrot.lane.b32.xlu0 %v230, 112
    %v238 = vpop.permute.xlu0 %237
    %239 = vrot.lane.b32.xlu0 %v230, 96
    %v240 = vpop.permute.xlu0 %239
    %241 = vrot.lane.b32.xlu0 %v230, 80
    %v242 = vpop.permute.xlu0 %241
    %244 = vrot.lane.b32.xlu0 %v232, 112
    %v245 = vpop.permute.xlu0 %244
    %247 = vrot.lane.b32.xlu0 %v232, 96
    %v248 = vpop.permute.xlu0 %247
    %250 = vrot.lane.b32.xlu0 %v232, 80
    %v251 = vpop.permute.xlu0 %250
    %253 = vrot.lane.b32.xlu0 %v230, 64
    %v254 = vpop.permute.xlu0 %253
    %v255 = vsel %vm43, %v230, 0
    %v257 = vsel %vm43, %v254, 0
    %259 = vmatprep.subr.mxu0 0.0
    %260 = vmatpush1.xpose.msra.mxu0 %v257
    %261 = vmatprep.subr.mxu0 0.0
    %262 = vmatpush1.xpose.msra.mxu0 0.0
    %263 = vmatprep.subr.mxu0 0.0
    %264 = vmatpush1.xpose.msra.mxu0 0.0
    %265 = vmatprep.subr.mxu0 0.0
    %266 = vmatpush1.xpose.msra.mxu0 0.0
    %267 = vmatprep.subr.mxu0 0.0
    %268 = vmatpush1.xpose.msra.mxu0 0.0
    %269 = vmatprep.subr.mxu0 0.0
    %270 = vmatpush1.xpose.msra.mxu0 0.0
    %271 = vmatprep.subr.mxu0 0.0
    %272 = vmatpush1.xpose.msra.mxu0 0.0
    %273 = vmatprep.subr.mxu0 0.0
    %274 = vmatpush1.xpose.msra.mxu0 0.0
    %275 = vmatprep.subr.mxu0 0.0
    %276 = vmatpush1.xpose.msra.mxu0 0.0
    %277 = vmatprep.subr.mxu0 0.0
    %278 = vmatpush1.xpose.msra.mxu0 0.0
    %279 = vmatprep.subr.mxu0 0.0
    %280 = vmatpush1.xpose.msra.mxu0 0.0
    %281 = vmatprep.subr.mxu0 0.0
    %282 = vmatpush1.xpose.msra.mxu0 0.0
    %283 = vmatprep.subr.mxu0 0.0
    %284 = vmatpush1.xpose.msra.mxu0 0.0
    %285 = vmatprep.subr.mxu0 0.0
    %286 = vmatpush1.xpose.msra.mxu0 0.0
    %287 = vmatprep.subr.mxu0 0.0
    %288 = vmatpush1.xpose.msra.mxu0 0.0
    %289 = vmatprep.subr.mxu0 0.0
    %290 = vmatpush1.xpose.msra.mxu0 0.0
    %291 = vmatprep.subr.mxu0 0.0
    %292 = vmatpush1.xpose.msra.mxu0 0.0
    %293 = vmatprep.subr.mxu0 0.0
    %294 = vmatpush1.xpose.msra.mxu0 0.0
    %295 = vmatprep.subr.mxu0 0.0
    %296 = vmatpush1.xpose.msra.mxu0 0.0
    %297 = vmatprep.subr.mxu0 0.0
    %298 = vmatpush1.xpose.msra.mxu0 0.0
    %299 = vmatprep.subr.mxu0 0.0
    %300 = vmatpush1.xpose.msra.mxu0 0.0
    %301 = vmatprep.subr.mxu0 0.0
    %302 = vmatpush1.xpose.msra.mxu0 0.0
    %303 = vmatprep.subr.mxu0 0.0
    %304 = vmatpush1.xpose.msra.mxu0 0.0
    %305 = vmatprep.subr.mxu0 0.0
    %306 = vmatpush1.xpose.msra.mxu0 0.0
    %307 = vmatprep.subr.mxu0 0.0
    %308 = vmatpush1.xpose.msra.mxu0 0.0
    %309 = vmatprep.subr.mxu0 0.0
    %310 = vmatpush1.xpose.msra.mxu0 0.0
    %311 = vmatprep.subr.mxu0 0.0
    %312 = vmatpush1.xpose.msra.mxu0 0.0
    %313 = vmatprep.subr.mxu0 0.0
    %314 = vmatpush1.xpose.msra.mxu0 0.0
    %315 = vmatprep.subr.mxu0 0.0
    %316 = vmatpush1.xpose.msra.mxu0 0.0
    %317 = vmatprep.subr.mxu0 0.0
    %318 = vmatpush1.xpose.msra.mxu0 0.0
    %319 = vmatprep.subr.mxu0 0.0
    %320 = vmatpush1.xpose.msra.mxu0 0.0
    %321 = vmatprep.subr.mxu0 0.0
    %322 = vmatpush1.xpose.msra.mxu0 0.0
    %323 = vmatprep.mubr.f32.mxu0 0.0
    %324 = vmatmul.mubr.f32.gmra.mrb[0].mxu0 %v255
    %v325 = vpop.f32.mrb[0].mxu0
    %v326 = vadd.f32 0.0, %v325
    %v327 = vpop.f32.mrb[0].mxu0
    %328 = vdwg.mxu0
    %329 = vrot.lane.b32.xlu0 %v238, 64
    %v330 = vpop.permute.xlu0 %329
    %v331 = vsel %vm43, %v238, 0
    %v333 = vsel %vm43, %v330, 0
    %335 = vmatprep.subr.mxu0 0.0
    %336 = vmatpush1.xpose.msra.mxu0 %v333
    %337 = vmatprep.subr.mxu0 0.0
    %338 = vmatpush1.xpose.msra.mxu0 0.0
    %339 = vmatprep.subr.mxu0 0.0
    %340 = vmatpush1.xpose.msra.mxu0 0.0
    %341 = vmatprep.subr.mxu0 0.0
    %342 = vmatpush1.xpose.msra.mxu0 0.0
    %343 = vmatprep.subr.mxu0 0.0
    %344 = vmatpush1.xpose.msra.mxu0 0.0
    %345 = vmatprep.subr.mxu0 0.0
    %346 = vmatpush1.xpose.msra.mxu0 0.0
    %347 = vmatprep.subr.mxu0 0.0
    %348 = vmatpush1.xpose.msra.mxu0 0.0
    %349 = vmatprep.subr.mxu0 0.0
    %350 = vmatpush1.xpose.msra.mxu0 0.0
    %351 = vmatprep.subr.mxu0 0.0
    %352 = vmatpush1.xpose.msra.mxu0 0.0
    %353 = vmatprep.subr.mxu0 0.0
    %354 = vmatpush1.xpose.msra.mxu0 0.0
    %355 = vmatprep.subr.mxu0 0.0
    %356 = vmatpush1.xpose.msra.mxu0 0.0
    %357 = vmatprep.subr.mxu0 0.0
    %358 = vmatpush1.xpose.msra.mxu0 0.0
    %359 = vmatprep.subr.mxu0 0.0
    %360 = vmatpush1.xpose.msra.mxu0 0.0
    %361 = vmatprep.subr.mxu0 0.0
    %362 = vmatpush1.xpose.msra.mxu0 0.0
    %363 = vmatprep.subr.mxu0 0.0
    %364 = vmatpush1.xpose.msra.mxu0 0.0
    %365 = vmatprep.subr.mxu0 0.0
    %366 = vmatpush1.xpose.msra.mxu0 0.0
    %367 = vmatprep.subr.mxu0 0.0
    %368 = vmatpush1.xpose.msra.mxu0 0.0
    %369 = vmatprep.subr.mxu0 0.0
    %370 = vmatpush1.xpose.msra.mxu0 0.0
    %371 = vmatprep.subr.mxu0 0.0
    %372 = vmatpush1.xpose.msra.mxu0 0.0
    %373 = vmatprep.subr.mxu0 0.0
    %374 = vmatpush1.xpose.msra.mxu0 0.0
    %375 = vmatprep.subr.mxu0 0.0
    %376 = vmatpush1.xpose.msra.mxu0 0.0
    %377 = vmatprep.subr.mxu0 0.0
    %378 = vmatpush1.xpose.msra.mxu0 0.0
    %379 = vmatprep.subr.mxu0 0.0
    %380 = vmatpush1.xpose.msra.mxu0 0.0
    %381 = vmatprep.subr.mxu0 0.0
    %382 = vmatpush1.xpose.msra.mxu0 0.0
    %383 = vmatprep.subr.mxu0 0.0
    %384 = vmatpush1.xpose.msra.mxu0 0.0
    %385 = vmatprep.subr.mxu0 0.0
    %386 = vmatpush1.xpose.msra.mxu0 0.0
    %387 = vmatprep.subr.mxu0 0.0
    %388 = vmatpush1.xpose.msra.mxu0 0.0
    %389 = vmatprep.subr.mxu0 0.0
    %390 = vmatpush1.xpose.msra.mxu0 0.0
    %391 = vmatprep.subr.mxu0 0.0
    %392 = vmatpush1.xpose.msra.mxu0 0.0
    %393 = vmatprep.subr.mxu0 0.0
    %394 = vmatpush1.xpose.msra.mxu0 0.0
    %395 = vmatprep.subr.mxu0 0.0
    %396 = vmatpush1.xpose.msra.mxu0 0.0
    %397 = vmatprep.subr.mxu0 0.0
    %398 = vmatpush1.xpose.msra.mxu0 0.0
    %399 = vmatprep.mubr.f32.mxu0 0.0
    %400 = vmatmul.mubr.f32.gmra.mrb[0].mxu0 %v331
    %v401 = vpop.f32.mrb[0].mxu0
    %v402 = vadd.f32 0.0, %v401
    %v403 = vpop.f32.mrb[0].mxu0
    %404 = vdwg.mxu0
    %405 = vrot.lane.b32.xlu0 %v240, 64
    %v406 = vpop.permute.xlu0 %405
    %v407 = vsel %vm43, %v240, 0
    %v409 = vsel %vm43, %v406, 0
    %411 = vmatprep.subr.mxu0 0.0
    %412 = vmatpush1.xpose.msra.mxu0 %v409
    %413 = vmatprep.subr.mxu0 0.0
    %414 = vmatpush1.xpose.msra.mxu0 0.0
    %415 = vmatprep.subr.mxu0 0.0
    %416 = vmatpush1.xpose.msra.mxu0 0.0
    %417 = vmatprep.subr.mxu0 0.0
    %418 = vmatpush1.xpose.msra.mxu0 0.0
    %419 = vmatprep.subr.mxu0 0.0
    %420 = vmatpush1.xpose.msra.mxu0 0.0
    %421 = vmatprep.subr.mxu0 0.0
    %422 = vmatpush1.xpose.msra.mxu0 0.0
    %423 = vmatprep.subr.mxu0 0.0
    %424 = vmatpush1.xpose.msra.mxu0 0.0
    %425 = vmatprep.subr.mxu0 0.0
    %426 = vmatpush1.xpose.msra.mxu0 0.0
    %427 = vmatprep.subr.mxu0 0.0
    %428 = vmatpush1.xpose.msra.mxu0 0.0
    %429 = vmatprep.subr.mxu0 0.0
    %430 = vmatpush1.xpose.msra.mxu0 0.0
    %431 = vmatprep.subr.mxu0 0.0
    %432 = vmatpush1.xpose.msra.mxu0 0.0
    %433 = vmatprep.subr.mxu0 0.0
    %434 = vmatpush1.xpose.msra.mxu0 0.0
    %435 = vmatprep.subr.mxu0 0.0
    %436 = vmatpush1.xpose.msra.mxu0 0.0
    %437 = vmatprep.subr.mxu0 0.0
    %438 = vmatpush1.xpose.msra.mxu0 0.0
    %439 = vmatprep.subr.mxu0 0.0
    %440 = vmatpush1.xpose.msra.mxu0 0.0
    %441 = vmatprep.subr.mxu0 0.0
    %442 = vmatpush1.xpose.msra.mxu0 0.0
    %443 = vmatprep.subr.mxu0 0.0
    %444 = vmatpush1.xpose.msra.mxu0 0.0
    %445 = vmatprep.subr.mxu0 0.0
    %446 = vmatpush1.xpose.msra.mxu0 0.0
    %447 = vmatprep.subr.mxu0 0.0
    %448 = vmatpush1.xpose.msra.mxu0 0.0
    %449 = vmatprep.subr.mxu0 0.0
    %450 = vmatpush1.xpose.msra.mxu0 0.0
    %451 = vmatprep.subr.mxu0 0.0
    %452 = vmatpush1.xpose.msra.mxu0 0.0
    %453 = vmatprep.subr.mxu0 0.0
    %454 = vmatpush1.xpose.msra.mxu0 0.0
    %455 = vmatprep.subr.mxu0 0.0
    %456 = vmatpush1.xpose.msra.mxu0 0.0
    %457 = vmatprep.subr.mxu0 0.0
    %458 = vmatpush1.xpose.msra.mxu0 0.0
    %459 = vmatprep.subr.mxu0 0.0
    %460 = vmatpush1.xpose.msra.mxu0 0.0
    %461 = vmatprep.subr.mxu0 0.0
    %462 = vmatpush1.xpose.msra.mxu0 0.0
    %463 = vmatprep.subr.mxu0 0.0
    %464 = vmatpush1.xpose.msra.mxu0 0.0
    %465 = vmatprep.subr.mxu0 0.0
    %466 = vmatpush1.xpose.msra.mxu0 0.0
    %467 = vmatprep.subr.mxu0 0.0
    %468 = vmatpush1.xpose.msra.mxu0 0.0
    %469 = vmatprep.subr.mxu0 0.0
    %470 = vmatpush1.xpose.msra.mxu0 0.0
    %471 = vmatprep.subr.mxu0 0.0
    %472 = vmatpush1.xpose.msra.mxu0 0.0
    %473 = vmatprep.subr.mxu0 0.0
    %474 = vmatpush1.xpose.msra.mxu0 0.0
    %475 = vmatprep.mubr.f32.mxu0 0.0
    %476 = vmatmul.mubr.f32.gmra.mrb[0].mxu0 %v407
    %v477 = vpop.f32.mrb[0].mxu0
    %v478 = vadd.f32 0.0, %v477
    %v479 = vpop.f32.mrb[0].mxu0
    %480 = vdwg.mxu0
    %481 = vrot.lane.b32.xlu0 %v242, 64
    %v482 = vpop.permute.xlu0 %481
    %v483 = vsel %vm43, %v242, 0
    %v485 = vsel %vm43, %v482, 0
    %487 = vmatprep.subr.mxu0 0.0
    %488 = vmatpush1.xpose.msra.mxu0 %v485
    %489 = vmatprep.subr.mxu0 0.0
    %490 = vmatpush1.xpose.msra.mxu0 0.0
    %491 = vmatprep.subr.mxu0 0.0
    %492 = vmatpush1.xpose.msra.mxu0 0.0
    %493 = vmatprep.subr.mxu0 0.0
    %494 = vmatpush1.xpose.msra.mxu0 0.0
    %495 = vmatprep.subr.mxu0 0.0
    %496 = vmatpush1.xpose.msra.mxu0 0.0
    %497 = vmatprep.subr.mxu0 0.0
    %498 = vmatpush1.xpose.msra.mxu0 0.0
    %499 = vmatprep.subr.mxu0 0.0
    %500 = vmatpush1.xpose.msra.mxu0 0.0
    %501 = vmatprep.subr.mxu0 0.0
    %502 = vmatpush1.xpose.msra.mxu0 0.0
    %503 = vmatprep.subr.mxu0 0.0
    %504 = vmatpush1.xpose.msra.mxu0 0.0
    %505 = vmatprep.subr.mxu0 0.0
    %506 = vmatpush1.xpose.msra.mxu0 0.0
    %507 = vmatprep.subr.mxu0 0.0
    %508 = vmatpush1.xpose.msra.mxu0 0.0
    %509 = vmatprep.subr.mxu0 0.0
    %510 = vmatpush1.xpose.msra.mxu0 0.0
    %511 = vmatprep.subr.mxu0 0.0
    %512 = vmatpush1.xpose.msra.mxu0 0.0
    %513 = vmatprep.subr.mxu0 0.0
    %514 = vmatpush1.xpose.msra.mxu0 0.0
    %515 = vmatprep.subr.mxu0 0.0
    %516 = vmatpush1.xpose.msra.mxu0 0.0
    %517 = vmatprep.subr.mxu0 0.0
    %518 = vmatpush1.xpose.msra.mxu0 0.0
    %519 = vmatprep.subr.mxu0 0.0
    %520 = vmatpush1.xpose.msra.mxu0 0.0
    %521 = vmatprep.subr.mxu0 0.0
    %522 = vmatpush1.xpose.msra.mxu0 0.0
    %523 = vmatprep.subr.mxu0 0.0
    %524 = vmatpush1.xpose.msra.mxu0 0.0
    %525 = vmatprep.subr.mxu0 0.0
    %526 = vmatpush1.xpose.msra.mxu0 0.0
    %527 = vmatprep.subr.mxu0 0.0
    %528 = vmatpush1.xpose.msra.mxu0 0.0
    %529 = vmatprep.subr.mxu0 0.0
    %530 = vmatpush1.xpose.msra.mxu0 0.0
    %531 = vmatprep.subr.mxu0 0.0
    %532 = vmatpush1.xpose.msra.mxu0 0.0
    %533 = vmatprep.subr.mxu0 0.0
    %534 = vmatpush1.xpose.msra.mxu0 0.0
    %535 = vmatprep.subr.mxu0 0.0
    %536 = vmatpush1.xpose.msra.mxu0 0.0
    %537 = vmatprep.subr.mxu0 0.0
    %538 = vmatpush1.xpose.msra.mxu0 0.0
    %539 = vmatprep.subr.mxu0 0.0
    %540 = vmatpush1.xpose.msra.mxu0 0.0
    %541 = vmatprep.subr.mxu0 0.0
    %542 = vmatpush1.xpose.msra.mxu0 0.0
    %543 = vmatprep.subr.mxu0 0.0
    %544 = vmatpush1.xpose.msra.mxu0 0.0
    %545 = vmatprep.subr.mxu0 0.0
    %546 = vmatpush1.xpose.msra.mxu0 0.0
    %547 = vmatprep.subr.mxu0 0.0
    %548 = vmatpush1.xpose.msra.mxu0 0.0
    %549 = vmatprep.subr.mxu0 0.0
    %550 = vmatpush1.xpose.msra.mxu0 0.0
    %551 = vmatprep.mubr.f32.mxu0 0.0
    %552 = vmatmul.mubr.f32.gmra.mrb[0].mxu0 %v483
    %v553 = vpop.f32.mrb[0].mxu0
    %v554 = vadd.f32 0.0, %v553
    %v555 = vpop.f32.mrb[0].mxu0
    %556 = vdwg.mxu0
    %vm557 = vcmask 64512
    %v558 = vsel %vm557, %v326, -inf
    %559 = vmax.xlane.f32.xlu0 %v558
    %v560 = vpop.xlane.xlu0 %559
    %v561 = vsel %vm557, %v402, -inf
    %562 = vmax.xlane.f32.xlu0 %v561
    %v563 = vpop.xlane.xlu0 %562
    %v564 = vsel %vm557, %v478, -inf
    %565 = vmax.xlane.f32.xlu0 %v564
    %v566 = vpop.xlane.xlu0 %565
    %v567 = vsel %vm557, %v554, -inf
    %568 = vmax.xlane.f32.xlu0 %v567
    %v569 = vpop.xlane.xlu0 %568
    %v570 = vsub.f32 %v326, %v560
    %v571 = vsub.f32 %v402, %v563
    %v572 = vsub.f32 %v478, %v566
    %v573 = vsub.f32 %v554, %v569
    %v574 = vmul.f32 %v570, 1.442695
    %v575 = vpow.pop %v574
    %v576 = vmul.f32 %v571, 1.442695
    %v577 = vpow.pop %v576
    %v578 = vmul.f32 %v572, 1.442695
    %v579 = vpow.pop %v578
    %v580 = vmul.f32 %v573, 1.442695
    %v581 = vpow.pop %v580
    %v582 = vsel %vm557, %v575, 0.0
    %583 = vadd.xlane.f32.xlu0 %v582
    %v584 = vpop.xlane.xlu0 %583
    %v585 = vsel %vm557, %v577, 0.0
    %586 = vadd.xlane.f32.xlu0 %v585
    %v587 = vpop.xlane.xlu0 %586
    %v588 = vsel %vm557, %v579, 0.0
    %589 = vadd.xlane.f32.xlu0 %v588
    %v590 = vpop.xlane.xlu0 %589
    %v591 = vsel %vm557, %v581, 0.0
    %592 = vadd.xlane.f32.xlu0 %v591
    %v593 = vpop.xlane.xlu0 %592
    %v594 = vrcp.pop %v584
    %v595 = vmul.f32 %v575, %v594
    %v596 = vrcp.pop %v587
    %v597 = vmul.f32 %v577, %v596
    %v598 = vrcp.pop %v590
    %v599 = vmul.f32 %v579, %v598
    %v600 = vrcp.pop %v593
    %v601 = vmul.f32 %v581, %v600
    %v603 = vsel %vm557, %v595, 0
    %605 = vmatprep.subr.mxu0 0.0
    %606 = vmatpush1.msra.mxu0 %v232
    %607 = vmatprep.subr.mxu0 0.0
    %608 = vmatpush1.msra.mxu0 0.0
    %609 = vmatprep.subr.mxu0 0.0
    %610 = vmatpush1.msra.mxu0 0.0
    %611 = vmatprep.subr.mxu0 0.0
    %612 = vmatpush1.msra.mxu0 0.0
    %613 = vmatprep.subr.mxu0 0.0
    %614 = vmatpush1.msra.mxu0 0.0
    %615 = vmatprep.subr.mxu0 0.0
    %616 = vmatpush1.msra.mxu0 0.0
    %617 = vmatprep.subr.mxu0 0.0
    %618 = vmatpush1.msra.mxu0 0.0
    %619 = vmatprep.subr.mxu0 0.0
    %620 = vmatpush1.msra.mxu0 0.0
    %621 = vmatprep.subr.mxu0 0.0
    %622 = vmatpush1.msra.mxu0 0.0
    %623 = vmatprep.subr.mxu0 0.0
    %624 = vmatpush1.msra.mxu0 0.0
    %625 = vmatprep.subr.mxu0 0.0
    %626 = vmatpush1.msra.mxu0 0.0
    %627 = vmatprep.subr.mxu0 0.0
    %628 = vmatpush1.msra.mxu0 0.0
    %629 = vmatprep.subr.mxu0 0.0
    %630 = vmatpush1.msra.mxu0 0.0
    %631 = vmatprep.subr.mxu0 0.0
    %632 = vmatpush1.msra.mxu0 0.0
    %633 = vmatprep.subr.mxu0 0.0
    %634 = vmatpush1.msra.mxu0 0.0
    %635 = vmatprep.subr.mxu0 0.0
    %636 = vmatpush1.msra.mxu0 0.0
    %637 = vmatprep.subr.mxu0 0.0
    %638 = vmatpush1.msra.mxu0 0.0
    %639 = vmatprep.subr.mxu0 0.0
    %640 = vmatpush1.msra.mxu0 0.0
    %641 = vmatprep.subr.mxu0 0.0
    %642 = vmatpush1.msra.mxu0 0.0
    %643 = vmatprep.subr.mxu0 0.0
    %644 = vmatpush1.msra.mxu0 0.0
    %645 = vmatprep.subr.mxu0 0.0
    %646 = vmatpush1.msra.mxu0 0.0
    %647 = vmatprep.subr.mxu0 0.0
    %648 = vmatpush1.msra.mxu0 0.0
    %649 = vmatprep.subr.mxu0 0.0
    %650 = vmatpush1.msra.mxu0 0.0
    %651 = vmatprep.subr.mxu0 0.0
    %652 = vmatpush1.msra.mxu0 0.0
    %653 = vmatprep.subr.mxu0 0.0
    %654 = vmatpush1.msra.mxu0 0.0
    %655 = vmatprep.subr.mxu0 0.0
    %656 = vmatpush1.msra.mxu0 0.0
    %657 = vmatprep.subr.mxu0 0.0
    %658 = vmatpush1.msra.mxu0 0.0
    %659 = vmatprep.subr.mxu0 0.0
    %660 = vmatpush1.msra.mxu0 0.0
    %661 = vmatprep.subr.mxu0 0.0
    %662 = vmatpush1.msra.mxu0 0.0
    %663 = vmatprep.subr.mxu0 0.0
    %664 = vmatpush1.msra.mxu0 0.0
    %665 = vmatprep.subr.mxu0 0.0
    %666 = vmatpush1.msra.mxu0 0.0
    %667 = vmatprep.subr.mxu0 0.0
    %668 = vmatpush1.msra.mxu0 0.0
    %669 = vmatprep.mubr.f32.mxu0 0.0
    %670 = vmatmul.mubr.f32.gmra.mrb[0].mxu0 %v603
    %v671 = vpop.f32.mrb[0].mxu0
    %v672 = vadd.f32 0.0, %v671
    %v673 = vpop.f32.mrb[0].mxu0
    %674 = vdwg.mxu0
    %v676 = vsel %vm557, %v597, 0
    %678 = vmatprep.subr.mxu0 0.0
    %679 = vmatpush1.msra.mxu0 %v245
    %680 = vmatprep.subr.mxu0 0.0
    %681 = vmatpush1.msra.mxu0 0.0
    %682 = vmatprep.subr.mxu0 0.0
    %683 = vmatpush1.msra.mxu0 0.0
    %684 = vmatprep.subr.mxu0 0.0
    %685 = vmatpush1.msra.mxu0 0.0
    %686 = vmatprep.subr.mxu0 0.0
    %687 = vmatpush1.msra.mxu0 0.0
    %688 = vmatprep.subr.mxu0 0.0
    %689 = vmatpush1.msra.mxu0 0.0
    %690 = vmatprep.subr.mxu0 0.0
    %691 = vmatpush1.msra.mxu0 0.0
    %692 = vmatprep.subr.mxu0 0.0
    %693 = vmatpush1.msra.mxu0 0.0
    %694 = vmatprep.subr.mxu0 0.0
    %695 = vmatpush1.msra.mxu0 0.0
    %696 = vmatprep.subr.mxu0 0.0
    %697 = vmatpush1.msra.mxu0 0.0
    %698 = vmatprep.subr.mxu0 0.0
    %699 = vmatpush1.msra.mxu0 0.0
    %700 = vmatprep.subr.mxu0 0.0
    %701 = vmatpush1.msra.mxu0 0.0
    %702 = vmatprep.subr.mxu0 0.0
    %703 = vmatpush1.msra.mxu0 0.0
    %704 = vmatprep.subr.mxu0 0.0
    %705 = vmatpush1.msra.mxu0 0.0
    %706 = vmatprep.subr.mxu0 0.0
    %707 = vmatpush1.msra.mxu0 0.0
    %708 = vmatprep.subr.mxu0 0.0
    %709 = vmatpush1.msra.mxu0 0.0
    %710 = vmatprep.subr.mxu0 0.0
    %711 = vmatpush1.msra.mxu0 0.0
    %712 = vmatprep.subr.mxu0 0.0
    %713 = vmatpush1.msra.mxu0 0.0
    %714 = vmatprep.subr.mxu0 0.0
    %715 = vmatpush1.msra.mxu0 0.0
    %716 = vmatprep.subr.mxu0 0.0
    %717 = vmatpush1.msra.mxu0 0.0
    %718 = vmatprep.subr.mxu0 0.0
    %719 = vmatpush1.msra.mxu0 0.0
    %720 = vmatprep.subr.mxu0 0.0
    %721 = vmatpush1.msra.mxu0 0.0
    %722 = vmatprep.subr.mxu0 0.0
    %723 = vmatpush1.msra.mxu0 0.0
    %724 = vmatprep.subr.mxu0 0.0
    %725 = vmatpush1.msra.mxu0 0.0
    %726 = vmatprep.subr.mxu0 0.0
    %727 = vmatpush1.msra.mxu0 0.0
    %728 = vmatprep.subr.mxu0 0.0
    %729 = vmatpush1.msra.mxu0 0.0
    %730 = vmatprep.subr.mxu0 0.0
    %731 = vmatpush1.msra.mxu0 0.0
    %732 = vmatprep.subr.mxu0 0.0
    %733 = vmatpush1.msra.mxu0 0.0
    %734 = vmatprep.subr.mxu0 0.0
    %735 = vmatpush1.msra.mxu0 0.0
    %736 = vmatprep.subr.mxu0 0.0
    %737 = vmatpush1.msra.mxu0 0.0
    %738 = vmatprep.subr.mxu0 0.0
    %739 = vmatpush1.msra.mxu0 0.0
    %740 = vmatprep.subr.mxu0 0.0
    %741 = vmatpush1.msra.mxu0 0.0
    %742 = vmatprep.mubr.f32.mxu0 0.0
    %743 = vmatmul.mubr.f32.gmra.mrb[0].mxu0 %v676
    %v744 = vpop.f32.mrb[0].mxu0
    %v745 = vadd.f32 0.0, %v744
    %v746 = vpop.f32.mrb[0].mxu0
    %747 = vdwg.mxu0
    %v749 = vsel %vm557, %v599, 0
    %751 = vmatprep.subr.mxu0 0.0
    %752 = vmatpush1.msra.mxu0 %v248
    %753 = vmatprep.subr.mxu0 0.0
    %754 = vmatpush1.msra.mxu0 0.0
    %755 = vmatprep.subr.mxu0 0.0
    %756 = vmatpush1.msra.mxu0 0.0
    %757 = vmatprep.subr.mxu0 0.0
    %758 = vmatpush1.msra.mxu0 0.0
    %759 = vmatprep.subr.mxu0 0.0
    %760 = vmatpush1.msra.mxu0 0.0
    %761 = vmatprep.subr.mxu0 0.0
    %762 = vmatpush1.msra.mxu0 0.0
    %763 = vmatprep.subr.mxu0 0.0
    %764 = vmatpush1.msra.mxu0 0.0
    %765 = vmatprep.subr.mxu0 0.0
    %766 = vmatpush1.msra.mxu0 0.0
    %767 = vmatprep.subr.mxu0 0.0
    %768 = vmatpush1.msra.mxu0 0.0
    %769 = vmatprep.subr.mxu0 0.0
    %770 = vmatpush1.msra.mxu0 0.0
    %771 = vmatprep.subr.mxu0 0.0
    %772 = vmatpush1.msra.mxu0 0.0
    %773 = vmatprep.subr.mxu0 0.0
    %774 = vmatpush1.msra.mxu0 0.0
    %775 = vmatprep.subr.mxu0 0.0
    %776 = vmatpush1.msra.mxu0 0.0
    %777 = vmatprep.subr.mxu0 0.0
    %778 = vmatpush1.msra.mxu0 0.0
    %779 = vmatprep.subr.mxu0 0.0
    %780 = vmatpush1.msra.mxu0 0.0
    %781 = vmatprep.subr.mxu0 0.0
    %782 = vmatpush1.msra.mxu0 0.0
    %783 = vmatprep.subr.mxu0 0.0
    %784 = vmatpush1.msra.mxu0 0.0
    %785 = vmatprep.subr.mxu0 0.0
    %786 = vmatpush1.msra.mxu0 0.0
    %787 = vmatprep.subr.mxu0 0.0
    %788 = vmatpush1.msra.mxu0 0.0
    %789 = vmatprep.subr.mxu0 0.0
    %790 = vmatpush1.msra.mxu0 0.0
    %791 = vmatprep.subr.mxu0 0.0
    %792 = vmatpush1.msra.mxu0 0.0
    %793 = vmatprep.subr.mxu0 0.0
    %794 = vmatpush1.msra.mxu0 0.0
    %795 = vmatprep.subr.mxu0 0.0
    %796 = vmatpush1.msra.mxu0 0.0
    %797 = vmatprep.subr.mxu0 0.0
    %798 = vmatpush1.msra.mxu0 0.0
    %799 = vmatprep.subr.mxu0 0.0
    %800 = vmatpush1.msra.mxu0 0.0
    %801 = vmatprep.subr.mxu0 0.0
    %802 = vmatpush1.msra.mxu0 0.0
    %803 = vmatprep.subr.mxu0 0.0
    %804 = vmatpush1.msra.mxu0 0.0
    %805 = vmatprep.subr.mxu0 0.0
    %806 = vmatpush1.msra.mxu0 0.0
    %807 = vmatprep.subr.mxu0 0.0
    %808 = vmatpush1.msra.mxu0 0.0
    %809 = vmatprep.subr.mxu0 0.0
    %810 = vmatpush1.msra.mxu0 0.0
    %811 = vmatprep.subr.mxu0 0.0
    %812 = vmatpush1.msra.mxu0 0.0
    %813 = vmatprep.subr.mxu0 0.0
    %814 = vmatpush1.msra.mxu0 0.0
    %815 = vmatprep.mubr.f32.mxu0 0.0
    %816 = vmatmul.mubr.f32.gmra.mrb[0].mxu0 %v749
    %v817 = vpop.f32.mrb[0].mxu0
    %v818 = vadd.f32 0.0, %v817
    %v819 = vpop.f32.mrb[0].mxu0
    %820 = vdwg.mxu0
    %v822 = vsel %vm557, %v601, 0
    %824 = vmatprep.subr.mxu0 0.0
    %825 = vmatpush1.msra.mxu0 %v251
    %826 = vmatprep.subr.mxu0 0.0
    %827 = vmatpush1.msra.mxu0 0.0
    %828 = vmatprep.subr.mxu0 0.0
    %829 = vmatpush1.msra.mxu0 0.0
    %830 = vmatprep.subr.mxu0 0.0
    %831 = vmatpush1.msra.mxu0 0.0
    %832 = vmatprep.subr.mxu0 0.0
    %833 = vmatpush1.msra.mxu0 0.0
    %834 = vmatprep.subr.mxu0 0.0
    %835 = vmatpush1.msra.mxu0 0.0
    %836 = vmatprep.subr.mxu0 0.0
    %837 = vmatpush1.msra.mxu0 0.0
    %838 = vmatprep.subr.mxu0 0.0
    %839 = vmatpush1.msra.mxu0 0.0
    %840 = vmatprep.subr.mxu0 0.0
    %841 = vmatpush1.msra.mxu0 0.0
    %842 = vmatprep.subr.mxu0 0.0
    %843 = vmatpush1.msra.mxu0 0.0
    %844 = vmatprep.subr.mxu0 0.0
    %845 = vmatpush1.msra.mxu0 0.0
    %846 = vmatprep.subr.mxu0 0.0
    %847 = vmatpush1.msra.mxu0 0.0
    %848 = vmatprep.subr.mxu0 0.0
    %849 = vmatpush1.msra.mxu0 0.0
    %850 = vmatprep.subr.mxu0 0.0
    %851 = vmatpush1.msra.mxu0 0.0
    %852 = vmatprep.subr.mxu0 0.0
    %853 = vmatpush1.msra.mxu0 0.0
    %854 = vmatprep.subr.mxu0 0.0
    %855 = vmatpush1.msra.mxu0 0.0
    %856 = vmatprep.subr.mxu0 0.0
    %857 = vmatpush1.msra.mxu0 0.0
    %858 = vmatprep.subr.mxu0 0.0
    %859 = vmatpush1.msra.mxu0 0.0
    %860 = vmatprep.subr.mxu0 0.0
    %861 = vmatpush1.msra.mxu0 0.0
    %862 = vmatprep.subr.mxu0 0.0
    %863 = vmatpush1.msra.mxu0 0.0
    %864 = vmatprep.subr.mxu0 0.0
    %865 = vmatpush1.msra.mxu0 0.0
    %866 = vmatprep.subr.mxu0 0.0
    %867 = vmatpush1.msra.mxu0 0.0
    %868 = vmatprep.subr.mxu0 0.0
    %869 = vmatpush1.msra.mxu0 0.0
    %870 = vmatprep.subr.mxu0 0.0
    %871 = vmatpush1.msra.mxu0 0.0
    %872 = vmatprep.subr.mxu0 0.0
    %873 = vmatpush1.msra.mxu0 0.0
    %874 = vmatprep.subr.mxu0 0.0
    %875 = vmatpush1.msra.mxu0 0.0
    %876 = vmatprep.subr.mxu0 0.0
    %877 = vmatpush1.msra.mxu0 0.0
    %878 = vmatprep.subr.mxu0 0.0
    %879 = vmatpush1.msra.mxu0 0.0
    %880 = vmatprep.subr.mxu0 0.0
    %881 = vmatpush1.msra.mxu0 0.0
    %882 = vmatprep.subr.mxu0 0.0
    %883 = vmatpush1.msra.mxu0 0.0
    %884 = vmatprep.subr.mxu0 0.0
    %885 = vmatpush1.msra.mxu0 0.0
    %886 = vmatprep.subr.mxu0 0.0
    %887 = vmatpush1.msra.mxu0 0.0
    %888 = vmatprep.mubr.f32.mxu0 0.0
    %889 = vmatmul.mubr.f32.gmra.mrb[0].mxu0 %v822
    %v890 = vpop.f32.mrb[0].mxu0
    %v891 = vadd.f32 0.0, %v890
    %v892 = vpop.f32.mrb[0].mxu0
    %893 = vdwg.mxu0
    %895 = vrot.lane.b32.xlu0 %v745, 16
    %v896 = vpop.permute.xlu0 %895
    %899 = vrot.lane.b32.xlu0 %v818, 32
    %v900 = vpop.permute.xlu0 %899
    %903 = vrot.lane.b32.xlu0 %v891, 48
    %v904 = vpop.permute.xlu0 %903
    %v906 = vsel %vm43, %v672, %v896
    %vm907 = vcmask 261120
    %v908 = vsel %vm907, %v906, %v900
    %vm909 = vcmask 392192
    %v910 = vsel %vm909, %v908, %v904
    %v911 = vpack.c.bf16 %v910, %v910
    %912 = vrot.lane.b32.xlu0 %v176, 64
    %v913 = vpop.permute.xlu0 %912
    %914 = vrot.lane.b32.xlu0 %v178, 64
    %v915 = vpop.permute.xlu0 %914
    %916 = vrot.lane.b32.xlu0 %v180, 64
    %v917 = vpop.permute.xlu0 %916
    %918 = vrot.lane.b32.xlu0 %v182, 64
    %v919 = vpop.permute.xlu0 %918
    %925 = vrot.lane.b32.xlu0 %v150, 64
    %v926 = vpop.permute.xlu0 %925
    %v929 = vsel %vm191, %v911, 0
    %931 = vmatprep.subr.bf16.mxu0 0
    %932 = vmatpush1.bf16.msra.mxu0 %v913
    %933 = vmatprep.subr.bf16.mxu0 0
    %934 = vmatpush1.bf16.msra.mxu0 %v915
    %935 = vmatprep.subr.bf16.mxu0 0
    %936 = vmatpush1.bf16.msra.mxu0 %v917
    %937 = vmatprep.subr.bf16.mxu0 0
    %938 = vmatpush1.bf16.msra.mxu0 %v919
    %939 = vmatprep.subr.bf16.mxu0 0
    %940 = vmatpush1.bf16.msra.mxu0 0
    %941 = vmatprep.subr.bf16.mxu0 0
    %942 = vmatpush1.bf16.msra.mxu0 0
    %943 = vmatprep.subr.bf16.mxu0 0
    %944 = vmatpush1.bf16.msra.mxu0 0
    %945 = vmatprep.subr.bf16.mxu0 0
    %946 = vmatpush1.bf16.msra.mxu0 0
    %947 = vmatprep.subr.bf16.mxu0 0
    %948 = vmatpush1.bf16.msra.mxu0 0
    %949 = vmatprep.subr.bf16.mxu0 0
    %950 = vmatpush1.bf16.msra.mxu0 0
    %951 = vmatprep.subr.bf16.mxu0 0
    %952 = vmatpush1.bf16.msra.mxu0 0
    %953 = vmatprep.subr.bf16.mxu0 0
    %954 = vmatpush1.bf16.msra.mxu0 0
    %955 = vmatprep.subr.bf16.mxu0 0
    %956 = vmatpush1.bf16.msra.mxu0 0
    %957 = vmatprep.subr.bf16.mxu0 0
    %958 = vmatpush1.bf16.msra.mxu0 0
    %959 = vmatprep.subr.bf16.mxu0 0
    %960 = vmatpush1.bf16.msra.mxu0 0
    %961 = vmatprep.subr.bf16.mxu0 0
    %962 = vmatpush1.bf16.msra.mxu0 0
    %963 = vmatprep.mubr.bf16.mxu0 0
    %964 = vmatmul.mubr.bf16.gmra.mrb[0].mxu0 %v929
    %v965 = vpop.f32.mrb[0].mxu0
    %v966 = vadd.f32 %v926, %v965
    %v967 = vpop.f32.mrb[0].mxu0
    %v968 = vpop.f32.mrb[0].mxu0
    %v969 = vpop.f32.mrb[0].mxu0
    %970 = vdwg.mxu0
    %v971 = vadd.f32 %v91, %v966
    %v972 = vsel %vm191, %v971, 0.0
    %973 = vadd.xlane.f32.xlu0 %v972
    %v974 = vpop.xlane.xlu0 %973
    %v975 = vrcp.pop 64.0
    %v976 = vmul.f32 %v974, %v975
    %v977 = vmul.f32 %v971, %v971
    %v978 = vsel %vm191, %v977, 0.0
    %979 = vadd.xlane.f32.xlu0 %v978
    %v980 = vpop.xlane.xlu0 %979
    %v981 = vmul.f32 %v980, %v975
    %v982 = vsub.f32 %v971, %v976
    %v983 = vmul.f32 %v976, %v976
    %v984 = vsub.f32 %v981, %v983
    %v985 = vadd.f32 %v984, 1e-05
    %v986 = vrsqrt.pop %v985
    %v987 = vmul.f32 %v982, %v986
    %v988 = vlaneseq
    %v989 = vshrl.u32 %v988, 7
    %v990 = vsub.s32 2, %v989
    %v991 = vrot.slane %v140, %v990
    %993 = vrot.lane.b32.xlu0 %v991, 64
    %v994 = vpop.permute.xlu0 %993
    %v996 = vmul.f32 %v987, %v994
    %v997 = vlaneseq
    %v998 = vshrl.u32 %v997, 7
    %v999 = vsub.s32 2, %v998
    %v1000 = vrot.slane %v141, %v999
    %v1001 = vadd.f32 %v996, %v1000
    %v1002 = vpack.c.bf16 %v1001, %v1001
    %v1003 = vlaneseq
    %v1004 = vshrl.u32 %v1003, 7
    %v1005 = vsub.s32 1, %v1004
    %v1006 = vrot.slane %v140, %v1005
    %v1007 = vlaneseq
    %v1008 = vshrl.u32 %v1007, 7
    %v1009 = vsub.s32 1, %v1008
    %v1010 = vrot.slane %v141, %v1009
    %v1019 = vunpack.c.l.b16 %v93
    %v1020 = vunpack.c.h.b16 %v93
    %v1021 = vunpack.c.l.b16 %v95
    %v1022 = vunpack.c.h.b16 %v95
    %v1023 = vunpack.c.l.b16 %v97
    %v1024 = vunpack.c.h.b16 %v97
    %v1025 = vunpack.c.l.b16 %v99
    %v1026 = vunpack.c.h.b16 %v99
    %v1027 = vunpack.c.l.b16 %v101
    %v1028 = vunpack.c.h.b16 %v101
    %v1029 = vunpack.c.l.b16 %v103
    %v1030 = vunpack.c.h.b16 %v103
    %v1031 = vunpack.c.l.b16 %v105
    %v1032 = vunpack.c.h.b16 %v105
    %v1033 = vunpack.c.l.b16 %v107
    %v1034 = vunpack.c.h.b16 %v107
    %v1035 = vpack.c.b16 %v1021, %v1019
    %v1036 = vpack.c.b16 %v1022, %v1020
    %v1037 = vpack.c.b16 %v1025, %v1023
    %v1038 = vpack.c.b16 %v1026, %v1024
    %v1039 = vpack.c.b16 %v1029, %v1027
    %v1040 = vpack.c.b16 %v1030, %v1028
    %v1041 = vpack.c.b16 %v1033, %v1031
    %v1042 = vpack.c.b16 %v1034, %v1032
    %v1052 = vsel %vm191, %v1002, 0
    %1054 = vmatprep.subr.bf16.mxu0 %v1036
    %1055 = vmatpush1.bf16.msra.mxu0 %v1035
    %1056 = vmatprep.subr.bf16.mxu0 %v1038
    %1057 = vmatpush1.bf16.msra.mxu0 %v1037
    %1058 = vmatprep.subr.bf16.mxu0 %v1040
    %1059 = vmatpush1.bf16.msra.mxu0 %v1039
    %1060 = vmatprep.subr.bf16.mxu0 %v1042
    %1061 = vmatpush1.bf16.msra.mxu0 %v1041
    %1062 = vmatprep.subr.bf16.mxu0 0
    %1063 = vmatpush1.bf16.msra.mxu0 0
    %1064 = vmatprep.subr.bf16.mxu0 0
    %1065 = vmatpush1.bf16.msra.mxu0 0
    %1066 = vmatprep.subr.bf16.mxu0 0
    %1067 = vmatpush1.bf16.msra.mxu0 0
    %1068 = vmatprep.subr.bf16.mxu0 0
    %1069 = vmatpush1.bf16.msra.mxu0 0
    %1070 = vmatprep.subr.bf16.mxu0 0
    %1071 = vmatpush1.bf16.msra.mxu0 0
    %1072 = vmatprep.subr.bf16.mxu0 0
    %1073 = vmatpush1.bf16.msra.mxu0 0
    %1074 = vmatprep.subr.bf16.mxu0 0
    %1075 = vmatpush1.bf16.msra.mxu0 0
    %1076 = vmatprep.subr.bf16.mxu0 0
    %1077 = vmatpush1.bf16.msra.mxu0 0
    %1078 = vmatprep.subr.bf16.mxu0 0
    %1079 = vmatpush1.bf16.msra.mxu0 0
    %1080 = vmatprep.subr.bf16.mxu0 0
    %1081 = vmatpush1.bf16.msra.mxu0 0
    %1082 = vmatprep.subr.bf16.mxu0 0
    %1083 = vmatpush1.bf16.msra.mxu0 0
    %1084 = vmatprep.subr.bf16.mxu0 0
    %1085 = vmatpush1.bf16.msra.mxu0 0
    %1086 = vmatprep.mubr.bf16.mxu0 0
    %1087 = vmatmul.mubr.bf16.gmra.mrb[0].mxu0 %v1052
    %v1088 = vpop.f32.mrb[0].mxu0
    %v1089 = vadd.f32 %v1006, %v1088
    %v1090 = vpop.f32.mrb[0].mxu0
    %v1091 = vadd.f32 %v1010, %v1090
    %v1092 = vpop.f32.mrb[0].mxu0
    %v1093 = vpop.f32.mrb[0].mxu0
    %1094 = vdwg.mxu0
    %v1095 = vmax.f32 %v1089, 0.0
    %v1096 = vmax.f32 %v1091, 0.0
    %v1097 = vpack.c.bf16 %v1095, %v1095
    %v1098 = vpack.c.bf16 %v1096, %v1096
    %v1131 = vunpack.c.l.b16 %v108
    %v1132 = vunpack.c.l.b16 %v109
    %v1133 = vunpack.c.l.b16 %v110
    %v1134 = vunpack.c.l.b16 %v111
    %v1135 = vunpack.c.l.b16 %v112
    %v1136 = vunpack.c.l.b16 %v113
    %v1137 = vunpack.c.l.b16 %v114
    %v1138 = vunpack.c.l.b16 %v115
    %v1139 = vunpack.c.l.b16 %v116
    %v1140 = vunpack.c.l.b16 %v117
    %v1141 = vunpack.c.l.b16 %v118
    %v1142 = vunpack.c.l.b16 %v119
    %v1143 = vunpack.c.l.b16 %v120
    %v1144 = vunpack.c.l.b16 %v121
    %v1145 = vunpack.c.l.b16 %v122
    %v1146 = vunpack.c.l.b16 %v123
    %v1147 = vunpack.c.l.b16 %v124
    %v1148 = vunpack.c.l.b16 %v125
    %v1149 = vunpack.c.l.b16 %v126
    %v1150 = vunpack.c.l.b16 %v127
    %v1151 = vunpack.c.l.b16 %v128
    %v1152 = vunpack.c.l.b16 %v129
    %v1153 = vunpack.c.l.b16 %v130
    %v1154 = vunpack.c.l.b16 %v131
    %v1155 = vunpack.c.l.b16 %v132
    %v1156 = vunpack.c.l.b16 %v133
    %v1157 = vunpack.c.l.b16 %v134
    %v1158 = vunpack.c.l.b16 %v135
    %v1159 = vunpack.c.l.b16 %v136
    %v1160 = vunpack.c.l.b16 %v137
    %v1161 = vunpack.c.l.b16 %v138
    %v1162 = vunpack.c.l.b16 %v139
    %v1163 = vpack.c.b16 %v1132, %v1131
    %v1164 = vpack.c.b16 %v1134, %v1133
    %v1165 = vpack.c.b16 %v1136, %v1135
    %v1166 = vpack.c.b16 %v1138, %v1137
    %v1167 = vpack.c.b16 %v1140, %v1139
    %v1168 = vpack.c.b16 %v1142, %v1141
    %v1169 = vpack.c.b16 %v1144, %v1143
    %v1170 = vpack.c.b16 %v1146, %v1145
    %v1171 = vpack.c.b16 %v1148, %v1147
    %v1172 = vpack.c.b16 %v1150, %v1149
    %v1173 = vpack.c.b16 %v1152, %v1151
    %v1174 = vpack.c.b16 %v1154, %v1153
    %v1175 = vpack.c.b16 %v1156, %v1155
    %v1176 = vpack.c.b16 %v1158, %v1157
    %v1177 = vpack.c.b16 %v1160, %v1159
    %v1178 = vpack.c.b16 %v1162, %v1161
    %1195 = vmatprep.subr.bf16.mxu0 0
    %1196 = vmatpush1.bf16.msra.mxu0 %v1163
    %1197 = vmatprep.subr.bf16.mxu0 0
    %1198 = vmatpush1.bf16.msra.mxu0 %v1164
    %1199 = vmatprep.subr.bf16.mxu0 0
    %1200 = vmatpush1.bf16.msra.mxu0 %v1165
    %1201 = vmatprep.subr.bf16.mxu0 0
    %1202 = vmatpush1.bf16.msra.mxu0 %v1166
    %1203 = vmatprep.subr.bf16.mxu0 0
    %1204 = vmatpush1.bf16.msra.mxu0 %v1167
    %1205 = vmatprep.subr.bf16.mxu0 0
    %1206 = vmatpush1.bf16.msra.mxu0 %v1168
    %1207 = vmatprep.subr.bf16.mxu0 0
    %1208 = vmatpush1.bf16.msra.mxu0 %v1169
    %1209 = vmatprep.subr.bf16.mxu0 0
    %1210 = vmatpush1.bf16.msra.mxu0 %v1170
    %1211 = vmatprep.subr.bf16.mxu0 0
    %1212 = vmatpush1.bf16.msra.mxu0 %v1171
    %1213 = vmatprep.subr.bf16.mxu0 0
    %1214 = vmatpush1.bf16.msra.mxu0 %v1172
    %1215 = vmatprep.subr.bf16.mxu0 0
    %1216 = vmatpush1.bf16.msra.mxu0 %v1173
    %1217 = vmatprep.subr.bf16.mxu0 0
    %1218 = vmatpush1.bf16.msra.mxu0 %v1174
    %1219 = vmatprep.subr.bf16.mxu0 0
    %1220 = vmatpush1.bf16.msra.mxu0 %v1175
    %1221 = vmatprep.subr.bf16.mxu0 0
    %1222 = vmatpush1.bf16.msra.mxu0 %v1176
    %1223 = vmatprep.subr.bf16.mxu0 0
    %1224 = vmatpush1.bf16.msra.mxu0 %v1177
    %1225 = vmatprep.subr.bf16.mxu0 0
    %1226 = vmatpush1.bf16.msra.mxu0 %v1178
    %1227 = vmatprep.mubr.bf16.mxu0 %v1098
    %1228 = vmatmul.mubr.bf16.gmra.mrb[0].mxu0 %v1097
    %v1229 = vpop.f32.mrb[0].mxu0
    %v1230 = vadd.f32 %v991, %v1229
    %v1231 = vpop.f32.mrb[0].mxu0
    %v1232 = vpop.f32.mrb[0].mxu0
    %v1233 = vpop.f32.mrb[0].mxu0
    %1234 = vdwg.mxu0
    %v1235 = vadd.f32 %v1001, %v1230
    %v1236 = vsel %vm191, %v1235, 0.0
    %1237 = vadd.xlane.f32.xlu0 %v1236
    %v1238 = vpop.xlane.xlu0 %1237
    %v1239 = vmul.f32 %v1238, %v975
    %v1240 = vmul.f32 %v1235, %v1235
    %v1241 = vsel %vm191, %v1240, 0.0
    %1242 = vadd.xlane.f32.xlu0 %v1241
    %v1243 = vpop.xlane.xlu0 %1242
    %v1244 = vmul.f32 %v1243, %v975
    %v1245 = vsub.f32 %v1235, %v1239
    %v1246 = vmul.f32 %v1239, %v1239
    %v1247 = vsub.f32 %v1244, %v1246
    %v1248 = vadd.f32 %v1247, 1e-05
    %v1249 = vrsqrt.pop %v1248
    %v1250 = vmul.f32 %v1245, %v1249
    %1252 = vrot.lane.b32.xlu0 %v1000, 64
    %v1253 = vpop.permute.xlu0 %1252
    %v1255 = vmul.f32 %v1250, %v1253
    %v1256 = vlaneseq
    %v1257 = vshrl.u32 %v1256, 7
    %v1258 = vsub.s32 3, %v1257
    %v1259 = vrot.slane %v140, %v1258
    %v1260 = vadd.f32 %v1255, %v1259
    %s1261 = scalar_lea.vmem %s4, 128
    %v1262 = vld [vmem:[%s1261] sm:$0xff]
    %v1263 = vld [vmem:[%s1261 + $0x8] sm:$0xff]
    %v1264 = vld [vmem:[%s1261 + $0x10] sm:$0xff]
    %v1265 = vld [vmem:[%s1261 + $0x18] sm:$0xff]
    %v1266 = vld [vmem:[%s1261 + $0x20] sm:$0xff]
    %v1267 = vld [vmem:[%s1261 + $0x28] sm:$0xff]
    %v1268 = vld [vmem:[%s1261 + $0x30] sm:$0xff]
    %v1269 = vld [vmem:[%s1261 + $0x38] sm:$0xff]
    %v1270 = vld [vmem:[%s1261 + $0x40] sm:$0xff]
    %v1271 = vld [vmem:[%s1261 + $0x48] sm:$0xff]
    %v1272 = vld [vmem:[%s1261 + $0x50] sm:$0xff]
    %v1273 = vld [vmem:[%s1261 + $0x58] sm:$0xff]
    %v1274 = vld [vmem:[%s1261 + $0x60] sm:$0xff]
    %v1275 = vld [vmem:[%s1261 + $0x68] sm:$0xff]
    %v1276 = vld [vmem:[%s1261 + $0x70] sm:$0xff]
    %v1277 = vld [vmem:[%s1261 + $0x78] sm:$0xff]
    %s1278 = scalar_lea.vmem %s5, 128
    %v1279 = vld [vmem:[%s1278] sm:$0xf]
    %v1280 = vld [vmem:[%s1278 + $0x4] sm:$0xf]
    %v1281 = vld [vmem:[%s1278 + $0x8] sm:$0xf]
    %v1282 = vld [vmem:[%s1278 + $0xc] sm:$0xf]
    %v1283 = vld [vmem:[%s1278 + $0x10] sm:$0xf]
    %v1284 = vld [vmem:[%s1278 + $0x14] sm:$0xf]
    %v1285 = vld [vmem:[%s1278 + $0x18] sm:$0xf]
    %v1286 = vld [vmem:[%s1278 + $0x1c] sm:$0xf]
    %v1287 = vld [vmem:[%s1278 + $0x20] sm:$0xf]
    %v1288 = vld [vmem:[%s1278 + $0x24] sm:$0xf]
    %v1289 = vld [vmem:[%s1278 + $0x28] sm:$0xf]
    %v1290 = vld [vmem:[%s1278 + $0x2c] sm:$0xf]
    %v1291 = vld [vmem:[%s1278 + $0x30] sm:$0xf]
    %v1292 = vld [vmem:[%s1278 + $0x34] sm:$0xf]
    %v1293 = vld [vmem:[%s1278 + $0x38] sm:$0xf]
    %v1294 = vld [vmem:[%s1278 + $0x3c] sm:$0xf]
    %v1295 = vld [vmem:[%s1278 + $0x40] sm:$0xf]
    %v1296 = vld [vmem:[%s1278 + $0x44] sm:$0xf]
    %v1297 = vld [vmem:[%s1278 + $0x48] sm:$0xf]
    %v1298 = vld [vmem:[%s1278 + $0x4c] sm:$0xf]
    %v1299 = vld [vmem:[%s1278 + $0x50] sm:$0xf]
    %v1300 = vld [vmem:[%s1278 + $0x54] sm:$0xf]
    %v1301 = vld [vmem:[%s1278 + $0x58] sm:$0xf]
    %v1302 = vld [vmem:[%s1278 + $0x5c] sm:$0xf]
    %v1303 = vld [vmem:[%s1278 + $0x60] sm:$0xf]
    %v1304 = vld [vmem:[%s1278 + $0x64] sm:$0xf]
    %v1305 = vld [vmem:[%s1278 + $0x68] sm:$0xf]
    %v1306 = vld [vmem:[%s1278 + $0x6c] sm:$0xf]
    %v1307 = vld [vmem:[%s1278 + $0x70] sm:$0xf]
    %v1308 = vld [vmem:[%s1278 + $0x74] sm:$0xf]
    %v1309 = vld [vmem:[%s1278 + $0x78] sm:$0xf]
    %v1310 = vld [vmem:[%s1278 + $0x7c] sm:$0xf]
    %s1311 = scalar_lea.vmem %s6, 16
    %v1312 = vld [vmem:[%s1311] sm:$0xff]
    %v1313 = vld [vmem:[%s1311 + $0x8] sm:$0xff]
    %v1314 = vpack.c.bf16 %v1260, %v1260
    %v1315 = vlaneseq
    %v1316 = vshrl.u32 %v1315, 7
    %v1317 = vsub.s32 0, %v1316
    %v1318 = vrot.slane %v1312, %v1317
    %v1319 = vlaneseq
    %v1320 = vshrl.u32 %v1319, 7
    %v1321 = vsub.s32 0, %v1320
    %v1322 = vrot.slane %v1313, %v1321
    %v1331 = vunpack.c.l.b16 %v1262
    %v1332 = vunpack.c.h.b16 %v1262
    %v1333 = vunpack.c.l.b16 %v1264
    %v1334 = vunpack.c.h.b16 %v1264
    %v1335 = vunpack.c.l.b16 %v1266
    %v1336 = vunpack.c.h.b16 %v1266
    %v1337 = vunpack.c.l.b16 %v1268
    %v1338 = vunpack.c.h.b16 %v1268
    %v1339 = vunpack.c.l.b16 %v1270
    %v1340 = vunpack.c.h.b16 %v1270
    %v1341 = vunpack.c.l.b16 %v1272
    %v1342 = vunpack.c.h.b16 %v1272
    %v1343 = vunpack.c.l.b16 %v1274
    %v1344 = vunpack.c.h.b16 %v1274
    %v1345 = vunpack.c.l.b16 %v1276
    %v1346 = vunpack.c.h.b16 %v1276
    %v1347 = vpack.c.b16 %v1333, %v1331
    %v1348 = vpack.c.b16 %v1334, %v1332
    %v1349 = vpack.c.b16 %v1337, %v1335
    %v1350 = vpack.c.b16 %v1338, %v1336
    %v1351 = vpack.c.b16 %v1341, %v1339
    %v1352 = vpack.c.b16 %v1342, %v1340
    %v1353 = vpack.c.b16 %v1345, %v1343
    %v1354 = vpack.c.b16 %v1346, %v1344
    %v1364 = vsel %vm191, %v1314, 0
    %1366 = vmatprep.subr.bf16.mxu0 %v1348
    %1367 = vmatpush1.bf16.msra.mxu0 %v1347
    %1368 = vmatprep.subr.bf16.mxu0 %v1350
    %1369 = vmatpush1.bf16.msra.mxu0 %v1349
    %1370 = vmatprep.subr.bf16.mxu0 %v1352
    %1371 = vmatpush1.bf16.msra.mxu0 %v1351
    %1372 = vmatprep.subr.bf16.mxu0 %v1354
    %1373 = vmatpush1.bf16.msra.mxu0 %v1353
    %1374 = vmatprep.subr.bf16.mxu0 0
    %1375 = vmatpush1.bf16.msra.mxu0 0
    %1376 = vmatprep.subr.bf16.mxu0 0
    %1377 = vmatpush1.bf16.msra.mxu0 0
    %1378 = vmatprep.subr.bf16.mxu0 0
    %1379 = vmatpush1.bf16.msra.mxu0 0
    %1380 = vmatprep.subr.bf16.mxu0 0
    %1381 = vmatpush1.bf16.msra.mxu0 0
    %1382 = vmatprep.subr.bf16.mxu0 0
    %1383 = vmatpush1.bf16.msra.mxu0 0
    %1384 = vmatprep.subr.bf16.mxu0 0
    %1385 = vmatpush1.bf16.msra.mxu0 0
    %1386 = vmatprep.subr.bf16.mxu0 0
    %1387 = vmatpush1.bf16.msra.mxu0 0
    %1388 = vmatprep.subr.bf16.mxu0 0
    %1389 = vmatpush1.bf16.msra.mxu0 0
    %1390 = vmatprep.subr.bf16.mxu0 0
    %1391 = vmatpush1.bf16.msra.mxu0 0
    %1392 = vmatprep.subr.bf16.mxu0 0
    %1393 = vmatpush1.bf16.msra.mxu0 0
    %1394 = vmatprep.subr.bf16.mxu0 0
    %1395 = vmatpush1.bf16.msra.mxu0 0
    %1396 = vmatprep.subr.bf16.mxu0 0
    %1397 = vmatpush1.bf16.msra.mxu0 0
    %1398 = vmatprep.mubr.bf16.mxu0 0
    %1399 = vmatmul.mubr.bf16.gmra.mrb[0].mxu0 %v1364
    %v1400 = vpop.f32.mrb[0].mxu0
    %v1401 = vadd.f32 %v1318, %v1400
    %v1402 = vpop.f32.mrb[0].mxu0
    %v1403 = vadd.f32 %v1322, %v1402
    %v1404 = vpop.f32.mrb[0].mxu0
    %v1405 = vpop.f32.mrb[0].mxu0
    %1406 = vdwg.mxu0
    %1408 = vrot.lane.b32.xlu0 %v1401, 112
    %v1409 = vpop.permute.xlu0 %1408
    %1410 = vrot.lane.b32.xlu0 %v1401, 96
    %v1411 = vpop.permute.xlu0 %1410
    %1412 = vrot.lane.b32.xlu0 %v1401, 80
    %v1413 = vpop.permute.xlu0 %1412
    %1415 = vrot.lane.b32.xlu0 %v1403, 112
    %v1416 = vpop.permute.xlu0 %1415
    %1418 = vrot.lane.b32.xlu0 %v1403, 96
    %v1419 = vpop.permute.xlu0 %1418
    %1421 = vrot.lane.b32.xlu0 %v1403, 80
    %v1422 = vpop.permute.xlu0 %1421
    %1424 = vrot.lane.b32.xlu0 %v1401, 64
    %v1425 = vpop.permute.xlu0 %1424
    %v1426 = vsel %vm43, %v1401, 0
    %v1428 = vsel %vm43, %v1425, 0
    %1430 = vmatprep.subr.mxu0 0.0
    %1431 = vmatpush1.xpose.msra.mxu0 %v1428
    %1432 = vmatprep.subr.mxu0 0.0
    %1433 = vmatpush1.xpose.msra.mxu0 0.0
    %1434 = vmatprep.subr.mxu0 0.0
    %1435 = vmatpush1.xpose.msra.mxu0 0.0
    %1436 = vmatprep.subr.mxu0 0.0
    %1437 = vmatpush1.xpose.msra.mxu0 0.0
    %1438 = vmatprep.subr.mxu0 0.0
    %1439 = vmatpush1.xpose.msra.mxu0 0.0
    %1440 = vmatprep.subr.mxu0 0.0
    %1441 = vmatpush1.xpose.msra.mxu0 0.0
    %1442 = vmatprep.subr.mxu0 0.0
    %1443 = vmatpush1.xpose.msra.mxu0 0.0
    %1444 = vmatprep.subr.mxu0 0.0
    %1445 = vmatpush1.xpose.msra.mxu0 0.0
    %1446 = vmatprep.subr.mxu0 0.0
    %1447 = vmatpush1.xpose.msra.mxu0 0.0
    %1448 = vmatprep.subr.mxu0 0.0
    %1449 = vmatpush1.xpose.msra.mxu0 0.0
    %1450 = vmatprep.subr.mxu0 0.0
    %1451 = vmatpush1.xpose.msra.mxu0 0.0
    %1452 = vmatprep.subr.mxu0 0.0
    %1453 = vmatpush1.xpose.msra.mxu0 0.0
    %1454 = vmatprep.subr.mxu0 0.0
    %1455 = vmatpush1.xpose.msra.mxu0 0.0
    %1456 = vmatprep.subr.mxu0 0.0
    %1457 = vmatpush1.xpose.msra.mxu0 0.0
    %1458 = vmatprep.subr.mxu0 0.0
    %1459 = vmatpush1.xpose.msra.mxu0 0.0
    %1460 = vmatprep.subr.mxu0 0.0
    %1461 = vmatpush1.xpose.msra.mxu0 0.0
    %1462 = vmatprep.subr.mxu0 0.0
    %1463 = vmatpush1.xpose.msra.mxu0 0.0
    %1464 = vmatprep.subr.mxu0 0.0
    %1465 = vmatpush1.xpose.msra.mxu0 0.0
    %1466 = vmatprep.subr.mxu0 0.0
    %1467 = vmatpush1.xpose.msra.mxu0 0.0
    %1468 = vmatprep.subr.mxu0 0.0
    %1469 = vmatpush1.xpose.msra.mxu0 0.0
    %1470 = vmatprep.subr.mxu0 0.0
    %1471 = vmatpush1.xpose.msra.mxu0 0.0
    %1472 = vmatprep.subr.mxu0 0.0
    %1473 = vmatpush1.xpose.msra.mxu0 0.0
    %1474 = vmatprep.subr.mxu0 0.0
    %1475 = vmatpush1.xpose.msra.mxu0 0.0
    %1476 = vmatprep.subr.mxu0 0.0
    %1477 = vmatpush1.xpose.msra.mxu0 0.0
    %1478 = vmatprep.subr.mxu0 0.0
    %1479 = vmatpush1.xpose.msra.mxu0 0.0
    %1480 = vmatprep.subr.mxu0 0.0
    %1481 = vmatpush1.xpose.msra.mxu0 0.0
    %1482 = vmatprep.subr.mxu0 0.0
    %1483 = vmatpush1.xpose.msra.mxu0 0.0
    %1484 = vmatprep.subr.mxu0 0.0
    %1485 = vmatpush1.xpose.msra.mxu0 0.0
    %1486 = vmatprep.subr.mxu0 0.0
    %1487 = vmatpush1.xpose.msra.mxu0 0.0
    %1488 = vmatprep.subr.mxu0 0.0
    %1489 = vmatpush1.xpose.msra.mxu0 0.0
    %1490 = vmatprep.subr.mxu0 0.0
    %1491 = vmatpush1.xpose.msra.mxu0 0.0
    %1492 = vmatprep.subr.mxu0 0.0
    %1493 = vmatpush1.xpose.msra.mxu0 0.0
    %1494 = vmatprep.mubr.f32.mxu0 0.0
    %1495 = vmatmul.mubr.f32.gmra.mrb[0].mxu0 %v1426
    %v1496 = vpop.f32.mrb[0].mxu0
    %v1497 = vadd.f32 0.0, %v1496
    %v1498 = vpop.f32.mrb[0].mxu0
    %1499 = vdwg.mxu0
    %1500 = vrot.lane.b32.xlu0 %v1409, 64
    %v1501 = vpop.permute.xlu0 %1500
    %v1502 = vsel %vm43, %v1409, 0
    %v1504 = vsel %vm43, %v1501, 0
    %1506 = vmatprep.subr.mxu0 0.0
    %1507 = vmatpush1.xpose.msra.mxu0 %v1504
    %1508 = vmatprep.subr.mxu0 0.0
    %1509 = vmatpush1.xpose.msra.mxu0 0.0
    %1510 = vmatprep.subr.mxu0 0.0
    %1511 = vmatpush1.xpose.msra.mxu0 0.0
    %1512 = vmatprep.subr.mxu0 0.0
    %1513 = vmatpush1.xpose.msra.mxu0 0.0
    %1514 = vmatprep.subr.mxu0 0.0
    %1515 = vmatpush1.xpose.msra.mxu0 0.0
    %1516 = vmatprep.subr.mxu0 0.0
    %1517 = vmatpush1.xpose.msra.mxu0 0.0
    %1518 = vmatprep.subr.mxu0 0.0
    %1519 = vmatpush1.xpose.msra.mxu0 0.0
    %1520 = vmatprep.subr.mxu0 0.0
    %1521 = vmatpush1.xpose.msra.mxu0 0.0
    %1522 = vmatprep.subr.mxu0 0.0
    %1523 = vmatpush1.xpose.msra.mxu0 0.0
    %1524 = vmatprep.subr.mxu0 0.0
    %1525 = vmatpush1.xpose.msra.mxu0 0.0
    %1526 = vmatprep.subr.mxu0 0.0
    %1527 = vmatpush1.xpose.msra.mxu0 0.0
    %1528 = vmatprep.subr.mxu0 0.0
    %1529 = vmatpush1.xpose.msra.mxu0 0.0
    %1530 = vmatprep.subr.mxu0 0.0
    %1531 = vmatpush1.xpose.msra.mxu0 0.0
    %1532 = vmatprep.subr.mxu0 0.0
    %1533 = vmatpush1.xpose.msra.mxu0 0.0
    %1534 = vmatprep.subr.mxu0 0.0
    %1535 = vmatpush1.xpose.msra.mxu0 0.0
    %1536 = vmatprep.subr.mxu0 0.0
    %1537 = vmatpush1.xpose.msra.mxu0 0.0
    %1538 = vmatprep.subr.mxu0 0.0
    %1539 = vmatpush1.xpose.msra.mxu0 0.0
    %1540 = vmatprep.subr.mxu0 0.0
    %1541 = vmatpush1.xpose.msra.mxu0 0.0
    %1542 = vmatprep.subr.mxu0 0.0
    %1543 = vmatpush1.xpose.msra.mxu0 0.0
    %1544 = vmatprep.subr.mxu0 0.0
    %1545 = vmatpush1.xpose.msra.mxu0 0.0
    %1546 = vmatprep.subr.mxu0 0.0
    %1547 = vmatpush1.xpose.msra.mxu0 0.0
    %1548 = vmatprep.subr.mxu0 0.0
    %1549 = vmatpush1.xpose.msra.mxu0 0.0
    %1550 = vmatprep.subr.mxu0 0.0
    %1551 = vmatpush1.xpose.msra.mxu0 0.0
    %1552 = vmatprep.subr.mxu0 0.0
    %1553 = vmatpush1.xpose.msra.mxu0 0.0
    %1554 = vmatprep.subr.mxu0 0.0
    %1555 = vmatpush1.xpose.msra.mxu0 0.0
    %1556 = vmatprep.subr.mxu0 0.0
    %1557 = vmatpush1.xpose.msra.mxu0 0.0
    %1558 = vmatprep.subr.mxu0 0.0
    %1559 = vmatpush1.xpose.msra.mxu0 0.0
    %1560 = vmatprep.subr.mxu0 0.0
    %1561 = vmatpush1.xpose.msra.mxu0 0.0
    %1562 = vmatprep.subr.mxu0 0.0
    %1563 = vmatpush1.xpose.msra.mxu0 0.0
    %1564 = vmatprep.subr.mxu0 0.0
    %1565 = vmatpush1.xpose.msra.mxu0 0.0
    %1566 = vmatprep.subr.mxu0 0.0
    %1567 = vmatpush1.xpose.msra.mxu0 0.0
    %1568 = vmatprep.subr.mxu0 0.0
    %1569 = vmatpush1.xpose.msra.mxu0 0.0
    %1570 = vmatprep.mubr.f32.mxu0 0.0
    %1571 = vmatmul.mubr.f32.gmra.mrb[0].mxu0 %v1502
    %v1572 = vpop.f32.mrb[0].mxu0
    %v1573 = vadd.f32 0.0, %v1572
    %v1574 = vpop.f32.mrb[0].mxu0
    %1575 = vdwg.mxu0
    %1576 = vrot.lane.b32.xlu0 %v1411, 64
    %v1577 = vpop.permute.xlu0 %1576
    %v1578 = vsel %vm43, %v1411, 0
    %v1580 = vsel %vm43, %v1577, 0
    %1582 = vmatprep.subr.mxu0 0.0
    %1583 = vmatpush1.xpose.msra.mxu0 %v1580
    %1584 = vmatprep.subr.mxu0 0.0
    %1585 = vmatpush1.xpose.msra.mxu0 0.0
    %1586 = vmatprep.subr.mxu0 0.0
    %1587 = vmatpush1.xpose.msra.mxu0 0.0
    %1588 = vmatprep.subr.mxu0 0.0
    %1589 = vmatpush1.xpose.msra.mxu0 0.0
    %1590 = vmatprep.subr.mxu0 0.0
    %1591 = vmatpush1.xpose.msra.mxu0 0.0
    %1592 = vmatprep.subr.mxu0 0.0
    %1593 = vmatpush1.xpose.msra.mxu0 0.0
    %1594 = vmatprep.subr.mxu0 0.0
    %1595 = vmatpush1.xpose.msra.mxu0 0.0
    %1596 = vmatprep.subr.mxu0 0.0
    %1597 = vmatpush1.xpose.msra.mxu0 0.0
    %1598 = vmatprep.subr.mxu0 0.0
    %1599 = vmatpush1.xpose.msra.mxu0 0.0
    %1600 = vmatprep.subr.mxu0 0.0
    %1601 = vmatpush1.xpose.msra.mxu0 0.0
    %1602 = vmatprep.subr.mxu0 0.0
    %1603 = vmatpush1.xpose.msra.mxu0 0.0
    %1604 = vmatprep.subr.mxu0 0.0
    %1605 = vmatpush1.xpose.msra.mxu0 0.0
    %1606 = vmatprep.subr.mxu0 0.0
    %1607 = vmatpush1.xpose.msra.mxu0 0.0
    %1608 = vmatprep.subr.mxu0 0.0
    %1609 = vmatpush1.xpose.msra.mxu0 0.0
    %1610 = vmatprep.subr.mxu0 0.0
    %1611 = vmatpush1.xpose.msra.mxu0 0.0
    %1612 = vmatprep.subr.mxu0 0.0
    %1613 = vmatpush1.xpose.msra.mxu0 0.0
    %1614 = vmatprep.subr.mxu0 0.0
    %1615 = vmatpush1.xpose.msra.mxu0 0.0
    %1616 = vmatprep.subr.mxu0 0.0
    %1617 = vmatpush1.xpose.msra.mxu0 0.0
    %1618 = vmatprep.subr.mxu0 0.0
    %1619 = vmatpush1.xpose.msra.mxu0 0.0
    %1620 = vmatprep.subr.mxu0 0.0
    %1621 = vmatpush1.xpose.msra.mxu0 0.0
    %1622 = vmatprep.subr.mxu0 0.0
    %1623 = vmatpush1.xpose.msra.mxu0 0.0
    %1624 = vmatprep.subr.mxu0 0.0
    %1625 = vmatpush1.xpose.msra.mxu0 0.0
    %1626 = vmatprep.subr.mxu0 0.0
    %1627 = vmatpush1.xpose.msra.mxu0 0.0
    %1628 = vmatprep.subr.mxu0 0.0
    %1629 = vmatpush1.xpose.msra.mxu0 0.0
    %1630 = vmatprep.subr.mxu0 0.0
    %1631 = vmatpush1.xpose.msra.mxu0 0.0
    %1632 = vmatprep.subr.mxu0 0.0
    %1633 = vmatpush1.xpose.msra.mxu0 0.0
    %1634 = vmatprep.subr.mxu0 0.0
    %1635 = vmatpush1.xpose.msra.mxu0 0.0
    %1636 = vmatprep.subr.mxu0 0.0
    %1637 = vmatpush1.xpose.msra.mxu0 0.0
    %1638 = vmatprep.subr.mxu0 0.0
    %1639 = vmatpush1.xpose.msra.mxu0 0.0
    %1640 = vmatprep.subr.mxu0 0.0
    %1641 = vmatpush1.xpose.msra.mxu0 0.0
    %1642 = vmatprep.subr.mxu0 0.0
    %1643 = vmatpush1.xpose.msra.mxu0 0.0
    %1644 = vmatprep.subr.mxu0 0.0
    %1645 = vmatpush1.xpose.msra.mxu0 0.0
    %1646 = vmatprep.mubr.f32.mxu0 0.0
    %1647 = vmatmul.mubr.f32.gmra.mrb[0].mxu0 %v1578
    %v1648 = vpop.f32.mrb[0].mxu0
    %v1649 = vadd.f32 0.0, %v1648
    %v1650 = vpop.f32.mrb[0].mxu0
    %1651 = vdwg.mxu0
    %1652 = vrot.lane.b32.xlu0 %v1413, 64
    %v1653 = vpop.permute.xlu0 %1652
    %v1654 = vsel %vm43, %v1413, 0
    %v1656 = vsel %vm43, %v1653, 0
    %1658 = vmatprep.subr.mxu0 0.0
    %1659 = vmatpush1.xpose.msra.mxu0 %v1656
    %1660 = vmatprep.subr.mxu0 0.0
    %1661 = vmatpush1.xpose.msra.mxu0 0.0
    %1662 = vmatprep.subr.mxu0 0.0
    %1663 = vmatpush1.xpose.msra.mxu0 0.0
    %1664 = vmatprep.subr.mxu0 0.0
    %1665 = vmatpush1.xpose.msra.mxu0 0.0
    %1666 = vmatprep.subr.mxu0 0.0
    %1667 = vmatpush1.xpose.msra.mxu0 0.0
    %1668 = vmatprep.subr.mxu0 0.0
    %1669 = vmatpush1.xpose.msra.mxu0 0.0
    %1670 = vmatprep.subr.mxu0 0.0
    %1671 = vmatpush1.xpose.msra.mxu0 0.0
    %1672 = vmatprep.subr.mxu0 0.0
    %1673 = vmatpush1.xpose.msra.mxu0 0.0
    %1674 = vmatprep.subr.mxu0 0.0
    %1675 = vmatpush1.xpose.msra.mxu0 0.0
    %1676 = vmatprep.subr.mxu0 0.0
    %1677 = vmatpush1.xpose.msra.mxu0 0.0
    %1678 = vmatprep.subr.mxu0 0.0
    %1679 = vmatpush1.xpose.msra.mxu0 0.0
    %1680 = vmatprep.subr.mxu0 0.0
    %1681 = vmatpush1.xpose.msra.mxu0 0.0
    %1682 = vmatprep.subr.mxu0 0.0
    %1683 = vmatpush1.xpose.msra.mxu0 0.0
    %1684 = vmatprep.subr.mxu0 0.0
    %1685 = vmatpush1.xpose.msra.mxu0 0.0
    %1686 = vmatprep.subr.mxu0 0.0
    %1687 = vmatpush1.xpose.msra.mxu0 0.0
    %1688 = vmatprep.subr.mxu0 0.0
    %1689 = vmatpush1.xpose.msra.mxu0 0.0
    %1690 = vmatprep.subr.mxu0 0.0
    %1691 = vmatpush1.xpose.msra.mxu0 0.0
    %1692 = vmatprep.subr.mxu0 0.0
    %1693 = vmatpush1.xpose.msra.mxu0 0.0
    %1694 = vmatprep.subr.mxu0 0.0
    %1695 = vmatpush1.xpose.msra.mxu0 0.0
    %1696 = vmatprep.subr.mxu0 0.0
    %1697 = vmatpush1.xpose.msra.mxu0 0.0
    %1698 = vmatprep.subr.mxu0 0.0
    %1699 = vmatpush1.xpose.msra.mxu0 0.0
    %1700 = vmatprep.subr.mxu0 0.0
    %1701 = vmatpush1.xpose.msra.mxu0 0.0
    %1702 = vmatprep.subr.mxu0 0.0
    %1703 = vmatpush1.xpose.msra.mxu0 0.0
    %1704 = vmatprep.subr.mxu0 0.0
    %1705 = vmatpush1.xpose.msra.mxu0 0.0
    %1706 = vmatprep.subr.mxu0 0.0
    %1707 = vmatpush1.xpose.msra.mxu0 0.0
    %1708 = vmatprep.subr.mxu0 0.0
    %1709 = vmatpush1.xpose.msra.mxu0 0.0
    %1710 = vmatprep.subr.mxu0 0.0
    %1711 = vmatpush1.xpose.msra.mxu0 0.0
    %1712 = vmatprep.subr.mxu0 0.0
    %1713 = vmatpush1.xpose.msra.mxu0 0.0
    %1714 = vmatprep.subr.mxu0 0.0
    %1715 = vmatpush1.xpose.msra.mxu0 0.0
    %1716 = vmatprep.subr.mxu0 0.0
    %1717 = vmatpush1.xpose.msra.mxu0 0.0
    %1718 = vmatprep.subr.mxu0 0.0
    %1719 = vmatpush1.xpose.msra.mxu0 0.0
    %1720 = vmatprep.subr.mxu0 0.0
    %1721 = vmatpush1.xpose.msra.mxu0 0.0
    %1722 = vmatprep.mubr.f32.mxu0 0.0
    %1723 = vmatmul.mubr.f32.gmra.mrb[0].mxu0 %v1654
    %v1724 = vpop.f32.mrb[0].mxu0
    %v1725 = vadd.f32 0.0, %v1724
    %v1726 = vpop.f32.mrb[0].mxu0
    %1727 = vdwg.mxu0
    %v1728 = vsel %vm557, %v1497, -inf
    %1729 = vmax.xlane.f32.xlu0 %v1728
    %v1730 = vpop.xlane.xlu0 %1729
    %v1731 = vsel %vm557, %v1573, -inf
    %1732 = vmax.xlane.f32.xlu0 %v1731
    %v1733 = vpop.xlane.xlu0 %1732
    %v1734 = vsel %vm557, %v1649, -inf
    %1735 = vmax.xlane.f32.xlu0 %v1734
    %v1736 = vpop.xlane.xlu0 %1735
    %v1737 = vsel %vm557, %v1725, -inf
    %1738 = vmax.xlane.f32.xlu0 %v1737
    %v1739 = vpop.xlane.xlu0 %1738
    %v1740 = vsub.f32 %v1497, %v1730
    %v1741 = vsub.f32 %v1573, %v1733
    %v1742 = vsub.f32 %v1649, %v1736
    %v1743 = vsub.f32 %v1725, %v1739
    %v1744 = vmul.f32 %v1740, 1.442695
    %v1745 = vpow.pop %v1744
    %v1746 = vmul.f32 %v1741, 1.442695
    %v1747 = vpow.pop %v1746
    %v1748 = vmul.f32 %v1742, 1.442695
    %v1749 = vpow.pop %v1748
    %v1750 = vmul.f32 %v1743, 1.442695
    %v1751 = vpow.pop %v1750
    %v1752 = vsel %vm557, %v1745, 0.0
    %1753 = vadd.xlane.f32.xlu0 %v1752
    %v1754 = vpop.xlane.xlu0 %1753
    %v1755 = vsel %vm557, %v1747, 0.0
    %1756 = vadd.xlane.f32.xlu0 %v1755
    %v1757 = vpop.xlane.xlu0 %1756
    %v1758 = vsel %vm557, %v1749, 0.0
    %1759 = vadd.xlane.f32.xlu0 %v1758
    %v1760 = vpop.xlane.xlu0 %1759
    %v1761 = vsel %vm557, %v1751, 0.0
    %1762 = vadd.xlane.f32.xlu0 %v1761
    %v1763 = vpop.xlane.xlu0 %1762
    %v1764 = vrcp.pop %v1754
    %v1765 = vmul.f32 %v1745, %v1764
    %v1766 = vrcp.pop %v1757
    %v1767 = vmul.f32 %v1747, %v1766
    %v1768 = vrcp.pop %v1760
    %v1769 = vmul.f32 %v1749, %v1768
    %v1770 = vrcp.pop %v1763
    %v1771 = vmul.f32 %v1751, %v1770
    %v1773 = vsel %vm557, %v1765, 0
    %1775 = vmatprep.subr.mxu0 0.0
    %1776 = vmatpush1.msra.mxu0 %v1403
    %1777 = vmatprep.subr.mxu0 0.0
    %1778 = vmatpush1.msra.mxu0 0.0
    %1779 = vmatprep.subr.mxu0 0.0
    %1780 = vmatpush1.msra.mxu0 0.0
    %1781 = vmatprep.subr.mxu0 0.0
    %1782 = vmatpush1.msra.mxu0 0.0
    %1783 = vmatprep.subr.mxu0 0.0
    %1784 = vmatpush1.msra.mxu0 0.0
    %1785 = vmatprep.subr.mxu0 0.0
    %1786 = vmatpush1.msra.mxu0 0.0
    %1787 = vmatprep.subr.mxu0 0.0
    %1788 = vmatpush1.msra.mxu0 0.0
    %1789 = vmatprep.subr.mxu0 0.0
    %1790 = vmatpush1.msra.mxu0 0.0
    %1791 = vmatprep.subr.mxu0 0.0
    %1792 = vmatpush1.msra.mxu0 0.0
    %1793 = vmatprep.subr.mxu0 0.0
    %1794 = vmatpush1.msra.mxu0 0.0
    %1795 = vmatprep.subr.mxu0 0.0
    %1796 = vmatpush1.msra.mxu0 0.0
    %1797 = vmatprep.subr.mxu0 0.0
    %1798 = vmatpush1.msra.mxu0 0.0
    %1799 = vmatprep.subr.mxu0 0.0
    %1800 = vmatpush1.msra.mxu0 0.0
    %1801 = vmatprep.subr.mxu0 0.0
    %1802 = vmatpush1.msra.mxu0 0.0
    %1803 = vmatprep.subr.mxu0 0.0
    %1804 = vmatpush1.msra.mxu0 0.0
    %1805 = vmatprep.subr.mxu0 0.0
    %1806 = vmatpush1.msra.mxu0 0.0
    %1807 = vmatprep.subr.mxu0 0.0
    %1808 = vmatpush1.msra.mxu0 0.0
    %1809 = vmatprep.subr.mxu0 0.0
    %1810 = vmatpush1.msra.mxu0 0.0
    %1811 = vmatprep.subr.mxu0 0.0
    %1812 = vmatpush1.msra.mxu0 0.0
    %1813 = vmatprep.subr.mxu0 0.0
    %1814 = vmatpush1.msra.mxu0 0.0
    %1815 = vmatprep.subr.mxu0 0.0
    %1816 = vmatpush1.msra.mxu0 0.0
    %1817 = vmatprep.subr.mxu0 0.0
    %1818 = vmatpush1.msra.mxu0 0.0
    %1819 = vmatprep.subr.mxu0 0.0
    %1820 = vmatpush1.msra.mxu0 0.0
    %1821 = vmatprep.subr.mxu0 0.0
    %1822 = vmatpush1.msra.mxu0 0.0
    %1823 = vmatprep.subr.mxu0 0.0
    %1824 = vmatpush1.msra.mxu0 0.0
    %1825 = vmatprep.subr.mxu0 0.0
    %1826 = vmatpush1.msra.mxu0 0.0
    %1827 = vmatprep.subr.mxu0 0.0
    %1828 = vmatpush1.msra.mxu0 0.0
    %1829 = vmatprep.subr.mxu0 0.0
    %1830 = vmatpush1.msra.mxu0 0.0
    %1831 = vmatprep.subr.mxu0 0.0
    %1832 = vmatpush1.msra.mxu0 0.0
    %1833 = vmatprep.subr.mxu0 0.0
    %1834 = vmatpush1.msra.mxu0 0.0
    %1835 = vmatprep.subr.mxu0 0.0
    %1836 = vmatpush1.msra.mxu0 0.0
    %1837 = vmatprep.subr.mxu0 0.0
    %1838 = vmatpush1.msra.mxu0 0.0
    %1839 = vmatprep.mubr.f32.mxu0 0.0
    %1840 = vmatmul.mubr.f32.gmra.mrb[0].mxu0 %v1773
    %v1841 = vpop.f32.mrb[0].mxu0
    %v1842 = vadd.f32 0.0, %v1841
    %v1843 = vpop.f32.mrb[0].mxu0
    %1844 = vdwg.mxu0
    %v1846 = vsel %vm557, %v1767, 0
    %1848 = vmatprep.subr.mxu0 0.0
    %1849 = vmatpush1.msra.mxu0 %v1416
    %1850 = vmatprep.subr.mxu0 0.0
    %1851 = vmatpush1.msra.mxu0 0.0
    %1852 = vmatprep.subr.mxu0 0.0
    %1853 = vmatpush1.msra.mxu0 0.0
    %1854 = vmatprep.subr.mxu0 0.0
    %1855 = vmatpush1.msra.mxu0 0.0
    %1856 = vmatprep.subr.mxu0 0.0
    %1857 = vmatpush1.msra.mxu0 0.0
    %1858 = vmatprep.subr.mxu0 0.0
    %1859 = vmatpush1.msra.mxu0 0.0
    %1860 = vmatprep.subr.mxu0 0.0
    %1861 = vmatpush1.msra.mxu0 0.0
    %1862 = vmatprep.subr.mxu0 0.0
    %1863 = vmatpush1.msra.mxu0 0.0
    %1864 = vmatprep.subr.mxu0 0.0
    %1865 = vmatpush1.msra.mxu0 0.0
    %1866 = vmatprep.subr.mxu0 0.0
    %1867 = vmatpush1.msra.mxu0 0.0
    %1868 = vmatprep.subr.mxu0 0.0
    %1869 = vmatpush1.msra.mxu0 0.0
    %1870 = vmatprep.subr.mxu0 0.0
    %1871 = vmatpush1.msra.mxu0 0.0
    %1872 = vmatprep.subr.mxu0 0.0
    %1873 = vmatpush1.msra.mxu0 0.0
    %1874 = vmatprep.subr.mxu0 0.0
    %1875 = vmatpush1.msra.mxu0 0.0
    %1876 = vmatprep.subr.mxu0 0.0
    %1877 = vmatpush1.msra.mxu0 0.0
    %1878 = vmatprep.subr.mxu0 0.0
    %1879 = vmatpush1.msra.mxu0 0.0
    %1880 = vmatprep.subr.mxu0 0.0
    %1881 = vmatpush1.msra.mxu0 0.0
    %1882 = vmatprep.subr.mxu0 0.0
    %1883 = vmatpush1.msra.mxu0 0.0
    %1884 = vmatprep.subr.mxu0 0.0
    %1885 = vmatpush1.msra.mxu0 0.0
    %1886 = vmatprep.subr.mxu0 0.0
    %1887 = vmatpush1.msra.mxu0 0.0
    %1888 = vmatprep.subr.mxu0 0.0
    %1889 = vmatpush1.msra.mxu0 0.0
    %1890 = vmatprep.subr.mxu0 0.0
    %1891 = vmatpush1.msra.mxu0 0.0
    %1892 = vmatprep.subr.mxu0 0.0
    %1893 = vmatpush1.msra.mxu0 0.0
    %1894 = vmatprep.subr.mxu0 0.0
    %1895 = vmatpush1.msra.mxu0 0.0
    %1896 = vmatprep.subr.mxu0 0.0
    %1897 = vmatpush1.msra.mxu0 0.0
    %1898 = vmatprep.subr.mxu0 0.0
    %1899 = vmatpush1.msra.mxu0 0.0
    %1900 = vmatprep.subr.mxu0 0.0
    %1901 = vmatpush1.msra.mxu0 0.0
    %1902 = vmatprep.subr.mxu0 0.0
    %1903 = vmatpush1.msra.mxu0 0.0
    %1904 = vmatprep.subr.mxu0 0.0
    %1905 = vmatpush1.msra.mxu0 0.0
    %1906 = vmatprep.subr.mxu0 0.0
    %1907 = vmatpush1.msra.mxu0 0.0
    %1908 = vmatprep.subr.mxu0 0.0
    %1909 = vmatpush1.msra.mxu0 0.0
    %1910 = vmatprep.subr.mxu0 0.0
    %1911 = vmatpush1.msra.mxu0 0.0
    %1912 = vmatprep.mubr.f32.mxu0 0.0
    %1913 = vmatmul.mubr.f32.gmra.mrb[0].mxu0 %v1846
    %v1914 = vpop.f32.mrb[0].mxu0
    %v1915 = vadd.f32 0.0, %v1914
    %v1916 = vpop.f32.mrb[0].mxu0
    %1917 = vdwg.mxu0
    %v1919 = vsel %vm557, %v1769, 0
    %1921 = vmatprep.subr.mxu0 0.0
    %1922 = vmatpush1.msra.mxu0 %v1419
    %1923 = vmatprep.subr.mxu0 0.0
    %1924 = vmatpush1.msra.mxu0 0.0
    %1925 = vmatprep.subr.mxu0 0.0
    %1926 = vmatpush1.msra.mxu0 0.0
    %1927 = vmatprep.subr.mxu0 0.0
    %1928 = vmatpush1.msra.mxu0 0.0
    %1929 = vmatprep.subr.mxu0 0.0
    %1930 = vmatpush1.msra.mxu0 0.0
    %1931 = vmatprep.subr.mxu0 0.0
    %1932 = vmatpush1.msra.mxu0 0.0
    %1933 = vmatprep.subr.mxu0 0.0
    %1934 = vmatpush1.msra.mxu0 0.0
    %1935 = vmatprep.subr.mxu0 0.0
    %1936 = vmatpush1.msra.mxu0 0.0
    %1937 = vmatprep.subr.mxu0 0.0
    %1938 = vmatpush1.msra.mxu0 0.0
    %1939 = vmatprep.subr.mxu0 0.0
    %1940 = vmatpush1.msra.mxu0 0.0
    %1941 = vmatprep.subr.mxu0 0.0
    %1942 = vmatpush1.msra.mxu0 0.0
    %1943 = vmatprep.subr.mxu0 0.0
    %1944 = vmatpush1.msra.mxu0 0.0
    %1945 = vmatprep.subr.mxu0 0.0
    %1946 = vmatpush1.msra.mxu0 0.0
    %1947 = vmatprep.subr.mxu0 0.0
    %1948 = vmatpush1.msra.mxu0 0.0
    %1949 = vmatprep.subr.mxu0 0.0
    %1950 = vmatpush1.msra.mxu0 0.0
    %1951 = vmatprep.subr.mxu0 0.0
    %1952 = vmatpush1.msra.mxu0 0.0
    %1953 = vmatprep.subr.mxu0 0.0
    %1954 = vmatpush1.msra.mxu0 0.0
    %1955 = vmatprep.subr.mxu0 0.0
    %1956 = vmatpush1.msra.mxu0 0.0
    %1957 = vmatprep.subr.mxu0 0.0
    %1958 = vmatpush1.msra.mxu0 0.0
    %1959 = vmatprep.subr.mxu0 0.0
    %1960 = vmatpush1.msra.mxu0 0.0
    %1961 = vmatprep.subr.mxu0 0.0
    %1962 = vmatpush1.msra.mxu0 0.0
    %1963 = vmatprep.subr.mxu0 0.0
    %1964 = vmatpush1.msra.mxu0 0.0
    %1965 = vmatprep.subr.mxu0 0.0
    %1966 = vmatpush1.msra.mxu0 0.0
    %1967 = vmatprep.subr.mxu0 0.0
    %1968 = vmatpush1.msra.mxu0 0.0
    %1969 = vmatprep.subr.mxu0 0.0
    %1970 = vmatpush1.msra.mxu0 0.0
    %1971 = vmatprep.subr.mxu0 0.0
    %1972 = vmatpush1.msra.mxu0 0.0
    %1973 = vmatprep.subr.mxu0 0.0
    %1974 = vmatpush1.msra.mxu0 0.0
    %1975 = vmatprep.subr.mxu0 0.0
    %1976 = vmatpush1.msra.mxu0 0.0
    %1977 = vmatprep.subr.mxu0 0.0
    %1978 = vmatpush1.msra.mxu0 0.0
    %1979 = vmatprep.subr.mxu0 0.0
    %1980 = vmatpush1.msra.mxu0 0.0
    %1981 = vmatprep.subr.mxu0 0.0
    %1982 = vmatpush1.msra.mxu0 0.0
    %1983 = vmatprep.subr.mxu0 0.0
    %1984 = vmatpush1.msra.mxu0 0.0
    %1985 = vmatprep.mubr.f32.mxu0 0.0
    %1986 = vmatmul.mubr.f32.gmra.mrb[0].mxu0 %v1919
    %v1987 = vpop.f32.mrb[0].mxu0
    %v1988 = vadd.f32 0.0, %v1987
    %v1989 = vpop.f32.mrb[0].mxu0
    %1990 = vdwg.mxu0
    %v1992 = vsel %vm557, %v1771, 0
    %1994 = vmatprep.subr.mxu0 0.0
    %1995 = vmatpush1.msra.mxu0 %v1422
    %1996 = vmatprep.subr.mxu0 0.0
    %1997 = vmatpush1.msra.mxu0 0.0
    %1998 = vmatprep.subr.mxu0 0.0
    %1999 = vmatpush1.msra.mxu0 0.0
    %2000 = vmatprep.subr.mxu0 0.0
    %2001 = vmatpush1.msra.mxu0 0.0
    %2002 = vmatprep.subr.mxu0 0.0
    %2003 = vmatpush1.msra.mxu0 0.0
    %2004 = vmatprep.subr.mxu0 0.0
    %2005 = vmatpush1.msra.mxu0 0.0
    %2006 = vmatprep.subr.mxu0 0.0
    %2007 = vmatpush1.msra.mxu0 0.0
    %2008 = vmatprep.subr.mxu0 0.0
    %2009 = vmatpush1.msra.mxu0 0.0
    %2010 = vmatprep.subr.mxu0 0.0
    %2011 = vmatpush1.msra.mxu0 0.0
    %2012 = vmatprep.subr.mxu0 0.0
    %2013 = vmatpush1.msra.mxu0 0.0
    %2014 = vmatprep.subr.mxu0 0.0
    %2015 = vmatpush1.msra.mxu0 0.0
    %2016 = vmatprep.subr.mxu0 0.0
    %2017 = vmatpush1.msra.mxu0 0.0
    %2018 = vmatprep.subr.mxu0 0.0
    %2019 = vmatpush1.msra.mxu0 0.0
    %2020 = vmatprep.subr.mxu0 0.0
    %2021 = vmatpush1.msra.mxu0 0.0
    %2022 = vmatprep.subr.mxu0 0.0
    %2023 = vmatpush1.msra.mxu0 0.0
    %2024 = vmatprep.subr.mxu0 0.0
    %2025 = vmatpush1.msra.mxu0 0.0
    %2026 = vmatprep.subr.mxu0 0.0
    %2027 = vmatpush1.msra.mxu0 0.0
    %2028 = vmatprep.subr.mxu0 0.0
    %2029 = vmatpush1.msra.mxu0 0.0
    %2030 = vmatprep.subr.mxu0 0.0
    %2031 = vmatpush1.msra.mxu0 0.0
    %2032 = vmatprep.subr.mxu0 0.0
    %2033 = vmatpush1.msra.mxu0 0.0
    %2034 = vmatprep.subr.mxu0 0.0
    %2035 = vmatpush1.msra.mxu0 0.0
    %2036 = vmatprep.subr.mxu0 0.0
    %2037 = vmatpush1.msra.mxu0 0.0
    %2038 = vmatprep.subr.mxu0 0.0
    %2039 = vmatpush1.msra.mxu0 0.0
    %2040 = vmatprep.subr.mxu0 0.0
    %2041 = vmatpush1.msra.mxu0 0.0
    %2042 = vmatprep.subr.mxu0 0.0
    %2043 = vmatpush1.msra.mxu0 0.0
    %2044 = vmatprep.subr.mxu0 0.0
    %2045 = vmatpush1.msra.mxu0 0.0
    %2046 = vmatprep.subr.mxu0 0.0
    %2047 = vmatpush1.msra.mxu0 0.0
    %2048 = vmatprep.subr.mxu0 0.0
    %2049 = vmatpush1.msra.mxu0 0.0
    %2050 = vmatprep.subr.mxu0 0.0
    %2051 = vmatpush1.msra.mxu0 0.0
    %2052 = vmatprep.subr.mxu0 0.0
    %2053 = vmatpush1.msra.mxu0 0.0
    %2054 = vmatprep.subr.mxu0 0.0
    %2055 = vmatpush1.msra.mxu0 0.0
    %2056 = vmatprep.subr.mxu0 0.0
    %2057 = vmatpush1.msra.mxu0 0.0
    %2058 = vmatprep.mubr.f32.mxu0 0.0
    %2059 = vmatmul.mubr.f32.gmra.mrb[0].mxu0 %v1992
    %v2060 = vpop.f32.mrb[0].mxu0
    %v2061 = vadd.f32 0.0, %v2060
    %v2062 = vpop.f32.mrb[0].mxu0
    %2063 = vdwg.mxu0
    %2065 = vrot.lane.b32.xlu0 %v1915, 16
    %v2066 = vpop.permute.xlu0 %2065
    %2069 = vrot.lane.b32.xlu0 %v1988, 32
    %v2070 = vpop.permute.xlu0 %2069
    %2073 = vrot.lane.b32.xlu0 %v2061, 48
    %v2074 = vpop.permute.xlu0 %2073
    %v2076 = vsel %vm43, %v1842, %v2066
    %v2077 = vsel %vm907, %v2076, %v2070
    %v2078 = vsel %vm909, %v2077, %v2074
    %v2079 = vpack.c.bf16 %v2078, %v2078
    %2080 = vrot.lane.b32.xlu0 %v1348, 64
    %v2081 = vpop.permute.xlu0 %2080
    %2082 = vrot.lane.b32.xlu0 %v1350, 64
    %v2083 = vpop.permute.xlu0 %2082
    %2084 = vrot.lane.b32.xlu0 %v1352, 64
    %v2085 = vpop.permute.xlu0 %2084
    %2086 = vrot.lane.b32.xlu0 %v1354, 64
    %v2087 = vpop.permute.xlu0 %2086
    %2093 = vrot.lane.b32.xlu0 %v1322, 64
    %v2094 = vpop.permute.xlu0 %2093
    %v2097 = vsel %vm191, %v2079, 0
    %2099 = vmatprep.subr.bf16.mxu0 0
    %2100 = vmatpush1.bf16.msra.mxu0 %v2081
    %2101 = vmatprep.subr.bf16.mxu0 0
    %2102 = vmatpush1.bf16.msra.mxu0 %v2083
    %2103 = vmatprep.subr.bf16.mxu0 0
    %2104 = vmatpush1.bf16.msra.mxu0 %v2085
    %2105 = vmatprep.subr.bf16.mxu0 0
    %2106 = vmatpush1.bf16.msra.mxu0 %v2087
    %2107 = vmatprep.subr.bf16.mxu0 0
    %2108 = vmatpush1.bf16.msra.mxu0 0
    %2109 = vmatprep.subr.bf16.mxu0 0
    %2110 = vmatpush1.bf16.msra.mxu0 0
    %2111 = vmatprep.subr.bf16.mxu0 0
    %2112 = vmatpush1.bf16.msra.mxu0 0
    %2113 = vmatprep.subr.bf16.mxu0 0
    %2114 = vmatpush1.bf16.msra.mxu0 0
    %2115 = vmatprep.subr.bf16.mxu0 0
    %2116 = vmatpush1.bf16.msra.mxu0 0
    %2117 = vmatprep.subr.bf16.mxu0 0
    %2118 = vmatpush1.bf16.msra.mxu0 0
    %2119 = vmatprep.subr.bf16.mxu0 0
    %2120 = vmatpush1.bf16.msra.mxu0 0
    %2121 = vmatprep.subr.bf16.mxu0 0
    %2122 = vmatpush1.bf16.msra.mxu0 0
    %2123 = vmatprep.subr.bf16.mxu0 0
    %2124 = vmatpush1.bf16.msra.mxu0 0
    %2125 = vmatprep.subr.bf16.mxu0 0
    %2126 = vmatpush1.bf16.msra.mxu0 0
    %2127 = vmatprep.subr.bf16.mxu0 0
    %2128 = vmatpush1.bf16.msra.mxu0 0
    %2129 = vmatprep.subr.bf16.mxu0 0
    %2130 = vmatpush1.bf16.msra.mxu0 0
    %2131 = vmatprep.mubr.bf16.mxu0 0
    %2132 = vmatmul.mubr.bf16.gmra.mrb[0].mxu0 %v2097
    %v2133 = vpop.f32.mrb[0].mxu0
    %v2134 = vadd.f32 %v2094, %v2133
    %v2135 = vpop.f32.mrb[0].mxu0
    %v2136 = vpop.f32.mrb[0].mxu0
    %v2137 = vpop.f32.mrb[0].mxu0
    %2138 = vdwg.mxu0
    %v2139 = vadd.f32 %v1260, %v2134
    %v2140 = vsel %vm191, %v2139, 0.0
    %2141 = vadd.xlane.f32.xlu0 %v2140
    %v2142 = vpop.xlane.xlu0 %2141
    %v2143 = vmul.f32 %v2142, %v975
    %v2144 = vmul.f32 %v2139, %v2139
    %v2145 = vsel %vm191, %v2144, 0.0
    %2146 = vadd.xlane.f32.xlu0 %v2145
    %v2147 = vpop.xlane.xlu0 %2146
    %v2148 = vmul.f32 %v2147, %v975
    %v2149 = vsub.f32 %v2139, %v2143
    %v2150 = vmul.f32 %v2143, %v2143
    %v2151 = vsub.f32 %v2148, %v2150
    %v2152 = vadd.f32 %v2151, 1e-05
    %v2153 = vrsqrt.pop %v2152
    %v2154 = vmul.f32 %v2149, %v2153
    %v2155 = vlaneseq
    %v2156 = vshrl.u32 %v2155, 7
    %v2157 = vsub.s32 2, %v2156
    %v2158 = vrot.slane %v1312, %v2157
    %2160 = vrot.lane.b32.xlu0 %v2158, 64
    %v2161 = vpop.permute.xlu0 %2160
    %v2163 = vmul.f32 %v2154, %v2161
    %v2164 = vlaneseq
    %v2165 = vshrl.u32 %v2164, 7
    %v2166 = vsub.s32 2, %v2165
    %v2167 = vrot.slane %v1313, %v2166
    %v2168 = vadd.f32 %v2163, %v2167
    %v2169 = vpack.c.bf16 %v2168, %v2168
    %v2170 = vlaneseq
    %v2171 = vshrl.u32 %v2170, 7
    %v2172 = vsub.s32 1, %v2171
    %v2173 = vrot.slane %v1312, %v2172
    %v2174 = vlaneseq
    %v2175 = vshrl.u32 %v2174, 7
    %v2176 = vsub.s32 1, %v2175
    %v2177 = vrot.slane %v1313, %v2176
    %v2186 = vunpack.c.l.b16 %v1263
    %v2187 = vunpack.c.h.b16 %v1263
    %v2188 = vunpack.c.l.b16 %v1265
    %v2189 = vunpack.c.h.b16 %v1265
    %v2190 = vunpack.c.l.b16 %v1267
    %v2191 = vunpack.c.h.b16 %v1267
    %v2192 = vunpack.c.l.b16 %v1269
    %v2193 = vunpack.c.h.b16 %v1269
    %v2194 = vunpack.c.l.b16 %v1271
    %v2195 = vunpack.c.h.b16 %v1271
    %v2196 = vunpack.c.l.b16 %v1273
    %v2197 = vunpack.c.h.b16 %v1273
    %v2198 = vunpack.c.l.b16 %v1275
    %v2199 = vunpack.c.h.b16 %v1275
    %v2200 = vunpack.c.l.b16 %v1277
    %v2201 = vunpack.c.h.b16 %v1277
    %v2202 = vpack.c.b16 %v2188, %v2186
    %v2203 = vpack.c.b16 %v2189, %v2187
    %v2204 = vpack.c.b16 %v2192, %v2190
    %v2205 = vpack.c.b16 %v2193, %v2191
    %v2206 = vpack.c.b16 %v2196, %v2194
    %v2207 = vpack.c.b16 %v2197, %v2195
    %v2208 = vpack.c.b16 %v2200, %v2198
    %v2209 = vpack.c.b16 %v2201, %v2199
    %v2219 = vsel %vm191, %v2169, 0
    %2221 = vmatprep.subr.bf16.mxu0 %v2203
    %2222 = vmatpush1.bf16.msra.mxu0 %v2202
    %2223 = vmatprep.subr.bf16.mxu0 %v2205
    %2224 = vmatpush1.bf16.msra.mxu0 %v2204
    %2225 = vmatprep.subr.bf16.mxu0 %v2207
    %2226 = vmatpush1.bf16.msra.mxu0 %v2206
    %2227 = vmatprep.subr.bf16.mxu0 %v2209
    %2228 = vmatpush1.bf16.msra.mxu0 %v2208
    %2229 = vmatprep.subr.bf16.mxu0 0
    %2230 = vmatpush1.bf16.msra.mxu0 0
    %2231 = vmatprep.subr.bf16.mxu0 0
    %2232 = vmatpush1.bf16.msra.mxu0 0
    %2233 = vmatprep.subr.bf16.mxu0 0
    %2234 = vmatpush1.bf16.msra.mxu0 0
    %2235 = vmatprep.subr.bf16.mxu0 0
    %2236 = vmatpush1.bf16.msra.mxu0 0
    %2237 = vmatprep.subr.bf16.mxu0 0
    %2238 = vmatpush1.bf16.msra.mxu0 0
    %2239 = vmatprep.subr.bf16.mxu0 0
    %2240 = vmatpush1.bf16.msra.mxu0 0
    %2241 = vmatprep.subr.bf16.mxu0 0
    %2242 = vmatpush1.bf16.msra.mxu0 0
    %2243 = vmatprep.subr.bf16.mxu0 0
    %2244 = vmatpush1.bf16.msra.mxu0 0
    %2245 = vmatprep.subr.bf16.mxu0 0
    %2246 = vmatpush1.bf16.msra.mxu0 0
    %2247 = vmatprep.subr.bf16.mxu0 0
    %2248 = vmatpush1.bf16.msra.mxu0 0
    %2249 = vmatprep.subr.bf16.mxu0 0
    %2250 = vmatpush1.bf16.msra.mxu0 0
    %2251 = vmatprep.subr.bf16.mxu0 0
    %2252 = vmatpush1.bf16.msra.mxu0 0
    %2253 = vmatprep.mubr.bf16.mxu0 0
    %2254 = vmatmul.mubr.bf16.gmra.mrb[0].mxu0 %v2219
    %v2255 = vpop.f32.mrb[0].mxu0
    %v2256 = vadd.f32 %v2173, %v2255
    %v2257 = vpop.f32.mrb[0].mxu0
    %v2258 = vadd.f32 %v2177, %v2257
    %v2259 = vpop.f32.mrb[0].mxu0
    %v2260 = vpop.f32.mrb[0].mxu0
    %2261 = vdwg.mxu0
    %v2262 = vmax.f32 %v2256, 0.0
    %v2263 = vmax.f32 %v2258, 0.0
    %v2264 = vpack.c.bf16 %v2262, %v2262
    %v2265 = vpack.c.bf16 %v2263, %v2263
    %v2298 = vunpack.c.l.b16 %v1279
    %v2299 = vunpack.c.l.b16 %v1280
    %v2300 = vunpack.c.l.b16 %v1281
    %v2301 = vunpack.c.l.b16 %v1282
    %v2302 = vunpack.c.l.b16 %v1283
    %v2303 = vunpack.c.l.b16 %v1284
    %v2304 = vunpack.c.l.b16 %v1285
    %v2305 = vunpack.c.l.b16 %v1286
    %v2306 = vunpack.c.l.b16 %v1287
    %v2307 = vunpack.c.l.b16 %v1288
    %v2308 = vunpack.c.l.b16 %v1289
    %v2309 = vunpack.c.l.b16 %v1290
    %v2310 = vunpack.c.l.b16 %v1291
    %v2311 = vunpack.c.l.b16 %v1292
    %v2312 = vunpack.c.l.b16 %v1293
    %v2313 = vunpack.c.l.b16 %v1294
    %v2314 = vunpack.c.l.b16 %v1295
    %v2315 = vunpack.c.l.b16 %v1296
    %v2316 = vunpack.c.l.b16 %v1297
    %v2317 = vunpack.c.l.b16 %v1298
    %v2318 = vunpack.c.l.b16 %v1299
    %v2319 = vunpack.c.l.b16 %v1300
    %v2320 = vunpack.c.l.b16 %v1301
    %v2321 = vunpack.c.l.b16 %v1302
    %v2322 = vunpack.c.l.b16 %v1303
    %v2323 = vunpack.c.l.b16 %v1304
    %v2324 = vunpack.c.l.b16 %v1305
    %v2325 = vunpack.c.l.b16 %v1306
    %v2326 = vunpack.c.l.b16 %v1307
    %v2327 = vunpack.c.l.b16 %v1308
    %v2328 = vunpack.c.l.b16 %v1309
    %v2329 = vunpack.c.l.b16 %v1310
    %v2330 = vpack.c.b16 %v2299, %v2298
    %v2331 = vpack.c.b16 %v2301, %v2300
    %v2332 = vpack.c.b16 %v2303, %v2302
    %v2333 = vpack.c.b16 %v2305, %v2304
    %v2334 = vpack.c.b16 %v2307, %v2306
    %v2335 = vpack.c.b16 %v2309, %v2308
    %v2336 = vpack.c.b16 %v2311, %v2310
    %v2337 = vpack.c.b16 %v2313, %v2312
    %v2338 = vpack.c.b16 %v2315, %v2314
    %v2339 = vpack.c.b16 %v2317, %v2316
    %v2340 = vpack.c.b16 %v2319, %v2318
    %v2341 = vpack.c.b16 %v2321, %v2320
    %v2342 = vpack.c.b16 %v2323, %v2322
    %v2343 = vpack.c.b16 %v2325, %v2324
    %v2344 = vpack.c.b16 %v2327, %v2326
    %v2345 = vpack.c.b16 %v2329, %v2328
    %2362 = vmatprep.subr.bf16.mxu0 0
    %2363 = vmatpush1.bf16.msra.mxu0 %v2330
    %2364 = vmatprep.subr.bf16.mxu0 0
    %2365 = vmatpush1.bf16.msra.mxu0 %v2331
    %2366 = vmatprep.subr.bf16.mxu0 0
    %2367 = vmatpush1.bf16.msra.mxu0 %v2332
    %2368 = vmatprep.subr.bf16.mxu0 0
    %2369 = vmatpush1.bf16.msra.mxu0 %v2333
    %2370 = vmatprep.subr.bf16.mxu0 0
    %2371 = vmatpush1.bf16.msra.mxu0 %v2334
    %2372 = vmatprep.subr.bf16.mxu0 0
    %2373 = vmatpush1.bf16.msra.mxu0 %v2335
    %2374 = vmatprep.subr.bf16.mxu0 0
    %2375 = vmatpush1.bf16.msra.mxu0 %v2336
    %2376 = vmatprep.subr.bf16.mxu0 0
    %2377 = vmatpush1.bf16.msra.mxu0 %v2337
    %2378 = vmatprep.subr.bf16.mxu0 0
    %2379 = vmatpush1.bf16.msra.mxu0 %v2338
    %2380 = vmatprep.subr.bf16.mxu0 0
    %2381 = vmatpush1.bf16.msra.mxu0 %v2339
    %2382 = vmatprep.subr.bf16.mxu0 0
    %2383 = vmatpush1.bf16.msra.mxu0 %v2340
    %2384 = vmatprep.subr.bf16.mxu0 0
    %2385 = vmatpush1.bf16.msra.mxu0 %v2341
    %2386 = vmatprep.subr.bf16.mxu0 0
    %2387 = vmatpush1.bf16.msra.mxu0 %v2342
    %2388 = vmatprep.subr.bf16.mxu0 0
    %2389 = vmatpush1.bf16.msra.mxu0 %v2343
    %2390 = vmatprep.subr.bf16.mxu0 0
    %2391 = vmatpush1.bf16.msra.mxu0 %v2344
    %2392 = vmatprep.subr.bf16.mxu0 0
    %2393 = vmatpush1.bf16.msra.mxu0 %v2345
    %2394 = vmatprep.mubr.bf16.mxu0 %v2265
    %2395 = vmatmul.mubr.bf16.gmra.mrb[0].mxu0 %v2264
    %v2396 = vpop.f32.mrb[0].mxu0
    %v2397 = vadd.f32 %v2158, %v2396
    %v2398 = vpop.f32.mrb[0].mxu0
    %v2399 = vpop.f32.mrb[0].mxu0
    %v2400 = vpop.f32.mrb[0].mxu0
    %2401 = vdwg.mxu0
    %v2402 = vadd.f32 %v2168, %v2397
    %v2403 = vsel %vm191, %v2402, 0.0
    %2404 = vadd.xlane.f32.xlu0 %v2403
    %v2405 = vpop.xlane.xlu0 %2404
    %v2406 = vmul.f32 %v2405, %v975
    %v2407 = vmul.f32 %v2402, %v2402
    %v2408 = vsel %vm191, %v2407, 0.0
    %2409 = vadd.xlane.f32.xlu0 %v2408
    %v2410 = vpop.xlane.xlu0 %2409
    %v2411 = vmul.f32 %v2410, %v975
    %v2412 = vsub.f32 %v2402, %v2406
    %v2413 = vmul.f32 %v2406, %v2406
    %v2414 = vsub.f32 %v2411, %v2413
    %v2415 = vadd.f32 %v2414, 1e-05
    %v2416 = vrsqrt.pop %v2415
    %v2417 = vmul.f32 %v2412, %v2416
    %2419 = vrot.lane.b32.xlu0 %v2167, 64
    %v2420 = vpop.permute.xlu0 %2419
    %v2422 = vmul.f32 %v2417, %v2420
    %v2423 = vlaneseq
    %v2424 = vshrl.u32 %v2423, 7
    %v2425 = vsub.s32 3, %v2424
    %v2426 = vrot.slane %v1312, %v2425
    %v2427 = vadd.f32 %v2422, %v2426
    %v2428 = vadd.f32 %v2427, %v82
    %v2429 = vld [vmem:[%s1 + $0x78] sm:$0xf]
    %v2430 = vld [vmem:[%s1 + $0x7c] sm:$0xf]
    %v2431 = vld [vmem:[%s1 + $0x80] sm:$0xf]
    %v2432 = vld [vmem:[%s1 + $0x84] sm:$0xf]
    %v2433 = vld [vmem:[%s1 + $0x88] sm:$0xf]
    %v2434 = vld [vmem:[%s1 + $0x8c] sm:$0xf]
    %v2435 = vld [vmem:[%s1 + $0x90] sm:$0xf]
    %v2436 = vld [vmem:[%s1 + $0x94] sm:$0xf]
    %v2437 = vpack.c.bf16 %v2428, %v2428
    %v2438 = vlaneseq
    %v2439 = vshrl.u32 %v2438, 7
    %v2440 = vsub.s32 4, %v2439
    %v2441 = vrot.slane %v28, %v2440
    %v2450 = vunpack.c.l.b16 %v2429
    %v2451 = vunpack.c.l.b16 %v2430
    %v2452 = vunpack.c.l.b16 %v2431
    %v2453 = vunpack.c.l.b16 %v2432
    %v2454 = vunpack.c.l.b16 %v2433
    %v2455 = vunpack.c.l.b16 %v2434
    %v2456 = vunpack.c.l.b16 %v2435
    %v2457 = vunpack.c.l.b16 %v2436
    %v2458 = vpack.c.b16 %v2451, %v2450
    %v2459 = vpack.c.b16 %v2453, %v2452
    %v2460 = vpack.c.b16 %v2455, %v2454
    %v2461 = vpack.c.b16 %v2457, %v2456
    %v2467 = vsel %vm191, %v2437, 0
    %2469 = vmatprep.subr.bf16.mxu0 0
    %2470 = vmatpush1.bf16.msra.mxu0 %v2458
    %2471 = vmatprep.subr.bf16.mxu0 0
    %2472 = vmatpush1.bf16.msra.mxu0 %v2459
    %2473 = vmatprep.subr.bf16.mxu0 0
    %2474 = vmatpush1.bf16.msra.mxu0 %v2460
    %2475 = vmatprep.subr.bf16.mxu0 0
    %2476 = vmatpush1.bf16.msra.mxu0 %v2461
    %2477 = vmatprep.subr.bf16.mxu0 0
    %2478 = vmatpush1.bf16.msra.mxu0 0
    %2479 = vmatprep.subr.bf16.mxu0 0
    %2480 = vmatpush1.bf16.msra.mxu0 0
    %2481 = vmatprep.subr.bf16.mxu0 0
    %2482 = vmatpush1.bf16.msra.mxu0 0
    %2483 = vmatprep.subr.bf16.mxu0 0
    %2484 = vmatpush1.bf16.msra.mxu0 0
    %2485 = vmatprep.subr.bf16.mxu0 0
    %2486 = vmatpush1.bf16.msra.mxu0 0
    %2487 = vmatprep.subr.bf16.mxu0 0
    %2488 = vmatpush1.bf16.msra.mxu0 0
    %2489 = vmatprep.subr.bf16.mxu0 0
    %2490 = vmatpush1.bf16.msra.mxu0 0
    %2491 = vmatprep.subr.bf16.mxu0 0
    %2492 = vmatpush1.bf16.msra.mxu0 0
    %2493 = vmatprep.subr.bf16.mxu0 0
    %2494 = vmatpush1.bf16.msra.mxu0 0
    %2495 = vmatprep.subr.bf16.mxu0 0
    %2496 = vmatpush1.bf16.msra.mxu0 0
    %2497 = vmatprep.subr.bf16.mxu0 0
    %2498 = vmatpush1.bf16.msra.mxu0 0
    %2499 = vmatprep.subr.bf16.mxu0 0
    %2500 = vmatpush1.bf16.msra.mxu0 0
    %2501 = vmatprep.mubr.bf16.mxu0 0
    %2502 = vmatmul.mubr.bf16.gmra.mrb[0].mxu0 %v2467
    %v2503 = vpop.f32.mrb[0].mxu0
    %v2504 = vadd.f32 %v2441, %v2503
    %v2505 = vpop.f32.mrb[0].mxu0
    %v2506 = vpop.f32.mrb[0].mxu0
    %v2507 = vpop.f32.mrb[0].mxu0
    %2508 = vdwg.mxu0
    %v2509 = vmax.f32 %v2504, 0.0
    %v2510 = vld [vmem:[%s1 + $0x98] sm:$0xf]
    %v2511 = vld [vmem:[%s1 + $0x9c] sm:$0xf]
    %v2512 = vld [vmem:[%s1 + $0xa0] sm:$0xf]
    %v2513 = vld [vmem:[%s1 + $0xa4] sm:$0xf]
    %v2514 = vld [vmem:[%s1 + $0xa8] sm:$0xf]
    %v2515 = vld [vmem:[%s1 + $0xac] sm:$0xf]
    %v2516 = vld [vmem:[%s1 + $0xb0] sm:$0xf]
    %v2517 = vld [vmem:[%s1 + $0xb4] sm:$0xf]
    %v2518 = vpack.c.bf16 %v2509, %v2509
    %v2519 = vlaneseq
    %v2520 = vshrl.u32 %v2519, 7
    %v2521 = vsub.s32 5, %v2520
    %v2522 = vrot.slane %v28, %v2521
    %v2531 = vunpack.c.l.b16 %v2510
    %v2532 = vunpack.c.l.b16 %v2511
    %v2533 = vunpack.c.l.b16 %v2512
    %v2534 = vunpack.c.l.b16 %v2513
    %v2535 = vunpack.c.l.b16 %v2514
    %v2536 = vunpack.c.l.b16 %v2515
    %v2537 = vunpack.c.l.b16 %v2516
    %v2538 = vunpack.c.l.b16 %v2517
    %v2539 = vpack.c.b16 %v2532, %v2531
    %v2540 = vpack.c.b16 %v2534, %v2533
    %v2541 = vpack.c.b16 %v2536, %v2535
    %v2542 = vpack.c.b16 %v2538, %v2537
    %v2548 = vsel %vm191, %v2518, 0
    %2550 = vmatprep.subr.bf16.mxu0 0
    %2551 = vmatpush1.bf16.msra.mxu0 %v2539
    %2552 = vmatprep.subr.bf16.mxu0 0
    %2553 = vmatpush1.bf16.msra.mxu0 %v2540
    %2554 = vmatprep.subr.bf16.mxu0 0
    %2555 = vmatpush1.bf16.msra.mxu0 %v2541
    %2556 = vmatprep.subr.bf16.mxu0 0
    %2557 = vmatpush1.bf16.msra.mxu0 %v2542
    %2558 = vmatprep.subr.bf16.mxu0 0
    %2559 = vmatpush1.bf16.msra.mxu0 0
    %2560 = vmatprep.subr.bf16.mxu0 0
    %2561 = vmatpush1.bf16.msra.mxu0 0
    %2562 = vmatprep.subr.bf16.mxu0 0
    %2563 = vmatpush1.bf16.msra.mxu0 0
    %2564 = vmatprep.subr.bf16.mxu0 0
    %2565 = vmatpush1.bf16.msra.mxu0 0
    %2566 = vmatprep.subr.bf16.mxu0 0
    %2567 = vmatpush1.bf16.msra.mxu0 0
    %2568 = vmatprep.subr.bf16.mxu0 0
    %2569 = vmatpush1.bf16.msra.mxu0 0
    %2570 = vmatprep.subr.bf16.mxu0 0
    %2571 = vmatpush1.bf16.msra.mxu0 0
    %2572 = vmatprep.subr.bf16.mxu0 0
    %2573 = vmatpush1.bf16.msra.mxu0 0
    %2574 = vmatprep.subr.bf16.mxu0 0
    %2575 = vmatpush1.bf16.msra.mxu0 0
    %2576 = vmatprep.subr.bf16.mxu0 0
    %2577 = vmatpush1.bf16.msra.mxu0 0
    %2578 = vmatprep.subr.bf16.mxu0 0
    %2579 = vmatpush1.bf16.msra.mxu0 0
    %2580 = vmatprep.subr.bf16.mxu0 0
    %2581 = vmatpush1.bf16.msra.mxu0 0
    %2582 = vmatprep.mubr.bf16.mxu0 0
    %2583 = vmatmul.mubr.bf16.gmra.mrb[0].mxu0 %v2548
    %v2584 = vpop.f32.mrb[0].mxu0
    %v2585 = vadd.f32 %v2522, %v2584
    %v2586 = vpop.f32.mrb[0].mxu0
    %v2587 = vpop.f32.mrb[0].mxu0
    %v2588 = vpop.f32.mrb[0].mxu0
    %2589 = vdwg.mxu0
    %v2590 = vld [vmem:[%s1 + $0x8] sm:$0xf]
    %v2591 = vld [vmem:[%s1 + $0xc] sm:$0xf]
    %v2592 = vld [vmem:[%s1 + $0x10] sm:$0xf]
    %v2593 = vld [vmem:[%s1 + $0x14] sm:$0xf]
    %v2594 = vld [vmem:[%s1 + $0x18] sm:$0xf]
    %v2595 = vld [vmem:[%s1 + $0x1c] sm:$0xf]
    %v2596 = vld [vmem:[%s1 + $0x20] sm:$0xf]
    %v2597 = vld [vmem:[%s1 + $0x24] sm:$0xf]
    %v2598 = vld [vmem:[%s1 + $0x28] sm:$0xf]
    %v2599 = vld [vmem:[%s1 + $0x2c] sm:$0xf]
    %v2600 = vpack.c.bf16 %v2585, %v2585
    %v2609 = vunpack.c.l.b16 %v2592
    %v2610 = vunpack.c.l.b16 %v2593
    %v2611 = vunpack.c.l.b16 %v2594
    %v2612 = vunpack.c.l.b16 %v2595
    %v2613 = vunpack.c.l.b16 %v2596
    %v2614 = vunpack.c.l.b16 %v2597
    %v2615 = vunpack.c.l.b16 %v2598
    %v2616 = vunpack.c.l.b16 %v2599
    %v2617 = vpack.c.b16 %v2610, %v2609
    %v2618 = vpack.c.b16 %v2612, %v2611
    %v2619 = vpack.c.b16 %v2614, %v2613
    %v2620 = vpack.c.b16 %v2616, %v2615
    %v2626 = vsel %vm191, %v2600, 0
    %2628 = vmatprep.subr.bf16.mxu0 0
    %2629 = vmatpush1.bf16.msra.mxu0 %v2617
    %2630 = vmatprep.subr.bf16.mxu0 0
    %2631 = vmatpush1.bf16.msra.mxu0 %v2618
    %2632 = vmatprep.subr.bf16.mxu0 0
    %2633 = vmatpush1.bf16.msra.mxu0 %v2619
    %2634 = vmatprep.subr.bf16.mxu0 0
    %2635 = vmatpush1.bf16.msra.mxu0 %v2620
    %2636 = vmatprep.subr.bf16.mxu0 0
    %2637 = vmatpush1.bf16.msra.mxu0 0
    %2638 = vmatprep.subr.bf16.mxu0 0
    %2639 = vmatpush1.bf16.msra.mxu0 0
    %2640 = vmatprep.subr.bf16.mxu0 0
    %2641 = vmatpush1.bf16.msra.mxu0 0
    %2642 = vmatprep.subr.bf16.mxu0 0
    %2643 = vmatpush1.bf16.msra.mxu0 0
    %2644 = vmatprep.subr.bf16.mxu0 0
    %2645 = vmatpush1.bf16.msra.mxu0 0
    %2646 = vmatprep.subr.bf16.mxu0 0
    %2647 = vmatpush1.bf16.msra.mxu0 0
    %2648 = vmatprep.subr.bf16.mxu0 0
    %2649 = vmatpush1.bf16.msra.mxu0 0
    %2650 = vmatprep.subr.bf16.mxu0 0
    %2651 = vmatpush1.bf16.msra.mxu0 0
    %2652 = vmatprep.subr.bf16.mxu0 0
    %2653 = vmatpush1.bf16.msra.mxu0 0
    %2654 = vmatprep.subr.bf16.mxu0 0
    %2655 = vmatpush1.bf16.msra.mxu0 0
    %2656 = vmatprep.subr.bf16.mxu0 0
    %2657 = vmatpush1.bf16.msra.mxu0 0
    %2658 = vmatprep.subr.bf16.mxu0 0
    %2659 = vmatpush1.bf16.msra.mxu0 0
    %2660 = vmatprep.mubr.bf16.mxu0 0
    %2661 = vmatmul.mubr.bf16.gmra.mrb[0].mxu0 %v2626
    %v2662 = vpop.f32.mrb[0].mxu0
    %v2663 = vadd.f32 0.0, %v2662
    %v2664 = vpop.f32.mrb[0].mxu0
    %v2665 = vpop.f32.mrb[0].mxu0
    %v2666 = vpop.f32.mrb[0].mxu0
    %2667 = vdwg.mxu0
    %v2670 = vunpack.c.l.b16 %v2590
    %v2671 = vunpack.c.l.b16 %v2591
    %v2672 = vpack.c.b16 %v2671, %v2670
    %2674 = vmatprep.subr.bf16.mxu0 0
    %2675 = vmatpush1.bf16.msra.mxu0 %v2672
    %2676 = vmatprep.subr.bf16.mxu0 0
    %2677 = vmatpush1.bf16.msra.mxu0 0
    %2678 = vmatprep.subr.bf16.mxu0 0
    %2679 = vmatpush1.bf16.msra.mxu0 0
    %2680 = vmatprep.subr.bf16.mxu0 0
    %2681 = vmatpush1.bf16.msra.mxu0 0
    %2682 = vmatprep.subr.bf16.mxu0 0
    %2683 = vmatpush1.bf16.msra.mxu0 0
    %2684 = vmatprep.subr.bf16.mxu0 0
    %2685 = vmatpush1.bf16.msra.mxu0 0
    %2686 = vmatprep.subr.bf16.mxu0 0
    %2687 = vmatpush1.bf16.msra.mxu0 0
    %2688 = vmatprep.subr.bf16.mxu0 0
    %2689 = vmatpush1.bf16.msra.mxu0 0
    %2690 = vmatprep.subr.bf16.mxu0 0
    %2691 = vmatpush1.bf16.msra.mxu0 0
    %2692 = vmatprep.subr.bf16.mxu0 0
    %2693 = vmatpush1.bf16.msra.mxu0 0
    %2694 = vmatprep.subr.bf16.mxu0 0
    %2695 = vmatpush1.bf16.msra.mxu0 0
    %2696 = vmatprep.subr.bf16.mxu0 0
    %2697 = vmatpush1.bf16.msra.mxu0 0
    %2698 = vmatprep.subr.bf16.mxu0 0
    %2699 = vmatpush1.bf16.msra.mxu0 0
    %2700 = vmatprep.subr.bf16.mxu0 0
    %2701 = vmatpush1.bf16.msra.mxu0 0
    %2702 = vmatprep.subr.bf16.mxu0 0
    %2703 = vmatpush1.bf16.msra.mxu0 0
    %2704 = vmatprep.subr.bf16.mxu0 0
    %2705 = vmatpush1.bf16.msra.mxu0 0
    %2706 = vmatprep.mubr.bf16.mxu0 0
    %2707 = vmatmul.mubr.bf16.gmra.mrb[0].mxu0 %v45
    %v2708 = vpop.f32.mrb[0].mxu0
    %v2709 = vadd.f32 %v2663, %v2708
    %v2710 = vpop.f32.mrb[0].mxu0
    %v2711 = vpop.f32.mrb[0].mxu0
    %v2712 = vpop.f32.mrb[0].mxu0
    %2713 = vdwg.mxu0
    %v2714 = vlaneseq
    %v2715 = vshrl.u32 %v2714, 7
    %v2716 = vsub.s32 2, %v2715
    %v2717 = vrot.slane %v28, %v2716
    %v2718 = vadd.f32 %v2709, %v2717
    %v2719 = vadd.f32 %v2718, %v90
    %v2720 = vld [vmem:[%s4] sm:$0xff]
    %v2721 = vld [vmem:[%s4 + $0x8] sm:$0xff]
    %v2722 = vld [vmem:[%s4 + $0x10] sm:$0xff]
    %v2723 = vld [vmem:[%s4 + $0x18] sm:$0xff]
    %v2724 = vld [vmem:[%s4 + $0x20] sm:$0xff]
    %v2725 = vld [vmem:[%s4 + $0x28] sm:$0xff]
    %v2726 = vld [vmem:[%s4 + $0x30] sm:$0xff]
    %v2727 = vld [vmem:[%s4 + $0x38] sm:$0xff]
    %v2728 = vld [vmem:[%s4 + $0x40] sm:$0xff]
    %v2729 = vld [vmem:[%s4 + $0x48] sm:$0xff]
    %v2730 = vld [vmem:[%s4 + $0x50] sm:$0xff]
    %v2731 = vld [vmem:[%s4 + $0x58] sm:$0xff]
    %v2732 = vld [vmem:[%s4 + $0x60] sm:$0xff]
    %v2733 = vld [vmem:[%s4 + $0x68] sm:$0xff]
    %v2734 = vld [vmem:[%s4 + $0x70] sm:$0xff]
    %v2735 = vld [vmem:[%s4 + $0x78] sm:$0xff]
    %v2736 = vld [vmem:[%s5] sm:$0xf]
    %v2737 = vld [vmem:[%s5 + $0x4] sm:$0xf]
    %v2738 = vld [vmem:[%s5 + $0x8] sm:$0xf]
    %v2739 = vld [vmem:[%s5 + $0xc] sm:$0xf]
    %v2740 = vld [vmem:[%s5 + $0x10] sm:$0xf]
    %v2741 = vld [vmem:[%s5 + $0x14] sm:$0xf]
    %v2742 = vld [vmem:[%s5 + $0x18] sm:$0xf]
    %v2743 = vld [vmem:[%s5 + $0x1c] sm:$0xf]
    %v2744 = vld [vmem:[%s5 + $0x20] sm:$0xf]
    %v2745 = vld [vmem:[%s5 + $0x24] sm:$0xf]
    %v2746 = vld [vmem:[%s5 + $0x28] sm:$0xf]
    %v2747 = vld [vmem:[%s5 + $0x2c] sm:$0xf]
    %v2748 = vld [vmem:[%s5 + $0x30] sm:$0xf]
    %v2749 = vld [vmem:[%s5 + $0x34] sm:$0xf]
    %v2750 = vld [vmem:[%s5 + $0x38] sm:$0xf]
    %v2751 = vld [vmem:[%s5 + $0x3c] sm:$0xf]
    %v2752 = vld [vmem:[%s5 + $0x40] sm:$0xf]
    %v2753 = vld [vmem:[%s5 + $0x44] sm:$0xf]
    %v2754 = vld [vmem:[%s5 + $0x48] sm:$0xf]
    %v2755 = vld [vmem:[%s5 + $0x4c] sm:$0xf]
    %v2756 = vld [vmem:[%s5 + $0x50] sm:$0xf]
    %v2757 = vld [vmem:[%s5 + $0x54] sm:$0xf]
    %v2758 = vld [vmem:[%s5 + $0x58] sm:$0xf]
    %v2759 = vld [vmem:[%s5 + $0x5c] sm:$0xf]
    %v2760 = vld [vmem:[%s5 + $0x60] sm:$0xf]
    %v2761 = vld [vmem:[%s5 + $0x64] sm:$0xf]
    %v2762 = vld [vmem:[%s5 + $0x68] sm:$0xf]
    %v2763 = vld [vmem:[%s5 + $0x6c] sm:$0xf]
    %v2764 = vld [vmem:[%s5 + $0x70] sm:$0xf]
    %v2765 = vld [vmem:[%s5 + $0x74] sm:$0xf]
    %v2766 = vld [vmem:[%s5 + $0x78] sm:$0xf]
    %v2767 = vld [vmem:[%s5 + $0x7c] sm:$0xf]
    %v2768 = vld [vmem:[%s6] sm:$0xff]
    %v2769 = vld [vmem:[%s6 + $0x8] sm:$0xff]
    %v2770 = vpack.c.bf16 %v2719, %v2719
    %v2771 = vlaneseq
    %v2772 = vshrl.u32 %v2771, 7
    %v2773 = vsub.s32 0, %v2772
    %v2774 = vrot.slane %v2768, %v2773
    %v2775 = vlaneseq
    %v2776 = vshrl.u32 %v2775, 7
    %v2777 = vsub.s32 0, %v2776
    %v2778 = vrot.slane %v2769, %v2777
    %v2787 = vunpack.c.l.b16 %v2720
    %v2788 = vunpack.c.h.b16 %v2720
    %v2789 = vunpack.c.l.b16 %v2722
    %v2790 = vunpack.c.h.b16 %v2722
    %v2791 = vunpack.c.l.b16 %v2724
    %v2792 = vunpack.c.h.b16 %v2724
    %v2793 = vunpack.c.l.b16 %v2726
    %v2794 = vunpack.c.h.b16 %v2726
    %v2795 = vunpack.c.l.b16 %v2728
    %v2796 = vunpack.c.h.b16 %v2728
    %v2797 = vunpack.c.l.b16 %v2730
    %v2798 = vunpack.c.h.b16 %v2730
    %v2799 = vunpack.c.l.b16 %v2732
    %v2800 = vunpack.c.h.b16 %v2732
    %v2801 = vunpack.c.l.b16 %v2734
    %v2802 = vunpack.c.h.b16 %v2734
    %v2803 = vpack.c.b16 %v2789, %v2787
    %v2804 = vpack.c.b16 %v2790, %v2788
    %v2805 = vpack.c.b16 %v2793, %v2791
    %v2806 = vpack.c.b16 %v2794, %v2792
    %v2807 = vpack.c.b16 %v2797, %v2795
    %v2808 = vpack.c.b16 %v2798, %v2796
    %v2809 = vpack.c.b16 %v2801, %v2799
    %v2810 = vpack.c.b16 %v2802, %v2800
    %v2820 = vsel %vm191, %v2770, 0
    %2822 = vmatprep.subr.bf16.mxu0 %v2804
    %2823 = vmatpush1.bf16.msra.mxu0 %v2803
    %2824 = vmatprep.subr.bf16.mxu0 %v2806
    %2825 = vmatpush1.bf16.msra.mxu0 %v2805
    %2826 = vmatprep.subr.bf16.mxu0 %v2808
    %2827 = vmatpush1.bf16.msra.mxu0 %v2807
    %2828 = vmatprep.subr.bf16.mxu0 %v2810
    %2829 = vmatpush1.bf16.msra.mxu0 %v2809
    %2830 = vmatprep.subr.bf16.mxu0 0
    %2831 = vmatpush1.bf16.msra.mxu0 0
    %2832 = vmatprep.subr.bf16.mxu0 0
    %2833 = vmatpush1.bf16.msra.mxu0 0
    %2834 = vmatprep.subr.bf16.mxu0 0
    %2835 = vmatpush1.bf16.msra.mxu0 0
    %2836 = vmatprep.subr.bf16.mxu0 0
    %2837 = vmatpush1.bf16.msra.mxu0 0
    %2838 = vmatprep.subr.bf16.mxu0 0
    %2839 = vmatpush1.bf16.msra.mxu0 0
    %2840 = vmatprep.subr.bf16.mxu0 0
    %2841 = vmatpush1.bf16.msra.mxu0 0
    %2842 = vmatprep.subr.bf16.mxu0 0
    %2843 = vmatpush1.bf16.msra.mxu0 0
    %2844 = vmatprep.subr.bf16.mxu0 0
    %2845 = vmatpush1.bf16.msra.mxu0 0
    %2846 = vmatprep.subr.bf16.mxu0 0
    %2847 = vmatpush1.bf16.msra.mxu0 0
    %2848 = vmatprep.subr.bf16.mxu0 0
    %2849 = vmatpush1.bf16.msra.mxu0 0
    %2850 = vmatprep.subr.bf16.mxu0 0
    %2851 = vmatpush1.bf16.msra.mxu0 0
    %2852 = vmatprep.subr.bf16.mxu0 0
    %2853 = vmatpush1.bf16.msra.mxu0 0
    %2854 = vmatprep.mubr.bf16.mxu0 0
    %2855 = vmatmul.mubr.bf16.gmra.mrb[0].mxu0 %v2820
    %v2856 = vpop.f32.mrb[0].mxu0
    %v2857 = vadd.f32 %v2774, %v2856
    %v2858 = vpop.f32.mrb[0].mxu0
    %v2859 = vadd.f32 %v2778, %v2858
    %v2860 = vpop.f32.mrb[0].mxu0
    %v2861 = vpop.f32.mrb[0].mxu0
    %2862 = vdwg.mxu0
    %2864 = vrot.lane.b32.xlu0 %v2857, 112
    %v2865 = vpop.permute.xlu0 %2864
    %2866 = vrot.lane.b32.xlu0 %v2857, 96
    %v2867 = vpop.permute.xlu0 %2866
    %2868 = vrot.lane.b32.xlu0 %v2857, 80
    %v2869 = vpop.permute.xlu0 %2868
    %2871 = vrot.lane.b32.xlu0 %v2859, 112
    %v2872 = vpop.permute.xlu0 %2871
    %2874 = vrot.lane.b32.xlu0 %v2859, 96
    %v2875 = vpop.permute.xlu0 %2874
    %2877 = vrot.lane.b32.xlu0 %v2859, 80
    %v2878 = vpop.permute.xlu0 %2877
    %2880 = vrot.lane.b32.xlu0 %v2857, 64
    %v2881 = vpop.permute.xlu0 %2880
    %v2882 = vsel %vm43, %v2857, 0
    %v2884 = vsel %vm43, %v2881, 0
    %2886 = vmatprep.subr.mxu0 0.0
    %2887 = vmatpush1.xpose.msra.mxu0 %v2884
    %2888 = vmatprep.subr.mxu0 0.0
    %2889 = vmatpush1.xpose.msra.mxu0 0.0
    %2890 = vmatprep.subr.mxu0 0.0
    %2891 = vmatpush1.xpose.msra.mxu0 0.0
    %2892 = vmatprep.subr.mxu0 0.0
    %2893 = vmatpush1.xpose.msra.mxu0 0.0
    %2894 = vmatprep.subr.mxu0 0.0
    %2895 = vmatpush1.xpose.msra.mxu0 0.0
    %2896 = vmatprep.subr.mxu0 0.0
    %2897 = vmatpush1.xpose.msra.mxu0 0.0
    %2898 = vmatprep.subr.mxu0 0.0
    %2899 = vmatpush1.xpose.msra.mxu0 0.0
    %2900 = vmatprep.subr.mxu0 0.0
    %2901 = vmatpush1.xpose.msra.mxu0 0.0
    %2902 = vmatprep.subr.mxu0 0.0
    %2903 = vmatpush1.xpose.msra.mxu0 0.0
    %2904 = vmatprep.subr.mxu0 0.0
    %2905 = vmatpush1.xpose.msra.mxu0 0.0
    %2906 = vmatprep.subr.mxu0 0.0
    %2907 = vmatpush1.xpose.msra.mxu0 0.0
    %2908 = vmatprep.subr.mxu0 0.0
    %2909 = vmatpush1.xpose.msra.mxu0 0.0
    %2910 = vmatprep.subr.mxu0 0.0
    %2911 = vmatpush1.xpose.msra.mxu0 0.0
    %2912 = vmatprep.subr.mxu0 0.0
    %2913 = vmatpush1.xpose.msra.mxu0 0.0
    %2914 = vmatprep.subr.mxu0 0.0
    %2915 = vmatpush1.xpose.msra.mxu0 0.0
    %2916 = vmatprep.subr.mxu0 0.0
    %2917 = vmatpush1.xpose.msra.mxu0 0.0
    %2918 = vmatprep.subr.mxu0 0.0
    %2919 = vmatpush1.xpose.msra.mxu0 0.0
    %2920 = vmatprep.subr.mxu0 0.0
    %2921 = vmatpush1.xpose.msra.mxu0 0.0
    %2922 = vmatprep.subr.mxu0 0.0
    %2923 = vmatpush1.xpose.msra.mxu0 0.0
    %2924 = vmatprep.subr.mxu0 0.0
    %2925 = vmatpush1.xpose.msra.mxu0 0.0
    %2926 = vmatprep.subr.mxu0 0.0
    %2927 = vmatpush1.xpose.msra.mxu0 0.0
    %2928 = vmatprep.subr.mxu0 0.0
    %2929 = vmatpush1.xpose.msra.mxu0 0.0
    %2930 = vmatprep.subr.mxu0 0.0
    %2931 = vmatpush1.xpose.msra.mxu0 0.0
    %2932 = vmatprep.subr.mxu0 0.0
    %2933 = vmatpush1.xpose.msra.mxu0 0.0
    %2934 = vmatprep.subr.mxu0 0.0
    %2935 = vmatpush1.xpose.msra.mxu0 0.0
    %2936 = vmatprep.subr.mxu0 0.0
    %2937 = vmatpush1.xpose.msra.mxu0 0.0
    %2938 = vmatprep.subr.mxu0 0.0
    %2939 = vmatpush1.xpose.msra.mxu0 0.0
    %2940 = vmatprep.subr.mxu0 0.0
    %2941 = vmatpush1.xpose.msra.mxu0 0.0
    %2942 = vmatprep.subr.mxu0 0.0
    %2943 = vmatpush1.xpose.msra.mxu0 0.0
    %2944 = vmatprep.subr.mxu0 0.0
    %2945 = vmatpush1.xpose.msra.mxu0 0.0
    %2946 = vmatprep.subr.mxu0 0.0
    %2947 = vmatpush1.xpose.msra.mxu0 0.0
    %2948 = vmatprep.subr.mxu0 0.0
    %2949 = vmatpush1.xpose.msra.mxu0 0.0
    %2950 = vmatprep.mubr.f32.mxu0 0.0
    %2951 = vmatmul.mubr.f32.gmra.mrb[0].mxu0 %v2882
    %v2952 = vpop.f32.mrb[0].mxu0
    %v2953 = vadd.f32 0.0, %v2952
    %v2954 = vpop.f32.mrb[0].mxu0
    %2955 = vdwg.mxu0
    %2956 = vrot.lane.b32.xlu0 %v2865, 64
    %v2957 = vpop.permute.xlu0 %2956
    %v2958 = vsel %vm43, %v2865, 0
    %v2960 = vsel %vm43, %v2957, 0
    %2962 = vmatprep.subr.mxu0 0.0
    %2963 = vmatpush1.xpose.msra.mxu0 %v2960
    %2964 = vmatprep.subr.mxu0 0.0
    %2965 = vmatpush1.xpose.msra.mxu0 0.0
    %2966 = vmatprep.subr.mxu0 0.0
    %2967 = vmatpush1.xpose.msra.mxu0 0.0
    %2968 = vmatprep.subr.mxu0 0.0
    %2969 = vmatpush1.xpose.msra.mxu0 0.0
    %2970 = vmatprep.subr.mxu0 0.0
    %2971 = vmatpush1.xpose.msra.mxu0 0.0
    %2972 = vmatprep.subr.mxu0 0.0
    %2973 = vmatpush1.xpose.msra.mxu0 0.0
    %2974 = vmatprep.subr.mxu0 0.0
    %2975 = vmatpush1.xpose.msra.mxu0 0.0
    %2976 = vmatprep.subr.mxu0 0.0
    %2977 = vmatpush1.xpose.msra.mxu0 0.0
    %2978 = vmatprep.subr.mxu0 0.0
    %2979 = vmatpush1.xpose.msra.mxu0 0.0
    %2980 = vmatprep.subr.mxu0 0.0
    %2981 = vmatpush1.xpose.msra.mxu0 0.0
    %2982 = vmatprep.subr.mxu0 0.0
    %2983 = vmatpush1.xpose.msra.mxu0 0.0
    %2984 = vmatprep.subr.mxu0 0.0
    %2985 = vmatpush1.xpose.msra.mxu0 0.0
    %2986 = vmatprep.subr.mxu0 0.0
    %2987 = vmatpush1.xpose.msra.mxu0 0.0
    %2988 = vmatprep.subr.mxu0 0.0
    %2989 = vmatpush1.xpose.msra.mxu0 0.0
    %2990 = vmatprep.subr.mxu0 0.0
    %2991 = vmatpush1.xpose.msra.mxu0 0.0
    %2992 = vmatprep.subr.mxu0 0.0
    %2993 = vmatpush1.xpose.msra.mxu0 0.0
    %2994 = vmatprep.subr.mxu0 0.0
    %2995 = vmatpush1.xpose.msra.mxu0 0.0
    %2996 = vmatprep.subr.mxu0 0.0
    %2997 = vmatpush1.xpose.msra.mxu0 0.0
    %2998 = vmatprep.subr.mxu0 0.0
    %2999 = vmatpush1.xpose.msra.mxu0 0.0
    %3000 = vmatprep.subr.mxu0 0.0
    %3001 = vmatpush1.xpose.msra.mxu0 0.0
    %3002 = vmatprep.subr.mxu0 0.0
    %3003 = vmatpush1.xpose.msra.mxu0 0.0
    %3004 = vmatprep.subr.mxu0 0.0
    %3005 = vmatpush1.xpose.msra.mxu0 0.0
    %3006 = vmatprep.subr.mxu0 0.0
    %3007 = vmatpush1.xpose.msra.mxu0 0.0
    %3008 = vmatprep.subr.mxu0 0.0
    %3009 = vmatpush1.xpose.msra.mxu0 0.0
    %3010 = vmatprep.subr.mxu0 0.0
    %3011 = vmatpush1.xpose.msra.mxu0 0.0
    %3012 = vmatprep.subr.mxu0 0.0
    %3013 = vmatpush1.xpose.msra.mxu0 0.0
    %3014 = vmatprep.subr.mxu0 0.0
    %3015 = vmatpush1.xpose.msra.mxu0 0.0
    %3016 = vmatprep.subr.mxu0 0.0
    %3017 = vmatpush1.xpose.msra.mxu0 0.0
    %3018 = vmatprep.subr.mxu0 0.0
    %3019 = vmatpush1.xpose.msra.mxu0 0.0
    %3020 = vmatprep.subr.mxu0 0.0
    %3021 = vmatpush1.xpose.msra.mxu0 0.0
    %3022 = vmatprep.subr.mxu0 0.0
    %3023 = vmatpush1.xpose.msra.mxu0 0.0
    %3024 = vmatprep.subr.mxu0 0.0
    %3025 = vmatpush1.xpose.msra.mxu0 0.0
    %3026 = vmatprep.mubr.f32.mxu0 0.0
    %3027 = vmatmul.mubr.f32.gmra.mrb[0].mxu0 %v2958
    %v3028 = vpop.f32.mrb[0].mxu0
    %v3029 = vadd.f32 0.0, %v3028
    %v3030 = vpop.f32.mrb[0].mxu0
    %3031 = vdwg.mxu0
    %3032 = vrot.lane.b32.xlu0 %v2867, 64
    %v3033 = vpop.permute.xlu0 %3032
    %v3034 = vsel %vm43, %v2867, 0
    %v3036 = vsel %vm43, %v3033, 0
    %3038 = vmatprep.subr.mxu0 0.0
    %3039 = vmatpush1.xpose.msra.mxu0 %v3036
    %3040 = vmatprep.subr.mxu0 0.0
    %3041 = vmatpush1.xpose.msra.mxu0 0.0
    %3042 = vmatprep.subr.mxu0 0.0
    %3043 = vmatpush1.xpose.msra.mxu0 0.0
    %3044 = vmatprep.subr.mxu0 0.0
    %3045 = vmatpush1.xpose.msra.mxu0 0.0
    %3046 = vmatprep.subr.mxu0 0.0
    %3047 = vmatpush1.xpose.msra.mxu0 0.0
    %3048 = vmatprep.subr.mxu0 0.0
    %3049 = vmatpush1.xpose.msra.mxu0 0.0
    %3050 = vmatprep.subr.mxu0 0.0
    %3051 = vmatpush1.xpose.msra.mxu0 0.0
    %3052 = vmatprep.subr.mxu0 0.0
    %3053 = vmatpush1.xpose.msra.mxu0 0.0
    %3054 = vmatprep.subr.mxu0 0.0
    %3055 = vmatpush1.xpose.msra.mxu0 0.0
    %3056 = vmatprep.subr.mxu0 0.0
    %3057 = vmatpush1.xpose.msra.mxu0 0.0
    %3058 = vmatprep.subr.mxu0 0.0
    %3059 = vmatpush1.xpose.msra.mxu0 0.0
    %3060 = vmatprep.subr.mxu0 0.0
    %3061 = vmatpush1.xpose.msra.mxu0 0.0
    %3062 = vmatprep.subr.mxu0 0.0
    %3063 = vmatpush1.xpose.msra.mxu0 0.0
    %3064 = vmatprep.subr.mxu0 0.0
    %3065 = vmatpush1.xpose.msra.mxu0 0.0
    %3066 = vmatprep.subr.mxu0 0.0
    %3067 = vmatpush1.xpose.msra.mxu0 0.0
    %3068 = vmatprep.subr.mxu0 0.0
    %3069 = vmatpush1.xpose.msra.mxu0 0.0
    %3070 = vmatprep.subr.mxu0 0.0
    %3071 = vmatpush1.xpose.msra.mxu0 0.0
    %3072 = vmatprep.subr.mxu0 0.0
    %3073 = vmatpush1.xpose.msra.mxu0 0.0
    %3074 = vmatprep.subr.mxu0 0.0
    %3075 = vmatpush1.xpose.msra.mxu0 0.0
    %3076 = vmatprep.subr.mxu0 0.0
    %3077 = vmatpush1.xpose.msra.mxu0 0.0
    %3078 = vmatprep.subr.mxu0 0.0
    %3079 = vmatpush1.xpose.msra.mxu0 0.0
    %3080 = vmatprep.subr.mxu0 0.0
    %3081 = vmatpush1.xpose.msra.mxu0 0.0
    %3082 = vmatprep.subr.mxu0 0.0
    %3083 = vmatpush1.xpose.msra.mxu0 0.0
    %3084 = vmatprep.subr.mxu0 0.0
    %3085 = vmatpush1.xpose.msra.mxu0 0.0
    %3086 = vmatprep.subr.mxu0 0.0
    %3087 = vmatpush1.xpose.msra.mxu0 0.0
    %3088 = vmatprep.subr.mxu0 0.0
    %3089 = vmatpush1.xpose.msra.mxu0 0.0
    %3090 = vmatprep.subr.mxu0 0.0
    %3091 = vmatpush1.xpose.msra.mxu0 0.0
    %3092 = vmatprep.subr.mxu0 0.0
    %3093 = vmatpush1.xpose.msra.mxu0 0.0
    %3094 = vmatprep.subr.mxu0 0.0
    %3095 = vmatpush1.xpose.msra.mxu0 0.0
    %3096 = vmatprep.subr.mxu0 0.0
    %3097 = vmatpush1.xpose.msra.mxu0 0.0
    %3098 = vmatprep.subr.mxu0 0.0
    %3099 = vmatpush1.xpose.msra.mxu0 0.0
    %3100 = vmatprep.subr.mxu0 0.0
    %3101 = vmatpush1.xpose.msra.mxu0 0.0
    %3102 = vmatprep.mubr.f32.mxu0 0.0
    %3103 = vmatmul.mubr.f32.gmra.mrb[0].mxu0 %v3034
    %v3104 = vpop.f32.mrb[0].mxu0
    %v3105 = vadd.f32 0.0, %v3104
    %v3106 = vpop.f32.mrb[0].mxu0
    %3107 = vdwg.mxu0
    %3108 = vrot.lane.b32.xlu0 %v2869, 64
    %v3109 = vpop.permute.xlu0 %3108
    %v3110 = vsel %vm43, %v2869, 0
    %v3112 = vsel %vm43, %v3109, 0
    %3114 = vmatprep.subr.mxu0 0.0
    %3115 = vmatpush1.xpose.msra.mxu0 %v3112
    %3116 = vmatprep.subr.mxu0 0.0
    %3117 = vmatpush1.xpose.msra.mxu0 0.0
    %3118 = vmatprep.subr.mxu0 0.0
    %3119 = vmatpush1.xpose.msra.mxu0 0.0
    %3120 = vmatprep.subr.mxu0 0.0
    %3121 = vmatpush1.xpose.msra.mxu0 0.0
    %3122 = vmatprep.subr.mxu0 0.0
    %3123 = vmatpush1.xpose.msra.mxu0 0.0
    %3124 = vmatprep.subr.mxu0 0.0
    %3125 = vmatpush1.xpose.msra.mxu0 0.0
    %3126 = vmatprep.subr.mxu0 0.0
    %3127 = vmatpush1.xpose.msra.mxu0 0.0
    %3128 = vmatprep.subr.mxu0 0.0
    %3129 = vmatpush1.xpose.msra.mxu0 0.0
    %3130 = vmatprep.subr.mxu0 0.0
    %3131 = vmatpush1.xpose.msra.mxu0 0.0
    %3132 = vmatprep.subr.mxu0 0.0
    %3133 = vmatpush1.xpose.msra.mxu0 0.0
    %3134 = vmatprep.subr.mxu0 0.0
    %3135 = vmatpush1.xpose.msra.mxu0 0.0
    %3136 = vmatprep.subr.mxu0 0.0
    %3137 = vmatpush1.xpose.msra.mxu0 0.0
    %3138 = vmatprep.subr.mxu0 0.0
    %3139 = vmatpush1.xpose.msra.mxu0 0.0
    %3140 = vmatprep.subr.mxu0 0.0
    %3141 = vmatpush1.xpose.msra.mxu0 0.0
    %3142 = vmatprep.subr.mxu0 0.0
    %3143 = vmatpush1.xpose.msra.mxu0 0.0
    %3144 = vmatprep.subr.mxu0 0.0
    %3145 = vmatpush1.xpose.msra.mxu0 0.0
    %3146 = vmatprep.subr.mxu0 0.0
    %3147 = vmatpush1.xpose.msra.mxu0 0.0
    %3148 = vmatprep.subr.mxu0 0.0
    %3149 = vmatpush1.xpose.msra.mxu0 0.0
    %3150 = vmatprep.subr.mxu0 0.0
    %3151 = vmatpush1.xpose.msra.mxu0 0.0
    %3152 = vmatprep.subr.mxu0 0.0
    %3153 = vmatpush1.xpose.msra.mxu0 0.0
    %3154 = vmatprep.subr.mxu0 0.0
    %3155 = vmatpush1.xpose.msra.mxu0 0.0
    %3156 = vmatprep.subr.mxu0 0.0
    %3157 = vmatpush1.xpose.msra.mxu0 0.0
    %3158 = vmatprep.subr.mxu0 0.0
    %3159 = vmatpush1.xpose.msra.mxu0 0.0
    %3160 = vmatprep.subr.mxu0 0.0
    %3161 = vmatpush1.xpose.msra.mxu0 0.0
    %3162 = vmatprep.subr.mxu0 0.0
    %3163 = vmatpush1.xpose.msra.mxu0 0.0
    %3164 = vmatprep.subr.mxu0 0.0
    %3165 = vmatpush1.xpose.msra.mxu0 0.0
    %3166 = vmatprep.subr.mxu0 0.0
    %3167 = vmatpush1.xpose.msra.mxu0 0.0
    %3168 = vmatprep.subr.mxu0 0.0
    %3169 = vmatpush1.xpose.msra.mxu0 0.0
    %3170 = vmatprep.subr.mxu0 0.0
    %3171 = vmatpush1.xpose.msra.mxu0 0.0
    %3172 = vmatprep.subr.mxu0 0.0
    %3173 = vmatpush1.xpose.msra.mxu0 0.0
    %3174 = vmatprep.subr.mxu0 0.0
    %3175 = vmatpush1.xpose.msra.mxu0 0.0
    %3176 = vmatprep.subr.mxu0 0.0
    %3177 = vmatpush1.xpose.msra.mxu0 0.0
    %3178 = vmatprep.mubr.f32.mxu0 0.0
    %3179 = vmatmul.mubr.f32.gmra.mrb[0].mxu0 %v3110
    %v3180 = vpop.f32.mrb[0].mxu0
    %v3181 = vadd.f32 0.0, %v3180
    %v3182 = vpop.f32.mrb[0].mxu0
    %3183 = vdwg.mxu0
    %v3184 = vsel %vm557, %v2953, -inf
    %3185 = vmax.xlane.f32.xlu0 %v3184
    %v3186 = vpop.xlane.xlu0 %3185
    %v3187 = vsel %vm557, %v3029, -inf
    %3188 = vmax.xlane.f32.xlu0 %v3187
    %v3189 = vpop.xlane.xlu0 %3188
    %v3190 = vsel %vm557, %v3105, -inf
    %3191 = vmax.xlane.f32.xlu0 %v3190
    %v3192 = vpop.xlane.xlu0 %3191
    %v3193 = vsel %vm557, %v3181, -inf
    %3194 = vmax.xlane.f32.xlu0 %v3193
    %v3195 = vpop.xlane.xlu0 %3194
    %v3196 = vsub.f32 %v2953, %v3186
    %v3197 = vsub.f32 %v3029, %v3189
    %v3198 = vsub.f32 %v3105, %v3192
    %v3199 = vsub.f32 %v3181, %v3195
    %v3200 = vmul.f32 %v3196, 1.442695
    %v3201 = vpow.pop %v3200
    %v3202 = vmul.f32 %v3197, 1.442695
    %v3203 = vpow.pop %v3202
    %v3204 = vmul.f32 %v3198, 1.442695
    %v3205 = vpow.pop %v3204
    %v3206 = vmul.f32 %v3199, 1.442695
    %v3207 = vpow.pop %v3206
    %v3208 = vsel %vm557, %v3201, 0.0
    %3209 = vadd.xlane.f32.xlu0 %v3208
    %v3210 = vpop.xlane.xlu0 %3209
    %v3211 = vsel %vm557, %v3203, 0.0
    %3212 = vadd.xlane.f32.xlu0 %v3211
    %v3213 = vpop.xlane.xlu0 %3212
    %v3214 = vsel %vm557, %v3205, 0.0
    %3215 = vadd.xlane.f32.xlu0 %v3214
    %v3216 = vpop.xlane.xlu0 %3215
    %v3217 = vsel %vm557, %v3207, 0.0
    %3218 = vadd.xlane.f32.xlu0 %v3217
    %v3219 = vpop.xlane.xlu0 %3218
    %v3220 = vrcp.pop %v3210
    %v3221 = vmul.f32 %v3201, %v3220
    %v3222 = vrcp.pop %v3213
    %v3223 = vmul.f32 %v3203, %v3222
    %v3224 = vrcp.pop %v3216
    %v3225 = vmul.f32 %v3205, %v3224
    %v3226 = vrcp.pop %v3219
    %v3227 = vmul.f32 %v3207, %v3226
    %v3229 = vsel %vm557, %v3221, 0
    %3231 = vmatprep.subr.mxu0 0.0
    %3232 = vmatpush1.msra.mxu0 %v2859
    %3233 = vmatprep.subr.mxu0 0.0
    %3234 = vmatpush1.msra.mxu0 0.0
    %3235 = vmatprep.subr.mxu0 0.0
    %3236 = vmatpush1.msra.mxu0 0.0
    %3237 = vmatprep.subr.mxu0 0.0
    %3238 = vmatpush1.msra.mxu0 0.0
    %3239 = vmatprep.subr.mxu0 0.0
    %3240 = vmatpush1.msra.mxu0 0.0
    %3241 = vmatprep.subr.mxu0 0.0
    %3242 = vmatpush1.msra.mxu0 0.0
    %3243 = vmatprep.subr.mxu0 0.0
    %3244 = vmatpush1.msra.mxu0 0.0
    %3245 = vmatprep.subr.mxu0 0.0
    %3246 = vmatpush1.msra.mxu0 0.0
    %3247 = vmatprep.subr.mxu0 0.0
    %3248 = vmatpush1.msra.mxu0 0.0
    %3249 = vmatprep.subr.mxu0 0.0
    %3250 = vmatpush1.msra.mxu0 0.0
    %3251 = vmatprep.subr.mxu0 0.0
    %3252 = vmatpush1.msra.mxu0 0.0
    %3253 = vmatprep.subr.mxu0 0.0
    %3254 = vmatpush1.msra.mxu0 0.0
    %3255 = vmatprep.subr.mxu0 0.0
    %3256 = vmatpush1.msra.mxu0 0.0
    %3257 = vmatprep.subr.mxu0 0.0
    %3258 = vmatpush1.msra.mxu0 0.0
    %3259 = vmatprep.subr.mxu0 0.0
    %3260 = vmatpush1.msra.mxu0 0.0
    %3261 = vmatprep.subr.mxu0 0.0
    %3262 = vmatpush1.msra.mxu0 0.0
    %3263 = vmatprep.subr.mxu0 0.0
    %3264 = vmatpush1.msra.mxu0 0.0
    %3265 = vmatprep.subr.mxu0 0.0
    %3266 = vmatpush1.msra.mxu0 0.0
    %3267 = vmatprep.subr.mxu0 0.0
    %3268 = vmatpush1.msra.mxu0 0.0
    %3269 = vmatprep.subr.mxu0 0.0
    %3270 = vmatpush1.msra.mxu0 0.0
    %3271 = vmatprep.subr.mxu0 0.0
    %3272 = vmatpush1.msra.mxu0 0.0
    %3273 = vmatprep.subr.mxu0 0.0
    %3274 = vmatpush1.msra.mxu0 0.0
    %3275 = vmatprep.subr.mxu0 0.0
    %3276 = vmatpush1.msra.mxu0 0.0
    %3277 = vmatprep.subr.mxu0 0.0
    %3278 = vmatpush1.msra.mxu0 0.0
    %3279 = vmatprep.subr.mxu0 0.0
    %3280 = vmatpush1.msra.mxu0 0.0
    %3281 = vmatprep.subr.mxu0 0.0
    %3282 = vmatpush1.msra.mxu0 0.0
    %3283 = vmatprep.subr.mxu0 0.0
    %3284 = vmatpush1.msra.mxu0 0.0
    %3285 = vmatprep.subr.mxu0 0.0
    %3286 = vmatpush1.msra.mxu0 0.0
    %3287 = vmatprep.subr.mxu0 0.0
    %3288 = vmatpush1.msra.mxu0 0.0
    %3289 = vmatprep.subr.mxu0 0.0
    %3290 = vmatpush1.msra.mxu0 0.0
    %3291 = vmatprep.subr.mxu0 0.0
    %3292 = vmatpush1.msra.mxu0 0.0
    %3293 = vmatprep.subr.mxu0 0.0
    %3294 = vmatpush1.msra.mxu0 0.0
    %3295 = vmatprep.mubr.f32.mxu0 0.0
    %3296 = vmatmul.mubr.f32.gmra.mrb[0].mxu0 %v3229
    %v3297 = vpop.f32.mrb[0].mxu0
    %v3298 = vadd.f32 0.0, %v3297
    %v3299 = vpop.f32.mrb[0].mxu0
    %3300 = vdwg.mxu0
    %v3302 = vsel %vm557, %v3223, 0
    %3304 = vmatprep.subr.mxu0 0.0
    %3305 = vmatpush1.msra.mxu0 %v2872
    %3306 = vmatprep.subr.mxu0 0.0
    %3307 = vmatpush1.msra.mxu0 0.0
    %3308 = vmatprep.subr.mxu0 0.0
    %3309 = vmatpush1.msra.mxu0 0.0
    %3310 = vmatprep.subr.mxu0 0.0
    %3311 = vmatpush1.msra.mxu0 0.0
    %3312 = vmatprep.subr.mxu0 0.0
    %3313 = vmatpush1.msra.mxu0 0.0
    %3314 = vmatprep.subr.mxu0 0.0
    %3315 = vmatpush1.msra.mxu0 0.0
    %3316 = vmatprep.subr.mxu0 0.0
    %3317 = vmatpush1.msra.mxu0 0.0
    %3318 = vmatprep.subr.mxu0 0.0
    %3319 = vmatpush1.msra.mxu0 0.0
    %3320 = vmatprep.subr.mxu0 0.0
    %3321 = vmatpush1.msra.mxu0 0.0
    %3322 = vmatprep.subr.mxu0 0.0
    %3323 = vmatpush1.msra.mxu0 0.0
    %3324 = vmatprep.subr.mxu0 0.0
    %3325 = vmatpush1.msra.mxu0 0.0
    %3326 = vmatprep.subr.mxu0 0.0
    %3327 = vmatpush1.msra.mxu0 0.0
    %3328 = vmatprep.subr.mxu0 0.0
    %3329 = vmatpush1.msra.mxu0 0.0
    %3330 = vmatprep.subr.mxu0 0.0
    %3331 = vmatpush1.msra.mxu0 0.0
    %3332 = vmatprep.subr.mxu0 0.0
    %3333 = vmatpush1.msra.mxu0 0.0
    %3334 = vmatprep.subr.mxu0 0.0
    %3335 = vmatpush1.msra.mxu0 0.0
    %3336 = vmatprep.subr.mxu0 0.0
    %3337 = vmatpush1.msra.mxu0 0.0
    %3338 = vmatprep.subr.mxu0 0.0
    %3339 = vmatpush1.msra.mxu0 0.0
    %3340 = vmatprep.subr.mxu0 0.0
    %3341 = vmatpush1.msra.mxu0 0.0
    %3342 = vmatprep.subr.mxu0 0.0
    %3343 = vmatpush1.msra.mxu0 0.0
    %3344 = vmatprep.subr.mxu0 0.0
    %3345 = vmatpush1.msra.mxu0 0.0
    %3346 = vmatprep.subr.mxu0 0.0
    %3347 = vmatpush1.msra.mxu0 0.0
    %3348 = vmatprep.subr.mxu0 0.0
    %3349 = vmatpush1.msra.mxu0 0.0
    %3350 = vmatprep.subr.mxu0 0.0
    %3351 = vmatpush1.msra.mxu0 0.0
    %3352 = vmatprep.subr.mxu0 0.0
    %3353 = vmatpush1.msra.mxu0 0.0
    %3354 = vmatprep.subr.mxu0 0.0
    %3355 = vmatpush1.msra.mxu0 0.0
    %3356 = vmatprep.subr.mxu0 0.0
    %3357 = vmatpush1.msra.mxu0 0.0
    %3358 = vmatprep.subr.mxu0 0.0
    %3359 = vmatpush1.msra.mxu0 0.0
    %3360 = vmatprep.subr.mxu0 0.0
    %3361 = vmatpush1.msra.mxu0 0.0
    %3362 = vmatprep.subr.mxu0 0.0
    %3363 = vmatpush1.msra.mxu0 0.0
    %3364 = vmatprep.subr.mxu0 0.0
    %3365 = vmatpush1.msra.mxu0 0.0
    %3366 = vmatprep.subr.mxu0 0.0
    %3367 = vmatpush1.msra.mxu0 0.0
    %3368 = vmatprep.mubr.f32.mxu0 0.0
    %3369 = vmatmul.mubr.f32.gmra.mrb[0].mxu0 %v3302
    %v3370 = vpop.f32.mrb[0].mxu0
    %v3371 = vadd.f32 0.0, %v3370
    %v3372 = vpop.f32.mrb[0].mxu0
    %3373 = vdwg.mxu0
    %v3375 = vsel %vm557, %v3225, 0
    %3377 = vmatprep.subr.mxu0 0.0
    %3378 = vmatpush1.msra.mxu0 %v2875
    %3379 = vmatprep.subr.mxu0 0.0
    %3380 = vmatpush1.msra.mxu0 0.0
    %3381 = vmatprep.subr.mxu0 0.0
    %3382 = vmatpush1.msra.mxu0 0.0
    %3383 = vmatprep.subr.mxu0 0.0
    %3384 = vmatpush1.msra.mxu0 0.0
    %3385 = vmatprep.subr.mxu0 0.0
    %3386 = vmatpush1.msra.mxu0 0.0
    %3387 = vmatprep.subr.mxu0 0.0
    %3388 = vmatpush1.msra.mxu0 0.0
    %3389 = vmatprep.subr.mxu0 0.0
    %3390 = vmatpush1.msra.mxu0 0.0
    %3391 = vmatprep.subr.mxu0 0.0
    %3392 = vmatpush1.msra.mxu0 0.0
    %3393 = vmatprep.subr.mxu0 0.0
    %3394 = vmatpush1.msra.mxu0 0.0
    %3395 = vmatprep.subr.mxu0 0.0
    %3396 = vmatpush1.msra.mxu0 0.0
    %3397 = vmatprep.subr.mxu0 0.0
    %3398 = vmatpush1.msra.mxu0 0.0
    %3399 = vmatprep.subr.mxu0 0.0
    %3400 = vmatpush1.msra.mxu0 0.0
    %3401 = vmatprep.subr.mxu0 0.0
    %3402 = vmatpush1.msra.mxu0 0.0
    %3403 = vmatprep.subr.mxu0 0.0
    %3404 = vmatpush1.msra.mxu0 0.0
    %3405 = vmatprep.subr.mxu0 0.0
    %3406 = vmatpush1.msra.mxu0 0.0
    %3407 = vmatprep.subr.mxu0 0.0
    %3408 = vmatpush1.msra.mxu0 0.0
    %3409 = vmatprep.subr.mxu0 0.0
    %3410 = vmatpush1.msra.mxu0 0.0
    %3411 = vmatprep.subr.mxu0 0.0
    %3412 = vmatpush1.msra.mxu0 0.0
    %3413 = vmatprep.subr.mxu0 0.0
    %3414 = vmatpush1.msra.mxu0 0.0
    %3415 = vmatprep.subr.mxu0 0.0
    %3416 = vmatpush1.msra.mxu0 0.0
    %3417 = vmatprep.subr.mxu0 0.0
    %3418 = vmatpush1.msra.mxu0 0.0
    %3419 = vmatprep.subr.mxu0 0.0
    %3420 = vmatpush1.msra.mxu0 0.0
    %3421 = vmatprep.subr.mxu0 0.0
    %3422 = vmatpush1.msra.mxu0 0.0
    %3423 = vmatprep.subr.mxu0 0.0
    %3424 = vmatpush1.msra.mxu0 0.0
    %3425 = vmatprep.subr.mxu0 0.0
    %3426 = vmatpush1.msra.mxu0 0.0
    %3427 = vmatprep.subr.mxu0 0.0
    %3428 = vmatpush1.msra.mxu0 0.0
    %3429 = vmatprep.subr.mxu0 0.0
    %3430 = vmatpush1.msra.mxu0 0.0
    %3431 = vmatprep.subr.mxu0 0.0
    %3432 = vmatpush1.msra.mxu0 0.0
    %3433 = vmatprep.subr.mxu0 0.0
    %3434 = vmatpush1.msra.mxu0 0.0
    %3435 = vmatprep.subr.mxu0 0.0
    %3436 = vmatpush1.msra.mxu0 0.0
    %3437 = vmatprep.subr.mxu0 0.0
    %3438 = vmatpush1.msra.mxu0 0.0
    %3439 = vmatprep.subr.mxu0 0.0
    %3440 = vmatpush1.msra.mxu0 0.0
    %3441 = vmatprep.mubr.f32.mxu0 0.0
    %3442 = vmatmul.mubr.f32.gmra.mrb[0].mxu0 %v3375
    %v3443 = vpop.f32.mrb[0].mxu0
    %v3444 = vadd.f32 0.0, %v3443
    %v3445 = vpop.f32.mrb[0].mxu0
    %3446 = vdwg.mxu0
    %v3448 = vsel %vm557, %v3227, 0
    %3450 = vmatprep.subr.mxu0 0.0
    %3451 = vmatpush1.msra.mxu0 %v2878
    %3452 = vmatprep.subr.mxu0 0.0
    %3453 = vmatpush1.msra.mxu0 0.0
    %3454 = vmatprep.subr.mxu0 0.0
    %3455 = vmatpush1.msra.mxu0 0.0
    %3456 = vmatprep.subr.mxu0 0.0
    %3457 = vmatpush1.msra.mxu0 0.0
    %3458 = vmatprep.subr.mxu0 0.0
    %3459 = vmatpush1.msra.mxu0 0.0
    %3460 = vmatprep.subr.mxu0 0.0
    %3461 = vmatpush1.msra.mxu0 0.0
    %3462 = vmatprep.subr.mxu0 0.0
    %3463 = vmatpush1.msra.mxu0 0.0
    %3464 = vmatprep.subr.mxu0 0.0
    %3465 = vmatpush1.msra.mxu0 0.0
    %3466 = vmatprep.subr.mxu0 0.0
    %3467 = vmatpush1.msra.mxu0 0.0
    %3468 = vmatprep.subr.mxu0 0.0
    %3469 = vmatpush1.msra.mxu0 0.0
    %3470 = vmatprep.subr.mxu0 0.0
    %3471 = vmatpush1.msra.mxu0 0.0
    %3472 = vmatprep.subr.mxu0 0.0
    %3473 = vmatpush1.msra.mxu0 0.0
    %3474 = vmatprep.subr.mxu0 0.0
    %3475 = vmatpush1.msra.mxu0 0.0
    %3476 = vmatprep.subr.mxu0 0.0
    %3477 = vmatpush1.msra.mxu0 0.0
    %3478 = vmatprep.subr.mxu0 0.0
    %3479 = vmatpush1.msra.mxu0 0.0
    %3480 = vmatprep.subr.mxu0 0.0
    %3481 = vmatpush1.msra.mxu0 0.0
    %3482 = vmatprep.subr.mxu0 0.0
    %3483 = vmatpush1.msra.mxu0 0.0
    %3484 = vmatprep.subr.mxu0 0.0
    %3485 = vmatpush1.msra.mxu0 0.0
    %3486 = vmatprep.subr.mxu0 0.0
    %3487 = vmatpush1.msra.mxu0 0.0
    %3488 = vmatprep.subr.mxu0 0.0
    %3489 = vmatpush1.msra.mxu0 0.0
    %3490 = vmatprep.subr.mxu0 0.0
    %3491 = vmatpush1.msra.mxu0 0.0
    %3492 = vmatprep.subr.mxu0 0.0
    %3493 = vmatpush1.msra.mxu0 0.0
    %3494 = vmatprep.subr.mxu0 0.0
    %3495 = vmatpush1.msra.mxu0 0.0
    %3496 = vmatprep.subr.mxu0 0.0
    %3497 = vmatpush1.msra.mxu0 0.0
    %3498 = vmatprep.subr.mxu0 0.0
    %3499 = vmatpush1.msra.mxu0 0.0
    %3500 = vmatprep.subr.mxu0 0.0
    %3501 = vmatpush1.msra.mxu0 0.0
    %3502 = vmatprep.subr.mxu0 0.0
    %3503 = vmatpush1.msra.mxu0 0.0
    %3504 = vmatprep.subr.mxu0 0.0
    %3505 = vmatpush1.msra.mxu0 0.0
    %3506 = vmatprep.subr.mxu0 0.0
    %3507 = vmatpush1.msra.mxu0 0.0
    %3508 = vmatprep.subr.mxu0 0.0
    %3509 = vmatpush1.msra.mxu0 0.0
    %3510 = vmatprep.subr.mxu0 0.0
    %3511 = vmatpush1.msra.mxu0 0.0
    %3512 = vmatprep.subr.mxu0 0.0
    %3513 = vmatpush1.msra.mxu0 0.0
    %3514 = vmatprep.mubr.f32.mxu0 0.0
    %3515 = vmatmul.mubr.f32.gmra.mrb[0].mxu0 %v3448
    %v3516 = vpop.f32.mrb[0].mxu0
    %v3517 = vadd.f32 0.0, %v3516
    %v3518 = vpop.f32.mrb[0].mxu0
    %3519 = vdwg.mxu0
    %3521 = vrot.lane.b32.xlu0 %v3371, 16
    %v3522 = vpop.permute.xlu0 %3521
    %3525 = vrot.lane.b32.xlu0 %v3444, 32
    %v3526 = vpop.permute.xlu0 %3525
    %3529 = vrot.lane.b32.xlu0 %v3517, 48
    %v3530 = vpop.permute.xlu0 %3529
    %v3532 = vsel %vm43, %v3298, %v3522
    %v3533 = vsel %vm907, %v3532, %v3526
    %v3534 = vsel %vm909, %v3533, %v3530
    %v3535 = vpack.c.bf16 %v3534, %v3534
    %3536 = vrot.lane.b32.xlu0 %v2804, 64
    %v3537 = vpop.permute.xlu0 %3536
    %3538 = vrot.lane.b32.xlu0 %v2806, 64
    %v3539 = vpop.permute.xlu0 %3538
    %3540 = vrot.lane.b32.xlu0 %v2808, 64
    %v3541 = vpop.permute.xlu0 %3540
    %3542 = vrot.lane.b32.xlu0 %v2810, 64
    %v3543 = vpop.permute.xlu0 %3542
    %3549 = vrot.lane.b32.xlu0 %v2778, 64
    %v3550 = vpop.permute.xlu0 %3549
    %v3553 = vsel %vm191, %v3535, 0
    %3555 = vmatprep.subr.bf16.mxu0 0
    %3556 = vmatpush1.bf16.msra.mxu0 %v3537
    %3557 = vmatprep.subr.bf16.mxu0 0
    %3558 = vmatpush1.bf16.msra.mxu0 %v3539
    %3559 = vmatprep.subr.bf16.mxu0 0
    %3560 = vmatpush1.bf16.msra.mxu0 %v3541
    %3561 = vmatprep.subr.bf16.mxu0 0
    %3562 = vmatpush1.bf16.msra.mxu0 %v3543
    %3563 = vmatprep.subr.bf16.mxu0 0
    %3564 = vmatpush1.bf16.msra.mxu0 0
    %3565 = vmatprep.subr.bf16.mxu0 0
    %3566 = vmatpush1.bf16.msra.mxu0 0
    %3567 = vmatprep.subr.bf16.mxu0 0
    %3568 = vmatpush1.bf16.msra.mxu0 0
    %3569 = vmatprep.subr.bf16.mxu0 0
    %3570 = vmatpush1.bf16.msra.mxu0 0
    %3571 = vmatprep.subr.bf16.mxu0 0
    %3572 = vmatpush1.bf16.msra.mxu0 0
    %3573 = vmatprep.subr.bf16.mxu0 0
    %3574 = vmatpush1.bf16.msra.mxu0 0
    %3575 = vmatprep.subr.bf16.mxu0 0
    %3576 = vmatpush1.bf16.msra.mxu0 0
    %3577 = vmatprep.subr.bf16.mxu0 0
    %3578 = vmatpush1.bf16.msra.mxu0 0
    %3579 = vmatprep.subr.bf16.mxu0 0
    %3580 = vmatpush1.bf16.msra.mxu0 0
    %3581 = vmatprep.subr.bf16.mxu0 0
    %3582 = vmatpush1.bf16.msra.mxu0 0
    %3583 = vmatprep.subr.bf16.mxu0 0
    %3584 = vmatpush1.bf16.msra.mxu0 0
    %3585 = vmatprep.subr.bf16.mxu0 0
    %3586 = vmatpush1.bf16.msra.mxu0 0
    %3587 = vmatprep.mubr.bf16.mxu0 0
    %3588 = vmatmul.mubr.bf16.gmra.mrb[0].mxu0 %v3553
    %v3589 = vpop.f32.mrb[0].mxu0
    %v3590 = vadd.f32 %v3550, %v3589
    %v3591 = vpop.f32.mrb[0].mxu0
    %v3592 = vpop.f32.mrb[0].mxu0
    %v3593 = vpop.f32.mrb[0].mxu0
    %3594 = vdwg.mxu0
    %v3595 = vadd.f32 %v2719, %v3590
    %v3596 = vsel %vm191, %v3595, 0.0
    %3597 = vadd.xlane.f32.xlu0 %v3596
    %v3598 = vpop.xlane.xlu0 %3597
    %v3599 = vmul.f32 %v3598, %v975
    %v3600 = vmul.f32 %v3595, %v3595
    %v3601 = vsel %vm191, %v3600, 0.0
    %3602 = vadd.xlane.f32.xlu0 %v3601
    %v3603 = vpop.xlane.xlu0 %3602
    %v3604 = vmul.f32 %v3603, %v975
    %v3605 = vsub.f32 %v3595, %v3599
    %v3606 = vmul.f32 %v3599, %v3599
    %v3607 = vsub.f32 %v3604, %v3606
    %v3608 = vadd.f32 %v3607, 1e-05
    %v3609 = vrsqrt.pop %v3608
    %v3610 = vmul.f32 %v3605, %v3609
    %v3611 = vlaneseq
    %v3612 = vshrl.u32 %v3611, 7
    %v3613 = vsub.s32 2, %v3612
    %v3614 = vrot.slane %v2768, %v3613
    %3616 = vrot.lane.b32.xlu0 %v3614, 64
    %v3617 = vpop.permute.xlu0 %3616
    %v3619 = vmul.f32 %v3610, %v3617
    %v3620 = vlaneseq
    %v3621 = vshrl.u32 %v3620, 7
    %v3622 = vsub.s32 2, %v3621
    %v3623 = vrot.slane %v2769, %v3622
    %v3624 = vadd.f32 %v3619, %v3623
    %v3625 = vpack.c.bf16 %v3624, %v3624
    %v3626 = vlaneseq
    %v3627 = vshrl.u32 %v3626, 7
    %v3628 = vsub.s32 1, %v3627
    %v3629 = vrot.slane %v2768, %v3628
    %v3630 = vlaneseq
    %v3631 = vshrl.u32 %v3630, 7
    %v3632 = vsub.s32 1, %v3631
    %v3633 = vrot.slane %v2769, %v3632
    %v3642 = vunpack.c.l.b16 %v2721
    %v3643 = vunpack.c.h.b16 %v2721
    %v3644 = vunpack.c.l.b16 %v2723
    %v3645 = vunpack.c.h.b16 %v2723
    %v3646 = vunpack.c.l.b16 %v2725
    %v3647 = vunpack.c.h.b16 %v2725
    %v3648 = vunpack.c.l.b16 %v2727
    %v3649 = vunpack.c.h.b16 %v2727
    %v3650 = vunpack.c.l.b16 %v2729
    %v3651 = vunpack.c.h.b16 %v2729
    %v3652 = vunpack.c.l.b16 %v2731
    %v3653 = vunpack.c.h.b16 %v2731
    %v3654 = vunpack.c.l.b16 %v2733
    %v3655 = vunpack.c.h.b16 %v2733
    %v3656 = vunpack.c.l.b16 %v2735
    %v3657 = vunpack.c.h.b16 %v2735
    %v3658 = vpack.c.b16 %v3644, %v3642
    %v3659 = vpack.c.b16 %v3645, %v3643
    %v3660 = vpack.c.b16 %v3648, %v3646
    %v3661 = vpack.c.b16 %v3649, %v3647
    %v3662 = vpack.c.b16 %v3652, %v3650
    %v3663 = vpack.c.b16 %v3653, %v3651
    %v3664 = vpack.c.b16 %v3656, %v3654
    %v3665 = vpack.c.b16 %v3657, %v3655
    %v3675 = vsel %vm191, %v3625, 0
    %3677 = vmatprep.subr.bf16.mxu0 %v3659
    %3678 = vmatpush1.bf16.msra.mxu0 %v3658
    %3679 = vmatprep.subr.bf16.mxu0 %v3661
    %3680 = vmatpush1.bf16.msra.mxu0 %v3660
    %3681 = vmatprep.subr.bf16.mxu0 %v3663
    %3682 = vmatpush1.bf16.msra.mxu0 %v3662
    %3683 = vmatprep.subr.bf16.mxu0 %v3665
    %3684 = vmatpush1.bf16.msra.mxu0 %v3664
    %3685 = vmatprep.subr.bf16.mxu0 0
    %3686 = vmatpush1.bf16.msra.mxu0 0
    %3687 = vmatprep.subr.bf16.mxu0 0
    %3688 = vmatpush1.bf16.msra.mxu0 0
    %3689 = vmatprep.subr.bf16.mxu0 0
    %3690 = vmatpush1.bf16.msra.mxu0 0
    %3691 = vmatprep.subr.bf16.mxu0 0
    %3692 = vmatpush1.bf16.msra.mxu0 0
    %3693 = vmatprep.subr.bf16.mxu0 0
    %3694 = vmatpush1.bf16.msra.mxu0 0
    %3695 = vmatprep.subr.bf16.mxu0 0
    %3696 = vmatpush1.bf16.msra.mxu0 0
    %3697 = vmatprep.subr.bf16.mxu0 0
    %3698 = vmatpush1.bf16.msra.mxu0 0
    %3699 = vmatprep.subr.bf16.mxu0 0
    %3700 = vmatpush1.bf16.msra.mxu0 0
    %3701 = vmatprep.subr.bf16.mxu0 0
    %3702 = vmatpush1.bf16.msra.mxu0 0
    %3703 = vmatprep.subr.bf16.mxu0 0
    %3704 = vmatpush1.bf16.msra.mxu0 0
    %3705 = vmatprep.subr.bf16.mxu0 0
    %3706 = vmatpush1.bf16.msra.mxu0 0
    %3707 = vmatprep.subr.bf16.mxu0 0
    %3708 = vmatpush1.bf16.msra.mxu0 0
    %3709 = vmatprep.mubr.bf16.mxu0 0
    %3710 = vmatmul.mubr.bf16.gmra.mrb[0].mxu0 %v3675
    %v3711 = vpop.f32.mrb[0].mxu0
    %v3712 = vadd.f32 %v3629, %v3711
    %v3713 = vpop.f32.mrb[0].mxu0
    %v3714 = vadd.f32 %v3633, %v3713
    %v3715 = vpop.f32.mrb[0].mxu0
    %v3716 = vpop.f32.mrb[0].mxu0
    %3717 = vdwg.mxu0
    %v3718 = vmax.f32 %v3712, 0.0
    %v3719 = vmax.f32 %v3714, 0.0
    %v3720 = vpack.c.bf16 %v3718, %v3718
    %v3721 = vpack.c.bf16 %v3719, %v3719
    %v3754 = vunpack.c.l.b16 %v2736
    %v3755 = vunpack.c.l.b16 %v2737
    %v3756 = vunpack.c.l.b16 %v2738
    %v3757 = vunpack.c.l.b16 %v2739
    %v3758 = vunpack.c.l.b16 %v2740
    %v3759 = vunpack.c.l.b16 %v2741
    %v3760 = vunpack.c.l.b16 %v2742
    %v3761 = vunpack.c.l.b16 %v2743
    %v3762 = vunpack.c.l.b16 %v2744
    %v3763 = vunpack.c.l.b16 %v2745
    %v3764 = vunpack.c.l.b16 %v2746
    %v3765 = vunpack.c.l.b16 %v2747
    %v3766 = vunpack.c.l.b16 %v2748
    %v3767 = vunpack.c.l.b16 %v2749
    %v3768 = vunpack.c.l.b16 %v2750
    %v3769 = vunpack.c.l.b16 %v2751
    %v3770 = vunpack.c.l.b16 %v2752
    %v3771 = vunpack.c.l.b16 %v2753
    %v3772 = vunpack.c.l.b16 %v2754
    %v3773 = vunpack.c.l.b16 %v2755
    %v3774 = vunpack.c.l.b16 %v2756
    %v3775 = vunpack.c.l.b16 %v2757
    %v3776 = vunpack.c.l.b16 %v2758
    %v3777 = vunpack.c.l.b16 %v2759
    %v3778 = vunpack.c.l.b16 %v2760
    %v3779 = vunpack.c.l.b16 %v2761
    %v3780 = vunpack.c.l.b16 %v2762
    %v3781 = vunpack.c.l.b16 %v2763
    %v3782 = vunpack.c.l.b16 %v2764
    %v3783 = vunpack.c.l.b16 %v2765
    %v3784 = vunpack.c.l.b16 %v2766
    %v3785 = vunpack.c.l.b16 %v2767
    %v3786 = vpack.c.b16 %v3755, %v3754
    %v3787 = vpack.c.b16 %v3757, %v3756
    %v3788 = vpack.c.b16 %v3759, %v3758
    %v3789 = vpack.c.b16 %v3761, %v3760
    %v3790 = vpack.c.b16 %v3763, %v3762
    %v3791 = vpack.c.b16 %v3765, %v3764
    %v3792 = vpack.c.b16 %v3767, %v3766
    %v3793 = vpack.c.b16 %v3769, %v3768
    %v3794 = vpack.c.b16 %v3771, %v3770
    %v3795 = vpack.c.b16 %v3773, %v3772
    %v3796 = vpack.c.b16 %v3775, %v3774
    %v3797 = vpack.c.b16 %v3777, %v3776
    %v3798 = vpack.c.b16 %v3779, %v3778
    %v3799 = vpack.c.b16 %v3781, %v3780
    %v3800 = vpack.c.b16 %v3783, %v3782
    %v3801 = vpack.c.b16 %v3785, %v3784
    %3818 = vmatprep.subr.bf16.mxu0 0
    %3819 = vmatpush1.bf16.msra.mxu0 %v3786
    %3820 = vmatprep.subr.bf16.mxu0 0
    %3821 = vmatpush1.bf16.msra.mxu0 %v3787
    %3822 = vmatprep.subr.bf16.mxu0 0
    %3823 = vmatpush1.bf16.msra.mxu0 %v3788
    %3824 = vmatprep.subr.bf16.mxu0 0
    %3825 = vmatpush1.bf16.msra.mxu0 %v3789
    %3826 = vmatprep.subr.bf16.mxu0 0
    %3827 = vmatpush1.bf16.msra.mxu0 %v3790
    %3828 = vmatprep.subr.bf16.mxu0 0
    %3829 = vmatpush1.bf16.msra.mxu0 %v3791
    %3830 = vmatprep.subr.bf16.mxu0 0
    %3831 = vmatpush1.bf16.msra.mxu0 %v3792
    %3832 = vmatprep.subr.bf16.mxu0 0
    %3833 = vmatpush1.bf16.msra.mxu0 %v3793
    %3834 = vmatprep.subr.bf16.mxu0 0
    %3835 = vmatpush1.bf16.msra.mxu0 %v3794
    %3836 = vmatprep.subr.bf16.mxu0 0
    %3837 = vmatpush1.bf16.msra.mxu0 %v3795
    %3838 = vmatprep.subr.bf16.mxu0 0
    %3839 = vmatpush1.bf16.msra.mxu0 %v3796
    %3840 = vmatprep.subr.bf16.mxu0 0
    %3841 = vmatpush1.bf16.msra.mxu0 %v3797
    %3842 = vmatprep.subr.bf16.mxu0 0
    %3843 = vmatpush1.bf16.msra.mxu0 %v3798
    %3844 = vmatprep.subr.bf16.mxu0 0
    %3845 = vmatpush1.bf16.msra.mxu0 %v3799
    %3846 = vmatprep.subr.bf16.mxu0 0
    %3847 = vmatpush1.bf16.msra.mxu0 %v3800
    %3848 = vmatprep.subr.bf16.mxu0 0
    %3849 = vmatpush1.bf16.msra.mxu0 %v3801
    %3850 = vmatprep.mubr.bf16.mxu0 %v3721
    %3851 = vmatmul.mubr.bf16.gmra.mrb[0].mxu0 %v3720
    %v3852 = vpop.f32.mrb[0].mxu0
    %v3853 = vadd.f32 %v3614, %v3852
    %v3854 = vpop.f32.mrb[0].mxu0
    %v3855 = vpop.f32.mrb[0].mxu0
    %v3856 = vpop.f32.mrb[0].mxu0
    %3857 = vdwg.mxu0
    %v3858 = vadd.f32 %v3624, %v3853
    %v3859 = vsel %vm191, %v3858, 0.0
    %3860 = vadd.xlane.f32.xlu0 %v3859
    %v3861 = vpop.xlane.xlu0 %3860
    %v3862 = vmul.f32 %v3861, %v975
    %v3863 = vmul.f32 %v3858, %v3858
    %v3864 = vsel %vm191, %v3863, 0.0
    %3865 = vadd.xlane.f32.xlu0 %v3864
    %v3866 = vpop.xlane.xlu0 %3865
    %v3867 = vmul.f32 %v3866, %v975
    %v3868 = vsub.f32 %v3858, %v3862
    %v3869 = vmul.f32 %v3862, %v3862
    %v3870 = vsub.f32 %v3867, %v3869
    %v3871 = vadd.f32 %v3870, 1e-05
    %v3872 = vrsqrt.pop %v3871
    %v3873 = vmul.f32 %v3868, %v3872
    %3875 = vrot.lane.b32.xlu0 %v3623, 64
    %v3876 = vpop.permute.xlu0 %3875
    %v3878 = vmul.f32 %v3873, %v3876
    %v3879 = vlaneseq
    %v3880 = vshrl.u32 %v3879, 7
    %v3881 = vsub.s32 3, %v3880
    %v3882 = vrot.slane %v2768, %v3881
    %v3883 = vadd.f32 %v3878, %v3882
    %v3884 = vld [vmem:[%s1261] sm:$0xff]
    %v3885 = vld [vmem:[%s1261 + $0x8] sm:$0xff]
    %v3886 = vld [vmem:[%s1261 + $0x10] sm:$0xff]
    %v3887 = vld [vmem:[%s1261 + $0x18] sm:$0xff]
    %v3888 = vld [vmem:[%s1261 + $0x20] sm:$0xff]
    %v3889 = vld [vmem:[%s1261 + $0x28] sm:$0xff]
    %v3890 = vld [vmem:[%s1261 + $0x30] sm:$0xff]
    %v3891 = vld [vmem:[%s1261 + $0x38] sm:$0xff]
    %v3892 = vld [vmem:[%s1261 + $0x40] sm:$0xff]
    %v3893 = vld [vmem:[%s1261 + $0x48] sm:$0xff]
    %v3894 = vld [vmem:[%s1261 + $0x50] sm:$0xff]
    %v3895 = vld [vmem:[%s1261 + $0x58] sm:$0xff]
    %v3896 = vld [vmem:[%s1261 + $0x60] sm:$0xff]
    %v3897 = vld [vmem:[%s1261 + $0x68] sm:$0xff]
    %v3898 = vld [vmem:[%s1261 + $0x70] sm:$0xff]
    %v3899 = vld [vmem:[%s1261 + $0x78] sm:$0xff]
    %v3900 = vld [vmem:[%s1278] sm:$0xf]
    %v3901 = vld [vmem:[%s1278 + $0x4] sm:$0xf]
    %v3902 = vld [vmem:[%s1278 + $0x8] sm:$0xf]
    %v3903 = vld [vmem:[%s1278 + $0xc] sm:$0xf]
    %v3904 = vld [vmem:[%s1278 + $0x10] sm:$0xf]
    %v3905 = vld [vmem:[%s1278 + $0x14] sm:$0xf]
    %v3906 = vld [vmem:[%s1278 + $0x18] sm:$0xf]
    %v3907 = vld [vmem:[%s1278 + $0x1c] sm:$0xf]
    %v3908 = vld [vmem:[%s1278 + $0x20] sm:$0xf]
    %v3909 = vld [vmem:[%s1278 + $0x24] sm:$0xf]
    %v3910 = vld [vmem:[%s1278 + $0x28] sm:$0xf]
    %v3911 = vld [vmem:[%s1278 + $0x2c] sm:$0xf]
    %v3912 = vld [vmem:[%s1278 + $0x30] sm:$0xf]
    %v3913 = vld [vmem:[%s1278 + $0x34] sm:$0xf]
    %v3914 = vld [vmem:[%s1278 + $0x38] sm:$0xf]
    %v3915 = vld [vmem:[%s1278 + $0x3c] sm:$0xf]
    %v3916 = vld [vmem:[%s1278 + $0x40] sm:$0xf]
    %v3917 = vld [vmem:[%s1278 + $0x44] sm:$0xf]
    %v3918 = vld [vmem:[%s1278 + $0x48] sm:$0xf]
    %v3919 = vld [vmem:[%s1278 + $0x4c] sm:$0xf]
    %v3920 = vld [vmem:[%s1278 + $0x50] sm:$0xf]
    %v3921 = vld [vmem:[%s1278 + $0x54] sm:$0xf]
    %v3922 = vld [vmem:[%s1278 + $0x58] sm:$0xf]
    %v3923 = vld [vmem:[%s1278 + $0x5c] sm:$0xf]
    %v3924 = vld [vmem:[%s1278 + $0x60] sm:$0xf]
    %v3925 = vld [vmem:[%s1278 + $0x64] sm:$0xf]
    %v3926 = vld [vmem:[%s1278 + $0x68] sm:$0xf]
    %v3927 = vld [vmem:[%s1278 + $0x6c] sm:$0xf]
    %v3928 = vld [vmem:[%s1278 + $0x70] sm:$0xf]
    %v3929 = vld [vmem:[%s1278 + $0x74] sm:$0xf]
    %v3930 = vld [vmem:[%s1278 + $0x78] sm:$0xf]
    %v3931 = vld [vmem:[%s1278 + $0x7c] sm:$0xf]
    %v3932 = vld [vmem:[%s1311] sm:$0xff]
    %v3933 = vld [vmem:[%s1311 + $0x8] sm:$0xff]
    %v3934 = vpack.c.bf16 %v3883, %v3883
    %v3935 = vlaneseq
    %v3936 = vshrl.u32 %v3935, 7
    %v3937 = vsub.s32 0, %v3936
    %v3938 = vrot.slane %v3932, %v3937
    %v3939 = vlaneseq
    %v3940 = vshrl.u32 %v3939, 7
    %v3941 = vsub.s32 0, %v3940
    %v3942 = vrot.slane %v3933, %v3941
    %v3951 = vunpack.c.l.b16 %v3884
    %v3952 = vunpack.c.h.b16 %v3884
    %v3953 = vunpack.c.l.b16 %v3886
    %v3954 = vunpack.c.h.b16 %v3886
    %v3955 = vunpack.c.l.b16 %v3888
    %v3956 = vunpack.c.h.b16 %v3888
    %v3957 = vunpack.c.l.b16 %v3890
    %v3958 = vunpack.c.h.b16 %v3890
    %v3959 = vunpack.c.l.b16 %v3892
    %v3960 = vunpack.c.h.b16 %v3892
    %v3961 = vunpack.c.l.b16 %v3894
    %v3962 = vunpack.c.h.b16 %v3894
    %v3963 = vunpack.c.l.b16 %v3896
    %v3964 = vunpack.c.h.b16 %v3896
    %v3965 = vunpack.c.l.b16 %v3898
    %v3966 = vunpack.c.h.b16 %v3898
    %v3967 = vpack.c.b16 %v3953, %v3951
    %v3968 = vpack.c.b16 %v3954, %v3952
    %v3969 = vpack.c.b16 %v3957, %v3955
    %v3970 = vpack.c.b16 %v3958, %v3956
    %v3971 = vpack.c.b16 %v3961, %v3959
    %v3972 = vpack.c.b16 %v3962, %v3960
    %v3973 = vpack.c.b16 %v3965, %v3963
    %v3974 = vpack.c.b16 %v3966, %v3964
    %v3984 = vsel %vm191, %v3934, 0
    %3986 = vmatprep.subr.bf16.mxu0 %v3968
    %3987 = vmatpush1.bf16.msra.mxu0 %v3967
    %3988 = vmatprep.subr.bf16.mxu0 %v3970
    %3989 = vmatpush1.bf16.msra.mxu0 %v3969
    %3990 = vmatprep.subr.bf16.mxu0 %v3972
    %3991 = vmatpush1.bf16.msra.mxu0 %v3971
    %3992 = vmatprep.subr.bf16.mxu0 %v3974
    %3993 = vmatpush1.bf16.msra.mxu0 %v3973
    %3994 = vmatprep.subr.bf16.mxu0 0
    %3995 = vmatpush1.bf16.msra.mxu0 0
    %3996 = vmatprep.subr.bf16.mxu0 0
    %3997 = vmatpush1.bf16.msra.mxu0 0
    %3998 = vmatprep.subr.bf16.mxu0 0
    %3999 = vmatpush1.bf16.msra.mxu0 0
    %4000 = vmatprep.subr.bf16.mxu0 0
    %4001 = vmatpush1.bf16.msra.mxu0 0
    %4002 = vmatprep.subr.bf16.mxu0 0
    %4003 = vmatpush1.bf16.msra.mxu0 0
    %4004 = vmatprep.subr.bf16.mxu0 0
    %4005 = vmatpush1.bf16.msra.mxu0 0
    %4006 = vmatprep.subr.bf16.mxu0 0
    %4007 = vmatpush1.bf16.msra.mxu0 0
    %4008 = vmatprep.subr.bf16.mxu0 0
    %4009 = vmatpush1.bf16.msra.mxu0 0
    %4010 = vmatprep.subr.bf16.mxu0 0
    %4011 = vmatpush1.bf16.msra.mxu0 0
    %4012 = vmatprep.subr.bf16.mxu0 0
    %4013 = vmatpush1.bf16.msra.mxu0 0
    %4014 = vmatprep.subr.bf16.mxu0 0
    %4015 = vmatpush1.bf16.msra.mxu0 0
    %4016 = vmatprep.subr.bf16.mxu0 0
    %4017 = vmatpush1.bf16.msra.mxu0 0
    %4018 = vmatprep.mubr.bf16.mxu0 0
    %4019 = vmatmul.mubr.bf16.gmra.mrb[0].mxu0 %v3984
    %v4020 = vpop.f32.mrb[0].mxu0
    %v4021 = vadd.f32 %v3938, %v4020
    %v4022 = vpop.f32.mrb[0].mxu0
    %v4023 = vadd.f32 %v3942, %v4022
    %v4024 = vpop.f32.mrb[0].mxu0
    %v4025 = vpop.f32.mrb[0].mxu0
    %4026 = vdwg.mxu0
    %4028 = vrot.lane.b32.xlu0 %v4021, 112
    %v4029 = vpop.permute.xlu0 %4028
    %4030 = vrot.lane.b32.xlu0 %v4021, 96
    %v4031 = vpop.permute.xlu0 %4030
    %4032 = vrot.lane.b32.xlu0 %v4021, 80
    %v4033 = vpop.permute.xlu0 %4032
    %4035 = vrot.lane.b32.xlu0 %v4023, 112
    %v4036 = vpop.permute.xlu0 %4035
    %4038 = vrot.lane.b32.xlu0 %v4023, 96
    %v4039 = vpop.permute.xlu0 %4038
    %4041 = vrot.lane.b32.xlu0 %v4023, 80
    %v4042 = vpop.permute.xlu0 %4041
    %4044 = vrot.lane.b32.xlu0 %v4021, 64
    %v4045 = vpop.permute.xlu0 %4044
    %v4046 = vsel %vm43, %v4021, 0
    %v4048 = vsel %vm43, %v4045, 0
    %4050 = vmatprep.subr.mxu0 0.0
    %4051 = vmatpush1.xpose.msra.mxu0 %v4048
    %4052 = vmatprep.subr.mxu0 0.0
    %4053 = vmatpush1.xpose.msra.mxu0 0.0
    %4054 = vmatprep.subr.mxu0 0.0
    %4055 = vmatpush1.xpose.msra.mxu0 0.0
    %4056 = vmatprep.subr.mxu0 0.0
    %4057 = vmatpush1.xpose.msra.mxu0 0.0
    %4058 = vmatprep.subr.mxu0 0.0
    %4059 = vmatpush1.xpose.msra.mxu0 0.0
    %4060 = vmatprep.subr.mxu0 0.0
    %4061 = vmatpush1.xpose.msra.mxu0 0.0
    %4062 = vmatprep.subr.mxu0 0.0
    %4063 = vmatpush1.xpose.msra.mxu0 0.0
    %4064 = vmatprep.subr.mxu0 0.0
    %4065 = vmatpush1.xpose.msra.mxu0 0.0
    %4066 = vmatprep.subr.mxu0 0.0
    %4067 = vmatpush1.xpose.msra.mxu0 0.0
    %4068 = vmatprep.subr.mxu0 0.0
    %4069 = vmatpush1.xpose.msra.mxu0 0.0
    %4070 = vmatprep.subr.mxu0 0.0
    %4071 = vmatpush1.xpose.msra.mxu0 0.0
    %4072 = vmatprep.subr.mxu0 0.0
    %4073 = vmatpush1.xpose.msra.mxu0 0.0
    %4074 = vmatprep.subr.mxu0 0.0
    %4075 = vmatpush1.xpose.msra.mxu0 0.0
    %4076 = vmatprep.subr.mxu0 0.0
    %4077 = vmatpush1.xpose.msra.mxu0 0.0
    %4078 = vmatprep.subr.mxu0 0.0
    %4079 = vmatpush1.xpose.msra.mxu0 0.0
    %4080 = vmatprep.subr.mxu0 0.0
    %4081 = vmatpush1.xpose.msra.mxu0 0.0
    %4082 = vmatprep.subr.mxu0 0.0
    %4083 = vmatpush1.xpose.msra.mxu0 0.0
    %4084 = vmatprep.subr.mxu0 0.0
    %4085 = vmatpush1.xpose.msra.mxu0 0.0
    %4086 = vmatprep.subr.mxu0 0.0
    %4087 = vmatpush1.xpose.msra.mxu0 0.0
    %4088 = vmatprep.subr.mxu0 0.0
    %4089 = vmatpush1.xpose.msra.mxu0 0.0
    %4090 = vmatprep.subr.mxu0 0.0
    %4091 = vmatpush1.xpose.msra.mxu0 0.0
    %4092 = vmatprep.subr.mxu0 0.0
    %4093 = vmatpush1.xpose.msra.mxu0 0.0
    %4094 = vmatprep.subr.mxu0 0.0
    %4095 = vmatpush1.xpose.msra.mxu0 0.0
    %4096 = vmatprep.subr.mxu0 0.0
    %4097 = vmatpush1.xpose.msra.mxu0 0.0
    %4098 = vmatprep.subr.mxu0 0.0
    %4099 = vmatpush1.xpose.msra.mxu0 0.0
    %4100 = vmatprep.subr.mxu0 0.0
    %4101 = vmatpush1.xpose.msra.mxu0 0.0
    %4102 = vmatprep.subr.mxu0 0.0
    %4103 = vmatpush1.xpose.msra.mxu0 0.0
    %4104 = vmatprep.subr.mxu0 0.0
    %4105 = vmatpush1.xpose.msra.mxu0 0.0
    %4106 = vmatprep.subr.mxu0 0.0
    %4107 = vmatpush1.xpose.msra.mxu0 0.0
    %4108 = vmatprep.subr.mxu0 0.0
    %4109 = vmatpush1.xpose.msra.mxu0 0.0
    %4110 = vmatprep.subr.mxu0 0.0
    %4111 = vmatpush1.xpose.msra.mxu0 0.0
    %4112 = vmatprep.subr.mxu0 0.0
    %4113 = vmatpush1.xpose.msra.mxu0 0.0
    %4114 = vmatprep.mubr.f32.mxu0 0.0
    %4115 = vmatmul.mubr.f32.gmra.mrb[0].mxu0 %v4046
    %v4116 = vpop.f32.mrb[0].mxu0
    %v4117 = vadd.f32 0.0, %v4116
    %v4118 = vpop.f32.mrb[0].mxu0
    %4119 = vdwg.mxu0
    %4120 = vrot.lane.b32.xlu0 %v4029, 64
    %v4121 = vpop.permute.xlu0 %4120
    %v4122 = vsel %vm43, %v4029, 0
    %v4124 = vsel %vm43, %v4121, 0
    %4126 = vmatprep.subr.mxu0 0.0
    %4127 = vmatpush1.xpose.msra.mxu0 %v4124
    %4128 = vmatprep.subr.mxu0 0.0
    %4129 = vmatpush1.xpose.msra.mxu0 0.0
    %4130 = vmatprep.subr.mxu0 0.0
    %4131 = vmatpush1.xpose.msra.mxu0 0.0
    %4132 = vmatprep.subr.mxu0 0.0
    %4133 = vmatpush1.xpose.msra.mxu0 0.0
    %4134 = vmatprep.subr.mxu0 0.0
    %4135 = vmatpush1.xpose.msra.mxu0 0.0
    %4136 = vmatprep.subr.mxu0 0.0
    %4137 = vmatpush1.xpose.msra.mxu0 0.0
    %4138 = vmatprep.subr.mxu0 0.0
    %4139 = vmatpush1.xpose.msra.mxu0 0.0
    %4140 = vmatprep.subr.mxu0 0.0
    %4141 = vmatpush1.xpose.msra.mxu0 0.0
    %4142 = vmatprep.subr.mxu0 0.0
    %4143 = vmatpush1.xpose.msra.mxu0 0.0
    %4144 = vmatprep.subr.mxu0 0.0
    %4145 = vmatpush1.xpose.msra.mxu0 0.0
    %4146 = vmatprep.subr.mxu0 0.0
    %4147 = vmatpush1.xpose.msra.mxu0 0.0
    %4148 = vmatprep.subr.mxu0 0.0
    %4149 = vmatpush1.xpose.msra.mxu0 0.0
    %4150 = vmatprep.subr.mxu0 0.0
    %4151 = vmatpush1.xpose.msra.mxu0 0.0
    %4152 = vmatprep.subr.mxu0 0.0
    %4153 = vmatpush1.xpose.msra.mxu0 0.0
    %4154 = vmatprep.subr.mxu0 0.0
    %4155 = vmatpush1.xpose.msra.mxu0 0.0
    %4156 = vmatprep.subr.mxu0 0.0
    %4157 = vmatpush1.xpose.msra.mxu0 0.0
    %4158 = vmatprep.subr.mxu0 0.0
    %4159 = vmatpush1.xpose.msra.mxu0 0.0
    %4160 = vmatprep.subr.mxu0 0.0
    %4161 = vmatpush1.xpose.msra.mxu0 0.0
    %4162 = vmatprep.subr.mxu0 0.0
    %4163 = vmatpush1.xpose.msra.mxu0 0.0
    %4164 = vmatprep.subr.mxu0 0.0
    %4165 = vmatpush1.xpose.msra.mxu0 0.0
    %4166 = vmatprep.subr.mxu0 0.0
    %4167 = vmatpush1.xpose.msra.mxu0 0.0
    %4168 = vmatprep.subr.mxu0 0.0
    %4169 = vmatpush1.xpose.msra.mxu0 0.0
    %4170 = vmatprep.subr.mxu0 0.0
    %4171 = vmatpush1.xpose.msra.mxu0 0.0
    %4172 = vmatprep.subr.mxu0 0.0
    %4173 = vmatpush1.xpose.msra.mxu0 0.0
    %4174 = vmatprep.subr.mxu0 0.0
    %4175 = vmatpush1.xpose.msra.mxu0 0.0
    %4176 = vmatprep.subr.mxu0 0.0
    %4177 = vmatpush1.xpose.msra.mxu0 0.0
    %4178 = vmatprep.subr.mxu0 0.0
    %4179 = vmatpush1.xpose.msra.mxu0 0.0
    %4180 = vmatprep.subr.mxu0 0.0
    %4181 = vmatpush1.xpose.msra.mxu0 0.0
    %4182 = vmatprep.subr.mxu0 0.0
    %4183 = vmatpush1.xpose.msra.mxu0 0.0
    %4184 = vmatprep.subr.mxu0 0.0
    %4185 = vmatpush1.xpose.msra.mxu0 0.0
    %4186 = vmatprep.subr.mxu0 0.0
    %4187 = vmatpush1.xpose.msra.mxu0 0.0
    %4188 = vmatprep.subr.mxu0 0.0
    %4189 = vmatpush1.xpose.msra.mxu0 0.0
    %4190 = vmatprep.mubr.f32.mxu0 0.0
    %4191 = vmatmul.mubr.f32.gmra.mrb[0].mxu0 %v4122
    %v4192 = vpop.f32.mrb[0].mxu0
    %v4193 = vadd.f32 0.0, %v4192
    %v4194 = vpop.f32.mrb[0].mxu0
    %4195 = vdwg.mxu0
    %4196 = vrot.lane.b32.xlu0 %v4031, 64
    %v4197 = vpop.permute.xlu0 %4196
    %v4198 = vsel %vm43, %v4031, 0
    %v4200 = vsel %vm43, %v4197, 0
    %4202 = vmatprep.subr.mxu0 0.0
    %4203 = vmatpush1.xpose.msra.mxu0 %v4200
    %4204 = vmatprep.subr.mxu0 0.0
    %4205 = vmatpush1.xpose.msra.mxu0 0.0
    %4206 = vmatprep.subr.mxu0 0.0
    %4207 = vmatpush1.xpose.msra.mxu0 0.0
    %4208 = vmatprep.subr.mxu0 0.0
    %4209 = vmatpush1.xpose.msra.mxu0 0.0
    %4210 = vmatprep.subr.mxu0 0.0
    %4211 = vmatpush1.xpose.msra.mxu0 0.0
    %4212 = vmatprep.subr.mxu0 0.0
    %4213 = vmatpush1.xpose.msra.mxu0 0.0
    %4214 = vmatprep.subr.mxu0 0.0
    %4215 = vmatpush1.xpose.msra.mxu0 0.0
    %4216 = vmatprep.subr.mxu0 0.0
    %4217 = vmatpush1.xpose.msra.mxu0 0.0
    %4218 = vmatprep.subr.mxu0 0.0
    %4219 = vmatpush1.xpose.msra.mxu0 0.0
    %4220 = vmatprep.subr.mxu0 0.0
    %4221 = vmatpush1.xpose.msra.mxu0 0.0
    %4222 = vmatprep.subr.mxu0 0.0
    %4223 = vmatpush1.xpose.msra.mxu0 0.0
    %4224 = vmatprep.subr.mxu0 0.0
    %4225 = vmatpush1.xpose.msra.mxu0 0.0
    %4226 = vmatprep.subr.mxu0 0.0
    %4227 = vmatpush1.xpose.msra.mxu0 0.0
    %4228 = vmatprep.subr.mxu0 0.0
    %4229 = vmatpush1.xpose.msra.mxu0 0.0
    %4230 = vmatprep.subr.mxu0 0.0
    %4231 = vmatpush1.xpose.msra.mxu0 0.0
    %4232 = vmatprep.subr.mxu0 0.0
    %4233 = vmatpush1.xpose.msra.mxu0 0.0
    %4234 = vmatprep.subr.mxu0 0.0
    %4235 = vmatpush1.xpose.msra.mxu0 0.0
    %4236 = vmatprep.subr.mxu0 0.0
    %4237 = vmatpush1.xpose.msra.mxu0 0.0
    %4238 = vmatprep.subr.mxu0 0.0
    %4239 = vmatpush1.xpose.msra.mxu0 0.0
    %4240 = vmatprep.subr.mxu0 0.0
    %4241 = vmatpush1.xpose.msra.mxu0 0.0
    %4242 = vmatprep.subr.mxu0 0.0
    %4243 = vmatpush1.xpose.msra.mxu0 0.0
    %4244 = vmatprep.subr.mxu0 0.0
    %4245 = vmatpush1.xpose.msra.mxu0 0.0
    %4246 = vmatprep.subr.mxu0 0.0
    %4247 = vmatpush1.xpose.msra.mxu0 0.0
    %4248 = vmatprep.subr.mxu0 0.0
    %4249 = vmatpush1.xpose.msra.mxu0 0.0
    %4250 = vmatprep.subr.mxu0 0.0
    %4251 = vmatpush1.xpose.msra.mxu0 0.0
    %4252 = vmatprep.subr.mxu0 0.0
    %4253 = vmatpush1.xpose.msra.mxu0 0.0
    %4254 = vmatprep.subr.mxu0 0.0
    %4255 = vmatpush1.xpose.msra.mxu0 0.0
    %4256 = vmatprep.subr.mxu0 0.0
    %4257 = vmatpush1.xpose.msra.mxu0 0.0
    %4258 = vmatprep.subr.mxu0 0.0
    %4259 = vmatpush1.xpose.msra.mxu0 0.0
    %4260 = vmatprep.subr.mxu0 0.0
    %4261 = vmatpush1.xpose.msra.mxu0 0.0
    %4262 = vmatprep.subr.mxu0 0.0
    %4263 = vmatpush1.xpose.msra.mxu0 0.0
    %4264 = vmatprep.subr.mxu0 0.0
    %4265 = vmatpush1.xpose.msra.mxu0 0.0
    %4266 = vmatprep.mubr.f32.mxu0 0.0
    %4267 = vmatmul.mubr.f32.gmra.mrb[0].mxu0 %v4198
    %v4268 = vpop.f32.mrb[0].mxu0
    %v4269 = vadd.f32 0.0, %v4268
    %v4270 = vpop.f32.mrb[0].mxu0
    %4271 = vdwg.mxu0
    %4272 = vrot.lane.b32.xlu0 %v4033, 64
    %v4273 = vpop.permute.xlu0 %4272
    %v4274 = vsel %vm43, %v4033, 0
    %v4276 = vsel %vm43, %v4273, 0
    %4278 = vmatprep.subr.mxu0 0.0
    %4279 = vmatpush1.xpose.msra.mxu0 %v4276
    %4280 = vmatprep.subr.mxu0 0.0
    %4281 = vmatpush1.xpose.msra.mxu0 0.0
    %4282 = vmatprep.subr.mxu0 0.0
    %4283 = vmatpush1.xpose.msra.mxu0 0.0
    %4284 = vmatprep.subr.mxu0 0.0
    %4285 = vmatpush1.xpose.msra.mxu0 0.0
    %4286 = vmatprep.subr.mxu0 0.0
    %4287 = vmatpush1.xpose.msra.mxu0 0.0
    %4288 = vmatprep.subr.mxu0 0.0
    %4289 = vmatpush1.xpose.msra.mxu0 0.0
    %4290 = vmatprep.subr.mxu0 0.0
    %4291 = vmatpush1.xpose.msra.mxu0 0.0
    %4292 = vmatprep.subr.mxu0 0.0
    %4293 = vmatpush1.xpose.msra.mxu0 0.0
    %4294 = vmatprep.subr.mxu0 0.0
    %4295 = vmatpush1.xpose.msra.mxu0 0.0
    %4296 = vmatprep.subr.mxu0 0.0
    %4297 = vmatpush1.xpose.msra.mxu0 0.0
    %4298 = vmatprep.subr.mxu0 0.0
    %4299 = vmatpush1.xpose.msra.mxu0 0.0
    %4300 = vmatprep.subr.mxu0 0.0
    %4301 = vmatpush1.xpose.msra.mxu0 0.0
    %4302 = vmatprep.subr.mxu0 0.0
    %4303 = vmatpush1.xpose.msra.mxu0 0.0
    %4304 = vmatprep.subr.mxu0 0.0
    %4305 = vmatpush1.xpose.msra.mxu0 0.0
    %4306 = vmatprep.subr.mxu0 0.0
    %4307 = vmatpush1.xpose.msra.mxu0 0.0
    %4308 = vmatprep.subr.mxu0 0.0
    %4309 = vmatpush1.xpose.msra.mxu0 0.0
    %4310 = vmatprep.subr.mxu0 0.0
    %4311 = vmatpush1.xpose.msra.mxu0 0.0
    %4312 = vmatprep.subr.mxu0 0.0
    %4313 = vmatpush1.xpose.msra.mxu0 0.0
    %4314 = vmatprep.subr.mxu0 0.0
    %4315 = vmatpush1.xpose.msra.mxu0 0.0
    %4316 = vmatprep.subr.mxu0 0.0
    %4317 = vmatpush1.xpose.msra.mxu0 0.0
    %4318 = vmatprep.subr.mxu0 0.0
    %4319 = vmatpush1.xpose.msra.mxu0 0.0
    %4320 = vmatprep.subr.mxu0 0.0
    %4321 = vmatpush1.xpose.msra.mxu0 0.0
    %4322 = vmatprep.subr.mxu0 0.0
    %4323 = vmatpush1.xpose.msra.mxu0 0.0
    %4324 = vmatprep.subr.mxu0 0.0
    %4325 = vmatpush1.xpose.msra.mxu0 0.0
    %4326 = vmatprep.subr.mxu0 0.0
    %4327 = vmatpush1.xpose.msra.mxu0 0.0
    %4328 = vmatprep.subr.mxu0 0.0
    %4329 = vmatpush1.xpose.msra.mxu0 0.0
    %4330 = vmatprep.subr.mxu0 0.0
    %4331 = vmatpush1.xpose.msra.mxu0 0.0
    %4332 = vmatprep.subr.mxu0 0.0
    %4333 = vmatpush1.xpose.msra.mxu0 0.0
    %4334 = vmatprep.subr.mxu0 0.0
    %4335 = vmatpush1.xpose.msra.mxu0 0.0
    %4336 = vmatprep.subr.mxu0 0.0
    %4337 = vmatpush1.xpose.msra.mxu0 0.0
    %4338 = vmatprep.subr.mxu0 0.0
    %4339 = vmatpush1.xpose.msra.mxu0 0.0
    %4340 = vmatprep.subr.mxu0 0.0
    %4341 = vmatpush1.xpose.msra.mxu0 0.0
    %4342 = vmatprep.mubr.f32.mxu0 0.0
    %4343 = vmatmul.mubr.f32.gmra.mrb[0].mxu0 %v4274
    %v4344 = vpop.f32.mrb[0].mxu0
    %v4345 = vadd.f32 0.0, %v4344
    %v4346 = vpop.f32.mrb[0].mxu0
    %4347 = vdwg.mxu0
    %v4348 = vsel %vm557, %v4117, -inf
    %4349 = vmax.xlane.f32.xlu0 %v4348
    %v4350 = vpop.xlane.xlu0 %4349
    %v4351 = vsel %vm557, %v4193, -inf
    %4352 = vmax.xlane.f32.xlu0 %v4351
    %v4353 = vpop.xlane.xlu0 %4352
    %v4354 = vsel %vm557, %v4269, -inf
    %4355 = vmax.xlane.f32.xlu0 %v4354
    %v4356 = vpop.xlane.xlu0 %4355
    %v4357 = vsel %vm557, %v4345, -inf
    %4358 = vmax.xlane.f32.xlu0 %v4357
    %v4359 = vpop.xlane.xlu0 %4358
    %v4360 = vsub.f32 %v4117, %v4350
    %v4361 = vsub.f32 %v4193, %v4353
    %v4362 = vsub.f32 %v4269, %v4356
    %v4363 = vsub.f32 %v4345, %v4359
    %v4364 = vmul.f32 %v4360, 1.442695
    %v4365 = vpow.pop %v4364
    %v4366 = vmul.f32 %v4361, 1.442695
    %v4367 = vpow.pop %v4366
    %v4368 = vmul.f32 %v4362, 1.442695
    %v4369 = vpow.pop %v4368
    %v4370 = vmul.f32 %v4363, 1.442695
    %v4371 = vpow.pop %v4370
    %v4372 = vsel %vm557, %v4365, 0.0
    %4373 = vadd.xlane.f32.xlu0 %v4372
    %v4374 = vpop.xlane.xlu0 %4373
    %v4375 = vsel %vm557, %v4367, 0.0
    %4376 = vadd.xlane.f32.xlu0 %v4375
    %v4377 = vpop.xlane.xlu0 %4376
    %v4378 = vsel %vm557, %v4369, 0.0
    %4379 = vadd.xlane.f32.xlu0 %v4378
    %v4380 = vpop.xlane.xlu0 %4379
    %v4381 = vsel %vm557, %v4371, 0.0
    %4382 = vadd.xlane.f32.xlu0 %v4381
    %v4383 = vpop.xlane.xlu0 %4382
    %v4384 = vrcp.pop %v4374
    %v4385 = vmul.f32 %v4365, %v4384
    %v4386 = vrcp.pop %v4377
    %v4387 = vmul.f32 %v4367, %v4386
    %v4388 = vrcp.pop %v4380
    %v4389 = vmul.f32 %v4369, %v4388
    %v4390 = vrcp.pop %v4383
    %v4391 = vmul.f32 %v4371, %v4390
    %v4393 = vsel %vm557, %v4385, 0
    %4395 = vmatprep.subr.mxu0 0.0
    %4396 = vmatpush1.msra.mxu0 %v4023
    %4397 = vmatprep.subr.mxu0 0.0
    %4398 = vmatpush1.msra.mxu0 0.0
    %4399 = vmatprep.subr.mxu0 0.0
    %4400 = vmatpush1.msra.mxu0 0.0
    %4401 = vmatprep.subr.mxu0 0.0
    %4402 = vmatpush1.msra.mxu0 0.0
    %4403 = vmatprep.subr.mxu0 0.0
    %4404 = vmatpush1.msra.mxu0 0.0
    %4405 = vmatprep.subr.mxu0 0.0
    %4406 = vmatpush1.msra.mxu0 0.0
    %4407 = vmatprep.subr.mxu0 0.0
    %4408 = vmatpush1.msra.mxu0 0.0
    %4409 = vmatprep.subr.mxu0 0.0
    %4410 = vmatpush1.msra.mxu0 0.0
    %4411 = vmatprep.subr.mxu0 0.0
    %4412 = vmatpush1.msra.mxu0 0.0
    %4413 = vmatprep.subr.mxu0 0.0
    %4414 = vmatpush1.msra.mxu0 0.0
    %4415 = vmatprep.subr.mxu0 0.0
    %4416 = vmatpush1.msra.mxu0 0.0
    %4417 = vmatprep.subr.mxu0 0.0
    %4418 = vmatpush1.msra.mxu0 0.0
    %4419 = vmatprep.subr.mxu0 0.0
    %4420 = vmatpush1.msra.mxu0 0.0
    %4421 = vmatprep.subr.mxu0 0.0
    %4422 = vmatpush1.msra.mxu0 0.0
    %4423 = vmatprep.subr.mxu0 0.0
    %4424 = vmatpush1.msra.mxu0 0.0
    %4425 = vmatprep.subr.mxu0 0.0
    %4426 = vmatpush1.msra.mxu0 0.0
    %4427 = vmatprep.subr.mxu0 0.0
    %4428 = vmatpush1.msra.mxu0 0.0
    %4429 = vmatprep.subr.mxu0 0.0
    %4430 = vmatpush1.msra.mxu0 0.0
    %4431 = vmatprep.subr.mxu0 0.0
    %4432 = vmatpush1.msra.mxu0 0.0
    %4433 = vmatprep.subr.mxu0 0.0
    %4434 = vmatpush1.msra.mxu0 0.0
    %4435 = vmatprep.subr.mxu0 0.0
    %4436 = vmatpush1.msra.mxu0 0.0
    %4437 = vmatprep.subr.mxu0 0.0
    %4438 = vmatpush1.msra.mxu0 0.0
    %4439 = vmatprep.subr.mxu0 0.0
    %4440 = vmatpush1.msra.mxu0 0.0
    %4441 = vmatprep.subr.mxu0 0.0
    %4442 = vmatpush1.msra.mxu0 0.0
    %4443 = vmatprep.subr.mxu0 0.0
    %4444 = vmatpush1.msra.mxu0 0.0
    %4445 = vmatprep.subr.mxu0 0.0
    %4446 = vmatpush1.msra.mxu0 0.0
    %4447 = vmatprep.subr.mxu0 0.0
    %4448 = vmatpush1.msra.mxu0 0.0
    %4449 = vmatprep.subr.mxu0 0.0
    %4450 = vmatpush1.msra.mxu0 0.0
    %4451 = vmatprep.subr.mxu0 0.0
    %4452 = vmatpush1.msra.mxu0 0.0
    %4453 = vmatprep.subr.mxu0 0.0
    %4454 = vmatpush1.msra.mxu0 0.0
    %4455 = vmatprep.subr.mxu0 0.0
    %4456 = vmatpush1.msra.mxu0 0.0
    %4457 = vmatprep.subr.mxu0 0.0
    %4458 = vmatpush1.msra.mxu0 0.0
    %4459 = vmatprep.mubr.f32.mxu0 0.0
    %4460 = vmatmul.mubr.f32.gmra.mrb[0].mxu0 %v4393
    %v4461 = vpop.f32.mrb[0].mxu0
    %v4462 = vadd.f32 0.0, %v4461
    %v4463 = vpop.f32.mrb[0].mxu0
    %4464 = vdwg.mxu0
    %v4466 = vsel %vm557, %v4387, 0
    %4468 = vmatprep.subr.mxu0 0.0
    %4469 = vmatpush1.msra.mxu0 %v4036
    %4470 = vmatprep.subr.mxu0 0.0
    %4471 = vmatpush1.msra.mxu0 0.0
    %4472 = vmatprep.subr.mxu0 0.0
    %4473 = vmatpush1.msra.mxu0 0.0
    %4474 = vmatprep.subr.mxu0 0.0
    %4475 = vmatpush1.msra.mxu0 0.0
    %4476 = vmatprep.subr.mxu0 0.0
    %4477 = vmatpush1.msra.mxu0 0.0
    %4478 = vmatprep.subr.mxu0 0.0
    %4479 = vmatpush1.msra.mxu0 0.0
    %4480 = vmatprep.subr.mxu0 0.0
    %4481 = vmatpush1.msra.mxu0 0.0
    %4482 = vmatprep.subr.mxu0 0.0
    %4483 = vmatpush1.msra.mxu0 0.0
    %4484 = vmatprep.subr.mxu0 0.0
    %4485 = vmatpush1.msra.mxu0 0.0
    %4486 = vmatprep.subr.mxu0 0.0
    %4487 = vmatpush1.msra.mxu0 0.0
    %4488 = vmatprep.subr.mxu0 0.0
    %4489 = vmatpush1.msra.mxu0 0.0
    %4490 = vmatprep.subr.mxu0 0.0
    %4491 = vmatpush1.msra.mxu0 0.0
    %4492 = vmatprep.subr.mxu0 0.0
    %4493 = vmatpush1.msra.mxu0 0.0
    %4494 = vmatprep.subr.mxu0 0.0
    %4495 = vmatpush1.msra.mxu0 0.0
    %4496 = vmatprep.subr.mxu0 0.0
    %4497 = vmatpush1.msra.mxu0 0.0
    %4498 = vmatprep.subr.mxu0 0.0
    %4499 = vmatpush1.msra.mxu0 0.0
    %4500 = vmatprep.subr.mxu0 0.0
    %4501 = vmatpush1.msra.mxu0 0.0
    %4502 = vmatprep.subr.mxu0 0.0
    %4503 = vmatpush1.msra.mxu0 0.0
    %4504 = vmatprep.subr.mxu0 0.0
    %4505 = vmatpush1.msra.mxu0 0.0
    %4506 = vmatprep.subr.mxu0 0.0
    %4507 = vmatpush1.msra.mxu0 0.0
    %4508 = vmatprep.subr.mxu0 0.0
    %4509 = vmatpush1.msra.mxu0 0.0
    %4510 = vmatprep.subr.mxu0 0.0
    %4511 = vmatpush1.msra.mxu0 0.0
    %4512 = vmatprep.subr.mxu0 0.0
    %4513 = vmatpush1.msra.mxu0 0.0
    %4514 = vmatprep.subr.mxu0 0.0
    %4515 = vmatpush1.msra.mxu0 0.0
    %4516 = vmatprep.subr.mxu0 0.0
    %4517 = vmatpush1.msra.mxu0 0.0
    %4518 = vmatprep.subr.mxu0 0.0
    %4519 = vmatpush1.msra.mxu0 0.0
    %4520 = vmatprep.subr.mxu0 0.0
    %4521 = vmatpush1.msra.mxu0 0.0
    %4522 = vmatprep.subr.mxu0 0.0
    %4523 = vmatpush1.msra.mxu0 0.0
    %4524 = vmatprep.subr.mxu0 0.0
    %4525 = vmatpush1.msra.mxu0 0.0
    %4526 = vmatprep.subr.mxu0 0.0
    %4527 = vmatpush1.msra.mxu0 0.0
    %4528 = vmatprep.subr.mxu0 0.0
    %4529 = vmatpush1.msra.mxu0 0.0
    %4530 = vmatprep.subr.mxu0 0.0
    %4531 = vmatpush1.msra.mxu0 0.0
    %4532 = vmatprep.mubr.f32.mxu0 0.0
    %4533 = vmatmul.mubr.f32.gmra.mrb[0].mxu0 %v4466
    %v4534 = vpop.f32.mrb[0].mxu0
    %v4535 = vadd.f32 0.0, %v4534
    %v4536 = vpop.f32.mrb[0].mxu0
    %4537 = vdwg.mxu0
    %v4539 = vsel %vm557, %v4389, 0
    %4541 = vmatprep.subr.mxu0 0.0
    %4542 = vmatpush1.msra.mxu0 %v4039
    %4543 = vmatprep.subr.mxu0 0.0
    %4544 = vmatpush1.msra.mxu0 0.0
    %4545 = vmatprep.subr.mxu0 0.0
    %4546 = vmatpush1.msra.mxu0 0.0
    %4547 = vmatprep.subr.mxu0 0.0
    %4548 = vmatpush1.msra.mxu0 0.0
    %4549 = vmatprep.subr.mxu0 0.0
    %4550 = vmatpush1.msra.mxu0 0.0
    %4551 = vmatprep.subr.mxu0 0.0
    %4552 = vmatpush1.msra.mxu0 0.0
    %4553 = vmatprep.subr.mxu0 0.0
    %4554 = vmatpush1.msra.mxu0 0.0
    %4555 = vmatprep.subr.mxu0 0.0
    %4556 = vmatpush1.msra.mxu0 0.0
    %4557 = vmatprep.subr.mxu0 0.0
    %4558 = vmatpush1.msra.mxu0 0.0
    %4559 = vmatprep.subr.mxu0 0.0
    %4560 = vmatpush1.msra.mxu0 0.0
    %4561 = vmatprep.subr.mxu0 0.0
    %4562 = vmatpush1.msra.mxu0 0.0
    %4563 = vmatprep.subr.mxu0 0.0
    %4564 = vmatpush1.msra.mxu0 0.0
    %4565 = vmatprep.subr.mxu0 0.0
    %4566 = vmatpush1.msra.mxu0 0.0
    %4567 = vmatprep.subr.mxu0 0.0
    %4568 = vmatpush1.msra.mxu0 0.0
    %4569 = vmatprep.subr.mxu0 0.0
    %4570 = vmatpush1.msra.mxu0 0.0
    %4571 = vmatprep.subr.mxu0 0.0
    %4572 = vmatpush1.msra.mxu0 0.0
    %4573 = vmatprep.subr.mxu0 0.0
    %4574 = vmatpush1.msra.mxu0 0.0
    %4575 = vmatprep.subr.mxu0 0.0
    %4576 = vmatpush1.msra.mxu0 0.0
    %4577 = vmatprep.subr.mxu0 0.0
    %4578 = vmatpush1.msra.mxu0 0.0
    %4579 = vmatprep.subr.mxu0 0.0
    %4580 = vmatpush1.msra.mxu0 0.0
    %4581 = vmatprep.subr.mxu0 0.0
    %4582 = vmatpush1.msra.mxu0 0.0
    %4583 = vmatprep.subr.mxu0 0.0
    %4584 = vmatpush1.msra.mxu0 0.0
    %4585 = vmatprep.subr.mxu0 0.0
    %4586 = vmatpush1.msra.mxu0 0.0
    %4587 = vmatprep.subr.mxu0 0.0
    %4588 = vmatpush1.msra.mxu0 0.0
    %4589 = vmatprep.subr.mxu0 0.0
    %4590 = vmatpush1.msra.mxu0 0.0
    %4591 = vmatprep.subr.mxu0 0.0
    %4592 = vmatpush1.msra.mxu0 0.0
    %4593 = vmatprep.subr.mxu0 0.0
    %4594 = vmatpush1.msra.mxu0 0.0
    %4595 = vmatprep.subr.mxu0 0.0
    %4596 = vmatpush1.msra.mxu0 0.0
    %4597 = vmatprep.subr.mxu0 0.0
    %4598 = vmatpush1.msra.mxu0 0.0
    %4599 = vmatprep.subr.mxu0 0.0
    %4600 = vmatpush1.msra.mxu0 0.0
    %4601 = vmatprep.subr.mxu0 0.0
    %4602 = vmatpush1.msra.mxu0 0.0
    %4603 = vmatprep.subr.mxu0 0.0
    %4604 = vmatpush1.msra.mxu0 0.0
    %4605 = vmatprep.mubr.f32.mxu0 0.0
    %4606 = vmatmul.mubr.f32.gmra.mrb[0].mxu0 %v4539
    %v4607 = vpop.f32.mrb[0].mxu0
    %v4608 = vadd.f32 0.0, %v4607
    %v4609 = vpop.f32.mrb[0].mxu0
    %4610 = vdwg.mxu0
    %v4612 = vsel %vm557, %v4391, 0
    %4614 = vmatprep.subr.mxu0 0.0
    %4615 = vmatpush1.msra.mxu0 %v4042
    %4616 = vmatprep.subr.mxu0 0.0
    %4617 = vmatpush1.msra.mxu0 0.0
    %4618 = vmatprep.subr.mxu0 0.0
    %4619 = vmatpush1.msra.mxu0 0.0
    %4620 = vmatprep.subr.mxu0 0.0
    %4621 = vmatpush1.msra.mxu0 0.0
    %4622 = vmatprep.subr.mxu0 0.0
    %4623 = vmatpush1.msra.mxu0 0.0
    %4624 = vmatprep.subr.mxu0 0.0
    %4625 = vmatpush1.msra.mxu0 0.0
    %4626 = vmatprep.subr.mxu0 0.0
    %4627 = vmatpush1.msra.mxu0 0.0
    %4628 = vmatprep.subr.mxu0 0.0
    %4629 = vmatpush1.msra.mxu0 0.0
    %4630 = vmatprep.subr.mxu0 0.0
    %4631 = vmatpush1.msra.mxu0 0.0
    %4632 = vmatprep.subr.mxu0 0.0
    %4633 = vmatpush1.msra.mxu0 0.0
    %4634 = vmatprep.subr.mxu0 0.0
    %4635 = vmatpush1.msra.mxu0 0.0
    %4636 = vmatprep.subr.mxu0 0.0
    %4637 = vmatpush1.msra.mxu0 0.0
    %4638 = vmatprep.subr.mxu0 0.0
    %4639 = vmatpush1.msra.mxu0 0.0
    %4640 = vmatprep.subr.mxu0 0.0
    %4641 = vmatpush1.msra.mxu0 0.0
    %4642 = vmatprep.subr.mxu0 0.0
    %4643 = vmatpush1.msra.mxu0 0.0
    %4644 = vmatprep.subr.mxu0 0.0
    %4645 = vmatpush1.msra.mxu0 0.0
    %4646 = vmatprep.subr.mxu0 0.0
    %4647 = vmatpush1.msra.mxu0 0.0
    %4648 = vmatprep.subr.mxu0 0.0
    %4649 = vmatpush1.msra.mxu0 0.0
    %4650 = vmatprep.subr.mxu0 0.0
    %4651 = vmatpush1.msra.mxu0 0.0
    %4652 = vmatprep.subr.mxu0 0.0
    %4653 = vmatpush1.msra.mxu0 0.0
    %4654 = vmatprep.subr.mxu0 0.0
    %4655 = vmatpush1.msra.mxu0 0.0
    %4656 = vmatprep.subr.mxu0 0.0
    %4657 = vmatpush1.msra.mxu0 0.0
    %4658 = vmatprep.subr.mxu0 0.0
    %4659 = vmatpush1.msra.mxu0 0.0
    %4660 = vmatprep.subr.mxu0 0.0
    %4661 = vmatpush1.msra.mxu0 0.0
    %4662 = vmatprep.subr.mxu0 0.0
    %4663 = vmatpush1.msra.mxu0 0.0
    %4664 = vmatprep.subr.mxu0 0.0
    %4665 = vmatpush1.msra.mxu0 0.0
    %4666 = vmatprep.subr.mxu0 0.0
    %4667 = vmatpush1.msra.mxu0 0.0
    %4668 = vmatprep.subr.mxu0 0.0
    %4669 = vmatpush1.msra.mxu0 0.0
    %4670 = vmatprep.subr.mxu0 0.0
    %4671 = vmatpush1.msra.mxu0 0.0
    %4672 = vmatprep.subr.mxu0 0.0
    %4673 = vmatpush1.msra.mxu0 0.0
    %4674 = vmatprep.subr.mxu0 0.0
    %4675 = vmatpush1.msra.mxu0 0.0
    %4676 = vmatprep.subr.mxu0 0.0
    %4677 = vmatpush1.msra.mxu0 0.0
    %4678 = vmatprep.mubr.f32.mxu0 0.0
    %4679 = vmatmul.mubr.f32.gmra.mrb[0].mxu0 %v4612
    %v4680 = vpop.f32.mrb[0].mxu0
    %v4681 = vadd.f32 0.0, %v4680
    %v4682 = vpop.f32.mrb[0].mxu0
    %4683 = vdwg.mxu0
    %4685 = vrot.lane.b32.xlu0 %v4535, 16
    %v4686 = vpop.permute.xlu0 %4685
    %4689 = vrot.lane.b32.xlu0 %v4608, 32
    %v4690 = vpop.permute.xlu0 %4689
    %4693 = vrot.lane.b32.xlu0 %v4681, 48
    %v4694 = vpop.permute.xlu0 %4693
    %v4696 = vsel %vm43, %v4462, %v4686
    %v4697 = vsel %vm907, %v4696, %v4690
    %v4698 = vsel %vm909, %v4697, %v4694
    %v4699 = vpack.c.bf16 %v4698, %v4698
    %4700 = vrot.lane.b32.xlu0 %v3968, 64
    %v4701 = vpop.permute.xlu0 %4700
    %4702 = vrot.lane.b32.xlu0 %v3970, 64
    %v4703 = vpop.permute.xlu0 %4702
    %4704 = vrot.lane.b32.xlu0 %v3972, 64
    %v4705 = vpop.permute.xlu0 %4704
    %4706 = vrot.lane.b32.xlu0 %v3974, 64
    %v4707 = vpop.permute.xlu0 %4706
    %4713 = vrot.lane.b32.xlu0 %v3942, 64
    %v4714 = vpop.permute.xlu0 %4713
    %v4717 = vsel %vm191, %v4699, 0
    %4719 = vmatprep.subr.bf16.mxu0 0
    %4720 = vmatpush1.bf16.msra.mxu0 %v4701
    %4721 = vmatprep.subr.bf16.mxu0 0
    %4722 = vmatpush1.bf16.msra.mxu0 %v4703
    %4723 = vmatprep.subr.bf16.mxu0 0
    %4724 = vmatpush1.bf16.msra.mxu0 %v4705
    %4725 = vmatprep.subr.bf16.mxu0 0
    %4726 = vmatpush1.bf16.msra.mxu0 %v4707
    %4727 = vmatprep.subr.bf16.mxu0 0
    %4728 = vmatpush1.bf16.msra.mxu0 0
    %4729 = vmatprep.subr.bf16.mxu0 0
    %4730 = vmatpush1.bf16.msra.mxu0 0
    %4731 = vmatprep.subr.bf16.mxu0 0
    %4732 = vmatpush1.bf16.msra.mxu0 0
    %4733 = vmatprep.subr.bf16.mxu0 0
    %4734 = vmatpush1.bf16.msra.mxu0 0
    %4735 = vmatprep.subr.bf16.mxu0 0
    %4736 = vmatpush1.bf16.msra.mxu0 0
    %4737 = vmatprep.subr.bf16.mxu0 0
    %4738 = vmatpush1.bf16.msra.mxu0 0
    %4739 = vmatprep.subr.bf16.mxu0 0
    %4740 = vmatpush1.bf16.msra.mxu0 0
    %4741 = vmatprep.subr.bf16.mxu0 0
    %4742 = vmatpush1.bf16.msra.mxu0 0
    %4743 = vmatprep.subr.bf16.mxu0 0
    %4744 = vmatpush1.bf16.msra.mxu0 0
    %4745 = vmatprep.subr.bf16.mxu0 0
    %4746 = vmatpush1.bf16.msra.mxu0 0
    %4747 = vmatprep.subr.bf16.mxu0 0
    %4748 = vmatpush1.bf16.msra.mxu0 0
    %4749 = vmatprep.subr.bf16.mxu0 0
    %4750 = vmatpush1.bf16.msra.mxu0 0
    %4751 = vmatprep.mubr.bf16.mxu0 0
    %4752 = vmatmul.mubr.bf16.gmra.mrb[0].mxu0 %v4717
    %v4753 = vpop.f32.mrb[0].mxu0
    %v4754 = vadd.f32 %v4714, %v4753
    %v4755 = vpop.f32.mrb[0].mxu0
    %v4756 = vpop.f32.mrb[0].mxu0
    %v4757 = vpop.f32.mrb[0].mxu0
    %4758 = vdwg.mxu0
    %v4759 = vadd.f32 %v3883, %v4754
    %v4760 = vsel %vm191, %v4759, 0.0
    %4761 = vadd.xlane.f32.xlu0 %v4760
    %v4762 = vpop.xlane.xlu0 %4761
    %v4763 = vmul.f32 %v4762, %v975
    %v4764 = vmul.f32 %v4759, %v4759
    %v4765 = vsel %vm191, %v4764, 0.0
    %4766 = vadd.xlane.f32.xlu0 %v4765
    %v4767 = vpop.xlane.xlu0 %4766
    %v4768 = vmul.f32 %v4767, %v975
    %v4769 = vsub.f32 %v4759, %v4763
    %v4770 = vmul.f32 %v4763, %v4763
    %v4771 = vsub.f32 %v4768, %v4770
    %v4772 = vadd.f32 %v4771, 1e-05
    %v4773 = vrsqrt.pop %v4772
    %v4774 = vmul.f32 %v4769, %v4773
    %v4775 = vlaneseq
    %v4776 = vshrl.u32 %v4775, 7
    %v4777 = vsub.s32 2, %v4776
    %v4778 = vrot.slane %v3932, %v4777
    %4780 = vrot.lane.b32.xlu0 %v4778, 64
    %v4781 = vpop.permute.xlu0 %4780
    %v4783 = vmul.f32 %v4774, %v4781
    %v4784 = vlaneseq
    %v4785 = vshrl.u32 %v4784, 7
    %v4786 = vsub.s32 2, %v4785
    %v4787 = vrot.slane %v3933, %v4786
    %v4788 = vadd.f32 %v4783, %v4787
    %v4789 = vpack.c.bf16 %v4788, %v4788
    %v4790 = vlaneseq
    %v4791 = vshrl.u32 %v4790, 7
    %v4792 = vsub.s32 1, %v4791
    %v4793 = vrot.slane %v3932, %v4792
    %v4794 = vlaneseq
    %v4795 = vshrl.u32 %v4794, 7
    %v4796 = vsub.s32 1, %v4795
    %v4797 = vrot.slane %v3933, %v4796
    %v4806 = vunpack.c.l.b16 %v3885
    %v4807 = vunpack.c.h.b16 %v3885
    %v4808 = vunpack.c.l.b16 %v3887
    %v4809 = vunpack.c.h.b16 %v3887
    %v4810 = vunpack.c.l.b16 %v3889
    %v4811 = vunpack.c.h.b16 %v3889
    %v4812 = vunpack.c.l.b16 %v3891
    %v4813 = vunpack.c.h.b16 %v3891
    %v4814 = vunpack.c.l.b16 %v3893
    %v4815 = vunpack.c.h.b16 %v3893
    %v4816 = vunpack.c.l.b16 %v3895
    %v4817 = vunpack.c.h.b16 %v3895
    %v4818 = vunpack.c.l.b16 %v3897
    %v4819 = vunpack.c.h.b16 %v3897
    %v4820 = vunpack.c.l.b16 %v3899
    %v4821 = vunpack.c.h.b16 %v3899
    %v4822 = vpack.c.b16 %v4808, %v4806
    %v4823 = vpack.c.b16 %v4809, %v4807
    %v4824 = vpack.c.b16 %v4812, %v4810
    %v4825 = vpack.c.b16 %v4813, %v4811
    %v4826 = vpack.c.b16 %v4816, %v4814
    %v4827 = vpack.c.b16 %v4817, %v4815
    %v4828 = vpack.c.b16 %v4820, %v4818
    %v4829 = vpack.c.b16 %v4821, %v4819
    %v4839 = vsel %vm191, %v4789, 0
    %4841 = vmatprep.subr.bf16.mxu0 %v4823
    %4842 = vmatpush1.bf16.msra.mxu0 %v4822
    %4843 = vmatprep.subr.bf16.mxu0 %v4825
    %4844 = vmatpush1.bf16.msra.mxu0 %v4824
    %4845 = vmatprep.subr.bf16.mxu0 %v4827
    %4846 = vmatpush1.bf16.msra.mxu0 %v4826
    %4847 = vmatprep.subr.bf16.mxu0 %v4829
    %4848 = vmatpush1.bf16.msra.mxu0 %v4828
    %4849 = vmatprep.subr.bf16.mxu0 0
    %4850 = vmatpush1.bf16.msra.mxu0 0
    %4851 = vmatprep.subr.bf16.mxu0 0
    %4852 = vmatpush1.bf16.msra.mxu0 0
    %4853 = vmatprep.subr.bf16.mxu0 0
    %4854 = vmatpush1.bf16.msra.mxu0 0
    %4855 = vmatprep.subr.bf16.mxu0 0
    %4856 = vmatpush1.bf16.msra.mxu0 0
    %4857 = vmatprep.subr.bf16.mxu0 0
    %4858 = vmatpush1.bf16.msra.mxu0 0
    %4859 = vmatprep.subr.bf16.mxu0 0
    %4860 = vmatpush1.bf16.msra.mxu0 0
    %4861 = vmatprep.subr.bf16.mxu0 0
    %4862 = vmatpush1.bf16.msra.mxu0 0
    %4863 = vmatprep.subr.bf16.mxu0 0
    %4864 = vmatpush1.bf16.msra.mxu0 0
    %4865 = vmatprep.subr.bf16.mxu0 0
    %4866 = vmatpush1.bf16.msra.mxu0 0
    %4867 = vmatprep.subr.bf16.mxu0 0
    %4868 = vmatpush1.bf16.msra.mxu0 0
    %4869 = vmatprep.subr.bf16.mxu0 0
    %4870 = vmatpush1.bf16.msra.mxu0 0
    %4871 = vmatprep.subr.bf16.mxu0 0
    %4872 = vmatpush1.bf16.msra.mxu0 0
    %4873 = vmatprep.mubr.bf16.mxu0 0
    %4874 = vmatmul.mubr.bf16.gmra.mrb[0].mxu0 %v4839
    %v4875 = vpop.f32.mrb[0].mxu0
    %v4876 = vadd.f32 %v4793, %v4875
    %v4877 = vpop.f32.mrb[0].mxu0
    %v4878 = vadd.f32 %v4797, %v4877
    %v4879 = vpop.f32.mrb[0].mxu0
    %v4880 = vpop.f32.mrb[0].mxu0
    %4881 = vdwg.mxu0
    %v4882 = vmax.f32 %v4876, 0.0
    %v4883 = vmax.f32 %v4878, 0.0
    %v4884 = vpack.c.bf16 %v4882, %v4882
    %v4885 = vpack.c.bf16 %v4883, %v4883
    %v4918 = vunpack.c.l.b16 %v3900
    %v4919 = vunpack.c.l.b16 %v3901
    %v4920 = vunpack.c.l.b16 %v3902
    %v4921 = vunpack.c.l.b16 %v3903
    %v4922 = vunpack.c.l.b16 %v3904
    %v4923 = vunpack.c.l.b16 %v3905
    %v4924 = vunpack.c.l.b16 %v3906
    %v4925 = vunpack.c.l.b16 %v3907
    %v4926 = vunpack.c.l.b16 %v3908
    %v4927 = vunpack.c.l.b16 %v3909
    %v4928 = vunpack.c.l.b16 %v3910
    %v4929 = vunpack.c.l.b16 %v3911
    %v4930 = vunpack.c.l.b16 %v3912
    %v4931 = vunpack.c.l.b16 %v3913
    %v4932 = vunpack.c.l.b16 %v3914
    %v4933 = vunpack.c.l.b16 %v3915
    %v4934 = vunpack.c.l.b16 %v3916
    %v4935 = vunpack.c.l.b16 %v3917
    %v4936 = vunpack.c.l.b16 %v3918
    %v4937 = vunpack.c.l.b16 %v3919
    %v4938 = vunpack.c.l.b16 %v3920
    %v4939 = vunpack.c.l.b16 %v3921
    %v4940 = vunpack.c.l.b16 %v3922
    %v4941 = vunpack.c.l.b16 %v3923
    %v4942 = vunpack.c.l.b16 %v3924
    %v4943 = vunpack.c.l.b16 %v3925
    %v4944 = vunpack.c.l.b16 %v3926
    %v4945 = vunpack.c.l.b16 %v3927
    %v4946 = vunpack.c.l.b16 %v3928
    %v4947 = vunpack.c.l.b16 %v3929
    %v4948 = vunpack.c.l.b16 %v3930
    %v4949 = vunpack.c.l.b16 %v3931
    %v4950 = vpack.c.b16 %v4919, %v4918
    %v4951 = vpack.c.b16 %v4921, %v4920
    %v4952 = vpack.c.b16 %v4923, %v4922
    %v4953 = vpack.c.b16 %v4925, %v4924
    %v4954 = vpack.c.b16 %v4927, %v4926
    %v4955 = vpack.c.b16 %v4929, %v4928
    %v4956 = vpack.c.b16 %v4931, %v4930
    %v4957 = vpack.c.b16 %v4933, %v4932
    %v4958 = vpack.c.b16 %v4935, %v4934
    %v4959 = vpack.c.b16 %v4937, %v4936
    %v4960 = vpack.c.b16 %v4939, %v4938
    %v4961 = vpack.c.b16 %v4941, %v4940
    %v4962 = vpack.c.b16 %v4943, %v4942
    %v4963 = vpack.c.b16 %v4945, %v4944
    %v4964 = vpack.c.b16 %v4947, %v4946
    %v4965 = vpack.c.b16 %v4949, %v4948
    %4982 = vmatprep.subr.bf16.mxu0 0
    %4983 = vmatpush1.bf16.msra.mxu0 %v4950
    %4984 = vmatprep.subr.bf16.mxu0 0
    %4985 = vmatpush1.bf16.msra.mxu0 %v4951
    %4986 = vmatprep.subr.bf16.mxu0 0
    %4987 = vmatpush1.bf16.msra.mxu0 %v4952
    %4988 = vmatprep.subr.bf16.mxu0 0
    %4989 = vmatpush1.bf16.msra.mxu0 %v4953
    %4990 = vmatprep.subr.bf16.mxu0 0
    %4991 = vmatpush1.bf16.msra.mxu0 %v4954
    %4992 = vmatprep.subr.bf16.mxu0 0
    %4993 = vmatpush1.bf16.msra.mxu0 %v4955
    %4994 = vmatprep.subr.bf16.mxu0 0
    %4995 = vmatpush1.bf16.msra.mxu0 %v4956
    %4996 = vmatprep.subr.bf16.mxu0 0
    %4997 = vmatpush1.bf16.msra.mxu0 %v4957
    %4998 = vmatprep.subr.bf16.mxu0 0
    %4999 = vmatpush1.bf16.msra.mxu0 %v4958
    %5000 = vmatprep.subr.bf16.mxu0 0
    %5001 = vmatpush1.bf16.msra.mxu0 %v4959
    %5002 = vmatprep.subr.bf16.mxu0 0
    %5003 = vmatpush1.bf16.msra.mxu0 %v4960
    %5004 = vmatprep.subr.bf16.mxu0 0
    %5005 = vmatpush1.bf16.msra.mxu0 %v4961
    %5006 = vmatprep.subr.bf16.mxu0 0
    %5007 = vmatpush1.bf16.msra.mxu0 %v4962
    %5008 = vmatprep.subr.bf16.mxu0 0
    %5009 = vmatpush1.bf16.msra.mxu0 %v4963
    %5010 = vmatprep.subr.bf16.mxu0 0
    %5011 = vmatpush1.bf16.msra.mxu0 %v4964
    %5012 = vmatprep.subr.bf16.mxu0 0
    %5013 = vmatpush1.bf16.msra.mxu0 %v4965
    %5014 = vmatprep.mubr.bf16.mxu0 %v4885
    %5015 = vmatmul.mubr.bf16.gmra.mrb[0].mxu0 %v4884
    %v5016 = vpop.f32.mrb[0].mxu0
    %v5017 = vadd.f32 %v4778, %v5016
    %v5018 = vpop.f32.mrb[0].mxu0
    %v5019 = vpop.f32.mrb[0].mxu0
    %v5020 = vpop.f32.mrb[0].mxu0
    %5021 = vdwg.mxu0
    %v5022 = vadd.f32 %v4788, %v5017
    %v5023 = vsel %vm191, %v5022, 0.0
    %5024 = vadd.xlane.f32.xlu0 %v5023
    %v5025 = vpop.xlane.xlu0 %5024
    %v5026 = vmul.f32 %v5025, %v975
    %v5027 = vmul.f32 %v5022, %v5022
    %v5028 = vsel %vm191, %v5027, 0.0
    %5029 = vadd.xlane.f32.xlu0 %v5028
    %v5030 = vpop.xlane.xlu0 %5029
    %v5031 = vmul.f32 %v5030, %v975
    %v5032 = vsub.f32 %v5022, %v5026
    %v5033 = vmul.f32 %v5026, %v5026
    %v5034 = vsub.f32 %v5031, %v5033
    %v5035 = vadd.f32 %v5034, 1e-05
    %v5036 = vrsqrt.pop %v5035
    %v5037 = vmul.f32 %v5032, %v5036
    %5039 = vrot.lane.b32.xlu0 %v4787, 64
    %v5040 = vpop.permute.xlu0 %5039
    %v5042 = vmul.f32 %v5037, %v5040
    %v5043 = vlaneseq
    %v5044 = vshrl.u32 %v5043, 7
    %v5045 = vsub.s32 3, %v5044
    %v5046 = vrot.slane %v3932, %v5045
    %v5047 = vadd.f32 %v5042, %v5046
    %v5048 = vadd.f32 %v5047, %v2718
    %v5049 = vld [vmem:[%s1 + $0x78] sm:$0xf]
    %v5050 = vld [vmem:[%s1 + $0x7c] sm:$0xf]
    %v5051 = vld [vmem:[%s1 + $0x80] sm:$0xf]
    %v5052 = vld [vmem:[%s1 + $0x84] sm:$0xf]
    %v5053 = vld [vmem:[%s1 + $0x88] sm:$0xf]
    %v5054 = vld [vmem:[%s1 + $0x8c] sm:$0xf]
    %v5055 = vld [vmem:[%s1 + $0x90] sm:$0xf]
    %v5056 = vld [vmem:[%s1 + $0x94] sm:$0xf]
    %v5057 = vpack.c.bf16 %v5048, %v5048
    %v5066 = vunpack.c.l.b16 %v5049
    %v5067 = vunpack.c.l.b16 %v5050
    %v5068 = vunpack.c.l.b16 %v5051
    %v5069 = vunpack.c.l.b16 %v5052
    %v5070 = vunpack.c.l.b16 %v5053
    %v5071 = vunpack.c.l.b16 %v5054
    %v5072 = vunpack.c.l.b16 %v5055
    %v5073 = vunpack.c.l.b16 %v5056
    %v5074 = vpack.c.b16 %v5067, %v5066
    %v5075 = vpack.c.b16 %v5069, %v5068
    %v5076 = vpack.c.b16 %v5071, %v5070
    %v5077 = vpack.c.b16 %v5073, %v5072
    %v5083 = vsel %vm191, %v5057, 0
    %5085 = vmatprep.subr.bf16.mxu0 0
    %5086 = vmatpush1.bf16.msra.mxu0 %v5074
    %5087 = vmatprep.subr.bf16.mxu0 0
    %5088 = vmatpush1.bf16.msra.mxu0 %v5075
    %5089 = vmatprep.subr.bf16.mxu0 0
    %5090 = vmatpush1.bf16.msra.mxu0 %v5076
    %5091 = vmatprep.subr.bf16.mxu0 0
    %5092 = vmatpush1.bf16.msra.mxu0 %v5077
    %5093 = vmatprep.subr.bf16.mxu0 0
    %5094 = vmatpush1.bf16.msra.mxu0 0
    %5095 = vmatprep.subr.bf16.mxu0 0
    %5096 = vmatpush1.bf16.msra.mxu0 0
    %5097 = vmatprep.subr.bf16.mxu0 0
    %5098 = vmatpush1.bf16.msra.mxu0 0
    %5099 = vmatprep.subr.bf16.mxu0 0
    %5100 = vmatpush1.bf16.msra.mxu0 0
    %5101 = vmatprep.subr.bf16.mxu0 0
    %5102 = vmatpush1.bf16.msra.mxu0 0
    %5103 = vmatprep.subr.bf16.mxu0 0
    %5104 = vmatpush1.bf16.msra.mxu0 0
    %5105 = vmatprep.subr.bf16.mxu0 0
    %5106 = vmatpush1.bf16.msra.mxu0 0
    %5107 = vmatprep.subr.bf16.mxu0 0
    %5108 = vmatpush1.bf16.msra.mxu0 0
    %5109 = vmatprep.subr.bf16.mxu0 0
    %5110 = vmatpush1.bf16.msra.mxu0 0
    %5111 = vmatprep.subr.bf16.mxu0 0
    %5112 = vmatpush1.bf16.msra.mxu0 0
    %5113 = vmatprep.subr.bf16.mxu0 0
    %5114 = vmatpush1.bf16.msra.mxu0 0
    %5115 = vmatprep.subr.bf16.mxu0 0
    %5116 = vmatpush1.bf16.msra.mxu0 0
    %5117 = vmatprep.mubr.bf16.mxu0 0
    %5118 = vmatmul.mubr.bf16.gmra.mrb[0].mxu0 %v5083
    %v5119 = vpop.f32.mrb[0].mxu0
    %v5120 = vadd.f32 %v2441, %v5119
    %v5121 = vpop.f32.mrb[0].mxu0
    %v5122 = vpop.f32.mrb[0].mxu0
    %v5123 = vpop.f32.mrb[0].mxu0
    %5124 = vdwg.mxu0
    %v5125 = vmax.f32 %v5120, 0.0
    %v5126 = vld [vmem:[%s1 + $0x98] sm:$0xf]
    %v5127 = vld [vmem:[%s1 + $0x9c] sm:$0xf]
    %v5128 = vld [vmem:[%s1 + $0xa0] sm:$0xf]
    %v5129 = vld [vmem:[%s1 + $0xa4] sm:$0xf]
    %v5130 = vld [vmem:[%s1 + $0xa8] sm:$0xf]
    %v5131 = vld [vmem:[%s1 + $0xac] sm:$0xf]
    %v5132 = vld [vmem:[%s1 + $0xb0] sm:$0xf]
    %v5133 = vld [vmem:[%s1 + $0xb4] sm:$0xf]
    %v5134 = vpack.c.bf16 %v5125, %v5125
    %v5143 = vunpack.c.l.b16 %v5126
    %v5144 = vunpack.c.l.b16 %v5127
    %v5145 = vunpack.c.l.b16 %v5128
    %v5146 = vunpack.c.l.b16 %v5129
    %v5147 = vunpack.c.l.b16 %v5130
    %v5148 = vunpack.c.l.b16 %v5131
    %v5149 = vunpack.c.l.b16 %v5132
    %v5150 = vunpack.c.l.b16 %v5133
    %v5151 = vpack.c.b16 %v5144, %v5143
    %v5152 = vpack.c.b16 %v5146, %v5145
    %v5153 = vpack.c.b16 %v5148, %v5147
    %v5154 = vpack.c.b16 %v5150, %v5149
    %v5160 = vsel %vm191, %v5134, 0
    %5162 = vmatprep.subr.bf16.mxu0 0
    %5163 = vmatpush1.bf16.msra.mxu0 %v5151
    %5164 = vmatprep.subr.bf16.mxu0 0
    %5165 = vmatpush1.bf16.msra.mxu0 %v5152
    %5166 = vmatprep.subr.bf16.mxu0 0
    %5167 = vmatpush1.bf16.msra.mxu0 %v5153
    %5168 = vmatprep.subr.bf16.mxu0 0
    %5169 = vmatpush1.bf16.msra.mxu0 %v5154
    %5170 = vmatprep.subr.bf16.mxu0 0
    %5171 = vmatpush1.bf16.msra.mxu0 0
    %5172 = vmatprep.subr.bf16.mxu0 0
    %5173 = vmatpush1.bf16.msra.mxu0 0
    %5174 = vmatprep.subr.bf16.mxu0 0
    %5175 = vmatpush1.bf16.msra.mxu0 0
    %5176 = vmatprep.subr.bf16.mxu0 0
    %5177 = vmatpush1.bf16.msra.mxu0 0
    %5178 = vmatprep.subr.bf16.mxu0 0
    %5179 = vmatpush1.bf16.msra.mxu0 0
    %5180 = vmatprep.subr.bf16.mxu0 0
    %5181 = vmatpush1.bf16.msra.mxu0 0
    %5182 = vmatprep.subr.bf16.mxu0 0
    %5183 = vmatpush1.bf16.msra.mxu0 0
    %5184 = vmatprep.subr.bf16.mxu0 0
    %5185 = vmatpush1.bf16.msra.mxu0 0
    %5186 = vmatprep.subr.bf16.mxu0 0
    %5187 = vmatpush1.bf16.msra.mxu0 0
    %5188 = vmatprep.subr.bf16.mxu0 0
    %5189 = vmatpush1.bf16.msra.mxu0 0
    %5190 = vmatprep.subr.bf16.mxu0 0
    %5191 = vmatpush1.bf16.msra.mxu0 0
    %5192 = vmatprep.subr.bf16.mxu0 0
    %5193 = vmatpush1.bf16.msra.mxu0 0
    %5194 = vmatprep.mubr.bf16.mxu0 0
    %5195 = vmatmul.mubr.bf16.gmra.mrb[0].mxu0 %v5160
    %v5196 = vpop.f32.mrb[0].mxu0
    %v5197 = vadd.f32 %v2522, %v5196
    %v5198 = vpop.f32.mrb[0].mxu0
    %v5199 = vpop.f32.mrb[0].mxu0
    %v5200 = vpop.f32.mrb[0].mxu0
    %5201 = vdwg.mxu0
    %v5202 = vld [vmem:[%s1 + $0x30] sm:$0xf]
    %v5203 = vld [vmem:[%s1 + $0x34] sm:$0xf]
    %v5204 = vld [vmem:[%s1 + $0x38] sm:$0xf]
    %v5205 = vld [vmem:[%s1 + $0x3c] sm:$0xf]
    %v5206 = vld [vmem:[%s1 + $0x40] sm:$0xf]
    %v5207 = vld [vmem:[%s1 + $0x44] sm:$0xf]
    %v5208 = vld [vmem:[%s1 + $0x48] sm:$0xf]
    %v5209 = vld [vmem:[%s1 + $0x4c] sm:$0xf]
    %v5210 = vld [vmem:[%s1 + $0x50] sm:$0xf]
    %v5211 = vld [vmem:[%s1 + $0x54] sm:$0xf]
    %v5220 = vunpack.c.l.b16 %v5204
    %v5221 = vunpack.c.l.b16 %v5205
    %v5222 = vunpack.c.l.b16 %v5206
    %v5223 = vunpack.c.l.b16 %v5207
    %v5224 = vunpack.c.l.b16 %v5208
    %v5225 = vunpack.c.l.b16 %v5209
    %v5226 = vunpack.c.l.b16 %v5210
    %v5227 = vunpack.c.l.b16 %v5211
    %v5228 = vpack.c.b16 %v5221, %v5220
    %v5229 = vpack.c.b16 %v5223, %v5222
    %v5230 = vpack.c.b16 %v5225, %v5224
    %v5231 = vpack.c.b16 %v5227, %v5226
    %5236 = vmatprep.subr.bf16.mxu0 0
    %5237 = vmatpush1.bf16.msra.mxu0 %v5228
    %5238 = vmatprep.subr.bf16.mxu0 0
    %5239 = vmatpush1.bf16.msra.mxu0 %v5229
    %5240 = vmatprep.subr.bf16.mxu0 0
    %5241 = vmatpush1.bf16.msra.mxu0 %v5230
    %5242 = vmatprep.subr.bf16.mxu0 0
    %5243 = vmatpush1.bf16.msra.mxu0 %v5231
    %5244 = vmatprep.subr.bf16.mxu0 0
    %5245 = vmatpush1.bf16.msra.mxu0 0
    %5246 = vmatprep.subr.bf16.mxu0 0
    %5247 = vmatpush1.bf16.msra.mxu0 0
    %5248 = vmatprep.subr.bf16.mxu0 0
    %5249 = vmatpush1.bf16.msra.mxu0 0
    %5250 = vmatprep.subr.bf16.mxu0 0
    %5251 = vmatpush1.bf16.msra.mxu0 0
    %5252 = vmatprep.subr.bf16.mxu0 0
    %5253 = vmatpush1.bf16.msra.mxu0 0
    %5254 = vmatprep.subr.bf16.mxu0 0
    %5255 = vmatpush1.bf16.msra.mxu0 0
    %5256 = vmatprep.subr.bf16.mxu0 0
    %5257 = vmatpush1.bf16.msra.mxu0 0
    %5258 = vmatprep.subr.bf16.mxu0 0
    %5259 = vmatpush1.bf16.msra.mxu0 0
    %5260 = vmatprep.subr.bf16.mxu0 0
    %5261 = vmatpush1.bf16.msra.mxu0 0
    %5262 = vmatprep.subr.bf16.mxu0 0
    %5263 = vmatpush1.bf16.msra.mxu0 0
    %5264 = vmatprep.subr.bf16.mxu0 0
    %5265 = vmatpush1.bf16.msra.mxu0 0
    %5266 = vmatprep.subr.bf16.mxu0 0
    %5267 = vmatpush1.bf16.msra.mxu0 0
    %5268 = vmatprep.mubr.bf16.mxu0 0
    %5269 = vmatmul.mubr.bf16.gmra.mrb[0].mxu0 %v2626
    %v5270 = vpop.f32.mrb[0].mxu0
    %v5271 = vadd.f32 0.0, %v5270
    %v5272 = vpop.f32.mrb[0].mxu0
    %v5273 = vpop.f32.mrb[0].mxu0
    %v5274 = vpop.f32.mrb[0].mxu0
    %5275 = vdwg.mxu0
    %v5278 = vunpack.c.l.b16 %v5202
    %v5279 = vunpack.c.l.b16 %v5203
    %v5280 = vpack.c.b16 %v5279, %v5278
    %5282 = vmatprep.subr.bf16.mxu0 0
    %5283 = vmatpush1.bf16.msra.mxu0 %v5280
    %5284 = vmatprep.subr.bf16.mxu0 0
    %5285 = vmatpush1.bf16.msra.mxu0 0
    %5286 = vmatprep.subr.bf16.mxu0 0
    %5287 = vmatpush1.bf16.msra.mxu0 0
    %5288 = vmatprep.subr.bf16.mxu0 0
    %5289 = vmatpush1.bf16.msra.mxu0 0
    %5290 = vmatprep.subr.bf16.mxu0 0
    %5291 = vmatpush1.bf16.msra.mxu0 0
    %5292 = vmatprep.subr.bf16.mxu0 0
    %5293 = vmatpush1.bf16.msra.mxu0 0
    %5294 = vmatprep.subr.bf16.mxu0 0
    %5295 = vmatpush1.bf16.msra.mxu0 0
    %5296 = vmatprep.subr.bf16.mxu0 0
    %5297 = vmatpush1.bf16.msra.mxu0 0
    %5298 = vmatprep.subr.bf16.mxu0 0
    %5299 = vmatpush1.bf16.msra.mxu0 0
    %5300 = vmatprep.subr.bf16.mxu0 0
    %5301 = vmatpush1.bf16.msra.mxu0 0
    %5302 = vmatprep.subr.bf16.mxu0 0
    %5303 = vmatpush1.bf16.msra.mxu0 0
    %5304 = vmatprep.subr.bf16.mxu0 0
    %5305 = vmatpush1.bf16.msra.mxu0 0
    %5306 = vmatprep.subr.bf16.mxu0 0
    %5307 = vmatpush1.bf16.msra.mxu0 0
    %5308 = vmatprep.subr.bf16.mxu0 0
    %5309 = vmatpush1.bf16.msra.mxu0 0
    %5310 = vmatprep.subr.bf16.mxu0 0
    %5311 = vmatpush1.bf16.msra.mxu0 0
    %5312 = vmatprep.subr.bf16.mxu0 0
    %5313 = vmatpush1.bf16.msra.mxu0 0
    %5314 = vmatprep.mubr.bf16.mxu0 0
    %5315 = vmatmul.mubr.bf16.gmra.mrb[0].mxu0 %v45
    %v5316 = vpop.f32.mrb[0].mxu0
    %v5317 = vadd.f32 %v5271, %v5316
    %v5318 = vpop.f32.mrb[0].mxu0
    %v5319 = vpop.f32.mrb[0].mxu0
    %v5320 = vpop.f32.mrb[0].mxu0
    %5321 = vdwg.mxu0
    %v5322 = vld [vmem:[%s1 + $0x58] sm:$0xf]
    %v5323 = vld [vmem:[%s1 + $0x5c] sm:$0xf]
    %v5324 = vld [vmem:[%s1 + $0x60] sm:$0xf]
    %v5325 = vld [vmem:[%s1 + $0x64] sm:$0xf]
    %v5326 = vld [vmem:[%s1 + $0x68] sm:$0xf]
    %v5327 = vld [vmem:[%s1 + $0x6c] sm:$0xf]
    %v5328 = vld [vmem:[%s1 + $0x70] sm:$0xf]
    %v5329 = vld [vmem:[%s1 + $0x74] sm:$0xf]
    %v5330 = vpack.c.bf16 %v5197, %v5197
    %v5339 = vunpack.c.l.b16 %v5322
    %v5340 = vunpack.c.l.b16 %v5323
    %v5341 = vunpack.c.l.b16 %v5324
    %v5342 = vunpack.c.l.b16 %v5325
    %v5343 = vunpack.c.l.b16 %v5326
    %v5344 = vunpack.c.l.b16 %v5327
    %v5345 = vunpack.c.l.b16 %v5328
    %v5346 = vunpack.c.l.b16 %v5329
    %v5347 = vpack.c.b16 %v5340, %v5339
    %v5348 = vpack.c.b16 %v5342, %v5341
    %v5349 = vpack.c.b16 %v5344, %v5343
    %v5350 = vpack.c.b16 %v5346, %v5345
    %v5356 = vsel %vm191, %v5330, 0
    %5358 = vmatprep.subr.bf16.mxu0 0
    %5359 = vmatpush1.bf16.msra.mxu0 %v5347
    %5360 = vmatprep.subr.bf16.mxu0 0
    %5361 = vmatpush1.bf16.msra.mxu0 %v5348
    %5362 = vmatprep.subr.bf16.mxu0 0
    %5363 = vmatpush1.bf16.msra.mxu0 %v5349
    %5364 = vmatprep.subr.bf16.mxu0 0
    %5365 = vmatpush1.bf16.msra.mxu0 %v5350
    %5366 = vmatprep.subr.bf16.mxu0 0
    %5367 = vmatpush1.bf16.msra.mxu0 0
    %5368 = vmatprep.subr.bf16.mxu0 0
    %5369 = vmatpush1.bf16.msra.mxu0 0
    %5370 = vmatprep.subr.bf16.mxu0 0
    %5371 = vmatpush1.bf16.msra.mxu0 0
    %5372 = vmatprep.subr.bf16.mxu0 0
    %5373 = vmatpush1.bf16.msra.mxu0 0
    %5374 = vmatprep.subr.bf16.mxu0 0
    %5375 = vmatpush1.bf16.msra.mxu0 0
    %5376 = vmatprep.subr.bf16.mxu0 0
    %5377 = vmatpush1.bf16.msra.mxu0 0
    %5378 = vmatprep.subr.bf16.mxu0 0
    %5379 = vmatpush1.bf16.msra.mxu0 0
    %5380 = vmatprep.subr.bf16.mxu0 0
    %5381 = vmatpush1.bf16.msra.mxu0 0
    %5382 = vmatprep.subr.bf16.mxu0 0
    %5383 = vmatpush1.bf16.msra.mxu0 0
    %5384 = vmatprep.subr.bf16.mxu0 0
    %5385 = vmatpush1.bf16.msra.mxu0 0
    %5386 = vmatprep.subr.bf16.mxu0 0
    %5387 = vmatpush1.bf16.msra.mxu0 0
    %5388 = vmatprep.subr.bf16.mxu0 0
    %5389 = vmatpush1.bf16.msra.mxu0 0
    %5390 = vmatprep.mubr.bf16.mxu0 0
    %5391 = vmatmul.mubr.bf16.gmra.mrb[0].mxu0 %v5356
    %v5392 = vpop.f32.mrb[0].mxu0
    %v5393 = vadd.f32 0.0, %v5392
    %v5394 = vpop.f32.mrb[0].mxu0
    %v5395 = vpop.f32.mrb[0].mxu0
    %v5396 = vpop.f32.mrb[0].mxu0
    %5397 = vdwg.mxu0
    %v5398 = vadd.f32 %v5317, %v5393
    %v5399 = vlaneseq
    %v5400 = vshrl.u32 %v5399, 7
    %v5401 = vsub.s32 3, %v5400
    %v5402 = vrot.slane %v28, %v5401
    %v5403 = vadd.f32 %v5398, %v5402
    %v5404 = vadd.f32 %v5403, %v90
    %v5405 = vld [vmem:[%s4] sm:$0xff]
    %v5406 = vld [vmem:[%s4 + $0x8] sm:$0xff]
    %v5407 = vld [vmem:[%s4 + $0x10] sm:$0xff]
    %v5408 = vld [vmem:[%s4 + $0x18] sm:$0xff]
    %v5409 = vld [vmem:[%s4 + $0x20] sm:$0xff]
    %v5410 = vld [vmem:[%s4 + $0x28] sm:$0xff]
    %v5411 = vld [vmem:[%s4 + $0x30] sm:$0xff]
    %v5412 = vld [vmem:[%s4 + $0x38] sm:$0xff]
    %v5413 = vld [vmem:[%s4 + $0x40] sm:$0xff]
    %v5414 = vld [vmem:[%s4 + $0x48] sm:$0xff]
    %v5415 = vld [vmem:[%s4 + $0x50] sm:$0xff]
    %v5416 = vld [vmem:[%s4 + $0x58] sm:$0xff]
    %v5417 = vld [vmem:[%s4 + $0x60] sm:$0xff]
    %v5418 = vld [vmem:[%s4 + $0x68] sm:$0xff]
    %v5419 = vld [vmem:[%s4 + $0x70] sm:$0xff]
    %v5420 = vld [vmem:[%s4 + $0x78] sm:$0xff]
    %v5421 = vld [vmem:[%s5] sm:$0xf]
    %v5422 = vld [vmem:[%s5 + $0x4] sm:$0xf]
    %v5423 = vld [vmem:[%s5 + $0x8] sm:$0xf]
    %v5424 = vld [vmem:[%s5 + $0xc] sm:$0xf]
    %v5425 = vld [vmem:[%s5 + $0x10] sm:$0xf]
    %v5426 = vld [vmem:[%s5 + $0x14] sm:$0xf]
    %v5427 = vld [vmem:[%s5 + $0x18] sm:$0xf]
    %v5428 = vld [vmem:[%s5 + $0x1c] sm:$0xf]
    %v5429 = vld [vmem:[%s5 + $0x20] sm:$0xf]
    %v5430 = vld [vmem:[%s5 + $0x24] sm:$0xf]
    %v5431 = vld [vmem:[%s5 + $0x28] sm:$0xf]
    %v5432 = vld [vmem:[%s5 + $0x2c] sm:$0xf]
    %v5433 = vld [vmem:[%s5 + $0x30] sm:$0xf]
    %v5434 = vld [vmem:[%s5 + $0x34] sm:$0xf]
    %v5435 = vld [vmem:[%s5 + $0x38] sm:$0xf]
    %v5436 = vld [vmem:[%s5 + $0x3c] sm:$0xf]
    %v5437 = vld [vmem:[%s5 + $0x40] sm:$0xf]
    %v5438 = vld [vmem:[%s5 + $0x44] sm:$0xf]
    %v5439 = vld [vmem:[%s5 + $0x48] sm:$0xf]
    %v5440 = vld [vmem:[%s5 + $0x4c] sm:$0xf]
    %v5441 = vld [vmem:[%s5 + $0x50] sm:$0xf]
    %v5442 = vld [vmem:[%s5 + $0x54] sm:$0xf]
    %v5443 = vld [vmem:[%s5 + $0x58] sm:$0xf]
    %v5444 = vld [vmem:[%s5 + $0x5c] sm:$0xf]
    %v5445 = vld [vmem:[%s5 + $0x60] sm:$0xf]
    %v5446 = vld [vmem:[%s5 + $0x64] sm:$0xf]
    %v5447 = vld [vmem:[%s5 + $0x68] sm:$0xf]
    %v5448 = vld [vmem:[%s5 + $0x6c] sm:$0xf]
    %v5449 = vld [vmem:[%s5 + $0x70] sm:$0xf]
    %v5450 = vld [vmem:[%s5 + $0x74] sm:$0xf]
    %v5451 = vld [vmem:[%s5 + $0x78] sm:$0xf]
    %v5452 = vld [vmem:[%s5 + $0x7c] sm:$0xf]
    %v5453 = vld [vmem:[%s6] sm:$0xff]
    %v5454 = vld [vmem:[%s6 + $0x8] sm:$0xff]
    %v5455 = vpack.c.bf16 %v5404, %v5404
    %v5456 = vlaneseq
    %v5457 = vshrl.u32 %v5456, 7
    %v5458 = vsub.s32 0, %v5457
    %v5459 = vrot.slane %v5453, %v5458
    %v5460 = vlaneseq
    %v5461 = vshrl.u32 %v5460, 7
    %v5462 = vsub.s32 0, %v5461
    %v5463 = vrot.slane %v5454, %v5462
    %v5472 = vunpack.c.l.b16 %v5405
    %v5473 = vunpack.c.h.b16 %v5405
    %v5474 = vunpack.c.l.b16 %v5407
    %v5475 = vunpack.c.h.b16 %v5407
    %v5476 = vunpack.c.l.b16 %v5409
    %v5477 = vunpack.c.h.b16 %v5409
    %v5478 = vunpack.c.l.b16 %v5411
    %v5479 = vunpack.c.h.b16 %v5411
    %v5480 = vunpack.c.l.b16 %v5413
    %v5481 = vunpack.c.h.b16 %v5413
    %v5482 = vunpack.c.l.b16 %v5415
    %v5483 = vunpack.c.h.b16 %v5415
    %v5484 = vunpack.c.l.b16 %v5417
    %v5485 = vunpack.c.h.b16 %v5417
    %v5486 = vunpack.c.l.b16 %v5419
    %v5487 = vunpack.c.h.b16 %v5419
    %v5488 = vpack.c.b16 %v5474, %v5472
    %v5489 = vpack.c.b16 %v5475, %v5473
    %v5490 = vpack.c.b16 %v5478, %v5476
    %v5491 = vpack.c.b16 %v5479, %v5477
    %v5492 = vpack.c.b16 %v5482, %v5480
    %v5493 = vpack.c.b16 %v5483, %v5481
    %v5494 = vpack.c.b16 %v5486, %v5484
    %v5495 = vpack.c.b16 %v5487, %v5485
    %v5505 = vsel %vm191, %v5455, 0
    %5507 = vmatprep.subr.bf16.mxu0 %v5489
    %5508 = vmatpush1.bf16.msra.mxu0 %v5488
    %5509 = vmatprep.subr.bf16.mxu0 %v5491
    %5510 = vmatpush1.bf16.msra.mxu0 %v5490
    %5511 = vmatprep.subr.bf16.mxu0 %v5493
    %5512 = vmatpush1.bf16.msra.mxu0 %v5492
    %5513 = vmatprep.subr.bf16.mxu0 %v5495
    %5514 = vmatpush1.bf16.msra.mxu0 %v5494
    %5515 = vmatprep.subr.bf16.mxu0 0
    %5516 = vmatpush1.bf16.msra.mxu0 0
    %5517 = vmatprep.subr.bf16.mxu0 0
    %5518 = vmatpush1.bf16.msra.mxu0 0
    %5519 = vmatprep.subr.bf16.mxu0 0
    %5520 = vmatpush1.bf16.msra.mxu0 0
    %5521 = vmatprep.subr.bf16.mxu0 0
    %5522 = vmatpush1.bf16.msra.mxu0 0
    %5523 = vmatprep.subr.bf16.mxu0 0
    %5524 = vmatpush1.bf16.msra.mxu0 0
    %5525 = vmatprep.subr.bf16.mxu0 0
    %5526 = vmatpush1.bf16.msra.mxu0 0
    %5527 = vmatprep.subr.bf16.mxu0 0
    %5528 = vmatpush1.bf16.msra.mxu0 0
    %5529 = vmatprep.subr.bf16.mxu0 0
    %5530 = vmatpush1.bf16.msra.mxu0 0
    %5531 = vmatprep.subr.bf16.mxu0 0
    %5532 = vmatpush1.bf16.msra.mxu0 0
    %5533 = vmatprep.subr.bf16.mxu0 0
    %5534 = vmatpush1.bf16.msra.mxu0 0
    %5535 = vmatprep.subr.bf16.mxu0 0
    %5536 = vmatpush1.bf16.msra.mxu0 0
    %5537 = vmatprep.subr.bf16.mxu0 0
    %5538 = vmatpush1.bf16.msra.mxu0 0
    %5539 = vmatprep.mubr.bf16.mxu0 0
    %5540 = vmatmul.mubr.bf16.gmra.mrb[0].mxu0 %v5505
    %v5541 = vpop.f32.mrb[0].mxu0
    %v5542 = vadd.f32 %v5459, %v5541
    %v5543 = vpop.f32.mrb[0].mxu0
    %v5544 = vadd.f32 %v5463, %v5543
    %v5545 = vpop.f32.mrb[0].mxu0
    %v5546 = vpop.f32.mrb[0].mxu0
    %5547 = vdwg.mxu0
    %5549 = vrot.lane.b32.xlu0 %v5542, 112
    %v5550 = vpop.permute.xlu0 %5549
    %5551 = vrot.lane.b32.xlu0 %v5542, 96
    %v5552 = vpop.permute.xlu0 %5551
    %5553 = vrot.lane.b32.xlu0 %v5542, 80
    %v5554 = vpop.permute.xlu0 %5553
    %5556 = vrot.lane.b32.xlu0 %v5544, 112
    %v5557 = vpop.permute.xlu0 %5556
    %5559 = vrot.lane.b32.xlu0 %v5544, 96
    %v5560 = vpop.permute.xlu0 %5559
    %5562 = vrot.lane.b32.xlu0 %v5544, 80
    %v5563 = vpop.permute.xlu0 %5562
    %5565 = vrot.lane.b32.xlu0 %v5542, 64
    %v5566 = vpop.permute.xlu0 %5565
    %v5567 = vsel %vm43, %v5542, 0
    %v5569 = vsel %vm43, %v5566, 0
    %5571 = vmatprep.subr.mxu0 0.0
    %5572 = vmatpush1.xpose.msra.mxu0 %v5569
    %5573 = vmatprep.subr.mxu0 0.0
    %5574 = vmatpush1.xpose.msra.mxu0 0.0
    %5575 = vmatprep.subr.mxu0 0.0
    %5576 = vmatpush1.xpose.msra.mxu0 0.0
    %5577 = vmatprep.subr.mxu0 0.0
    %5578 = vmatpush1.xpose.msra.mxu0 0.0
    %5579 = vmatprep.subr.mxu0 0.0
    %5580 = vmatpush1.xpose.msra.mxu0 0.0
    %5581 = vmatprep.subr.mxu0 0.0
    %5582 = vmatpush1.xpose.msra.mxu0 0.0
    %5583 = vmatprep.subr.mxu0 0.0
    %5584 = vmatpush1.xpose.msra.mxu0 0.0
    %5585 = vmatprep.subr.mxu0 0.0
    %5586 = vmatpush1.xpose.msra.mxu0 0.0
    %5587 = vmatprep.subr.mxu0 0.0
    %5588 = vmatpush1.xpose.msra.mxu0 0.0
    %5589 = vmatprep.subr.mxu0 0.0
    %5590 = vmatpush1.xpose.msra.mxu0 0.0
    %5591 = vmatprep.subr.mxu0 0.0
    %5592 = vmatpush1.xpose.msra.mxu0 0.0
    %5593 = vmatprep.subr.mxu0 0.0
    %5594 = vmatpush1.xpose.msra.mxu0 0.0
    %5595 = vmatprep.subr.mxu0 0.0
    %5596 = vmatpush1.xpose.msra.mxu0 0.0
    %5597 = vmatprep.subr.mxu0 0.0
    %5598 = vmatpush1.xpose.msra.mxu0 0.0
    %5599 = vmatprep.subr.mxu0 0.0
    %5600 = vmatpush1.xpose.msra.mxu0 0.0
    %5601 = vmatprep.subr.mxu0 0.0
    %5602 = vmatpush1.xpose.msra.mxu0 0.0
    %5603 = vmatprep.subr.mxu0 0.0
    %5604 = vmatpush1.xpose.msra.mxu0 0.0
    %5605 = vmatprep.subr.mxu0 0.0
    %5606 = vmatpush1.xpose.msra.mxu0 0.0
    %5607 = vmatprep.subr.mxu0 0.0
    %5608 = vmatpush1.xpose.msra.mxu0 0.0
    %5609 = vmatprep.subr.mxu0 0.0
    %5610 = vmatpush1.xpose.msra.mxu0 0.0
    %5611 = vmatprep.subr.mxu0 0.0
    %5612 = vmatpush1.xpose.msra.mxu0 0.0
    %5613 = vmatprep.subr.mxu0 0.0
    %5614 = vmatpush1.xpose.msra.mxu0 0.0
    %5615 = vmatprep.subr.mxu0 0.0
    %5616 = vmatpush1.xpose.msra.mxu0 0.0
    %5617 = vmatprep.subr.mxu0 0.0
    %5618 = vmatpush1.xpose.msra.mxu0 0.0
    %5619 = vmatprep.subr.mxu0 0.0
    %5620 = vmatpush1.xpose.msra.mxu0 0.0
    %5621 = vmatprep.subr.mxu0 0.0
    %5622 = vmatpush1.xpose.msra.mxu0 0.0
    %5623 = vmatprep.subr.mxu0 0.0
    %5624 = vmatpush1.xpose.msra.mxu0 0.0
    %5625 = vmatprep.subr.mxu0 0.0
    %5626 = vmatpush1.xpose.msra.mxu0 0.0
    %5627 = vmatprep.subr.mxu0 0.0
    %5628 = vmatpush1.xpose.msra.mxu0 0.0
    %5629 = vmatprep.subr.mxu0 0.0
    %5630 = vmatpush1.xpose.msra.mxu0 0.0
    %5631 = vmatprep.subr.mxu0 0.0
    %5632 = vmatpush1.xpose.msra.mxu0 0.0
    %5633 = vmatprep.subr.mxu0 0.0
    %5634 = vmatpush1.xpose.msra.mxu0 0.0
    %5635 = vmatprep.mubr.f32.mxu0 0.0
    %5636 = vmatmul.mubr.f32.gmra.mrb[0].mxu0 %v5567
    %v5637 = vpop.f32.mrb[0].mxu0
    %v5638 = vadd.f32 0.0, %v5637
    %v5639 = vpop.f32.mrb[0].mxu0
    %5640 = vdwg.mxu0
    %5641 = vrot.lane.b32.xlu0 %v5550, 64
    %v5642 = vpop.permute.xlu0 %5641
    %v5643 = vsel %vm43, %v5550, 0
    %v5645 = vsel %vm43, %v5642, 0
    %5647 = vmatprep.subr.mxu0 0.0
    %5648 = vmatpush1.xpose.msra.mxu0 %v5645
    %5649 = vmatprep.subr.mxu0 0.0
    %5650 = vmatpush1.xpose.msra.mxu0 0.0
    %5651 = vmatprep.subr.mxu0 0.0
    %5652 = vmatpush1.xpose.msra.mxu0 0.0
    %5653 = vmatprep.subr.mxu0 0.0
    %5654 = vmatpush1.xpose.msra.mxu0 0.0
    %5655 = vmatprep.subr.mxu0 0.0
    %5656 = vmatpush1.xpose.msra.mxu0 0.0
    %5657 = vmatprep.subr.mxu0 0.0
    %5658 = vmatpush1.xpose.msra.mxu0 0.0
    %5659 = vmatprep.subr.mxu0 0.0
    %5660 = vmatpush1.xpose.msra.mxu0 0.0
    %5661 = vmatprep.subr.mxu0 0.0
    %5662 = vmatpush1.xpose.msra.mxu0 0.0
    %5663 = vmatprep.subr.mxu0 0.0
    %5664 = vmatpush1.xpose.msra.mxu0 0.0
    %5665 = vmatprep.subr.mxu0 0.0
    %5666 = vmatpush1.xpose.msra.mxu0 0.0
    %5667 = vmatprep.subr.mxu0 0.0
    %5668 = vmatpush1.xpose.msra.mxu0 0.0
    %5669 = vmatprep.subr.mxu0 0.0
    %5670 = vmatpush1.xpose.msra.mxu0 0.0
    %5671 = vmatprep.subr.mxu0 0.0
    %5672 = vmatpush1.xpose.msra.mxu0 0.0
    %5673 = vmatprep.subr.mxu0 0.0
    %5674 = vmatpush1.xpose.msra.mxu0 0.0
    %5675 = vmatprep.subr.mxu0 0.0
    %5676 = vmatpush1.xpose.msra.mxu0 0.0
    %5677 = vmatprep.subr.mxu0 0.0
    %5678 = vmatpush1.xpose.msra.mxu0 0.0
    %5679 = vmatprep.subr.mxu0 0.0
    %5680 = vmatpush1.xpose.msra.mxu0 0.0
    %5681 = vmatprep.subr.mxu0 0.0
    %5682 = vmatpush1.xpose.msra.mxu0 0.0
    %5683 = vmatprep.subr.mxu0 0.0
    %5684 = vmatpush1.xpose.msra.mxu0 0.0
    %5685 = vmatprep.subr.mxu0 0.0
    %5686 = vmatpush1.xpose.msra.mxu0 0.0
    %5687 = vmatprep.subr.mxu0 0.0
    %5688 = vmatpush1.xpose.msra.mxu0 0.0
    %5689 = vmatprep.subr.mxu0 0.0
    %5690 = vmatpush1.xpose.msra.mxu0 0.0
    %5691 = vmatprep.subr.mxu0 0.0
    %5692 = vmatpush1.xpose.msra.mxu0 0.0
    %5693 = vmatprep.subr.mxu0 0.0
    %5694 = vmatpush1.xpose.msra.mxu0 0.0
    %5695 = vmatprep.subr.mxu0 0.0
    %5696 = vmatpush1.xpose.msra.mxu0 0.0
    %5697 = vmatprep.subr.mxu0 0.0
    %5698 = vmatpush1.xpose.msra.mxu0 0.0
    %5699 = vmatprep.subr.mxu0 0.0
    %5700 = vmatpush1.xpose.msra.mxu0 0.0
    %5701 = vmatprep.subr.mxu0 0.0
    %5702 = vmatpush1.xpose.msra.mxu0 0.0
    %5703 = vmatprep.subr.mxu0 0.0
    %5704 = vmatpush1.xpose.msra.mxu0 0.0
    %5705 = vmatprep.subr.mxu0 0.0
    %5706 = vmatpush1.xpose.msra.mxu0 0.0
    %5707 = vmatprep.subr.mxu0 0.0
    %5708 = vmatpush1.xpose.msra.mxu0 0.0
    %5709 = vmatprep.subr.mxu0 0.0
    %5710 = vmatpush1.xpose.msra.mxu0 0.0
    %5711 = vmatprep.mubr.f32.mxu0 0.0
    %5712 = vmatmul.mubr.f32.gmra.mrb[0].mxu0 %v5643
    %v5713 = vpop.f32.mrb[0].mxu0
    %v5714 = vadd.f32 0.0, %v5713
    %v5715 = vpop.f32.mrb[0].mxu0
    %5716 = vdwg.mxu0
    %5717 = vrot.lane.b32.xlu0 %v5552, 64
    %v5718 = vpop.permute.xlu0 %5717
    %v5719 = vsel %vm43, %v5552, 0
    %v5721 = vsel %vm43, %v5718, 0
    %5723 = vmatprep.subr.mxu0 0.0
    %5724 = vmatpush1.xpose.msra.mxu0 %v5721
    %5725 = vmatprep.subr.mxu0 0.0
    %5726 = vmatpush1.xpose.msra.mxu0 0.0
    %5727 = vmatprep.subr.mxu0 0.0
    %5728 = vmatpush1.xpose.msra.mxu0 0.0
    %5729 = vmatprep.subr.mxu0 0.0
    %5730 = vmatpush1.xpose.msra.mxu0 0.0
    %5731 = vmatprep.subr.mxu0 0.0
    %5732 = vmatpush1.xpose.msra.mxu0 0.0
    %5733 = vmatprep.subr.mxu0 0.0
    %5734 = vmatpush1.xpose.msra.mxu0 0.0
    %5735 = vmatprep.subr.mxu0 0.0
    %5736 = vmatpush1.xpose.msra.mxu0 0.0
    %5737 = vmatprep.subr.mxu0 0.0
    %5738 = vmatpush1.xpose.msra.mxu0 0.0
    %5739 = vmatprep.subr.mxu0 0.0
    %5740 = vmatpush1.xpose.msra.mxu0 0.0
    %5741 = vmatprep.subr.mxu0 0.0
    %5742 = vmatpush1.xpose.msra.mxu0 0.0
    %5743 = vmatprep.subr.mxu0 0.0
    %5744 = vmatpush1.xpose.msra.mxu0 0.0
    %5745 = vmatprep.subr.mxu0 0.0
    %5746 = vmatpush1.xpose.msra.mxu0 0.0
    %5747 = vmatprep.subr.mxu0 0.0
    %5748 = vmatpush1.xpose.msra.mxu0 0.0
    %5749 = vmatprep.subr.mxu0 0.0
    %5750 = vmatpush1.xpose.msra.mxu0 0.0
    %5751 = vmatprep.subr.mxu0 0.0
    %5752 = vmatpush1.xpose.msra.mxu0 0.0
    %5753 = vmatprep.subr.mxu0 0.0
    %5754 = vmatpush1.xpose.msra.mxu0 0.0
    %5755 = vmatprep.subr.mxu0 0.0
    %5756 = vmatpush1.xpose.msra.mxu0 0.0
    %5757 = vmatprep.subr.mxu0 0.0
    %5758 = vmatpush1.xpose.msra.mxu0 0.0
    %5759 = vmatprep.subr.mxu0 0.0
    %5760 = vmatpush1.xpose.msra.mxu0 0.0
    %5761 = vmatprep.subr.mxu0 0.0
    %5762 = vmatpush1.xpose.msra.mxu0 0.0
    %5763 = vmatprep.subr.mxu0 0.0
    %5764 = vmatpush1.xpose.msra.mxu0 0.0
    %5765 = vmatprep.subr.mxu0 0.0
    %5766 = vmatpush1.xpose.msra.mxu0 0.0
    %5767 = vmatprep.subr.mxu0 0.0
    %5768 = vmatpush1.xpose.msra.mxu0 0.0
    %5769 = vmatprep.subr.mxu0 0.0
    %5770 = vmatpush1.xpose.msra.mxu0 0.0
    %5771 = vmatprep.subr.mxu0 0.0
    %5772 = vmatpush1.xpose.msra.mxu0 0.0
    %5773 = vmatprep.subr.mxu0 0.0
    %5774 = vmatpush1.xpose.msra.mxu0 0.0
    %5775 = vmatprep.subr.mxu0 0.0
    %5776 = vmatpush1.xpose.msra.mxu0 0.0
    %5777 = vmatprep.subr.mxu0 0.0
    %5778 = vmatpush1.xpose.msra.mxu0 0.0
    %5779 = vmatprep.subr.mxu0 0.0
    %5780 = vmatpush1.xpose.msra.mxu0 0.0
    %5781 = vmatprep.subr.mxu0 0.0
    %5782 = vmatpush1.xpose.msra.mxu0 0.0
    %5783 = vmatprep.subr.mxu0 0.0
    %5784 = vmatpush1.xpose.msra.mxu0 0.0
    %5785 = vmatprep.subr.mxu0 0.0
    %5786 = vmatpush1.xpose.msra.mxu0 0.0
    %5787 = vmatprep.mubr.f32.mxu0 0.0
    %5788 = vmatmul.mubr.f32.gmra.mrb[0].mxu0 %v5719
    %v5789 = vpop.f32.mrb[0].mxu0
    %v5790 = vadd.f32 0.0, %v5789
    %v5791 = vpop.f32.mrb[0].mxu0
    %5792 = vdwg.mxu0
    %5793 = vrot.lane.b32.xlu0 %v5554, 64
    %v5794 = vpop.permute.xlu0 %5793
    %v5795 = vsel %vm43, %v5554, 0
    %v5797 = vsel %vm43, %v5794, 0
    %5799 = vmatprep.subr.mxu0 0.0
    %5800 = vmatpush1.xpose.msra.mxu0 %v5797
    %5801 = vmatprep.subr.mxu0 0.0
    %5802 = vmatpush1.xpose.msra.mxu0 0.0
    %5803 = vmatprep.subr.mxu0 0.0
    %5804 = vmatpush1.xpose.msra.mxu0 0.0
    %5805 = vmatprep.subr.mxu0 0.0
    %5806 = vmatpush1.xpose.msra.mxu0 0.0
    %5807 = vmatprep.subr.mxu0 0.0
    %5808 = vmatpush1.xpose.msra.mxu0 0.0
    %5809 = vmatprep.subr.mxu0 0.0
    %5810 = vmatpush1.xpose.msra.mxu0 0.0
    %5811 = vmatprep.subr.mxu0 0.0
    %5812 = vmatpush1.xpose.msra.mxu0 0.0
    %5813 = vmatprep.subr.mxu0 0.0
    %5814 = vmatpush1.xpose.msra.mxu0 0.0
    %5815 = vmatprep.subr.mxu0 0.0
    %5816 = vmatpush1.xpose.msra.mxu0 0.0
    %5817 = vmatprep.subr.mxu0 0.0
    %5818 = vmatpush1.xpose.msra.mxu0 0.0
    %5819 = vmatprep.subr.mxu0 0.0
    %5820 = vmatpush1.xpose.msra.mxu0 0.0
    %5821 = vmatprep.subr.mxu0 0.0
    %5822 = vmatpush1.xpose.msra.mxu0 0.0
    %5823 = vmatprep.subr.mxu0 0.0
    %5824 = vmatpush1.xpose.msra.mxu0 0.0
    %5825 = vmatprep.subr.mxu0 0.0
    %5826 = vmatpush1.xpose.msra.mxu0 0.0
    %5827 = vmatprep.subr.mxu0 0.0
    %5828 = vmatpush1.xpose.msra.mxu0 0.0
    %5829 = vmatprep.subr.mxu0 0.0
    %5830 = vmatpush1.xpose.msra.mxu0 0.0
    %5831 = vmatprep.subr.mxu0 0.0
    %5832 = vmatpush1.xpose.msra.mxu0 0.0
    %5833 = vmatprep.subr.mxu0 0.0
    %5834 = vmatpush1.xpose.msra.mxu0 0.0
    %5835 = vmatprep.subr.mxu0 0.0
    %5836 = vmatpush1.xpose.msra.mxu0 0.0
    %5837 = vmatprep.subr.mxu0 0.0
    %5838 = vmatpush1.xpose.msra.mxu0 0.0
    %5839 = vmatprep.subr.mxu0 0.0
    %5840 = vmatpush1.xpose.msra.mxu0 0.0
    %5841 = vmatprep.subr.mxu0 0.0
    %5842 = vmatpush1.xpose.msra.mxu0 0.0
    %5843 = vmatprep.subr.mxu0 0.0
    %5844 = vmatpush1.xpose.msra.mxu0 0.0
    %5845 = vmatprep.subr.mxu0 0.0
    %5846 = vmatpush1.xpose.msra.mxu0 0.0
    %5847 = vmatprep.subr.mxu0 0.0
    %5848 = vmatpush1.xpose.msra.mxu0 0.0
    %5849 = vmatprep.subr.mxu0 0.0
    %5850 = vmatpush1.xpose.msra.mxu0 0.0
    %5851 = vmatprep.subr.mxu0 0.0
    %5852 = vmatpush1.xpose.msra.mxu0 0.0
    %5853 = vmatprep.subr.mxu0 0.0
    %5854 = vmatpush1.xpose.msra.mxu0 0.0
    %5855 = vmatprep.subr.mxu0 0.0
    %5856 = vmatpush1.xpose.msra.mxu0 0.0
    %5857 = vmatprep.subr.mxu0 0.0
    %5858 = vmatpush1.xpose.msra.mxu0 0.0
    %5859 = vmatprep.subr.mxu0 0.0
    %5860 = vmatpush1.xpose.msra.mxu0 0.0
    %5861 = vmatprep.subr.mxu0 0.0
    %5862 = vmatpush1.xpose.msra.mxu0 0.0
    %5863 = vmatprep.mubr.f32.mxu0 0.0
    %5864 = vmatmul.mubr.f32.gmra.mrb[0].mxu0 %v5795
    %v5865 = vpop.f32.mrb[0].mxu0
    %v5866 = vadd.f32 0.0, %v5865
    %v5867 = vpop.f32.mrb[0].mxu0
    %5868 = vdwg.mxu0
    %v5869 = vsel %vm557, %v5638, -inf
    %5870 = vmax.xlane.f32.xlu0 %v5869
    %v5871 = vpop.xlane.xlu0 %5870
    %v5872 = vsel %vm557, %v5714, -inf
    %5873 = vmax.xlane.f32.xlu0 %v5872
    %v5874 = vpop.xlane.xlu0 %5873
    %v5875 = vsel %vm557, %v5790, -inf
    %5876 = vmax.xlane.f32.xlu0 %v5875
    %v5877 = vpop.xlane.xlu0 %5876
    %v5878 = vsel %vm557, %v5866, -inf
    %5879 = vmax.xlane.f32.xlu0 %v5878
    %v5880 = vpop.xlane.xlu0 %5879
    %v5881 = vsub.f32 %v5638, %v5871
    %v5882 = vsub.f32 %v5714, %v5874
    %v5883 = vsub.f32 %v5790, %v5877
    %v5884 = vsub.f32 %v5866, %v5880
    %v5885 = vmul.f32 %v5881, 1.442695
    %v5886 = vpow.pop %v5885
    %v5887 = vmul.f32 %v5882, 1.442695
    %v5888 = vpow.pop %v5887
    %v5889 = vmul.f32 %v5883, 1.442695
    %v5890 = vpow.pop %v5889
    %v5891 = vmul.f32 %v5884, 1.442695
    %v5892 = vpow.pop %v5891
    %v5893 = vsel %vm557, %v5886, 0.0
    %5894 = vadd.xlane.f32.xlu0 %v5893
    %v5895 = vpop.xlane.xlu0 %5894
    %v5896 = vsel %vm557, %v5888, 0.0
    %5897 = vadd.xlane.f32.xlu0 %v5896
    %v5898 = vpop.xlane.xlu0 %5897
    %v5899 = vsel %vm557, %v5890, 0.0
    %5900 = vadd.xlane.f32.xlu0 %v5899
    %v5901 = vpop.xlane.xlu0 %5900
    %v5902 = vsel %vm557, %v5892, 0.0
    %5903 = vadd.xlane.f32.xlu0 %v5902
    %v5904 = vpop.xlane.xlu0 %5903
    %v5905 = vrcp.pop %v5895
    %v5906 = vmul.f32 %v5886, %v5905
    %v5907 = vrcp.pop %v5898
    %v5908 = vmul.f32 %v5888, %v5907
    %v5909 = vrcp.pop %v5901
    %v5910 = vmul.f32 %v5890, %v5909
    %v5911 = vrcp.pop %v5904
    %v5912 = vmul.f32 %v5892, %v5911
    %v5914 = vsel %vm557, %v5906, 0
    %5916 = vmatprep.subr.mxu0 0.0
    %5917 = vmatpush1.msra.mxu0 %v5544
    %5918 = vmatprep.subr.mxu0 0.0
    %5919 = vmatpush1.msra.mxu0 0.0
    %5920 = vmatprep.subr.mxu0 0.0
    %5921 = vmatpush1.msra.mxu0 0.0
    %5922 = vmatprep.subr.mxu0 0.0
    %5923 = vmatpush1.msra.mxu0 0.0
    %5924 = vmatprep.subr.mxu0 0.0
    %5925 = vmatpush1.msra.mxu0 0.0
    %5926 = vmatprep.subr.mxu0 0.0
    %5927 = vmatpush1.msra.mxu0 0.0
    %5928 = vmatprep.subr.mxu0 0.0
    %5929 = vmatpush1.msra.mxu0 0.0
    %5930 = vmatprep.subr.mxu0 0.0
    %5931 = vmatpush1.msra.mxu0 0.0
    %5932 = vmatprep.subr.mxu0 0.0
    %5933 = vmatpush1.msra.mxu0 0.0
    %5934 = vmatprep.subr.mxu0 0.0
    %5935 = vmatpush1.msra.mxu0 0.0
    %5936 = vmatprep.subr.mxu0 0.0
    %5937 = vmatpush1.msra.mxu0 0.0
    %5938 = vmatprep.subr.mxu0 0.0
    %5939 = vmatpush1.msra.mxu0 0.0
    %5940 = vmatprep.subr.mxu0 0.0
    %5941 = vmatpush1.msra.mxu0 0.0
    %5942 = vmatprep.subr.mxu0 0.0
    %5943 = vmatpush1.msra.mxu0 0.0
    %5944 = vmatprep.subr.mxu0 0.0
    %5945 = vmatpush1.msra.mxu0 0.0
    %5946 = vmatprep.subr.mxu0 0.0
    %5947 = vmatpush1.msra.mxu0 0.0
    %5948 = vmatprep.subr.mxu0 0.0
    %5949 = vmatpush1.msra.mxu0 0.0
    %5950 = vmatprep.subr.mxu0 0.0
    %5951 = vmatpush1.msra.mxu0 0.0
    %5952 = vmatprep.subr.mxu0 0.0
    %5953 = vmatpush1.msra.mxu0 0.0
    %5954 = vmatprep.subr.mxu0 0.0
    %5955 = vmatpush1.msra.mxu0 0.0
    %5956 = vmatprep.subr.mxu0 0.0
    %5957 = vmatpush1.msra.mxu0 0.0
    %5958 = vmatprep.subr.mxu0 0.0
    %5959 = vmatpush1.msra.mxu0 0.0
    %5960 = vmatprep.subr.mxu0 0.0
    %5961 = vmatpush1.msra.mxu0 0.0
    %5962 = vmatprep.subr.mxu0 0.0
    %5963 = vmatpush1.msra.mxu0 0.0
    %5964 = vmatprep.subr.mxu0 0.0
    %5965 = vmatpush1.msra.mxu0 0.0
    %5966 = vmatprep.subr.mxu0 0.0
    %5967 = vmatpush1.msra.mxu0 0.0
    %5968 = vmatprep.subr.mxu0 0.0
    %5969 = vmatpush1.msra.mxu0 0.0
    %5970 = vmatprep.subr.mxu0 0.0
    %5971 = vmatpush1.msra.mxu0 0.0
    %5972 = vmatprep.subr.mxu0 0.0
    %5973 = vmatpush1.msra.mxu0 0.0
    %5974 = vmatprep.subr.mxu0 0.0
    %5975 = vmatpush1.msra.mxu0 0.0
    %5976 = vmatprep.subr.mxu0 0.0
    %5977 = vmatpush1.msra.mxu0 0.0
    %5978 = vmatprep.subr.mxu0 0.0
    %5979 = vmatpush1.msra.mxu0 0.0
    %5980 = vmatprep.mubr.f32.mxu0 0.0
    %5981 = vmatmul.mubr.f32.gmra.mrb[0].mxu0 %v5914
    %v5982 = vpop.f32.mrb[0].mxu0
    %v5983 = vadd.f32 0.0, %v5982
    %v5984 = vpop.f32.mrb[0].mxu0
    %5985 = vdwg.mxu0
    %v5987 = vsel %vm557, %v5908, 0
    %5989 = vmatprep.subr.mxu0 0.0
    %5990 = vmatpush1.msra.mxu0 %v5557
    %5991 = vmatprep.subr.mxu0 0.0
    %5992 = vmatpush1.msra.mxu0 0.0
    %5993 = vmatprep.subr.mxu0 0.0
    %5994 = vmatpush1.msra.mxu0 0.0
    %5995 = vmatprep.subr.mxu0 0.0
    %5996 = vmatpush1.msra.mxu0 0.0
    %5997 = vmatprep.subr.mxu0 0.0
    %5998 = vmatpush1.msra.mxu0 0.0
    %5999 = vmatprep.subr.mxu0 0.0
    %6000 = vmatpush1.msra.mxu0 0.0
    %6001 = vmatprep.subr.mxu0 0.0
    %6002 = vmatpush1.msra.mxu0 0.0
    %6003 = vmatprep.subr.mxu0 0.0
    %6004 = vmatpush1.msra.mxu0 0.0
    %6005 = vmatprep.subr.mxu0 0.0
    %6006 = vmatpush1.msra.mxu0 0.0
    %6007 = vmatprep.subr.mxu0 0.0
    %6008 = vmatpush1.msra.mxu0 0.0
    %6009 = vmatprep.subr.mxu0 0.0
    %6010 = vmatpush1.msra.mxu0 0.0
    %6011 = vmatprep.subr.mxu0 0.0
    %6012 = vmatpush1.msra.mxu0 0.0
    %6013 = vmatprep.subr.mxu0 0.0
    %6014 = vmatpush1.msra.mxu0 0.0
    %6015 = vmatprep.subr.mxu0 0.0
    %6016 = vmatpush1.msra.mxu0 0.0
    %6017 = vmatprep.subr.mxu0 0.0
    %6018 = vmatpush1.msra.mxu0 0.0
    %6019 = vmatprep.subr.mxu0 0.0
    %6020 = vmatpush1.msra.mxu0 0.0
    %6021 = vmatprep.subr.mxu0 0.0
    %6022 = vmatpush1.msra.mxu0 0.0
    %6023 = vmatprep.subr.mxu0 0.0
    %6024 = vmatpush1.msra.mxu0 0.0
    %6025 = vmatprep.subr.mxu0 0.0
    %6026 = vmatpush1.msra.mxu0 0.0
    %6027 = vmatprep.subr.mxu0 0.0
    %6028 = vmatpush1.msra.mxu0 0.0
    %6029 = vmatprep.subr.mxu0 0.0
    %6030 = vmatpush1.msra.mxu0 0.0
    %6031 = vmatprep.subr.mxu0 0.0
    %6032 = vmatpush1.msra.mxu0 0.0
    %6033 = vmatprep.subr.mxu0 0.0
    %6034 = vmatpush1.msra.mxu0 0.0
    %6035 = vmatprep.subr.mxu0 0.0
    %6036 = vmatpush1.msra.mxu0 0.0
    %6037 = vmatprep.subr.mxu0 0.0
    %6038 = vmatpush1.msra.mxu0 0.0
    %6039 = vmatprep.subr.mxu0 0.0
    %6040 = vmatpush1.msra.mxu0 0.0
    %6041 = vmatprep.subr.mxu0 0.0
    %6042 = vmatpush1.msra.mxu0 0.0
    %6043 = vmatprep.subr.mxu0 0.0
    %6044 = vmatpush1.msra.mxu0 0.0
    %6045 = vmatprep.subr.mxu0 0.0
    %6046 = vmatpush1.msra.mxu0 0.0
    %6047 = vmatprep.subr.mxu0 0.0
    %6048 = vmatpush1.msra.mxu0 0.0
    %6049 = vmatprep.subr.mxu0 0.0
    %6050 = vmatpush1.msra.mxu0 0.0
    %6051 = vmatprep.subr.mxu0 0.0
    %6052 = vmatpush1.msra.mxu0 0.0
    %6053 = vmatprep.mubr.f32.mxu0 0.0
    %6054 = vmatmul.mubr.f32.gmra.mrb[0].mxu0 %v5987
    %v6055 = vpop.f32.mrb[0].mxu0
    %v6056 = vadd.f32 0.0, %v6055
    %v6057 = vpop.f32.mrb[0].mxu0
    %6058 = vdwg.mxu0
    %v6060 = vsel %vm557, %v5910, 0
    %6062 = vmatprep.subr.mxu0 0.0
    %6063 = vmatpush1.msra.mxu0 %v5560
    %6064 = vmatprep.subr.mxu0 0.0
    %6065 = vmatpush1.msra.mxu0 0.0
    %6066 = vmatprep.subr.mxu0 0.0
    %6067 = vmatpush1.msra.mxu0 0.0
    %6068 = vmatprep.subr.mxu0 0.0
    %6069 = vmatpush1.msra.mxu0 0.0
    %6070 = vmatprep.subr.mxu0 0.0
    %6071 = vmatpush1.msra.mxu0 0.0
    %6072 = vmatprep.subr.mxu0 0.0
    %6073 = vmatpush1.msra.mxu0 0.0
    %6074 = vmatprep.subr.mxu0 0.0
    %6075 = vmatpush1.msra.mxu0 0.0
    %6076 = vmatprep.subr.mxu0 0.0
    %6077 = vmatpush1.msra.mxu0 0.0
    %6078 = vmatprep.subr.mxu0 0.0
    %6079 = vmatpush1.msra.mxu0 0.0
    %6080 = vmatprep.subr.mxu0 0.0
    %6081 = vmatpush1.msra.mxu0 0.0
    %6082 = vmatprep.subr.mxu0 0.0
    %6083 = vmatpush1.msra.mxu0 0.0
    %6084 = vmatprep.subr.mxu0 0.0
    %6085 = vmatpush1.msra.mxu0 0.0
    %6086 = vmatprep.subr.mxu0 0.0
    %6087 = vmatpush1.msra.mxu0 0.0
    %6088 = vmatprep.subr.mxu0 0.0
    %6089 = vmatpush1.msra.mxu0 0.0
    %6090 = vmatprep.subr.mxu0 0.0
    %6091 = vmatpush1.msra.mxu0 0.0
    %6092 = vmatprep.subr.mxu0 0.0
    %6093 = vmatpush1.msra.mxu0 0.0
    %6094 = vmatprep.subr.mxu0 0.0
    %6095 = vmatpush1.msra.mxu0 0.0
    %6096 = vmatprep.subr.mxu0 0.0
    %6097 = vmatpush1.msra.mxu0 0.0
    %6098 = vmatprep.subr.mxu0 0.0
    %6099 = vmatpush1.msra.mxu0 0.0
    %6100 = vmatprep.subr.mxu0 0.0
    %6101 = vmatpush1.msra.mxu0 0.0
    %6102 = vmatprep.subr.mxu0 0.0
    %6103 = vmatpush1.msra.mxu0 0.0
    %6104 = vmatprep.subr.mxu0 0.0
    %6105 = vmatpush1.msra.mxu0 0.0
    %6106 = vmatprep.subr.mxu0 0.0
    %6107 = vmatpush1.msra.mxu0 0.0
    %6108 = vmatprep.subr.mxu0 0.0
    %6109 = vmatpush1.msra.mxu0 0.0
    %6110 = vmatprep.subr.mxu0 0.0
    %6111 = vmatpush1.msra.mxu0 0.0
    %6112 = vmatprep.subr.mxu0 0.0
    %6113 = vmatpush1.msra.mxu0 0.0
    %6114 = vmatprep.subr.mxu0 0.0
    %6115 = vmatpush1.msra.mxu0 0.0
    %6116 = vmatprep.subr.mxu0 0.0
    %6117 = vmatpush1.msra.mxu0 0.0
    %6118 = vmatprep.subr.mxu0 0.0
    %6119 = vmatpush1.msra.mxu0 0.0
    %6120 = vmatprep.subr.mxu0 0.0
    %6121 = vmatpush1.msra.mxu0 0.0
    %6122 = vmatprep.subr.mxu0 0.0
    %6123 = vmatpush1.msra.mxu0 0.0
    %6124 = vmatprep.subr.mxu0 0.0
    %6125 = vmatpush1.msra.mxu0 0.0
    %6126 = vmatprep.mubr.f32.mxu0 0.0
    %6127 = vmatmul.mubr.f32.gmra.mrb[0].mxu0 %v6060
    %v6128 = vpop.f32.mrb[0].mxu0
    %v6129 = vadd.f32 0.0, %v6128
    %v6130 = vpop.f32.mrb[0].mxu0
    %6131 = vdwg.mxu0
    %v6133 = vsel %vm557, %v5912, 0
    %6135 = vmatprep.subr.mxu0 0.0
    %6136 = vmatpush1.msra.mxu0 %v5563
    %6137 = vmatprep.subr.mxu0 0.0
    %6138 = vmatpush1.msra.mxu0 0.0
    %6139 = vmatprep.subr.mxu0 0.0
    %6140 = vmatpush1.msra.mxu0 0.0
    %6141 = vmatprep.subr.mxu0 0.0
    %6142 = vmatpush1.msra.mxu0 0.0
    %6143 = vmatprep.subr.mxu0 0.0
    %6144 = vmatpush1.msra.mxu0 0.0
    %6145 = vmatprep.subr.mxu0 0.0
    %6146 = vmatpush1.msra.mxu0 0.0
    %6147 = vmatprep.subr.mxu0 0.0
    %6148 = vmatpush1.msra.mxu0 0.0
    %6149 = vmatprep.subr.mxu0 0.0
    %6150 = vmatpush1.msra.mxu0 0.0
    %6151 = vmatprep.subr.mxu0 0.0
    %6152 = vmatpush1.msra.mxu0 0.0
    %6153 = vmatprep.subr.mxu0 0.0
    %6154 = vmatpush1.msra.mxu0 0.0
    %6155 = vmatprep.subr.mxu0 0.0
    %6156 = vmatpush1.msra.mxu0 0.0
    %6157 = vmatprep.subr.mxu0 0.0
    %6158 = vmatpush1.msra.mxu0 0.0
    %6159 = vmatprep.subr.mxu0 0.0
    %6160 = vmatpush1.msra.mxu0 0.0
    %6161 = vmatprep.subr.mxu0 0.0
    %6162 = vmatpush1.msra.mxu0 0.0
    %6163 = vmatprep.subr.mxu0 0.0
    %6164 = vmatpush1.msra.mxu0 0.0
    %6165 = vmatprep.subr.mxu0 0.0
    %6166 = vmatpush1.msra.mxu0 0.0
    %6167 = vmatprep.subr.mxu0 0.0
    %6168 = vmatpush1.msra.mxu0 0.0
    %6169 = vmatprep.subr.mxu0 0.0
    %6170 = vmatpush1.msra.mxu0 0.0
    %6171 = vmatprep.subr.mxu0 0.0
    %6172 = vmatpush1.msra.mxu0 0.0
    %6173 = vmatprep.subr.mxu0 0.0
    %6174 = vmatpush1.msra.mxu0 0.0
    %6175 = vmatprep.subr.mxu0 0.0
    %6176 = vmatpush1.msra.mxu0 0.0
    %6177 = vmatprep.subr.mxu0 0.0
    %6178 = vmatpush1.msra.mxu0 0.0
    %6179 = vmatprep.subr.mxu0 0.0
    %6180 = vmatpush1.msra.mxu0 0.0
    %6181 = vmatprep.subr.mxu0 0.0
    %6182 = vmatpush1.msra.mxu0 0.0
    %6183 = vmatprep.subr.mxu0 0.0
    %6184 = vmatpush1.msra.mxu0 0.0
    %6185 = vmatprep.subr.mxu0 0.0
    %6186 = vmatpush1.msra.mxu0 0.0
    %6187 = vmatprep.subr.mxu0 0.0
    %6188 = vmatpush1.msra.mxu0 0.0
    %6189 = vmatprep.subr.mxu0 0.0
    %6190 = vmatpush1.msra.mxu0 0.0
    %6191 = vmatprep.subr.mxu0 0.0
    %6192 = vmatpush1.msra.mxu0 0.0
    %6193 = vmatprep.subr.mxu0 0.0
    %6194 = vmatpush1.msra.mxu0 0.0
    %6195 = vmatprep.subr.mxu0 0.0
    %6196 = vmatpush1.msra.mxu0 0.0
    %6197 = vmatprep.subr.mxu0 0.0
    %6198 = vmatpush1.msra.mxu0 0.0
    %6199 = vmatprep.mubr.f32.mxu0 0.0
    %6200 = vmatmul.mubr.f32.gmra.mrb[0].mxu0 %v6133
    %v6201 = vpop.f32.mrb[0].mxu0
    %v6202 = vadd.f32 0.0, %v6201
    %v6203 = vpop.f32.mrb[0].mxu0
    %6204 = vdwg.mxu0
    %6206 = vrot.lane.b32.xlu0 %v6056, 16
    %v6207 = vpop.permute.xlu0 %6206
    %6210 = vrot.lane.b32.xlu0 %v6129, 32
    %v6211 = vpop.permute.xlu0 %6210
    %6214 = vrot.lane.b32.xlu0 %v6202, 48
    %v6215 = vpop.permute.xlu0 %6214
    %v6217 = vsel %vm43, %v5983, %v6207
    %v6218 = vsel %vm907, %v6217, %v6211
    %v6219 = vsel %vm909, %v6218, %v6215
    %v6220 = vpack.c.bf16 %v6219, %v6219
    %6221 = vrot.lane.b32.xlu0 %v5489, 64
    %v6222 = vpop.permute.xlu0 %6221
    %6223 = vrot.lane.b32.xlu0 %v5491, 64
    %v6224 = vpop.permute.xlu0 %6223
    %6225 = vrot.lane.b32.xlu0 %v5493, 64
    %v6226 = vpop.permute.xlu0 %6225
    %6227 = vrot.lane.b32.xlu0 %v5495, 64
    %v6228 = vpop.permute.xlu0 %6227
    %6234 = vrot.lane.b32.xlu0 %v5463, 64
    %v6235 = vpop.permute.xlu0 %6234
    %v6238 = vsel %vm191, %v6220, 0
    %6240 = vmatprep.subr.bf16.mxu0 0
    %6241 = vmatpush1.bf16.msra.mxu0 %v6222
    %6242 = vmatprep.subr.bf16.mxu0 0
    %6243 = vmatpush1.bf16.msra.mxu0 %v6224
    %6244 = vmatprep.subr.bf16.mxu0 0
    %6245 = vmatpush1.bf16.msra.mxu0 %v6226
    %6246 = vmatprep.subr.bf16.mxu0 0
    %6247 = vmatpush1.bf16.msra.mxu0 %v6228
    %6248 = vmatprep.subr.bf16.mxu0 0
    %6249 = vmatpush1.bf16.msra.mxu0 0
    %6250 = vmatprep.subr.bf16.mxu0 0
    %6251 = vmatpush1.bf16.msra.mxu0 0
    %6252 = vmatprep.subr.bf16.mxu0 0
    %6253 = vmatpush1.bf16.msra.mxu0 0
    %6254 = vmatprep.subr.bf16.mxu0 0
    %6255 = vmatpush1.bf16.msra.mxu0 0
    %6256 = vmatprep.subr.bf16.mxu0 0
    %6257 = vmatpush1.bf16.msra.mxu0 0
    %6258 = vmatprep.subr.bf16.mxu0 0
    %6259 = vmatpush1.bf16.msra.mxu0 0
    %6260 = vmatprep.subr.bf16.mxu0 0
    %6261 = vmatpush1.bf16.msra.mxu0 0
    %6262 = vmatprep.subr.bf16.mxu0 0
    %6263 = vmatpush1.bf16.msra.mxu0 0
    %6264 = vmatprep.subr.bf16.mxu0 0
    %6265 = vmatpush1.bf16.msra.mxu0 0
    %6266 = vmatprep.subr.bf16.mxu0 0
    %6267 = vmatpush1.bf16.msra.mxu0 0
    %6268 = vmatprep.subr.bf16.mxu0 0
    %6269 = vmatpush1.bf16.msra.mxu0 0
    %6270 = vmatprep.subr.bf16.mxu0 0
    %6271 = vmatpush1.bf16.msra.mxu0 0
    %6272 = vmatprep.mubr.bf16.mxu0 0
    %6273 = vmatmul.mubr.bf16.gmra.mrb[0].mxu0 %v6238
    %v6274 = vpop.f32.mrb[0].mxu0
    %v6275 = vadd.f32 %v6235, %v6274
    %v6276 = vpop.f32.mrb[0].mxu0
    %v6277 = vpop.f32.mrb[0].mxu0
    %v6278 = vpop.f32.mrb[0].mxu0
    %6279 = vdwg.mxu0
    %v6280 = vadd.f32 %v5404, %v6275
    %v6281 = vsel %vm191, %v6280, 0.0
    %6282 = vadd.xlane.f32.xlu0 %v6281
    %v6283 = vpop.xlane.xlu0 %6282
    %v6284 = vmul.f32 %v6283, %v975
    %v6285 = vmul.f32 %v6280, %v6280
    %v6286 = vsel %vm191, %v6285, 0.0
    %6287 = vadd.xlane.f32.xlu0 %v6286
    %v6288 = vpop.xlane.xlu0 %6287
    %v6289 = vmul.f32 %v6288, %v975
    %v6290 = vsub.f32 %v6280, %v6284
    %v6291 = vmul.f32 %v6284, %v6284
    %v6292 = vsub.f32 %v6289, %v6291
    %v6293 = vadd.f32 %v6292, 1e-05
    %v6294 = vrsqrt.pop %v6293
    %v6295 = vmul.f32 %v6290, %v6294
    %v6296 = vlaneseq
    %v6297 = vshrl.u32 %v6296, 7
    %v6298 = vsub.s32 2, %v6297
    %v6299 = vrot.slane %v5453, %v6298
    %6301 = vrot.lane.b32.xlu0 %v6299, 64
    %v6302 = vpop.permute.xlu0 %6301
    %v6304 = vmul.f32 %v6295, %v6302
    %v6305 = vlaneseq
    %v6306 = vshrl.u32 %v6305, 7
    %v6307 = vsub.s32 2, %v6306
    %v6308 = vrot.slane %v5454, %v6307
    %v6309 = vadd.f32 %v6304, %v6308
    %v6310 = vpack.c.bf16 %v6309, %v6309
    %v6311 = vlaneseq
    %v6312 = vshrl.u32 %v6311, 7
    %v6313 = vsub.s32 1, %v6312
    %v6314 = vrot.slane %v5453, %v6313
    %v6315 = vlaneseq
    %v6316 = vshrl.u32 %v6315, 7
    %v6317 = vsub.s32 1, %v6316
    %v6318 = vrot.slane %v5454, %v6317
    %v6327 = vunpack.c.l.b16 %v5406
    %v6328 = vunpack.c.h.b16 %v5406
    %v6329 = vunpack.c.l.b16 %v5408
    %v6330 = vunpack.c.h.b16 %v5408
    %v6331 = vunpack.c.l.b16 %v5410
    %v6332 = vunpack.c.h.b16 %v5410
    %v6333 = vunpack.c.l.b16 %v5412
    %v6334 = vunpack.c.h.b16 %v5412
    %v6335 = vunpack.c.l.b16 %v5414
    %v6336 = vunpack.c.h.b16 %v5414
    %v6337 = vunpack.c.l.b16 %v5416
    %v6338 = vunpack.c.h.b16 %v5416
    %v6339 = vunpack.c.l.b16 %v5418
    %v6340 = vunpack.c.h.b16 %v5418
    %v6341 = vunpack.c.l.b16 %v5420
    %v6342 = vunpack.c.h.b16 %v5420
    %v6343 = vpack.c.b16 %v6329, %v6327
    %v6344 = vpack.c.b16 %v6330, %v6328
    %v6345 = vpack.c.b16 %v6333, %v6331
    %v6346 = vpack.c.b16 %v6334, %v6332
    %v6347 = vpack.c.b16 %v6337, %v6335
    %v6348 = vpack.c.b16 %v6338, %v6336
    %v6349 = vpack.c.b16 %v6341, %v6339
    %v6350 = vpack.c.b16 %v6342, %v6340
    %v6360 = vsel %vm191, %v6310, 0
    %6362 = vmatprep.subr.bf16.mxu0 %v6344
    %6363 = vmatpush1.bf16.msra.mxu0 %v6343
    %6364 = vmatprep.subr.bf16.mxu0 %v6346
    %6365 = vmatpush1.bf16.msra.mxu0 %v6345
    %6366 = vmatprep.subr.bf16.mxu0 %v6348
    %6367 = vmatpush1.bf16.msra.mxu0 %v6347
    %6368 = vmatprep.subr.bf16.mxu0 %v6350
    %6369 = vmatpush1.bf16.msra.mxu0 %v6349
    %6370 = vmatprep.subr.bf16.mxu0 0
    %6371 = vmatpush1.bf16.msra.mxu0 0
    %6372 = vmatprep.subr.bf16.mxu0 0
    %6373 = vmatpush1.bf16.msra.mxu0 0
    %6374 = vmatprep.subr.bf16.mxu0 0
    %6375 = vmatpush1.bf16.msra.mxu0 0
    %6376 = vmatprep.subr.bf16.mxu0 0
    %6377 = vmatpush1.bf16.msra.mxu0 0
    %6378 = vmatprep.subr.bf16.mxu0 0
    %6379 = vmatpush1.bf16.msra.mxu0 0
    %6380 = vmatprep.subr.bf16.mxu0 0
    %6381 = vmatpush1.bf16.msra.mxu0 0
    %6382 = vmatprep.subr.bf16.mxu0 0
    %6383 = vmatpush1.bf16.msra.mxu0 0
    %6384 = vmatprep.subr.bf16.mxu0 0
    %6385 = vmatpush1.bf16.msra.mxu0 0
    %6386 = vmatprep.subr.bf16.mxu0 0
    %6387 = vmatpush1.bf16.msra.mxu0 0
    %6388 = vmatprep.subr.bf16.mxu0 0
    %6389 = vmatpush1.bf16.msra.mxu0 0
    %6390 = vmatprep.subr.bf16.mxu0 0
    %6391 = vmatpush1.bf16.msra.mxu0 0
    %6392 = vmatprep.subr.bf16.mxu0 0
    %6393 = vmatpush1.bf16.msra.mxu0 0
    %6394 = vmatprep.mubr.bf16.mxu0 0
    %6395 = vmatmul.mubr.bf16.gmra.mrb[0].mxu0 %v6360
    %v6396 = vpop.f32.mrb[0].mxu0
    %v6397 = vadd.f32 %v6314, %v6396
    %v6398 = vpop.f32.mrb[0].mxu0
    %v6399 = vadd.f32 %v6318, %v6398
    %v6400 = vpop.f32.mrb[0].mxu0
    %v6401 = vpop.f32.mrb[0].mxu0
    %6402 = vdwg.mxu0
    %v6403 = vmax.f32 %v6397, 0.0
    %v6404 = vmax.f32 %v6399, 0.0
    %v6405 = vpack.c.bf16 %v6403, %v6403
    %v6406 = vpack.c.bf16 %v6404, %v6404
    %v6439 = vunpack.c.l.b16 %v5421
    %v6440 = vunpack.c.l.b16 %v5422
    %v6441 = vunpack.c.l.b16 %v5423
    %v6442 = vunpack.c.l.b16 %v5424
    %v6443 = vunpack.c.l.b16 %v5425
    %v6444 = vunpack.c.l.b16 %v5426
    %v6445 = vunpack.c.l.b16 %v5427
    %v6446 = vunpack.c.l.b16 %v5428
    %v6447 = vunpack.c.l.b16 %v5429
    %v6448 = vunpack.c.l.b16 %v5430
    %v6449 = vunpack.c.l.b16 %v5431
    %v6450 = vunpack.c.l.b16 %v5432
    %v6451 = vunpack.c.l.b16 %v5433
    %v6452 = vunpack.c.l.b16 %v5434
    %v6453 = vunpack.c.l.b16 %v5435
    %v6454 = vunpack.c.l.b16 %v5436
    %v6455 = vunpack.c.l.b16 %v5437
    %v6456 = vunpack.c.l.b16 %v5438
    %v6457 = vunpack.c.l.b16 %v5439
    %v6458 = vunpack.c.l.b16 %v5440
    %v6459 = vunpack.c.l.b16 %v5441
    %v6460 = vunpack.c.l.b16 %v5442
    %v6461 = vunpack.c.l.b16 %v5443
    %v6462 = vunpack.c.l.b16 %v5444
    %v6463 = vunpack.c.l.b16 %v5445
    %v6464 = vunpack.c.l.b16 %v5446
    %v6465 = vunpack.c.l.b16 %v5447
    %v6466 = vunpack.c.l.b16 %v5448
    %v6467 = vunpack.c.l.b16 %v5449
    %v6468 = vunpack.c.l.b16 %v5450
    %v6469 = vunpack.c.l.b16 %v5451
    %v6470 = vunpack.c.l.b16 %v5452
    %v6471 = vpack.c.b16 %v6440, %v6439
    %v6472 = vpack.c.b16 %v6442, %v6441
    %v6473 = vpack.c.b16 %v6444, %v6443
    %v6474 = vpack.c.b16 %v6446, %v6445
    %v6475 = vpack.c.b16 %v6448, %v6447
    %v6476 = vpack.c.b16 %v6450, %v6449
    %v6477 = vpack.c.b16 %v6452, %v6451
    %v6478 = vpack.c.b16 %v6454, %v6453
    %v6479 = vpack.c.b16 %v6456, %v6455
    %v6480 = vpack.c.b16 %v6458, %v6457
    %v6481 = vpack.c.b16 %v6460, %v6459
    %v6482 = vpack.c.b16 %v6462, %v6461
    %v6483 = vpack.c.b16 %v6464, %v6463
    %v6484 = vpack.c.b16 %v6466, %v6465
    %v6485 = vpack.c.b16 %v6468, %v6467
    %v6486 = vpack.c.b16 %v6470, %v6469
    %6503 = vmatprep.subr.bf16.mxu0 0
    %6504 = vmatpush1.bf16.msra.mxu0 %v6471
    %6505 = vmatprep.subr.bf16.mxu0 0
    %6506 = vmatpush1.bf16.msra.mxu0 %v6472
    %6507 = vmatprep.subr.bf16.mxu0 0
    %6508 = vmatpush1.bf16.msra.mxu0 %v6473
    %6509 = vmatprep.subr.bf16.mxu0 0
    %6510 = vmatpush1.bf16.msra.mxu0 %v6474
    %6511 = vmatprep.subr.bf16.mxu0 0
    %6512 = vmatpush1.bf16.msra.mxu0 %v6475
    %6513 = vmatprep.subr.bf16.mxu0 0
    %6514 = vmatpush1.bf16.msra.mxu0 %v6476
    %6515 = vmatprep.subr.bf16.mxu0 0
    %6516 = vmatpush1.bf16.msra.mxu0 %v6477
    %6517 = vmatprep.subr.bf16.mxu0 0
    %6518 = vmatpush1.bf16.msra.mxu0 %v6478
    %6519 = vmatprep.subr.bf16.mxu0 0
    %6520 = vmatpush1.bf16.msra.mxu0 %v6479
    %6521 = vmatprep.subr.bf16.mxu0 0
    %6522 = vmatpush1.bf16.msra.mxu0 %v6480
    %6523 = vmatprep.subr.bf16.mxu0 0
    %6524 = vmatpush1.bf16.msra.mxu0 %v6481
    %6525 = vmatprep.subr.bf16.mxu0 0
    %6526 = vmatpush1.bf16.msra.mxu0 %v6482
    %6527 = vmatprep.subr.bf16.mxu0 0
    %6528 = vmatpush1.bf16.msra.mxu0 %v6483
    %6529 = vmatprep.subr.bf16.mxu0 0
    %6530 = vmatpush1.bf16.msra.mxu0 %v6484
    %6531 = vmatprep.subr.bf16.mxu0 0
    %6532 = vmatpush1.bf16.msra.mxu0 %v6485
    %6533 = vmatprep.subr.bf16.mxu0 0
    %6534 = vmatpush1.bf16.msra.mxu0 %v6486
    %6535 = vmatprep.mubr.bf16.mxu0 %v6406
    %6536 = vmatmul.mubr.bf16.gmra.mrb[0].mxu0 %v6405
    %v6537 = vpop.f32.mrb[0].mxu0
    %v6538 = vadd.f32 %v6299, %v6537
    %v6539 = vpop.f32.mrb[0].mxu0
    %v6540 = vpop.f32.mrb[0].mxu0
    %v6541 = vpop.f32.mrb[0].mxu0
    %6542 = vdwg.mxu0
    %v6543 = vadd.f32 %v6309, %v6538
    %v6544 = vsel %vm191, %v6543, 0.0
    %6545 = vadd.xlane.f32.xlu0 %v6544
    %v6546 = vpop.xlane.xlu0 %6545
    %v6547 = vmul.f32 %v6546, %v975
    %v6548 = vmul.f32 %v6543, %v6543
    %v6549 = vsel %vm191, %v6548, 0.0
    %6550 = vadd.xlane.f32.xlu0 %v6549
    %v6551 = vpop.xlane.xlu0 %6550
    %v6552 = vmul.f32 %v6551, %v975
    %v6553 = vsub.f32 %v6543, %v6547
    %v6554 = vmul.f32 %v6547, %v6547
    %v6555 = vsub.f32 %v6552, %v6554
    %v6556 = vadd.f32 %v6555, 1e-05
    %v6557 = vrsqrt.pop %v6556
    %v6558 = vmul.f32 %v6553, %v6557
    %6560 = vrot.lane.b32.xlu0 %v6308, 64
    %v6561 = vpop.permute.xlu0 %6560
    %v6563 = vmul.f32 %v6558, %v6561
    %v6564 = vlaneseq
    %v6565 = vshrl.u32 %v6564, 7
    %v6566 = vsub.s32 3, %v6565
    %v6567 = vrot.slane %v5453, %v6566
    %v6568 = vadd.f32 %v6563, %v6567
    %v6569 = vld [vmem:[%s1261] sm:$0xff]
    %v6570 = vld [vmem:[%s1261 + $0x8] sm:$0xff]
    %v6571 = vld [vmem:[%s1261 + $0x10] sm:$0xff]
    %v6572 = vld [vmem:[%s1261 + $0x18] sm:$0xff]
    %v6573 = vld [vmem:[%s1261 + $0x20] sm:$0xff]
    %v6574 = vld [vmem:[%s1261 + $0x28] sm:$0xff]
    %v6575 = vld [vmem:[%s1261 + $0x30] sm:$0xff]
    %v6576 = vld [vmem:[%s1261 + $0x38] sm:$0xff]
    %v6577 = vld [vmem:[%s1261 + $0x40] sm:$0xff]
    %v6578 = vld [vmem:[%s1261 + $0x48] sm:$0xff]
    %v6579 = vld [vmem:[%s1261 + $0x50] sm:$0xff]
    %v6580 = vld [vmem:[%s1261 + $0x58] sm:$0xff]
    %v6581 = vld [vmem:[%s1261 + $0x60] sm:$0xff]
    %v6582 = vld [vmem:[%s1261 + $0x68] sm:$0xff]
    %v6583 = vld [vmem:[%s1261 + $0x70] sm:$0xff]
    %v6584 = vld [vmem:[%s1261 + $0x78] sm:$0xff]
    %v6585 = vld [vmem:[%s1278] sm:$0xf]
    %v6586 = vld [vmem:[%s1278 + $0x4] sm:$0xf]
    %v6587 = vld [vmem:[%s1278 + $0x8] sm:$0xf]
    %v6588 = vld [vmem:[%s1278 + $0xc] sm:$0xf]
    %v6589 = vld [vmem:[%s1278 + $0x10] sm:$0xf]
    %v6590 = vld [vmem:[%s1278 + $0x14] sm:$0xf]
    %v6591 = vld [vmem:[%s1278 + $0x18] sm:$0xf]
    %v6592 = vld [vmem:[%s1278 + $0x1c] sm:$0xf]
    %v6593 = vld [vmem:[%s1278 + $0x20] sm:$0xf]
    %v6594 = vld [vmem:[%s1278 + $0x24] sm:$0xf]
    %v6595 = vld [vmem:[%s1278 + $0x28] sm:$0xf]
    %v6596 = vld [vmem:[%s1278 + $0x2c] sm:$0xf]
    %v6597 = vld [vmem:[%s1278 + $0x30] sm:$0xf]
    %v6598 = vld [vmem:[%s1278 + $0x34] sm:$0xf]
    %v6599 = vld [vmem:[%s1278 + $0x38] sm:$0xf]
    %v6600 = vld [vmem:[%s1278 + $0x3c] sm:$0xf]
    %v6601 = vld [vmem:[%s1278 + $0x40] sm:$0xf]
    %v6602 = vld [vmem:[%s1278 + $0x44] sm:$0xf]
    %v6603 = vld [vmem:[%s1278 + $0x48] sm:$0xf]
    %v6604 = vld [vmem:[%s1278 + $0x4c] sm:$0xf]
    %v6605 = vld [vmem:[%s1278 + $0x50] sm:$0xf]
    %v6606 = vld [vmem:[%s1278 + $0x54] sm:$0xf]
    %v6607 = vld [vmem:[%s1278 + $0x58] sm:$0xf]
    %v6608 = vld [vmem:[%s1278 + $0x5c] sm:$0xf]
    %v6609 = vld [vmem:[%s1278 + $0x60] sm:$0xf]
    %v6610 = vld [vmem:[%s1278 + $0x64] sm:$0xf]
    %v6611 = vld [vmem:[%s1278 + $0x68] sm:$0xf]
    %v6612 = vld [vmem:[%s1278 + $0x6c] sm:$0xf]
    %v6613 = vld [vmem:[%s1278 + $0x70] sm:$0xf]
    %v6614 = vld [vmem:[%s1278 + $0x74] sm:$0xf]
    %v6615 = vld [vmem:[%s1278 + $0x78] sm:$0xf]
    %v6616 = vld [vmem:[%s1278 + $0x7c] sm:$0xf]
    %v6617 = vld [vmem:[%s1311] sm:$0xff]
    %v6618 = vld [vmem:[%s1311 + $0x8] sm:$0xff]
    %v6619 = vpack.c.bf16 %v6568, %v6568
    %v6620 = vlaneseq
    %v6621 = vshrl.u32 %v6620, 7
    %v6622 = vsub.s32 0, %v6621
    %v6623 = vrot.slane %v6617, %v6622
    %v6624 = vlaneseq
    %v6625 = vshrl.u32 %v6624, 7
    %v6626 = vsub.s32 0, %v6625
    %v6627 = vrot.slane %v6618, %v6626
    %v6636 = vunpack.c.l.b16 %v6569
    %v6637 = vunpack.c.h.b16 %v6569
    %v6638 = vunpack.c.l.b16 %v6571
    %v6639 = vunpack.c.h.b16 %v6571
    %v6640 = vunpack.c.l.b16 %v6573
    %v6641 = vunpack.c.h.b16 %v6573
    %v6642 = vunpack.c.l.b16 %v6575
    %v6643 = vunpack.c.h.b16 %v6575
    %v6644 = vunpack.c.l.b16 %v6577
    %v6645 = vunpack.c.h.b16 %v6577
    %v6646 = vunpack.c.l.b16 %v6579
    %v6647 = vunpack.c.h.b16 %v6579
    %v6648 = vunpack.c.l.b16 %v6581
    %v6649 = vunpack.c.h.b16 %v6581
    %v6650 = vunpack.c.l.b16 %v6583
    %v6651 = vunpack.c.h.b16 %v6583
    %v6652 = vpack.c.b16 %v6638, %v6636
    %v6653 = vpack.c.b16 %v6639, %v6637
    %v6654 = vpack.c.b16 %v6642, %v6640
    %v6655 = vpack.c.b16 %v6643, %v6641
    %v6656 = vpack.c.b16 %v6646, %v6644
    %v6657 = vpack.c.b16 %v6647, %v6645
    %v6658 = vpack.c.b16 %v6650, %v6648
    %v6659 = vpack.c.b16 %v6651, %v6649
    %v6669 = vsel %vm191, %v6619, 0
    %6671 = vmatprep.subr.bf16.mxu0 %v6653
    %6672 = vmatpush1.bf16.msra.mxu0 %v6652
    %6673 = vmatprep.subr.bf16.mxu0 %v6655
    %6674 = vmatpush1.bf16.msra.mxu0 %v6654
    %6675 = vmatprep.subr.bf16.mxu0 %v6657
    %6676 = vmatpush1.bf16.msra.mxu0 %v6656
    %6677 = vmatprep.subr.bf16.mxu0 %v6659
    %6678 = vmatpush1.bf16.msra.mxu0 %v6658
    %6679 = vmatprep.subr.bf16.mxu0 0
    %6680 = vmatpush1.bf16.msra.mxu0 0
    %6681 = vmatprep.subr.bf16.mxu0 0
    %6682 = vmatpush1.bf16.msra.mxu0 0
    %6683 = vmatprep.subr.bf16.mxu0 0
    %6684 = vmatpush1.bf16.msra.mxu0 0
    %6685 = vmatprep.subr.bf16.mxu0 0
    %6686 = vmatpush1.bf16.msra.mxu0 0
    %6687 = vmatprep.subr.bf16.mxu0 0
    %6688 = vmatpush1.bf16.msra.mxu0 0
    %6689 = vmatprep.subr.bf16.mxu0 0
    %6690 = vmatpush1.bf16.msra.mxu0 0
    %6691 = vmatprep.subr.bf16.mxu0 0
    %6692 = vmatpush1.bf16.msra.mxu0 0
    %6693 = vmatprep.subr.bf16.mxu0 0
    %6694 = vmatpush1.bf16.msra.mxu0 0
    %6695 = vmatprep.subr.bf16.mxu0 0
    %6696 = vmatpush1.bf16.msra.mxu0 0
    %6697 = vmatprep.subr.bf16.mxu0 0
    %6698 = vmatpush1.bf16.msra.mxu0 0
    %6699 = vmatprep.subr.bf16.mxu0 0
    %6700 = vmatpush1.bf16.msra.mxu0 0
    %6701 = vmatprep.subr.bf16.mxu0 0
    %6702 = vmatpush1.bf16.msra.mxu0 0
    %6703 = vmatprep.mubr.bf16.mxu0 0
    %6704 = vmatmul.mubr.bf16.gmra.mrb[0].mxu0 %v6669
    %v6705 = vpop.f32.mrb[0].mxu0
    %v6706 = vadd.f32 %v6623, %v6705
    %v6707 = vpop.f32.mrb[0].mxu0
    %v6708 = vadd.f32 %v6627, %v6707
    %v6709 = vpop.f32.mrb[0].mxu0
    %v6710 = vpop.f32.mrb[0].mxu0
    %6711 = vdwg.mxu0
    %6713 = vrot.lane.b32.xlu0 %v6706, 112
    %v6714 = vpop.permute.xlu0 %6713
    %6715 = vrot.lane.b32.xlu0 %v6706, 96
    %v6716 = vpop.permute.xlu0 %6715
    %6717 = vrot.lane.b32.xlu0 %v6706, 80
    %v6718 = vpop.permute.xlu0 %6717
    %6720 = vrot.lane.b32.xlu0 %v6708, 112
    %v6721 = vpop.permute.xlu0 %6720
    %6723 = vrot.lane.b32.xlu0 %v6708, 96
    %v6724 = vpop.permute.xlu0 %6723
    %6726 = vrot.lane.b32.xlu0 %v6708, 80
    %v6727 = vpop.permute.xlu0 %6726
    %6729 = vrot.lane.b32.xlu0 %v6706, 64
    %v6730 = vpop.permute.xlu0 %6729
    %v6731 = vsel %vm43, %v6706, 0
    %v6733 = vsel %vm43, %v6730, 0
    %6735 = vmatprep.subr.mxu0 0.0
    %6736 = vmatpush1.xpose.msra.mxu0 %v6733
    %6737 = vmatprep.subr.mxu0 0.0
    %6738 = vmatpush1.xpose.msra.mxu0 0.0
    %6739 = vmatprep.subr.mxu0 0.0
    %6740 = vmatpush1.xpose.msra.mxu0 0.0
    %6741 = vmatprep.subr.mxu0 0.0
    %6742 = vmatpush1.xpose.msra.mxu0 0.0
    %6743 = vmatprep.subr.mxu0 0.0
    %6744 = vmatpush1.xpose.msra.mxu0 0.0
    %6745 = vmatprep.subr.mxu0 0.0
    %6746 = vmatpush1.xpose.msra.mxu0 0.0
    %6747 = vmatprep.subr.mxu0 0.0
    %6748 = vmatpush1.xpose.msra.mxu0 0.0
    %6749 = vmatprep.subr.mxu0 0.0
    %6750 = vmatpush1.xpose.msra.mxu0 0.0
    %6751 = vmatprep.subr.mxu0 0.0
    %6752 = vmatpush1.xpose.msra.mxu0 0.0
    %6753 = vmatprep.subr.mxu0 0.0
    %6754 = vmatpush1.xpose.msra.mxu0 0.0
    %6755 = vmatprep.subr.mxu0 0.0
    %6756 = vmatpush1.xpose.msra.mxu0 0.0
    %6757 = vmatprep.subr.mxu0 0.0
    %6758 = vmatpush1.xpose.msra.mxu0 0.0
    %6759 = vmatprep.subr.mxu0 0.0
    %6760 = vmatpush1.xpose.msra.mxu0 0.0
    %6761 = vmatprep.subr.mxu0 0.0
    %6762 = vmatpush1.xpose.msra.mxu0 0.0
    %6763 = vmatprep.subr.mxu0 0.0
    %6764 = vmatpush1.xpose.msra.mxu0 0.0
    %6765 = vmatprep.subr.mxu0 0.0
    %6766 = vmatpush1.xpose.msra.mxu0 0.0
    %6767 = vmatprep.subr.mxu0 0.0
    %6768 = vmatpush1.xpose.msra.mxu0 0.0
    %6769 = vmatprep.subr.mxu0 0.0
    %6770 = vmatpush1.xpose.msra.mxu0 0.0
    %6771 = vmatprep.subr.mxu0 0.0
    %6772 = vmatpush1.xpose.msra.mxu0 0.0
    %6773 = vmatprep.subr.mxu0 0.0
    %6774 = vmatpush1.xpose.msra.mxu0 0.0
    %6775 = vmatprep.subr.mxu0 0.0
    %6776 = vmatpush1.xpose.msra.mxu0 0.0
    %6777 = vmatprep.subr.mxu0 0.0
    %6778 = vmatpush1.xpose.msra.mxu0 0.0
    %6779 = vmatprep.subr.mxu0 0.0
    %6780 = vmatpush1.xpose.msra.mxu0 0.0
    %6781 = vmatprep.subr.mxu0 0.0
    %6782 = vmatpush1.xpose.msra.mxu0 0.0
    %6783 = vmatprep.subr.mxu0 0.0
    %6784 = vmatpush1.xpose.msra.mxu0 0.0
    %6785 = vmatprep.subr.mxu0 0.0
    %6786 = vmatpush1.xpose.msra.mxu0 0.0
    %6787 = vmatprep.subr.mxu0 0.0
    %6788 = vmatpush1.xpose.msra.mxu0 0.0
    %6789 = vmatprep.subr.mxu0 0.0
    %6790 = vmatpush1.xpose.msra.mxu0 0.0
    %6791 = vmatprep.subr.mxu0 0.0
    %6792 = vmatpush1.xpose.msra.mxu0 0.0
    %6793 = vmatprep.subr.mxu0 0.0
    %6794 = vmatpush1.xpose.msra.mxu0 0.0
    %6795 = vmatprep.subr.mxu0 0.0
    %6796 = vmatpush1.xpose.msra.mxu0 0.0
    %6797 = vmatprep.subr.mxu0 0.0
    %6798 = vmatpush1.xpose.msra.mxu0 0.0
    %6799 = vmatprep.mubr.f32.mxu0 0.0
    %6800 = vmatmul.mubr.f32.gmra.mrb[0].mxu0 %v6731
    %v6801 = vpop.f32.mrb[0].mxu0
    %v6802 = vadd.f32 0.0, %v6801
    %v6803 = vpop.f32.mrb[0].mxu0
    %6804 = vdwg.mxu0
    %6805 = vrot.lane.b32.xlu0 %v6714, 64
    %v6806 = vpop.permute.xlu0 %6805
    %v6807 = vsel %vm43, %v6714, 0
    %v6809 = vsel %vm43, %v6806, 0
    %6811 = vmatprep.subr.mxu0 0.0
    %6812 = vmatpush1.xpose.msra.mxu0 %v6809
    %6813 = vmatprep.subr.mxu0 0.0
    %6814 = vmatpush1.xpose.msra.mxu0 0.0
    %6815 = vmatprep.subr.mxu0 0.0
    %6816 = vmatpush1.xpose.msra.mxu0 0.0
    %6817 = vmatprep.subr.mxu0 0.0
    %6818 = vmatpush1.xpose.msra.mxu0 0.0
    %6819 = vmatprep.subr.mxu0 0.0
    %6820 = vmatpush1.xpose.msra.mxu0 0.0
    %6821 = vmatprep.subr.mxu0 0.0
    %6822 = vmatpush1.xpose.msra.mxu0 0.0
    %6823 = vmatprep.subr.mxu0 0.0
    %6824 = vmatpush1.xpose.msra.mxu0 0.0
    %6825 = vmatprep.subr.mxu0 0.0
    %6826 = vmatpush1.xpose.msra.mxu0 0.0
    %6827 = vmatprep.subr.mxu0 0.0
    %6828 = vmatpush1.xpose.msra.mxu0 0.0
    %6829 = vmatprep.subr.mxu0 0.0
    %6830 = vmatpush1.xpose.msra.mxu0 0.0
    %6831 = vmatprep.subr.mxu0 0.0
    %6832 = vmatpush1.xpose.msra.mxu0 0.0
    %6833 = vmatprep.subr.mxu0 0.0
    %6834 = vmatpush1.xpose.msra.mxu0 0.0
    %6835 = vmatprep.subr.mxu0 0.0
    %6836 = vmatpush1.xpose.msra.mxu0 0.0
    %6837 = vmatprep.subr.mxu0 0.0
    %6838 = vmatpush1.xpose.msra.mxu0 0.0
    %6839 = vmatprep.subr.mxu0 0.0
    %6840 = vmatpush1.xpose.msra.mxu0 0.0
    %6841 = vmatprep.subr.mxu0 0.0
    %6842 = vmatpush1.xpose.msra.mxu0 0.0
    %6843 = vmatprep.subr.mxu0 0.0
    %6844 = vmatpush1.xpose.msra.mxu0 0.0
    %6845 = vmatprep.subr.mxu0 0.0
    %6846 = vmatpush1.xpose.msra.mxu0 0.0
    %6847 = vmatprep.subr.mxu0 0.0
    %6848 = vmatpush1.xpose.msra.mxu0 0.0
    %6849 = vmatprep.subr.mxu0 0.0
    %6850 = vmatpush1.xpose.msra.mxu0 0.0
    %6851 = vmatprep.subr.mxu0 0.0
    %6852 = vmatpush1.xpose.msra.mxu0 0.0
    %6853 = vmatprep.subr.mxu0 0.0
    %6854 = vmatpush1.xpose.msra.mxu0 0.0
    %6855 = vmatprep.subr.mxu0 0.0
    %6856 = vmatpush1.xpose.msra.mxu0 0.0
    %6857 = vmatprep.subr.mxu0 0.0
    %6858 = vmatpush1.xpose.msra.mxu0 0.0
    %6859 = vmatprep.subr.mxu0 0.0
    %6860 = vmatpush1.xpose.msra.mxu0 0.0
    %6861 = vmatprep.subr.mxu0 0.0
    %6862 = vmatpush1.xpose.msra.mxu0 0.0
    %6863 = vmatprep.subr.mxu0 0.0
    %6864 = vmatpush1.xpose.msra.mxu0 0.0
    %6865 = vmatprep.subr.mxu0 0.0
    %6866 = vmatpush1.xpose.msra.mxu0 0.0
    %6867 = vmatprep.subr.mxu0 0.0
    %6868 = vmatpush1.xpose.msra.mxu0 0.0
    %6869 = vmatprep.subr.mxu0 0.0
    %6870 = vmatpush1.xpose.msra.mxu0 0.0
    %6871 = vmatprep.subr.mxu0 0.0
    %6872 = vmatpush1.xpose.msra.mxu0 0.0
    %6873 = vmatprep.subr.mxu0 0.0
    %6874 = vmatpush1.xpose.msra.mxu0 0.0
    %6875 = vmatprep.mubr.f32.mxu0 0.0
    %6876 = vmatmul.mubr.f32.gmra.mrb[0].mxu0 %v6807
    %v6877 = vpop.f32.mrb[0].mxu0
    %v6878 = vadd.f32 0.0, %v6877
    %v6879 = vpop.f32.mrb[0].mxu0
    %6880 = vdwg.mxu0
    %6881 = vrot.lane.b32.xlu0 %v6716, 64
    %v6882 = vpop.permute.xlu0 %6881
    %v6883 = vsel %vm43, %v6716, 0
    %v6885 = vsel %vm43, %v6882, 0
    %6887 = vmatprep.subr.mxu0 0.0
    %6888 = vmatpush1.xpose.msra.mxu0 %v6885
    %6889 = vmatprep.subr.mxu0 0.0
    %6890 = vmatpush1.xpose.msra.mxu0 0.0
    %6891 = vmatprep.subr.mxu0 0.0
    %6892 = vmatpush1.xpose.msra.mxu0 0.0
    %6893 = vmatprep.subr.mxu0 0.0
    %6894 = vmatpush1.xpose.msra.mxu0 0.0
    %6895 = vmatprep.subr.mxu0 0.0
    %6896 = vmatpush1.xpose.msra.mxu0 0.0
    %6897 = vmatprep.subr.mxu0 0.0
    %6898 = vmatpush1.xpose.msra.mxu0 0.0
    %6899 = vmatprep.subr.mxu0 0.0
    %6900 = vmatpush1.xpose.msra.mxu0 0.0
    %6901 = vmatprep.subr.mxu0 0.0
    %6902 = vmatpush1.xpose.msra.mxu0 0.0
    %6903 = vmatprep.subr.mxu0 0.0
    %6904 = vmatpush1.xpose.msra.mxu0 0.0
    %6905 = vmatprep.subr.mxu0 0.0
    %6906 = vmatpush1.xpose.msra.mxu0 0.0
    %6907 = vmatprep.subr.mxu0 0.0
    %6908 = vmatpush1.xpose.msra.mxu0 0.0
    %6909 = vmatprep.subr.mxu0 0.0
    %6910 = vmatpush1.xpose.msra.mxu0 0.0
    %6911 = vmatprep.subr.mxu0 0.0
    %6912 = vmatpush1.xpose.msra.mxu0 0.0
    %6913 = vmatprep.subr.mxu0 0.0
    %6914 = vmatpush1.xpose.msra.mxu0 0.0
    %6915 = vmatprep.subr.mxu0 0.0
    %6916 = vmatpush1.xpose.msra.mxu0 0.0
    %6917 = vmatprep.subr.mxu0 0.0
    %6918 = vmatpush1.xpose.msra.mxu0 0.0
    %6919 = vmatprep.subr.mxu0 0.0
    %6920 = vmatpush1.xpose.msra.mxu0 0.0
    %6921 = vmatprep.subr.mxu0 0.0
    %6922 = vmatpush1.xpose.msra.mxu0 0.0
    %6923 = vmatprep.subr.mxu0 0.0
    %6924 = vmatpush1.xpose.msra.mxu0 0.0
    %6925 = vmatprep.subr.mxu0 0.0
    %6926 = vmatpush1.xpose.msra.mxu0 0.0
    %6927 = vmatprep.subr.mxu0 0.0
    %6928 = vmatpush1.xpose.msra.mxu0 0.0
    %6929 = vmatprep.subr.mxu0 0.0
    %6930 = vmatpush1.xpose.msra.mxu0 0.0
    %6931 = vmatprep.subr.mxu0 0.0
    %6932 = vmatpush1.xpose.msra.mxu0 0.0
    %6933 = vmatprep.subr.mxu0 0.0
    %6934 = vmatpush1.xpose.msra.mxu0 0.0
    %6935 = vmatprep.subr.mxu0 0.0
    %6936 = vmatpush1.xpose.msra.mxu0 0.0
    %6937 = vmatprep.subr.mxu0 0.0
    %6938 = vmatpush1.xpose.msra.mxu0 0.0
    %6939 = vmatprep.subr.mxu0 0.0
    %6940 = vmatpush1.xpose.msra.mxu0 0.0
    %6941 = vmatprep.subr.mxu0 0.0
    %6942 = vmatpush1.xpose.msra.mxu0 0.0
    %6943 = vmatprep.subr.mxu0 0.0
    %6944 = vmatpush1.xpose.msra.mxu0 0.0
    %6945 = vmatprep.subr.mxu0 0.0
    %6946 = vmatpush1.xpose.msra.mxu0 0.0
    %6947 = vmatprep.subr.mxu0 0.0
    %6948 = vmatpush1.xpose.msra.mxu0 0.0
    %6949 = vmatprep.subr.mxu0 0.0
    %6950 = vmatpush1.xpose.msra.mxu0 0.0
    %6951 = vmatprep.mubr.f32.mxu0 0.0
    %6952 = vmatmul.mubr.f32.gmra.mrb[0].mxu0 %v6883
    %v6953 = vpop.f32.mrb[0].mxu0
    %v6954 = vadd.f32 0.0, %v6953
    %v6955 = vpop.f32.mrb[0].mxu0
    %6956 = vdwg.mxu0
    %6957 = vrot.lane.b32.xlu0 %v6718, 64
    %v6958 = vpop.permute.xlu0 %6957
    %v6959 = vsel %vm43, %v6718, 0
    %v6961 = vsel %vm43, %v6958, 0
    %6963 = vmatprep.subr.mxu0 0.0
    %6964 = vmatpush1.xpose.msra.mxu0 %v6961
    %6965 = vmatprep.subr.mxu0 0.0
    %6966 = vmatpush1.xpose.msra.mxu0 0.0
    %6967 = vmatprep.subr.mxu0 0.0
    %6968 = vmatpush1.xpose.msra.mxu0 0.0
    %6969 = vmatprep.subr.mxu0 0.0
    %6970 = vmatpush1.xpose.msra.mxu0 0.0
    %6971 = vmatprep.subr.mxu0 0.0
    %6972 = vmatpush1.xpose.msra.mxu0 0.0
    %6973 = vmatprep.subr.mxu0 0.0
    %6974 = vmatpush1.xpose.msra.mxu0 0.0
    %6975 = vmatprep.subr.mxu0 0.0
    %6976 = vmatpush1.xpose.msra.mxu0 0.0
    %6977 = vmatprep.subr.mxu0 0.0
    %6978 = vmatpush1.xpose.msra.mxu0 0.0
    %6979 = vmatprep.subr.mxu0 0.0
    %6980 = vmatpush1.xpose.msra.mxu0 0.0
    %6981 = vmatprep.subr.mxu0 0.0
    %6982 = vmatpush1.xpose.msra.mxu0 0.0
    %6983 = vmatprep.subr.mxu0 0.0
    %6984 = vmatpush1.xpose.msra.mxu0 0.0
    %6985 = vmatprep.subr.mxu0 0.0
    %6986 = vmatpush1.xpose.msra.mxu0 0.0
    %6987 = vmatprep.subr.mxu0 0.0
    %6988 = vmatpush1.xpose.msra.mxu0 0.0
    %6989 = vmatprep.subr.mxu0 0.0
    %6990 = vmatpush1.xpose.msra.mxu0 0.0
    %6991 = vmatprep.subr.mxu0 0.0
    %6992 = vmatpush1.xpose.msra.mxu0 0.0
    %6993 = vmatprep.subr.mxu0 0.0
    %6994 = vmatpush1.xpose.msra.mxu0 0.0
    %6995 = vmatprep.subr.mxu0 0.0
    %6996 = vmatpush1.xpose.msra.mxu0 0.0
    %6997 = vmatprep.subr.mxu0 0.0
    %6998 = vmatpush1.xpose.msra.mxu0 0.0
    %6999 = vmatprep.subr.mxu0 0.0
    %7000 = vmatpush1.xpose.msra.mxu0 0.0
    %7001 = vmatprep.subr.mxu0 0.0
    %7002 = vmatpush1.xpose.msra.mxu0 0.0
    %7003 = vmatprep.subr.mxu0 0.0
    %7004 = vmatpush1.xpose.msra.mxu0 0.0
    %7005 = vmatprep.subr.mxu0 0.0
    %7006 = vmatpush1.xpose.msra.mxu0 0.0
    %7007 = vmatprep.subr.mxu0 0.0
    %7008 = vmatpush1.xpose.msra.mxu0 0.0
    %7009 = vmatprep.subr.mxu0 0.0
    %7010 = vmatpush1.xpose.msra.mxu0 0.0
    %7011 = vmatprep.subr.mxu0 0.0
    %7012 = vmatpush1.xpose.msra.mxu0 0.0
    %7013 = vmatprep.subr.mxu0 0.0
    %7014 = vmatpush1.xpose.msra.mxu0 0.0
    %7015 = vmatprep.subr.mxu0 0.0
    %7016 = vmatpush1.xpose.msra.mxu0 0.0
    %7017 = vmatprep.subr.mxu0 0.0
    %7018 = vmatpush1.xpose.msra.mxu0 0.0
    %7019 = vmatprep.subr.mxu0 0.0
    %7020 = vmatpush1.xpose.msra.mxu0 0.0
    %7021 = vmatprep.subr.mxu0 0.0
    %7022 = vmatpush1.xpose.msra.mxu0 0.0
    %7023 = vmatprep.subr.mxu0 0.0
    %7024 = vmatpush1.xpose.msra.mxu0 0.0
    %7025 = vmatprep.subr.mxu0 0.0
    %7026 = vmatpush1.xpose.msra.mxu0 0.0
    %7027 = vmatprep.mubr.f32.mxu0 0.0
    %7028 = vmatmul.mubr.f32.gmra.mrb[0].mxu0 %v6959
    %v7029 = vpop.f32.mrb[0].mxu0
    %v7030 = vadd.f32 0.0, %v7029
    %v7031 = vpop.f32.mrb[0].mxu0
    %7032 = vdwg.mxu0
    %v7033 = vsel %vm557, %v6802, -inf
    %7034 = vmax.xlane.f32.xlu0 %v7033
    %v7035 = vpop.xlane.xlu0 %7034
    %v7036 = vsel %vm557, %v6878, -inf
    %7037 = vmax.xlane.f32.xlu0 %v7036
    %v7038 = vpop.xlane.xlu0 %7037
    %v7039 = vsel %vm557, %v6954, -inf
    %7040 = vmax.xlane.f32.xlu0 %v7039
    %v7041 = vpop.xlane.xlu0 %7040
    %v7042 = vsel %vm557, %v7030, -inf
    %7043 = vmax.xlane.f32.xlu0 %v7042
    %v7044 = vpop.xlane.xlu0 %7043
    %v7045 = vsub.f32 %v6802, %v7035
    %v7046 = vsub.f32 %v6878, %v7038
    %v7047 = vsub.f32 %v6954, %v7041
    %v7048 = vsub.f32 %v7030, %v7044
    %v7049 = vmul.f32 %v7045, 1.442695
    %v7050 = vpow.pop %v7049
    %v7051 = vmul.f32 %v7046, 1.442695
    %v7052 = vpow.pop %v7051
    %v7053 = vmul.f32 %v7047, 1.442695
    %v7054 = vpow.pop %v7053
    %v7055 = vmul.f32 %v7048, 1.442695
    %v7056 = vpow.pop %v7055
    %v7057 = vsel %vm557, %v7050, 0.0
    %7058 = vadd.xlane.f32.xlu0 %v7057
    %v7059 = vpop.xlane.xlu0 %7058
    %v7060 = vsel %vm557, %v7052, 0.0
    %7061 = vadd.xlane.f32.xlu0 %v7060
    %v7062 = vpop.xlane.xlu0 %7061
    %v7063 = vsel %vm557, %v7054, 0.0
    %7064 = vadd.xlane.f32.xlu0 %v7063
    %v7065 = vpop.xlane.xlu0 %7064
    %v7066 = vsel %vm557, %v7056, 0.0
    %7067 = vadd.xlane.f32.xlu0 %v7066
    %v7068 = vpop.xlane.xlu0 %7067
    %v7069 = vrcp.pop %v7059
    %v7070 = vmul.f32 %v7050, %v7069
    %v7071 = vrcp.pop %v7062
    %v7072 = vmul.f32 %v7052, %v7071
    %v7073 = vrcp.pop %v7065
    %v7074 = vmul.f32 %v7054, %v7073
    %v7075 = vrcp.pop %v7068
    %v7076 = vmul.f32 %v7056, %v7075
    %v7078 = vsel %vm557, %v7070, 0
    %7080 = vmatprep.subr.mxu0 0.0
    %7081 = vmatpush1.msra.mxu0 %v6708
    %7082 = vmatprep.subr.mxu0 0.0
    %7083 = vmatpush1.msra.mxu0 0.0
    %7084 = vmatprep.subr.mxu0 0.0
    %7085 = vmatpush1.msra.mxu0 0.0
    %7086 = vmatprep.subr.mxu0 0.0
    %7087 = vmatpush1.msra.mxu0 0.0
    %7088 = vmatprep.subr.mxu0 0.0
    %7089 = vmatpush1.msra.mxu0 0.0
    %7090 = vmatprep.subr.mxu0 0.0
    %7091 = vmatpush1.msra.mxu0 0.0
    %7092 = vmatprep.subr.mxu0 0.0
    %7093 = vmatpush1.msra.mxu0 0.0
    %7094 = vmatprep.subr.mxu0 0.0
    %7095 = vmatpush1.msra.mxu0 0.0
    %7096 = vmatprep.subr.mxu0 0.0
    %7097 = vmatpush1.msra.mxu0 0.0
    %7098 = vmatprep.subr.mxu0 0.0
    %7099 = vmatpush1.msra.mxu0 0.0
    %7100 = vmatprep.subr.mxu0 0.0
    %7101 = vmatpush1.msra.mxu0 0.0
    %7102 = vmatprep.subr.mxu0 0.0
    %7103 = vmatpush1.msra.mxu0 0.0
    %7104 = vmatprep.subr.mxu0 0.0
    %7105 = vmatpush1.msra.mxu0 0.0
    %7106 = vmatprep.subr.mxu0 0.0
    %7107 = vmatpush1.msra.mxu0 0.0
    %7108 = vmatprep.subr.mxu0 0.0
    %7109 = vmatpush1.msra.mxu0 0.0
    %7110 = vmatprep.subr.mxu0 0.0
    %7111 = vmatpush1.msra.mxu0 0.0
    %7112 = vmatprep.subr.mxu0 0.0
    %7113 = vmatpush1.msra.mxu0 0.0
    %7114 = vmatprep.subr.mxu0 0.0
    %7115 = vmatpush1.msra.mxu0 0.0
    %7116 = vmatprep.subr.mxu0 0.0
    %7117 = vmatpush1.msra.mxu0 0.0
    %7118 = vmatprep.subr.mxu0 0.0
    %7119 = vmatpush1.msra.mxu0 0.0
    %7120 = vmatprep.subr.mxu0 0.0
    %7121 = vmatpush1.msra.mxu0 0.0
    %7122 = vmatprep.subr.mxu0 0.0
    %7123 = vmatpush1.msra.mxu0 0.0
    %7124 = vmatprep.subr.mxu0 0.0
    %7125 = vmatpush1.msra.mxu0 0.0
    %7126 = vmatprep.subr.mxu0 0.0
    %7127 = vmatpush1.msra.mxu0 0.0
    %7128 = vmatprep.subr.mxu0 0.0
    %7129 = vmatpush1.msra.mxu0 0.0
    %7130 = vmatprep.subr.mxu0 0.0
    %7131 = vmatpush1.msra.mxu0 0.0
    %7132 = vmatprep.subr.mxu0 0.0
    %7133 = vmatpush1.msra.mxu0 0.0
    %7134 = vmatprep.subr.mxu0 0.0
    %7135 = vmatpush1.msra.mxu0 0.0
    %7136 = vmatprep.subr.mxu0 0.0
    %7137 = vmatpush1.msra.mxu0 0.0
    %7138 = vmatprep.subr.mxu0 0.0
    %7139 = vmatpush1.msra.mxu0 0.0
    %7140 = vmatprep.subr.mxu0 0.0
    %7141 = vmatpush1.msra.mxu0 0.0
    %7142 = vmatprep.subr.mxu0 0.0
    %7143 = vmatpush1.msra.mxu0 0.0
    %7144 = vmatprep.mubr.f32.mxu0 0.0
    %7145 = vmatmul.mubr.f32.gmra.mrb[0].mxu0 %v7078
    %v7146 = vpop.f32.mrb[0].mxu0
    %v7147 = vadd.f32 0.0, %v7146
    %v7148 = vpop.f32.mrb[0].mxu0
    %7149 = vdwg.mxu0
    %v7151 = vsel %vm557, %v7072, 0
    %7153 = vmatprep.subr.mxu0 0.0
    %7154 = vmatpush1.msra.mxu0 %v6721
    %7155 = vmatprep.subr.mxu0 0.0
    %7156 = vmatpush1.msra.mxu0 0.0
    %7157 = vmatprep.subr.mxu0 0.0
    %7158 = vmatpush1.msra.mxu0 0.0
    %7159 = vmatprep.subr.mxu0 0.0
    %7160 = vmatpush1.msra.mxu0 0.0
    %7161 = vmatprep.subr.mxu0 0.0
    %7162 = vmatpush1.msra.mxu0 0.0
    %7163 = vmatprep.subr.mxu0 0.0
    %7164 = vmatpush1.msra.mxu0 0.0
    %7165 = vmatprep.subr.mxu0 0.0
    %7166 = vmatpush1.msra.mxu0 0.0
    %7167 = vmatprep.subr.mxu0 0.0
    %7168 = vmatpush1.msra.mxu0 0.0
    %7169 = vmatprep.subr.mxu0 0.0
    %7170 = vmatpush1.msra.mxu0 0.0
    %7171 = vmatprep.subr.mxu0 0.0
    %7172 = vmatpush1.msra.mxu0 0.0
    %7173 = vmatprep.subr.mxu0 0.0
    %7174 = vmatpush1.msra.mxu0 0.0
    %7175 = vmatprep.subr.mxu0 0.0
    %7176 = vmatpush1.msra.mxu0 0.0
    %7177 = vmatprep.subr.mxu0 0.0
    %7178 = vmatpush1.msra.mxu0 0.0
    %7179 = vmatprep.subr.mxu0 0.0
    %7180 = vmatpush1.msra.mxu0 0.0
    %7181 = vmatprep.subr.mxu0 0.0
    %7182 = vmatpush1.msra.mxu0 0.0
    %7183 = vmatprep.subr.mxu0 0.0
    %7184 = vmatpush1.msra.mxu0 0.0
    %7185 = vmatprep.subr.mxu0 0.0
    %7186 = vmatpush1.msra.mxu0 0.0
    %7187 = vmatprep.subr.mxu0 0.0
    %7188 = vmatpush1.msra.mxu0 0.0
    %7189 = vmatprep.subr.mxu0 0.0
    %7190 = vmatpush1.msra.mxu0 0.0
    %7191 = vmatprep.subr.mxu0 0.0
    %7192 = vmatpush1.msra.mxu0 0.0
    %7193 = vmatprep.subr.mxu0 0.0
    %7194 = vmatpush1.msra.mxu0 0.0
    %7195 = vmatprep.subr.mxu0 0.0
    %7196 = vmatpush1.msra.mxu0 0.0
    %7197 = vmatprep.subr.mxu0 0.0
    %7198 = vmatpush1.msra.mxu0 0.0
    %7199 = vmatprep.subr.mxu0 0.0
    %7200 = vmatpush1.msra.mxu0 0.0
    %7201 = vmatprep.subr.mxu0 0.0
    %7202 = vmatpush1.msra.mxu0 0.0
    %7203 = vmatprep.subr.mxu0 0.0
    %7204 = vmatpush1.msra.mxu0 0.0
    %7205 = vmatprep.subr.mxu0 0.0
    %7206 = vmatpush1.msra.mxu0 0.0
    %7207 = vmatprep.subr.mxu0 0.0
    %7208 = vmatpush1.msra.mxu0 0.0
    %7209 = vmatprep.subr.mxu0 0.0
    %7210 = vmatpush1.msra.mxu0 0.0
    %7211 = vmatprep.subr.mxu0 0.0
    %7212 = vmatpush1.msra.mxu0 0.0
    %7213 = vmatprep.subr.mxu0 0.0
    %7214 = vmatpush1.msra.mxu0 0.0
    %7215 = vmatprep.subr.mxu0 0.0
    %7216 = vmatpush1.msra.mxu0 0.0
    %7217 = vmatprep.mubr.f32.mxu0 0.0
    %7218 = vmatmul.mubr.f32.gmra.mrb[0].mxu0 %v7151
    %v7219 = vpop.f32.mrb[0].mxu0
    %v7220 = vadd.f32 0.0, %v7219
    %v7221 = vpop.f32.mrb[0].mxu0
    %7222 = vdwg.mxu0
    %v7224 = vsel %vm557, %v7074, 0
    %7226 = vmatprep.subr.mxu0 0.0
    %7227 = vmatpush1.msra.mxu0 %v6724
    %7228 = vmatprep.subr.mxu0 0.0
    %7229 = vmatpush1.msra.mxu0 0.0
    %7230 = vmatprep.subr.mxu0 0.0
    %7231 = vmatpush1.msra.mxu0 0.0
    %7232 = vmatprep.subr.mxu0 0.0
    %7233 = vmatpush1.msra.mxu0 0.0
    %7234 = vmatprep.subr.mxu0 0.0
    %7235 = vmatpush1.msra.mxu0 0.0
    %7236 = vmatprep.subr.mxu0 0.0
    %7237 = vmatpush1.msra.mxu0 0.0
    %7238 = vmatprep.subr.mxu0 0.0
    %7239 = vmatpush1.msra.mxu0 0.0
    %7240 = vmatprep.subr.mxu0 0.0
    %7241 = vmatpush1.msra.mxu0 0.0
    %7242 = vmatprep.subr.mxu0 0.0
    %7243 = vmatpush1.msra.mxu0 0.0
    %7244 = vmatprep.subr.mxu0 0.0
    %7245 = vmatpush1.msra.mxu0 0.0
    %7246 = vmatprep.subr.mxu0 0.0
    %7247 = vmatpush1.msra.mxu0 0.0
    %7248 = vmatprep.subr.mxu0 0.0
    %7249 = vmatpush1.msra.mxu0 0.0
    %7250 = vmatprep.subr.mxu0 0.0
    %7251 = vmatpush1.msra.mxu0 0.0
    %7252 = vmatprep.subr.mxu0 0.0
    %7253 = vmatpush1.msra.mxu0 0.0
    %7254 = vmatprep.subr.mxu0 0.0
    %7255 = vmatpush1.msra.mxu0 0.0
    %7256 = vmatprep.subr.mxu0 0.0
    %7257 = vmatpush1.msra.mxu0 0.0
    %7258 = vmatprep.subr.mxu0 0.0
    %7259 = vmatpush1.msra.mxu0 0.0
    %7260 = vmatprep.subr.mxu0 0.0
    %7261 = vmatpush1.msra.mxu0 0.0
    %7262 = vmatprep.subr.mxu0 0.0
    %7263 = vmatpush1.msra.mxu0 0.0
    %7264 = vmatprep.subr.mxu0 0.0
    %7265 = vmatpush1.msra.mxu0 0.0
    %7266 = vmatprep.subr.mxu0 0.0
    %7267 = vmatpush1.msra.mxu0 0.0
    %7268 = vmatprep.subr.mxu0 0.0
    %7269 = vmatpush1.msra.mxu0 0.0
    %7270 = vmatprep.subr.mxu0 0.0
    %7271 = vmatpush1.msra.mxu0 0.0
    %7272 = vmatprep.subr.mxu0 0.0
    %7273 = vmatpush1.msra.mxu0 0.0
    %7274 = vmatprep.subr.mxu0 0.0
    %7275 = vmatpush1.msra.mxu0 0.0
    %7276 = vmatprep.subr.mxu0 0.0
    %7277 = vmatpush1.msra.mxu0 0.0
    %7278 = vmatprep.subr.mxu0 0.0
    %7279 = vmatpush1.msra.mxu0 0.0
    %7280 = vmatprep.subr.mxu0 0.0
    %7281 = vmatpush1.msra.mxu0 0.0
    %7282 = vmatprep.subr.mxu0 0.0
    %7283 = vmatpush1.msra.mxu0 0.0
    %7284 = vmatprep.subr.mxu0 0.0
    %7285 = vmatpush1.msra.mxu0 0.0
    %7286 = vmatprep.subr.mxu0 0.0
    %7287 = vmatpush1.msra.mxu0 0.0
    %7288 = vmatprep.subr.mxu0 0.0
    %7289 = vmatpush1.msra.mxu0 0.0
    %7290 = vmatprep.mubr.f32.mxu0 0.0
    %7291 = vmatmul.mubr.f32.gmra.mrb[0].mxu0 %v7224
    %v7292 = vpop.f32.mrb[0].mxu0
    %v7293 = vadd.f32 0.0, %v7292
    %v7294 = vpop.f32.mrb[0].mxu0
    %7295 = vdwg.mxu0
    %v7297 = vsel %vm557, %v7076, 0
    %7299 = vmatprep.subr.mxu0 0.0
    %7300 = vmatpush1.msra.mxu0 %v6727
    %7301 = vmatprep.subr.mxu0 0.0
    %7302 = vmatpush1.msra.mxu0 0.0
    %7303 = vmatprep.subr.mxu0 0.0
    %7304 = vmatpush1.msra.mxu0 0.0
    %7305 = vmatprep.subr.mxu0 0.0
    %7306 = vmatpush1.msra.mxu0 0.0
    %7307 = vmatprep.subr.mxu0 0.0
    %7308 = vmatpush1.msra.mxu0 0.0
    %7309 = vmatprep.subr.mxu0 0.0
    %7310 = vmatpush1.msra.mxu0 0.0
    %7311 = vmatprep.subr.mxu0 0.0
    %7312 = vmatpush1.msra.mxu0 0.0
    %7313 = vmatprep.subr.mxu0 0.0
    %7314 = vmatpush1.msra.mxu0 0.0
    %7315 = vmatprep.subr.mxu0 0.0
    %7316 = vmatpush1.msra.mxu0 0.0
    %7317 = vmatprep.subr.mxu0 0.0
    %7318 = vmatpush1.msra.mxu0 0.0
    %7319 = vmatprep.subr.mxu0 0.0
    %7320 = vmatpush1.msra.mxu0 0.0
    %7321 = vmatprep.subr.mxu0 0.0
    %7322 = vmatpush1.msra.mxu0 0.0
    %7323 = vmatprep.subr.mxu0 0.0
    %7324 = vmatpush1.msra.mxu0 0.0
    %7325 = vmatprep.subr.mxu0 0.0
    %7326 = vmatpush1.msra.mxu0 0.0
    %7327 = vmatprep.subr.mxu0 0.0
    %7328 = vmatpush1.msra.mxu0 0.0
    %7329 = vmatprep.subr.mxu0 0.0
    %7330 = vmatpush1.msra.mxu0 0.0
    %7331 = vmatprep.subr.mxu0 0.0
    %7332 = vmatpush1.msra.mxu0 0.0
    %7333 = vmatprep.subr.mxu0 0.0
    %7334 = vmatpush1.msra.mxu0 0.0
    %7335 = vmatprep.subr.mxu0 0.0
    %7336 = vmatpush1.msra.mxu0 0.0
    %7337 = vmatprep.subr.mxu0 0.0
    %7338 = vmatpush1.msra.mxu0 0.0
    %7339 = vmatprep.subr.mxu0 0.0
    %7340 = vmatpush1.msra.mxu0 0.0
    %7341 = vmatprep.subr.mxu0 0.0
    %7342 = vmatpush1.msra.mxu0 0.0
    %7343 = vmatprep.subr.mxu0 0.0
    %7344 = vmatpush1.msra.mxu0 0.0
    %7345 = vmatprep.subr.mxu0 0.0
    %7346 = vmatpush1.msra.mxu0 0.0
    %7347 = vmatprep.subr.mxu0 0.0
    %7348 = vmatpush1.msra.mxu0 0.0
    %7349 = vmatprep.subr.mxu0 0.0
    %7350 = vmatpush1.msra.mxu0 0.0
    %7351 = vmatprep.subr.mxu0 0.0
    %7352 = vmatpush1.msra.mxu0 0.0
    %7353 = vmatprep.subr.mxu0 0.0
    %7354 = vmatpush1.msra.mxu0 0.0
    %7355 = vmatprep.subr.mxu0 0.0
    %7356 = vmatpush1.msra.mxu0 0.0
    %7357 = vmatprep.subr.mxu0 0.0
    %7358 = vmatpush1.msra.mxu0 0.0
    %7359 = vmatprep.subr.mxu0 0.0
    %7360 = vmatpush1.msra.mxu0 0.0
    %7361 = vmatprep.subr.mxu0 0.0
    %7362 = vmatpush1.msra.mxu0 0.0
    %7363 = vmatprep.mubr.f32.mxu0 0.0
    %7364 = vmatmul.mubr.f32.gmra.mrb[0].mxu0 %v7297
    %v7365 = vpop.f32.mrb[0].mxu0
    %v7366 = vadd.f32 0.0, %v7365
    %v7367 = vpop.f32.mrb[0].mxu0
    %7368 = vdwg.mxu0
    %7370 = vrot.lane.b32.xlu0 %v7220, 16
    %v7371 = vpop.permute.xlu0 %7370
    %7374 = vrot.lane.b32.xlu0 %v7293, 32
    %v7375 = vpop.permute.xlu0 %7374
    %7378 = vrot.lane.b32.xlu0 %v7366, 48
    %v7379 = vpop.permute.xlu0 %7378
    %v7381 = vsel %vm43, %v7147, %v7371
    %v7382 = vsel %vm907, %v7381, %v7375
    %v7383 = vsel %vm909, %v7382, %v7379
    %v7384 = vpack.c.bf16 %v7383, %v7383
    %7385 = vrot.lane.b32.xlu0 %v6653, 64
    %v7386 = vpop.permute.xlu0 %7385
    %7387 = vrot.lane.b32.xlu0 %v6655, 64
    %v7388 = vpop.permute.xlu0 %7387
    %7389 = vrot.lane.b32.xlu0 %v6657, 64
    %v7390 = vpop.permute.xlu0 %7389
    %7391 = vrot.lane.b32.xlu0 %v6659, 64
    %v7392 = vpop.permute.xlu0 %7391
    %7398 = vrot.lane.b32.xlu0 %v6627, 64
    %v7399 = vpop.permute.xlu0 %7398
    %v7402 = vsel %vm191, %v7384, 0
    %7404 = vmatprep.subr.bf16.mxu0 0
    %7405 = vmatpush1.bf16.msra.mxu0 %v7386
    %7406 = vmatprep.subr.bf16.mxu0 0
    %7407 = vmatpush1.bf16.msra.mxu0 %v7388
    %7408 = vmatprep.subr.bf16.mxu0 0
    %7409 = vmatpush1.bf16.msra.mxu0 %v7390
    %7410 = vmatprep.subr.bf16.mxu0 0
    %7411 = vmatpush1.bf16.msra.mxu0 %v7392
    %7412 = vmatprep.subr.bf16.mxu0 0
    %7413 = vmatpush1.bf16.msra.mxu0 0
    %7414 = vmatprep.subr.bf16.mxu0 0
    %7415 = vmatpush1.bf16.msra.mxu0 0
    %7416 = vmatprep.subr.bf16.mxu0 0
    %7417 = vmatpush1.bf16.msra.mxu0 0
    %7418 = vmatprep.subr.bf16.mxu0 0
    %7419 = vmatpush1.bf16.msra.mxu0 0
    %7420 = vmatprep.subr.bf16.mxu0 0
    %7421 = vmatpush1.bf16.msra.mxu0 0
    %7422 = vmatprep.subr.bf16.mxu0 0
    %7423 = vmatpush1.bf16.msra.mxu0 0
    %7424 = vmatprep.subr.bf16.mxu0 0
    %7425 = vmatpush1.bf16.msra.mxu0 0
    %7426 = vmatprep.subr.bf16.mxu0 0
    %7427 = vmatpush1.bf16.msra.mxu0 0
    %7428 = vmatprep.subr.bf16.mxu0 0
    %7429 = vmatpush1.bf16.msra.mxu0 0
    %7430 = vmatprep.subr.bf16.mxu0 0
    %7431 = vmatpush1.bf16.msra.mxu0 0
    %7432 = vmatprep.subr.bf16.mxu0 0
    %7433 = vmatpush1.bf16.msra.mxu0 0
    %7434 = vmatprep.subr.bf16.mxu0 0
    %7435 = vmatpush1.bf16.msra.mxu0 0
    %7436 = vmatprep.mubr.bf16.mxu0 0
    %7437 = vmatmul.mubr.bf16.gmra.mrb[0].mxu0 %v7402
    %v7438 = vpop.f32.mrb[0].mxu0
    %v7439 = vadd.f32 %v7399, %v7438
    %v7440 = vpop.f32.mrb[0].mxu0
    %v7441 = vpop.f32.mrb[0].mxu0
    %v7442 = vpop.f32.mrb[0].mxu0
    %7443 = vdwg.mxu0
    %v7444 = vadd.f32 %v6568, %v7439
    %v7445 = vsel %vm191, %v7444, 0.0
    %7446 = vadd.xlane.f32.xlu0 %v7445
    %v7447 = vpop.xlane.xlu0 %7446
    %v7448 = vmul.f32 %v7447, %v975
    %v7449 = vmul.f32 %v7444, %v7444
    %v7450 = vsel %vm191, %v7449, 0.0
    %7451 = vadd.xlane.f32.xlu0 %v7450
    %v7452 = vpop.xlane.xlu0 %7451
    %v7453 = vmul.f32 %v7452, %v975
    %v7454 = vsub.f32 %v7444, %v7448
    %v7455 = vmul.f32 %v7448, %v7448
    %v7456 = vsub.f32 %v7453, %v7455
    %v7457 = vadd.f32 %v7456, 1e-05
    %v7458 = vrsqrt.pop %v7457
    %v7459 = vmul.f32 %v7454, %v7458
    %v7460 = vlaneseq
    %v7461 = vshrl.u32 %v7460, 7
    %v7462 = vsub.s32 2, %v7461
    %v7463 = vrot.slane %v6617, %v7462
    %7465 = vrot.lane.b32.xlu0 %v7463, 64
    %v7466 = vpop.permute.xlu0 %7465
    %v7468 = vmul.f32 %v7459, %v7466
    %v7469 = vlaneseq
    %v7470 = vshrl.u32 %v7469, 7
    %v7471 = vsub.s32 2, %v7470
    %v7472 = vrot.slane %v6618, %v7471
    %v7473 = vadd.f32 %v7468, %v7472
    %v7474 = vpack.c.bf16 %v7473, %v7473
    %v7475 = vlaneseq
    %v7476 = vshrl.u32 %v7475, 7
    %v7477 = vsub.s32 1, %v7476
    %v7478 = vrot.slane %v6617, %v7477
    %v7479 = vlaneseq
    %v7480 = vshrl.u32 %v7479, 7
    %v7481 = vsub.s32 1, %v7480
    %v7482 = vrot.slane %v6618, %v7481
    %v7491 = vunpack.c.l.b16 %v6570
    %v7492 = vunpack.c.h.b16 %v6570
    %v7493 = vunpack.c.l.b16 %v6572
    %v7494 = vunpack.c.h.b16 %v6572
    %v7495 = vunpack.c.l.b16 %v6574
    %v7496 = vunpack.c.h.b16 %v6574
    %v7497 = vunpack.c.l.b16 %v6576
    %v7498 = vunpack.c.h.b16 %v6576
    %v7499 = vunpack.c.l.b16 %v6578
    %v7500 = vunpack.c.h.b16 %v6578
    %v7501 = vunpack.c.l.b16 %v6580
    %v7502 = vunpack.c.h.b16 %v6580
    %v7503 = vunpack.c.l.b16 %v6582
    %v7504 = vunpack.c.h.b16 %v6582
    %v7505 = vunpack.c.l.b16 %v6584
    %v7506 = vunpack.c.h.b16 %v6584
    %v7507 = vpack.c.b16 %v7493, %v7491
    %v7508 = vpack.c.b16 %v7494, %v7492
    %v7509 = vpack.c.b16 %v7497, %v7495
    %v7510 = vpack.c.b16 %v7498, %v7496
    %v7511 = vpack.c.b16 %v7501, %v7499
    %v7512 = vpack.c.b16 %v7502, %v7500
    %v7513 = vpack.c.b16 %v7505, %v7503
    %v7514 = vpack.c.b16 %v7506, %v7504
    %v7524 = vsel %vm191, %v7474, 0
    %7526 = vmatprep.subr.bf16.mxu0 %v7508
    %7527 = vmatpush1.bf16.msra.mxu0 %v7507
    %7528 = vmatprep.subr.bf16.mxu0 %v7510
    %7529 = vmatpush1.bf16.msra.mxu0 %v7509
    %7530 = vmatprep.subr.bf16.mxu0 %v7512
    %7531 = vmatpush1.bf16.msra.mxu0 %v7511
    %7532 = vmatprep.subr.bf16.mxu0 %v7514
    %7533 = vmatpush1.bf16.msra.mxu0 %v7513
    %7534 = vmatprep.subr.bf16.mxu0 0
    %7535 = vmatpush1.bf16.msra.mxu0 0
    %7536 = vmatprep.subr.bf16.mxu0 0
    %7537 = vmatpush1.bf16.msra.mxu0 0
    %7538 = vmatprep.subr.bf16.mxu0 0
    %7539 = vmatpush1.bf16.msra.mxu0 0
    %7540 = vmatprep.subr.bf16.mxu0 0
    %7541 = vmatpush1.bf16.msra.mxu0 0
    %7542 = vmatprep.subr.bf16.mxu0 0
    %7543 = vmatpush1.bf16.msra.mxu0 0
    %7544 = vmatprep.subr.bf16.mxu0 0
    %7545 = vmatpush1.bf16.msra.mxu0 0
    %7546 = vmatprep.subr.bf16.mxu0 0
    %7547 = vmatpush1.bf16.msra.mxu0 0
    %7548 = vmatprep.subr.bf16.mxu0 0
    %7549 = vmatpush1.bf16.msra.mxu0 0
    %7550 = vmatprep.subr.bf16.mxu0 0
    %7551 = vmatpush1.bf16.msra.mxu0 0
    %7552 = vmatprep.subr.bf16.mxu0 0
    %7553 = vmatpush1.bf16.msra.mxu0 0
    %7554 = vmatprep.subr.bf16.mxu0 0
    %7555 = vmatpush1.bf16.msra.mxu0 0
    %7556 = vmatprep.subr.bf16.mxu0 0
    %7557 = vmatpush1.bf16.msra.mxu0 0
    %7558 = vmatprep.mubr.bf16.mxu0 0
    %7559 = vmatmul.mubr.bf16.gmra.mrb[0].mxu0 %v7524
    %v7560 = vpop.f32.mrb[0].mxu0
    %v7561 = vadd.f32 %v7478, %v7560
    %v7562 = vpop.f32.mrb[0].mxu0
    %v7563 = vadd.f32 %v7482, %v7562
    %v7564 = vpop.f32.mrb[0].mxu0
    %v7565 = vpop.f32.mrb[0].mxu0
    %7566 = vdwg.mxu0
    %v7567 = vmax.f32 %v7561, 0.0
    %v7568 = vmax.f32 %v7563, 0.0
    %v7569 = vpack.c.bf16 %v7567, %v7567
    %v7570 = vpack.c.bf16 %v7568, %v7568
    %v7603 = vunpack.c.l.b16 %v6585
    %v7604 = vunpack.c.l.b16 %v6586
    %v7605 = vunpack.c.l.b16 %v6587
    %v7606 = vunpack.c.l.b16 %v6588
    %v7607 = vunpack.c.l.b16 %v6589
    %v7608 = vunpack.c.l.b16 %v6590
    %v7609 = vunpack.c.l.b16 %v6591
    %v7610 = vunpack.c.l.b16 %v6592
    %v7611 = vunpack.c.l.b16 %v6593
    %v7612 = vunpack.c.l.b16 %v6594
    %v7613 = vunpack.c.l.b16 %v6595
    %v7614 = vunpack.c.l.b16 %v6596
    %v7615 = vunpack.c.l.b16 %v6597
    %v7616 = vunpack.c.l.b16 %v6598
    %v7617 = vunpack.c.l.b16 %v6599
    %v7618 = vunpack.c.l.b16 %v6600
    %v7619 = vunpack.c.l.b16 %v6601
    %v7620 = vunpack.c.l.b16 %v6602
    %v7621 = vunpack.c.l.b16 %v6603
    %v7622 = vunpack.c.l.b16 %v6604
    %v7623 = vunpack.c.l.b16 %v6605
    %v7624 = vunpack.c.l.b16 %v6606
    %v7625 = vunpack.c.l.b16 %v6607
    %v7626 = vunpack.c.l.b16 %v6608
    %v7627 = vunpack.c.l.b16 %v6609
    %v7628 = vunpack.c.l.b16 %v6610
    %v7629 = vunpack.c.l.b16 %v6611
    %v7630 = vunpack.c.l.b16 %v6612
    %v7631 = vunpack.c.l.b16 %v6613
    %v7632 = vunpack.c.l.b16 %v6614
    %v7633 = vunpack.c.l.b16 %v6615
    %v7634 = vunpack.c.l.b16 %v6616
    %v7635 = vpack.c.b16 %v7604, %v7603
    %v7636 = vpack.c.b16 %v7606, %v7605
    %v7637 = vpack.c.b16 %v7608, %v7607
    %v7638 = vpack.c.b16 %v7610, %v7609
    %v7639 = vpack.c.b16 %v7612, %v7611
    %v7640 = vpack.c.b16 %v7614, %v7613
    %v7641 = vpack.c.b16 %v7616, %v7615
    %v7642 = vpack.c.b16 %v7618, %v7617
    %v7643 = vpack.c.b16 %v7620, %v7619
    %v7644 = vpack.c.b16 %v7622, %v7621
    %v7645 = vpack.c.b16 %v7624, %v7623
    %v7646 = vpack.c.b16 %v7626, %v7625
    %v7647 = vpack.c.b16 %v7628, %v7627
    %v7648 = vpack.c.b16 %v7630, %v7629
    %v7649 = vpack.c.b16 %v7632, %v7631
    %v7650 = vpack.c.b16 %v7634, %v7633
    %7667 = vmatprep.subr.bf16.mxu0 0
    %7668 = vmatpush1.bf16.msra.mxu0 %v7635
    %7669 = vmatprep.subr.bf16.mxu0 0
    %7670 = vmatpush1.bf16.msra.mxu0 %v7636
    %7671 = vmatprep.subr.bf16.mxu0 0
    %7672 = vmatpush1.bf16.msra.mxu0 %v7637
    %7673 = vmatprep.subr.bf16.mxu0 0
    %7674 = vmatpush1.bf16.msra.mxu0 %v7638
    %7675 = vmatprep.subr.bf16.mxu0 0
    %7676 = vmatpush1.bf16.msra.mxu0 %v7639
    %7677 = vmatprep.subr.bf16.mxu0 0
    %7678 = vmatpush1.bf16.msra.mxu0 %v7640
    %7679 = vmatprep.subr.bf16.mxu0 0
    %7680 = vmatpush1.bf16.msra.mxu0 %v7641
    %7681 = vmatprep.subr.bf16.mxu0 0
    %7682 = vmatpush1.bf16.msra.mxu0 %v7642
    %7683 = vmatprep.subr.bf16.mxu0 0
    %7684 = vmatpush1.bf16.msra.mxu0 %v7643
    %7685 = vmatprep.subr.bf16.mxu0 0
    %7686 = vmatpush1.bf16.msra.mxu0 %v7644
    %7687 = vmatprep.subr.bf16.mxu0 0
    %7688 = vmatpush1.bf16.msra.mxu0 %v7645
    %7689 = vmatprep.subr.bf16.mxu0 0
    %7690 = vmatpush1.bf16.msra.mxu0 %v7646
    %7691 = vmatprep.subr.bf16.mxu0 0
    %7692 = vmatpush1.bf16.msra.mxu0 %v7647
    %7693 = vmatprep.subr.bf16.mxu0 0
    %7694 = vmatpush1.bf16.msra.mxu0 %v7648
    %7695 = vmatprep.subr.bf16.mxu0 0
    %7696 = vmatpush1.bf16.msra.mxu0 %v7649
    %7697 = vmatprep.subr.bf16.mxu0 0
    %7698 = vmatpush1.bf16.msra.mxu0 %v7650
    %7699 = vmatprep.mubr.bf16.mxu0 %v7570
    %7700 = vmatmul.mubr.bf16.gmra.mrb[0].mxu0 %v7569
    %v7701 = vpop.f32.mrb[0].mxu0
    %v7702 = vadd.f32 %v7463, %v7701
    %v7703 = vpop.f32.mrb[0].mxu0
    %v7704 = vpop.f32.mrb[0].mxu0
    %v7705 = vpop.f32.mrb[0].mxu0
    %7706 = vdwg.mxu0
    %v7707 = vadd.f32 %v7473, %v7702
    %v7708 = vsel %vm191, %v7707, 0.0
    %7709 = vadd.xlane.f32.xlu0 %v7708
    %v7710 = vpop.xlane.xlu0 %7709
    %v7711 = vmul.f32 %v7710, %v975
    %v7712 = vmul.f32 %v7707, %v7707
    %v7713 = vsel %vm191, %v7712, 0.0
    %7714 = vadd.xlane.f32.xlu0 %v7713
    %v7715 = vpop.xlane.xlu0 %7714
    %v7716 = vmul.f32 %v7715, %v975
    %v7717 = vsub.f32 %v7707, %v7711
    %v7718 = vmul.f32 %v7711, %v7711
    %v7719 = vsub.f32 %v7716, %v7718
    %v7720 = vadd.f32 %v7719, 1e-05
    %v7721 = vrsqrt.pop %v7720
    %v7722 = vmul.f32 %v7717, %v7721
    %7724 = vrot.lane.b32.xlu0 %v7472, 64
    %v7725 = vpop.permute.xlu0 %7724
    %v7727 = vmul.f32 %v7722, %v7725
    %v7728 = vlaneseq
    %v7729 = vshrl.u32 %v7728, 7
    %v7730 = vsub.s32 3, %v7729
    %v7731 = vrot.slane %v6617, %v7730
    %v7732 = vadd.f32 %v7727, %v7731
    %v7733 = vadd.f32 %v7732, %v5403
    %v7734 = vld [vmem:[%s1 + $0x78] sm:$0xf]
    %v7735 = vld [vmem:[%s1 + $0x7c] sm:$0xf]
    %v7736 = vld [vmem:[%s1 + $0x80] sm:$0xf]
    %v7737 = vld [vmem:[%s1 + $0x84] sm:$0xf]
    %v7738 = vld [vmem:[%s1 + $0x88] sm:$0xf]
    %v7739 = vld [vmem:[%s1 + $0x8c] sm:$0xf]
    %v7740 = vld [vmem:[%s1 + $0x90] sm:$0xf]
    %v7741 = vld [vmem:[%s1 + $0x94] sm:$0xf]
    %v7742 = vpack.c.bf16 %v7733, %v7733
    %v7751 = vunpack.c.l.b16 %v7734
    %v7752 = vunpack.c.l.b16 %v7735
    %v7753 = vunpack.c.l.b16 %v7736
    %v7754 = vunpack.c.l.b16 %v7737
    %v7755 = vunpack.c.l.b16 %v7738
    %v7756 = vunpack.c.l.b16 %v7739
    %v7757 = vunpack.c.l.b16 %v7740
    %v7758 = vunpack.c.l.b16 %v7741
    %v7759 = vpack.c.b16 %v7752, %v7751
    %v7760 = vpack.c.b16 %v7754, %v7753
    %v7761 = vpack.c.b16 %v7756, %v7755
    %v7762 = vpack.c.b16 %v7758, %v7757
    %v7768 = vsel %vm191, %v7742, 0
    %7770 = vmatprep.subr.bf16.mxu0 0
    %7771 = vmatpush1.bf16.msra.mxu0 %v7759
    %7772 = vmatprep.subr.bf16.mxu0 0
    %7773 = vmatpush1.bf16.msra.mxu0 %v7760
    %7774 = vmatprep.subr.bf16.mxu0 0
    %7775 = vmatpush1.bf16.msra.mxu0 %v7761
    %7776 = vmatprep.subr.bf16.mxu0 0
    %7777 = vmatpush1.bf16.msra.mxu0 %v7762
    %7778 = vmatprep.subr.bf16.mxu0 0
    %7779 = vmatpush1.bf16.msra.mxu0 0
    %7780 = vmatprep.subr.bf16.mxu0 0
    %7781 = vmatpush1.bf16.msra.mxu0 0
    %7782 = vmatprep.subr.bf16.mxu0 0
    %7783 = vmatpush1.bf16.msra.mxu0 0
    %7784 = vmatprep.subr.bf16.mxu0 0
    %7785 = vmatpush1.bf16.msra.mxu0 0
    %7786 = vmatprep.subr.bf16.mxu0 0
    %7787 = vmatpush1.bf16.msra.mxu0 0
    %7788 = vmatprep.subr.bf16.mxu0 0
    %7789 = vmatpush1.bf16.msra.mxu0 0
    %7790 = vmatprep.subr.bf16.mxu0 0
    %7791 = vmatpush1.bf16.msra.mxu0 0
    %7792 = vmatprep.subr.bf16.mxu0 0
    %7793 = vmatpush1.bf16.msra.mxu0 0
    %7794 = vmatprep.subr.bf16.mxu0 0
    %7795 = vmatpush1.bf16.msra.mxu0 0
    %7796 = vmatprep.subr.bf16.mxu0 0
    %7797 = vmatpush1.bf16.msra.mxu0 0
    %7798 = vmatprep.subr.bf16.mxu0 0
    %7799 = vmatpush1.bf16.msra.mxu0 0
    %7800 = vmatprep.subr.bf16.mxu0 0
    %7801 = vmatpush1.bf16.msra.mxu0 0
    %7802 = vmatprep.mubr.bf16.mxu0 0
    %7803 = vmatmul.mubr.bf16.gmra.mrb[0].mxu0 %v7768
    %v7804 = vpop.f32.mrb[0].mxu0
    %v7805 = vadd.f32 %v2441, %v7804
    %v7806 = vpop.f32.mrb[0].mxu0
    %v7807 = vpop.f32.mrb[0].mxu0
    %v7808 = vpop.f32.mrb[0].mxu0
    %7809 = vdwg.mxu0
    %v7810 = vmax.f32 %v7805, 0.0
    %v7811 = vld [vmem:[%s1 + $0xb8] sm:$0xf]
    %v7812 = vld [vmem:[%s1 + $0xbc] sm:$0xf]
    %v7813 = vld [vmem:[%s1 + $0xc0] sm:$0xf]
    %v7814 = vld [vmem:[%s1 + $0xc4] sm:$0xf]
    %v7815 = vld [vmem:[%s1 + $0xc8] sm:$0xf]
    %v7816 = vld [vmem:[%s1 + $0xcc] sm:$0xf]
    %v7817 = vld [vmem:[%s1 + $0xd0] sm:$0xf]
    %v7818 = vld [vmem:[%s1 + $0xd4] sm:$0xf]
    %v7819 = vpack.c.bf16 %v7810, %v7810
    %v7820 = vlaneseq
    %v7821 = vshrl.u32 %v7820, 7
    %v7822 = vsub.s32 6, %v7821
    %v7823 = vrot.slane %v28, %v7822
    %v7832 = vunpack.c.l.b16 %v7811
    %v7833 = vunpack.c.l.b16 %v7812
    %v7834 = vunpack.c.l.b16 %v7813
    %v7835 = vunpack.c.l.b16 %v7814
    %v7836 = vunpack.c.l.b16 %v7815
    %v7837 = vunpack.c.l.b16 %v7816
    %v7838 = vunpack.c.l.b16 %v7817
    %v7839 = vunpack.c.l.b16 %v7818
    %v7840 = vpack.c.b16 %v7833, %v7832
    %v7841 = vpack.c.b16 %v7835, %v7834
    %v7842 = vpack.c.b16 %v7837, %v7836
    %v7843 = vpack.c.b16 %v7839, %v7838
    %v7849 = vsel %vm191, %v7819, 0
    %7851 = vmatprep.subr.bf16.mxu0 0
    %7852 = vmatpush1.bf16.msra.mxu0 %v7840
    %7853 = vmatprep.subr.bf16.mxu0 0
    %7854 = vmatpush1.bf16.msra.mxu0 %v7841
    %7855 = vmatprep.subr.bf16.mxu0 0
    %7856 = vmatpush1.bf16.msra.mxu0 %v7842
    %7857 = vmatprep.subr.bf16.mxu0 0
    %7858 = vmatpush1.bf16.msra.mxu0 %v7843
    %7859 = vmatprep.subr.bf16.mxu0 0
    %7860 = vmatpush1.bf16.msra.mxu0 0
    %7861 = vmatprep.subr.bf16.mxu0 0
    %7862 = vmatpush1.bf16.msra.mxu0 0
    %7863 = vmatprep.subr.bf16.mxu0 0
    %7864 = vmatpush1.bf16.msra.mxu0 0
    %7865 = vmatprep.subr.bf16.mxu0 0
    %7866 = vmatpush1.bf16.msra.mxu0 0
    %7867 = vmatprep.subr.bf16.mxu0 0
    %7868 = vmatpush1.bf16.msra.mxu0 0
    %7869 = vmatprep.subr.bf16.mxu0 0
    %7870 = vmatpush1.bf16.msra.mxu0 0
    %7871 = vmatprep.subr.bf16.mxu0 0
    %7872 = vmatpush1.bf16.msra.mxu0 0
    %7873 = vmatprep.subr.bf16.mxu0 0
    %7874 = vmatpush1.bf16.msra.mxu0 0
    %7875 = vmatprep.subr.bf16.mxu0 0
    %7876 = vmatpush1.bf16.msra.mxu0 0
    %7877 = vmatprep.subr.bf16.mxu0 0
    %7878 = vmatpush1.bf16.msra.mxu0 0
    %7879 = vmatprep.subr.bf16.mxu0 0
    %7880 = vmatpush1.bf16.msra.mxu0 0
    %7881 = vmatprep.subr.bf16.mxu0 0
    %7882 = vmatpush1.bf16.msra.mxu0 0
    %7883 = vmatprep.mubr.bf16.mxu0 0
    %7884 = vmatmul.mubr.bf16.gmra.mrb[0].mxu0 %v7849
    %v7885 = vpop.f32.mrb[0].mxu0
    %v7886 = vadd.f32 %v7823, %v7885
    %v7887 = vpop.f32.mrb[0].mxu0
    %v7888 = vpop.f32.mrb[0].mxu0
    %v7889 = vpop.f32.mrb[0].mxu0
    %7890 = vdwg.mxu0
    %v7891 = vld [vmem:[%s3] sm:$0xff]
    %v7892 = vld [vmem:[%s3 + $0x8] sm:$0xff]
    %v7893 = vld [vmem:[%s3 + $0x10] sm:$0xff]
    %v7894 = vld [vmem:[%s3 + $0x18] sm:$0xff]
    %v7895 = vld [vmem:[%s3 + $0x20] sm:$0xff]
    %v7896 = vld [vmem:[%s3 + $0x28] sm:$0xff]
    %v7897 = vld [vmem:[%s3 + $0x30] sm:$0xff]
    %v7898 = vld [vmem:[%s3 + $0x38] sm:$0xff]
    %v7899 = vld [vmem:[%s3 + $0x40] sm:$0xff]
    %v7900 = vld [vmem:[%s3 + $0x48] sm:$0xff]
    %v7901 = vld [vmem:[%s3 + $0x50] sm:$0xff]
    %v7902 = vld [vmem:[%s3 + $0x58] sm:$0xff]
    %v7903 = vld [vmem:[%s3 + $0x60] sm:$0xff]
    %v7904 = vld [vmem:[%s3 + $0x68] sm:$0xff]
    %v7905 = vld [vmem:[%s3 + $0x70] sm:$0xff]
    %v7906 = vld [vmem:[%s3 + $0x78] sm:$0xff]
    %v7907 = vld [vmem:[%s3 + $0x80] sm:$0xff]
    %v7908 = vld [vmem:[%s3 + $0x88] sm:$0xff]
    %v7909 = vld [vmem:[%s3 + $0x90] sm:$0xff]
    %v7910 = vld [vmem:[%s3 + $0x98] sm:$0xff]
    %v7911 = vld [vmem:[%s3 + $0xa0] sm:$0xff]
    %v7912 = vld [vmem:[%s3 + $0xa8] sm:$0xff]
    %v7913 = vld [vmem:[%s3 + $0xb0] sm:$0xff]
    %v7914 = vld [vmem:[%s3 + $0xb8] sm:$0xff]
    %v7916 = vsel %vm191, %v5197, 0
    %7918 = vmatprep.subr.mxu0 0.0
    %7919 = vmatpush1.msra.mxu0 %v7899
    %7920 = vmatprep.subr.mxu0 0.0
    %7921 = vmatpush1.msra.mxu0 %v7900
    %7922 = vmatprep.subr.mxu0 0.0
    %7923 = vmatpush1.msra.mxu0 %v7901
    %7924 = vmatprep.subr.mxu0 0.0
    %7925 = vmatpush1.msra.mxu0 %v7902
    %7926 = vmatprep.subr.mxu0 0.0
    %7927 = vmatpush1.msra.mxu0 %v7903
    %7928 = vmatprep.subr.mxu0 0.0
    %7929 = vmatpush1.msra.mxu0 %v7904
    %7930 = vmatprep.subr.mxu0 0.0
    %7931 = vmatpush1.msra.mxu0 %v7905
    %7932 = vmatprep.subr.mxu0 0.0
    %7933 = vmatpush1.msra.mxu0 %v7906
    %7934 = vmatprep.subr.mxu0 0.0
    %7935 = vmatpush1.msra.mxu0 0.0
    %7936 = vmatprep.subr.mxu0 0.0
    %7937 = vmatpush1.msra.mxu0 0.0
    %7938 = vmatprep.subr.mxu0 0.0
    %7939 = vmatpush1.msra.mxu0 0.0
    %7940 = vmatprep.subr.mxu0 0.0
    %7941 = vmatpush1.msra.mxu0 0.0
    %7942 = vmatprep.subr.mxu0 0.0
    %7943 = vmatpush1.msra.mxu0 0.0
    %7944 = vmatprep.subr.mxu0 0.0
    %7945 = vmatpush1.msra.mxu0 0.0
    %7946 = vmatprep.subr.mxu0 0.0
    %7947 = vmatpush1.msra.mxu0 0.0
    %7948 = vmatprep.subr.mxu0 0.0
    %7949 = vmatpush1.msra.mxu0 0.0
    %7950 = vmatprep.subr.mxu0 0.0
    %7951 = vmatpush1.msra.mxu0 0.0
    %7952 = vmatprep.subr.mxu0 0.0
    %7953 = vmatpush1.msra.mxu0 0.0
    %7954 = vmatprep.subr.mxu0 0.0
    %7955 = vmatpush1.msra.mxu0 0.0
    %7956 = vmatprep.subr.mxu0 0.0
    %7957 = vmatpush1.msra.mxu0 0.0
    %7958 = vmatprep.subr.mxu0 0.0
    %7959 = vmatpush1.msra.mxu0 0.0
    %7960 = vmatprep.subr.mxu0 0.0
    %7961 = vmatpush1.msra.mxu0 0.0
    %7962 = vmatprep.subr.mxu0 0.0
    %7963 = vmatpush1.msra.mxu0 0.0
    %7964 = vmatprep.subr.mxu0 0.0
    %7965 = vmatpush1.msra.mxu0 0.0
    %7966 = vmatprep.subr.mxu0 0.0
    %7967 = vmatpush1.msra.mxu0 0.0
    %7968 = vmatprep.subr.mxu0 0.0
    %7969 = vmatpush1.msra.mxu0 0.0
    %7970 = vmatprep.subr.mxu0 0.0
    %7971 = vmatpush1.msra.mxu0 0.0
    %7972 = vmatprep.subr.mxu0 0.0
    %7973 = vmatpush1.msra.mxu0 0.0
    %7974 = vmatprep.subr.mxu0 0.0
    %7975 = vmatpush1.msra.mxu0 0.0
    %7976 = vmatprep.subr.mxu0 0.0
    %7977 = vmatpush1.msra.mxu0 0.0
    %7978 = vmatprep.subr.mxu0 0.0
    %7979 = vmatpush1.msra.mxu0 0.0
    %7980 = vmatprep.subr.mxu0 0.0
    %7981 = vmatpush1.msra.mxu0 0.0
    %7982 = vmatprep.mubr.f32.mxu0 0.0
    %7983 = vmatmul.mubr.f32.gmra.mrb[0].mxu0 %v7916
    %v7984 = vpop.f32.mrb[0].mxu0
    %v7985 = vadd.f32 0.0, %v7984
    %v7986 = vpop.f32.mrb[0].mxu0
    %7987 = vdwg.mxu0
    %v7989 = vsel %vm191, %v2585, 0
    %7991 = vmatprep.subr.mxu0 0.0
    %7992 = vmatpush1.msra.mxu0 %v7891
    %7993 = vmatprep.subr.mxu0 0.0
    %7994 = vmatpush1.msra.mxu0 %v7892
    %7995 = vmatprep.subr.mxu0 0.0
    %7996 = vmatpush1.msra.mxu0 %v7893
    %7997 = vmatprep.subr.mxu0 0.0
    %7998 = vmatpush1.msra.mxu0 %v7894
    %7999 = vmatprep.subr.mxu0 0.0
    %8000 = vmatpush1.msra.mxu0 %v7895
    %8001 = vmatprep.subr.mxu0 0.0
    %8002 = vmatpush1.msra.mxu0 %v7896
    %8003 = vmatprep.subr.mxu0 0.0
    %8004 = vmatpush1.msra.mxu0 %v7897
    %8005 = vmatprep.subr.mxu0 0.0
    %8006 = vmatpush1.msra.mxu0 %v7898
    %8007 = vmatprep.subr.mxu0 0.0
    %8008 = vmatpush1.msra.mxu0 0.0
    %8009 = vmatprep.subr.mxu0 0.0
    %8010 = vmatpush1.msra.mxu0 0.0
    %8011 = vmatprep.subr.mxu0 0.0
    %8012 = vmatpush1.msra.mxu0 0.0
    %8013 = vmatprep.subr.mxu0 0.0
    %8014 = vmatpush1.msra.mxu0 0.0
    %8015 = vmatprep.subr.mxu0 0.0
    %8016 = vmatpush1.msra.mxu0 0.0
    %8017 = vmatprep.subr.mxu0 0.0
    %8018 = vmatpush1.msra.mxu0 0.0
    %8019 = vmatprep.subr.mxu0 0.0
    %8020 = vmatpush1.msra.mxu0 0.0
    %8021 = vmatprep.subr.mxu0 0.0
    %8022 = vmatpush1.msra.mxu0 0.0
    %8023 = vmatprep.subr.mxu0 0.0
    %8024 = vmatpush1.msra.mxu0 0.0
    %8025 = vmatprep.subr.mxu0 0.0
    %8026 = vmatpush1.msra.mxu0 0.0
    %8027 = vmatprep.subr.mxu0 0.0
    %8028 = vmatpush1.msra.mxu0 0.0
    %8029 = vmatprep.subr.mxu0 0.0
    %8030 = vmatpush1.msra.mxu0 0.0
    %8031 = vmatprep.subr.mxu0 0.0
    %8032 = vmatpush1.msra.mxu0 0.0
    %8033 = vmatprep.subr.mxu0 0.0
    %8034 = vmatpush1.msra.mxu0 0.0
    %8035 = vmatprep.subr.mxu0 0.0
    %8036 = vmatpush1.msra.mxu0 0.0
    %8037 = vmatprep.subr.mxu0 0.0
    %8038 = vmatpush1.msra.mxu0 0.0
    %8039 = vmatprep.subr.mxu0 0.0
    %8040 = vmatpush1.msra.mxu0 0.0
    %8041 = vmatprep.subr.mxu0 0.0
    %8042 = vmatpush1.msra.mxu0 0.0
    %8043 = vmatprep.subr.mxu0 0.0
    %8044 = vmatpush1.msra.mxu0 0.0
    %8045 = vmatprep.subr.mxu0 0.0
    %8046 = vmatpush1.msra.mxu0 0.0
    %8047 = vmatprep.subr.mxu0 0.0
    %8048 = vmatpush1.msra.mxu0 0.0
    %8049 = vmatprep.subr.mxu0 0.0
    %8050 = vmatpush1.msra.mxu0 0.0
    %8051 = vmatprep.subr.mxu0 0.0
    %8052 = vmatpush1.msra.mxu0 0.0
    %8053 = vmatprep.subr.mxu0 0.0
    %8054 = vmatpush1.msra.mxu0 0.0
    %8055 = vmatprep.mubr.f32.mxu0 0.0
    %8056 = vmatmul.mubr.f32.gmra.mrb[0].mxu0 %v7989
    %v8057 = vpop.f32.mrb[0].mxu0
    %v8058 = vadd.f32 %v7985, %v8057
    %v8059 = vpop.f32.mrb[0].mxu0
    %8060 = vdwg.mxu0
    %v8062 = vsel %vm191, %v7886, 0
    %8064 = vmatprep.subr.mxu0 0.0
    %8065 = vmatpush1.msra.mxu0 %v7907
    %8066 = vmatprep.subr.mxu0 0.0
    %8067 = vmatpush1.msra.mxu0 %v7908
    %8068 = vmatprep.subr.mxu0 0.0
    %8069 = vmatpush1.msra.mxu0 %v7909
    %8070 = vmatprep.subr.mxu0 0.0
    %8071 = vmatpush1.msra.mxu0 %v7910
    %8072 = vmatprep.subr.mxu0 0.0
    %8073 = vmatpush1.msra.mxu0 %v7911
    %8074 = vmatprep.subr.mxu0 0.0
    %8075 = vmatpush1.msra.mxu0 %v7912
    %8076 = vmatprep.subr.mxu0 0.0
    %8077 = vmatpush1.msra.mxu0 %v7913
    %8078 = vmatprep.subr.mxu0 0.0
    %8079 = vmatpush1.msra.mxu0 %v7914
    %8080 = vmatprep.subr.mxu0 0.0
    %8081 = vmatpush1.msra.mxu0 0.0
    %8082 = vmatprep.subr.mxu0 0.0
    %8083 = vmatpush1.msra.mxu0 0.0
    %8084 = vmatprep.subr.mxu0 0.0
    %8085 = vmatpush1.msra.mxu0 0.0
    %8086 = vmatprep.subr.mxu0 0.0
    %8087 = vmatpush1.msra.mxu0 0.0
    %8088 = vmatprep.subr.mxu0 0.0
    %8089 = vmatpush1.msra.mxu0 0.0
    %8090 = vmatprep.subr.mxu0 0.0
    %8091 = vmatpush1.msra.mxu0 0.0
    %8092 = vmatprep.subr.mxu0 0.0
    %8093 = vmatpush1.msra.mxu0 0.0
    %8094 = vmatprep.subr.mxu0 0.0
    %8095 = vmatpush1.msra.mxu0 0.0
    %8096 = vmatprep.subr.mxu0 0.0
    %8097 = vmatpush1.msra.mxu0 0.0
    %8098 = vmatprep.subr.mxu0 0.0
    %8099 = vmatpush1.msra.mxu0 0.0
    %8100 = vmatprep.subr.mxu0 0.0
    %8101 = vmatpush1.msra.mxu0 0.0
    %8102 = vmatprep.subr.mxu0 0.0
    %8103 = vmatpush1.msra.mxu0 0.0
    %8104 = vmatprep.subr.mxu0 0.0
    %8105 = vmatpush1.msra.mxu0 0.0
    %8106 = vmatprep.subr.mxu0 0.0
    %8107 = vmatpush1.msra.mxu0 0.0
    %8108 = vmatprep.subr.mxu0 0.0
    %8109 = vmatpush1.msra.mxu0 0.0
    %8110 = vmatprep.subr.mxu0 0.0
    %8111 = vmatpush1.msra.mxu0 0.0
    %8112 = vmatprep.subr.mxu0 0.0
    %8113 = vmatpush1.msra.mxu0 0.0
    %8114 = vmatprep.subr.mxu0 0.0
    %8115 = vmatpush1.msra.mxu0 0.0
    %8116 = vmatprep.subr.mxu0 0.0
    %8117 = vmatpush1.msra.mxu0 0.0
    %8118 = vmatprep.subr.mxu0 0.0
    %8119 = vmatpush1.msra.mxu0 0.0
    %8120 = vmatprep.subr.mxu0 0.0
    %8121 = vmatpush1.msra.mxu0 0.0
    %8122 = vmatprep.subr.mxu0 0.0
    %8123 = vmatpush1.msra.mxu0 0.0
    %8124 = vmatprep.subr.mxu0 0.0
    %8125 = vmatpush1.msra.mxu0 0.0
    %8126 = vmatprep.subr.mxu0 0.0
    %8127 = vmatpush1.msra.mxu0 0.0
    %8128 = vmatprep.mubr.f32.mxu0 0.0
    %8129 = vmatmul.mubr.f32.gmra.mrb[0].mxu0 %v8062
    %v8130 = vpop.f32.mrb[0].mxu0
    %v8131 = vadd.f32 0.0, %v8130
    %v8132 = vpop.f32.mrb[0].mxu0
    %8133 = vdwg.mxu0
    %v8134 = vadd.f32 %v8058, %v8131
    %vm8135 = vcmask 39936
    %8136 = vst.msk [vmem:[#allocation2] sm:$0xff] %vm8135, %v8134
    // Predicated region
    $region30: #{spec2hrd_forward.1} parent=1 // pred_check
      _
    $region31: #{spec2hrd_forward.1} parent=1 // pred_check_branch
      %8138 = sbr.rel (0) target = $region33
    $region32: #{spec2hrd_forward.1} parent=1 // pred_region
      %s8140 = ssub.s32 128, 128
      %8141 = vsyncadd [#allocation3], %s8140
      %s8143 = sshll.u32 [#allocation2], 4
      %s8144 = int_to_ptr.vmem [resolvable:$true] %s8143
      %8146 = dma.vmem_to_hbm [thread:$0]  %s8144, 128, %s7, [#allocation3]
    $region33: #{spec2hrd_forward.1} parent=1 // pred_fallthru
      _
    // Predicated region
    $region34: #{spec2hrd_forward.1} parent=1 // pred_check
      _
    $region35: #{spec2hrd_forward.1} parent=1 // pred_check_branch
      %8148 = sbr.rel (0) target = $region37
    $region36: #{spec2hrd_forward.1} parent=1 // pred_region
      %8149 = dma.done [#allocation3], 128
    $region37: #{spec2hrd_forward.1} parent=1 // pred_fallthru
      _
    %8150 = vsyncpa [#allocation3], 1

</llo_original>
